<compile_context>
chip_gen: v7x
topology: tpu7x:2x2x1
jax: 0.10.0
libtpu: 0.0.40
codegen_flags: <defaults>
</compile_context>

<pallas_src>
import jax
import jax.numpy as jnp
from jax.experimental import pallas as pl
from jax.experimental.pallas import tpu as pltpu


# ---------------------------------------------------------------------------
# In-kernel helpers
# ---------------------------------------------------------------------------
def _pool2x2(v):
    """2x2 max-pool of an NHWC value held in VMEM/vregs (H, W even)."""
    nb, h, w, c = v.shape
    v = jnp.max(v.reshape(nb, h, w // 2, 2, c), axis=3)          # pool along W
    v = v.reshape(nb, h // 2, 2, w // 2, c)                      # pool along H
    return jnp.maximum(v[:, :, 0, :, :], v[:, :, 1, :, :])


# ---------------------------------------------------------------------------
# The fused kernel (one grid step == one batch block)
# ---------------------------------------------------------------------------
def _fused_kernel(x_ref, w1_ref, b1_ref, w2_ref, b2_ref, wt1_ref, bt1_ref,
                  w2big_ref, bt2_ref, o_ref, xb_ref, ppad_ref):
    f32 = jnp.float32
    nb, H, W, cin = x_ref.shape
    c1 = w1_ref.shape[1]                    # encoder conv1 out channels
    c2 = w2_ref.shape[2]                    # encoder conv2 out channels
    cf = bt2_ref.shape[1] // 16             # final out channels (= in_chans)
    H2, W2 = H // 2, W // 2
    H4, W4 = H // 4, W // 4
    m2 = nb * H2 * W2
    m4 = nb * H4 * W4

    # ---- conv1: 3x3 (cin -> c1), pad 1, ReLU ------------------------------
    # Broadcast the (tiny-channel) input across the c1 lane dim ONCE, then the
    # 9 taps are plain shifted VPU multiply-adds with lane-constant weights.
    w1all = w1_ref[...]                                          # (9*cin, c1)
    a1 = jnp.zeros((nb, H, W, c1), f32) + b1_ref[...]            # bias init
    for ci in range(cin):
        xb_ref[...] = jnp.zeros(xb_ref.shape, f32)               # zero pad border
        xb_ref[:, 1:H + 1, 1:W + 1, :] = jnp.broadcast_to(
            x_ref[:, :, :, ci:ci + 1].astype(f32), (nb, H, W, c1))
        for t in range(9):
            dy, dx = t // 3, t % 3
            a1 = a1 + xb_ref[:, dy:dy + H, dx:dx + W, :] * w1all[t * cin + ci]
    a1 = jnp.maximum(a1, 0.0)

    # ---- maxpool 2x2 (fused epilogue) --------------------------------------
    p1 = _pool2x2(a1)                                            # (nb,H2,W2,c1)

    # ---- conv2: 3x3 (c1 -> c2), pad 1, ReLU --------------------------------
    # Horizontal taps folded into K: operand (m2, 3*c1), 3 matmuls (one per dy).
    ppad_ref[...] = jnp.zeros(ppad_ref.shape, f32)
    ppad_ref[:, 1:H2 + 1, 1:W2 + 1, :] = p1
    xk = jnp.concatenate(
        [ppad_ref[:, :, dx:dx + W2, :] for dx in range(3)], axis=-1
    )                                                            # (nb,H2+2,W2,3*c1)
    acc2 = jnp.zeros((m2, c2), f32) + b2_ref[...]
    for dy in range(3):
        acc2 = acc2 + jnp.dot(xk[:, dy:dy + H2].reshape(m2, 3 * c1),
                              w2_ref[dy], preferred_element_type=f32)
    a2 = jnp.maximum(acc2, 0.0).reshape(nb, H2, W2, c2)

    # ---- maxpool 2x2 (fused epilogue) --------------------------------------
    p2 = _pool2x2(a2)                                            # (nb,H4,W4,c2)
    p2f = p2.reshape(m4, c2)

    # ---- convT1: 2x2 stride 2 (c2 -> c1), ReLU -- ONE matmul, N = 4*c1 -----
    # Result columns are [(dy1,dx1) tap, co] -- parity-packed, no scatter.
    r1 = jnp.dot(p2f, wt1_ref[...], preferred_element_type=f32) + bt1_ref[...]
    r1 = jnp.maximum(r1, 0.0)                                    # (m4, 4*c1)

    # ---- convT2: 2x2 stride 2 (c1 -> cf), Sigmoid -- ONE matmul, K = 4*c1 --
    # Block-diagonal packed weight keeps each (dy1,dx1) group separate; output
    # columns are [(dy1,dx1), (dy2,dx2), co].
    ys = jnp.dot(r1, w2big_ref[...], preferred_element_type=f32) + bt2_ref[...]
    ys = jax.nn.sigmoid(ys)                                      # (m4, 16*cf)

    o_ref[...] = ys.reshape(nb, H4 * W4, 16 * cf)


# ---------------------------------------------------------------------------
# Host-side: one-time weight packing + thin forward wrapper
# ---------------------------------------------------------------------------
def pack_params(params):
    """Repack PyTorch-layout weights into kernel-friendly layouts (do once)."""
    f32 = jnp.float32
    w1, b1 = params["w1"], params["b1"]        # (c1, cin, 3, 3), (c1,)
    w2, b2 = params["w2"], params["b2"]        # (c2, c1, 3, 3), (c2,)
    wt1, bt1 = params["wt1"], params["bt1"]    # (c2, c1, 2, 2)  ConvT: (Cin,Cout,kH,kW)
    wt2, bt2 = params["wt2"], params["bt2"]    # (c1, cf, 2, 2)
    c1, cin = w1.shape[0], w1.shape[1]
    c2 = w2.shape[0]
    cf = wt2.shape[1]

    # conv1: rows = (dy,dx,ci), cols = co
    w1p = jnp.transpose(w1, (2, 3, 1, 0)).reshape(9 * cin, c1).astype(f32)
    # conv2: [dy][dx*c1+ci, co]
    w2c = jnp.transpose(w2, (2, 3, 1, 0)).reshape(3, 3 * c1, c2).astype(f32)
    # convT1: [ci, (dy1,dx1)*c1 + co]
    wt1c = jnp.transpose(wt1, (0, 2, 3, 1)).reshape(c2, 4 * c1).astype(f32)
    # convT2: block-diagonal over the (dy1,dx1) groups; block = [ci, (dy2,dx2)*cf + co]
    w2t = jnp.transpose(wt2, (0, 2, 3, 1)).reshape(c1, 4 * cf).astype(f32)
    w2big = jnp.kron(jnp.eye(4, dtype=f32), w2t)                 # (4*c1, 16*cf)

    return {
        "w1p": w1p, "b1": b1.reshape(1, c1).astype(f32),
        "w2c": w2c, "b2": b2.reshape(1, c2).astype(f32),
        "wt1c": wt1c, "bt1c": jnp.tile(bt1.reshape(1, c1), (1, 4)).astype(f32),
        "w2big": w2big, "bt2c": jnp.tile(bt2.reshape(1, cf), (1, 16)).astype(f32),
    }


def cnn_encoder_decoder_forward(x_nchw, packed, *, num_blocks=1):
    """num_blocks=1 for v5e/v6e (single TC); num_blocks=2 on v7x (2 TCs)."""
    n, cin, H, W = x_nchw.shape
    c1 = packed["b1"].shape[1]
    c2 = packed["b2"].shape[1]
    cf = packed["bt2c"].shape[1] // 16
    assert H % 4 == 0 and W % 4 == 0, "spatial dims must be divisible by 4"
    assert n % num_blocks == 0
    NB = n // num_blocks
    H2, W2, H4, W4 = H // 2, W // 2, H // 4, W // 4

    if cin == 1:
        x_nhwc = x_nchw.reshape(n, H, W, 1)              # pure metadata reshape
    else:
        x_nhwc = jnp.transpose(x_nchw, (0, 2, 3, 1))

    y = pl.pallas_call(
        _fused_kernel,
        out_shape=jax.ShapeDtypeStruct((n, H4 * W4, 16 * cf), jnp.float32),
        grid=(num_blocks,),
        in_specs=[
            pl.BlockSpec((NB, H, W, cin), lambda b: (b, 0, 0, 0)),     # x
            pl.BlockSpec((9 * cin, c1), lambda b: (0, 0)),             # w1p
            pl.BlockSpec((1, c1), lambda b: (0, 0)),                   # b1
            pl.BlockSpec((3, 3 * c1, c2), lambda b: (0, 0, 0)),        # w2c
            pl.BlockSpec((1, c2), lambda b: (0, 0)),                   # b2
            pl.BlockSpec((c2, 4 * c1), lambda b: (0, 0)),              # wt1c
            pl.BlockSpec((1, 4 * c1), lambda b: (0, 0)),               # bt1c
            pl.BlockSpec((4 * c1, 16 * cf), lambda b: (0, 0)),         # w2big
            pl.BlockSpec((1, 16 * cf), lambda b: (0, 0)),              # bt2c
        ],
        out_specs=pl.BlockSpec((NB, H4 * W4, 16 * cf), lambda b: (b, 0, 0)),
        scratch_shapes=[
            pltpu.VMEM((NB, H + 2, W + 2, c1), jnp.float32),           # padded bcast x
            pltpu.VMEM((NB, H2 + 2, W2 + 2, c1), jnp.float32),         # padded pool1
        ],
        compiler_params=pltpu.CompilerParams(
            dimension_semantics=("parallel",)),
    )(x_nhwc, packed["w1p"], packed["b1"], packed["w2c"], packed["b2"],
      packed["wt1c"], packed["bt1c"], packed["w2big"], packed["bt2c"])

    # Depth-to-space of the parity-packed result: ~2 KB of layout plumbing in
    # the wrapper (metadata reshape + tiny transpose), negligible HBM traffic.
    y = y.reshape(n, H4, W4, 2, 2, 2, 2, cf)        # (n, h4, w4, dy1, dx1, dy2, dx2, co)
    y = jnp.transpose(y, (0, 7, 1, 3, 5, 2, 4, 6))  # (n, co, h4, dy1, dy2, w4, dx1, dx2)
    return y.reshape(n, cf, H, W)


# ---------------------------------------------------------------------------
# Parameters (PyTorch-equivalent init) and a pure-JAX reference for checking
# ---------------------------------------------------------------------------
def init_params(key, in_chans=1, out_chans=64):
    ks = jax.random.split(key, 8)

    def uinit(k, shape, fan_in):
        bound = 1.0 / jnp.sqrt(jnp.float32(fan_in))
        return jax.random.uniform(k, shape, jnp.float32, -bound, bound)

    c1, c2 = out_chans, out_chans * 2
    return {
        "w1": uinit(ks[0], (c1, in_chans, 3, 3), in_chans * 9),
        "b1": uinit(ks[1], (c1,), in_chans * 9),
        "w2": uinit(ks[2], (c2, c1, 3, 3), c1 * 9),
        "b2": uinit(ks[3], (c2,), c1 * 9),
        "wt1": uinit(ks[4], (c2, c1, 2, 2), c1 * 4),
        "bt1": uinit(ks[5], (c1,), c1 * 4),
        "wt2": uinit(ks[6], (c1, in_chans, 2, 2), in_chans * 4),
        "bt2": uinit(ks[7], (in_chans,), in_chans * 4),
    }


def reference_forward(x_nchw, params):
    """Pure-JAX (XLA) reference of the PyTorch module, for numerical checking."""
    hp = jax.lax.Precision.HIGHEST
    x = jnp.transpose(x_nchw, (0, 2, 3, 1)).astype(jnp.float32)

    def conv3x3_relu(x, w, b):
        n, h, wd, _ = x.shape
        xp = jnp.pad(x, ((0, 0), (1, 1), (1, 1), (0, 0)))
        acc = jnp.zeros((n, h, wd, w.shape[0]), jnp.float32) + b
        for dy in range(3):
            for dx in range(3):
                acc = acc + jnp.einsum("nhwc,oc->nhwo",
                                       xp[:, dy:dy + h, dx:dx + wd, :],
                                       w[:, :, dy, dx], precision=hp)
        return jax.nn.relu(acc)

    def pool(x):
        n, h, wd, c = x.shape
        return jnp.max(x.reshape(n, h // 2, 2, wd // 2, 2, c), axis=(2, 4))

    def convT2x2_s2(x, w, b, act):
        y = jnp.einsum("nhwi,iojk->nhjwko", x, w, precision=hp)   # (n,h,dy,w,dx,o)
        n, h, _, wd, _, co = y.shape
        return act(y.reshape(n, 2 * h, 2 * wd, co) + b)

    x = conv3x3_relu(x, params["w1"], params["b1"]); x = pool(x)
    x = conv3x3_relu(x, params["w2"], params["b2"]); x = pool(x)
    x = convT2x2_s2(x, params["wt1"], params["bt1"], jax.nn.relu)
    x = convT2x2_s2(x, params["wt2"], params["bt2"], jax.nn.sigmoid)
    return jnp.transpose(x, (0, 3, 1, 2))


if __name__ == "__main__":
    key = jax.random.PRNGKey(0)
    kx, kp = jax.random.split(key)

    # shapes consistent with the module defaults: batch=2, in_chans=1, 16x16
    x = jax.random.normal(kx, (2, 1, 16, 16), jnp.float32)
    params = init_params(kp, in_chans=1, out_chans=64)

    packed = pack_params(params)                  # one-time packing, outside the jit
    fwd = jax.jit(cnn_encoder_decoder_forward)
    out = fwd(x, packed)
    jax.block_until_ready(out)

    assert out.shape == (2, 1, 16, 16), out.shape
    assert out.dtype == jnp.float32
    assert bool(jnp.all(out >= 0.0)) and bool(jnp.all(out <= 1.0))

    ref = reference_forward(x, params)
    err = float(jnp.max(jnp.abs(out - ref)))
    assert err < 2e-3, f"max abs error vs reference: {err}"

    print("KERNEL_OK")
</pallas_src>

<mosaic_0001>
module attributes {stable_mosaic.version = 11 : i64} {
  func.func @_fused_kernel(%arg0: i32, %arg1: memref<2x16x16x1xf32, #tpu.memory_space<vmem>>, %arg2: memref<9x64xf32, #tpu.memory_space<vmem>>, %arg3: memref<1x64xf32, #tpu.memory_space<vmem>>, %arg4: memref<3x192x128xf32, #tpu.memory_space<vmem>>, %arg5: memref<1x128xf32, #tpu.memory_space<vmem>>, %arg6: memref<128x256xf32, #tpu.memory_space<vmem>>, %arg7: memref<1x256xf32, #tpu.memory_space<vmem>>, %arg8: memref<256x16xf32, #tpu.memory_space<vmem>>, %arg9: memref<1x16xf32, #tpu.memory_space<vmem>>, %arg10: memref<2x16x16xf32, #tpu.memory_space<vmem>>, %arg11: memref<2x18x18x64xf32, #tpu.memory_space<vmem>>, %arg12: memref<2x10x10x64xf32, #tpu.memory_space<vmem>>) attributes {dimension_semantics = [#tpu.dimension_semantics<parallel>], iteration_bounds = array<i64: 1>, scalar_prefetch = 0 : i64, scratch_operands = 2 : i64, tpu.core_type = #tpu.core_type<tc>, window_params = [{transform_indices = @transform_0, window_bounds = array<i64: 2, 16, 16, 1>}, {pipeline_mode = #tpu.pipeline_mode<synchronous>, transform_indices = @transform_1, window_bounds = array<i64: 9, 64>}, {pipeline_mode = #tpu.pipeline_mode<synchronous>, transform_indices = @transform_2, window_bounds = array<i64: 1, 64>}, {pipeline_mode = #tpu.pipeline_mode<synchronous>, transform_indices = @transform_3, window_bounds = array<i64: 3, 192, 128>}, {pipeline_mode = #tpu.pipeline_mode<synchronous>, transform_indices = @transform_4, window_bounds = array<i64: 1, 128>}, {pipeline_mode = #tpu.pipeline_mode<synchronous>, transform_indices = @transform_5, window_bounds = array<i64: 128, 256>}, {pipeline_mode = #tpu.pipeline_mode<synchronous>, transform_indices = @transform_6, window_bounds = array<i64: 1, 256>}, {pipeline_mode = #tpu.pipeline_mode<synchronous>, transform_indices = @transform_7, window_bounds = array<i64: 256, 16>}, {pipeline_mode = #tpu.pipeline_mode<synchronous>, transform_indices = @transform_8, window_bounds = array<i64: 1, 16>}, {transform_indices = @transform_9, window_bounds = array<i64: 2, 16, 16>}]} {
    %c0 = arith.constant 0 : index
    %c0_0 = arith.constant 0 : index
    %0 = vector.load %arg2[%c0, %c0_0] : memref<9x64xf32, #tpu.memory_space<vmem>>, vector<9x64xf32>
    %cst = arith.constant 0.000000e+00 : f32
    %1 = vector.broadcast %cst : f32 to vector<2x16x16x64xf32>
    %c0_1 = arith.constant 0 : index
    %c0_2 = arith.constant 0 : index
    %2 = vector.load %arg3[%c0_1, %c0_2] : memref<1x64xf32, #tpu.memory_space<vmem>>, vector<1x64xf32>
    %3 = vector.shape_cast %2 : vector<1x64xf32> to vector<1x1x1x64xf32>
    %4 = vector.broadcast %3 : vector<1x1x1x64xf32> to vector<2x16x16x64xf32>
    %5 = arith.addf %1, %4 : vector<2x16x16x64xf32>
    %cst_3 = arith.constant 0.000000e+00 : f32
    %6 = vector.broadcast %cst_3 : f32 to vector<2x18x18x64xf32>
    %c0_4 = arith.constant 0 : index
    %c0_5 = arith.constant 0 : index
    %c0_6 = arith.constant 0 : index
    %c0_7 = arith.constant 0 : index
    %7 = vector.load %arg11[%c0_4, %c0_5, %c0_6, %c0_7] : memref<2x18x18x64xf32, #tpu.memory_space<vmem>>, vector<2x18x18x64xf32>
    tpu.vector_store %arg11[%c0_4, %c0_5, %c0_6, %c0_7], %6 {strides = array<i32>} : memref<2x18x18x64xf32, #tpu.memory_space<vmem>>, vector<2x18x18x64xf32>,
    %c0_8 = arith.constant 0 : index
    %c0_9 = arith.constant 0 : index
    %c0_10 = arith.constant 0 : index
    %c0_11 = arith.constant 0 : index
    %8 = vector.load %arg1[%c0_8, %c0_9, %c0_10, %c0_11] : memref<2x16x16x1xf32, #tpu.memory_space<vmem>>, vector<2x16x16x1xf32>
    %9 = vector.shape_cast %8 : vector<2x16x16x1xf32> to vector<2x16x16x1xf32>
    %10 = vector.broadcast %9 : vector<2x16x16x1xf32> to vector<2x16x16x64xf32>
    %c0_12 = arith.constant 0 : index
    %c1 = arith.constant 1 : index
    %c1_13 = arith.constant 1 : index
    %c0_14 = arith.constant 0 : index
    %11 = vector.load %arg11[%c0_12, %c1, %c1_13, %c0_14] : memref<2x18x18x64xf32, #tpu.memory_space<vmem>>, vector<2x16x16x64xf32>
    tpu.vector_store %arg11[%c0_12, %c1, %c1_13, %c0_14], %10 {strides = array<i32>} : memref<2x18x18x64xf32, #tpu.memory_space<vmem>>, vector<2x16x16x64xf32>,
    %c0_15 = arith.constant 0 : index
    %c0_16 = arith.constant 0 : index
    %c0_17 = arith.constant 0 : index
    %c0_18 = arith.constant 0 : index
    %12 = vector.load %arg11[%c0_15, %c0_16, %c0_17, %c0_18] : memref<2x18x18x64xf32, #tpu.memory_space<vmem>>, vector<2x16x16x64xf32>
    %13 = vector.extract_strided_slice %0 {offsets = [0, 0], sizes = [1, 64], strides = [1, 1]} : vector<9x64xf32> to vector<1x64xf32>
    %14 = vector.shape_cast %13 : vector<1x64xf32> to vector<64xf32>
    %15 = vector.shape_cast %14 : vector<64xf32> to vector<1x1x1x64xf32>
    %16 = vector.broadcast %15 : vector<1x1x1x64xf32> to vector<2x16x16x64xf32>
    %17 = arith.mulf %12, %16 : vector<2x16x16x64xf32>
    %18 = arith.addf %5, %17 : vector<2x16x16x64xf32>
    %c0_19 = arith.constant 0 : index
    %c0_20 = arith.constant 0 : index
    %c1_21 = arith.constant 1 : index
    %c0_22 = arith.constant 0 : index
    %19 = vector.load %arg11[%c0_19, %c0_20, %c1_21, %c0_22] : memref<2x18x18x64xf32, #tpu.memory_space<vmem>>, vector<2x16x16x64xf32>
    %20 = vector.extract_strided_slice %0 {offsets = [1, 0], sizes = [1, 64], strides = [1, 1]} : vector<9x64xf32> to vector<1x64xf32>
    %21 = vector.shape_cast %20 : vector<1x64xf32> to vector<64xf32>
    %22 = vector.shape_cast %21 : vector<64xf32> to vector<1x1x1x64xf32>
    %23 = vector.broadcast %22 : vector<1x1x1x64xf32> to vector<2x16x16x64xf32>
    %24 = arith.mulf %19, %23 : vector<2x16x16x64xf32>
    %25 = arith.addf %18, %24 : vector<2x16x16x64xf32>
    %c0_23 = arith.constant 0 : index
    %c0_24 = arith.constant 0 : index
    %c2 = arith.constant 2 : index
    %c0_25 = arith.constant 0 : index
    %26 = vector.load %arg11[%c0_23, %c0_24, %c2, %c0_25] : memref<2x18x18x64xf32, #tpu.memory_space<vmem>>, vector<2x16x16x64xf32>
    %27 = vector.extract_strided_slice %0 {offsets = [2, 0], sizes = [1, 64], strides = [1, 1]} : vector<9x64xf32> to vector<1x64xf32>
    %28 = vector.shape_cast %27 : vector<1x64xf32> to vector<64xf32>
    %29 = vector.shape_cast %28 : vector<64xf32> to vector<1x1x1x64xf32>
    %30 = vector.broadcast %29 : vector<1x1x1x64xf32> to vector<2x16x16x64xf32>
    %31 = arith.mulf %26, %30 : vector<2x16x16x64xf32>
    %32 = arith.addf %25, %31 : vector<2x16x16x64xf32>
    %c0_26 = arith.constant 0 : index
    %c1_27 = arith.constant 1 : index
    %c0_28 = arith.constant 0 : index
    %c0_29 = arith.constant 0 : index
    %33 = vector.load %arg11[%c0_26, %c1_27, %c0_28, %c0_29] : memref<2x18x18x64xf32, #tpu.memory_space<vmem>>, vector<2x16x16x64xf32>
    %34 = vector.extract_strided_slice %0 {offsets = [3, 0], sizes = [1, 64], strides = [1, 1]} : vector<9x64xf32> to vector<1x64xf32>
    %35 = vector.shape_cast %34 : vector<1x64xf32> to vector<64xf32>
    %36 = vector.shape_cast %35 : vector<64xf32> to vector<1x1x1x64xf32>
    %37 = vector.broadcast %36 : vector<1x1x1x64xf32> to vector<2x16x16x64xf32>
    %38 = arith.mulf %33, %37 : vector<2x16x16x64xf32>
    %39 = arith.addf %32, %38 : vector<2x16x16x64xf32>
    %c0_30 = arith.constant 0 : index
    %c1_31 = arith.constant 1 : index
    %c1_32 = arith.constant 1 : index
    %c0_33 = arith.constant 0 : index
    %40 = vector.load %arg11[%c0_30, %c1_31, %c1_32, %c0_33] : memref<2x18x18x64xf32, #tpu.memory_space<vmem>>, vector<2x16x16x64xf32>
    %41 = vector.extract_strided_slice %0 {offsets = [4, 0], sizes = [1, 64], strides = [1, 1]} : vector<9x64xf32> to vector<1x64xf32>
    %42 = vector.shape_cast %41 : vector<1x64xf32> to vector<64xf32>
    %43 = vector.shape_cast %42 : vector<64xf32> to vector<1x1x1x64xf32>
    %44 = vector.broadcast %43 : vector<1x1x1x64xf32> to vector<2x16x16x64xf32>
    %45 = arith.mulf %40, %44 : vector<2x16x16x64xf32>
    %46 = arith.addf %39, %45 : vector<2x16x16x64xf32>
    %c0_34 = arith.constant 0 : index
    %c1_35 = arith.constant 1 : index
    %c2_36 = arith.constant 2 : index
    %c0_37 = arith.constant 0 : index
    %47 = vector.load %arg11[%c0_34, %c1_35, %c2_36, %c0_37] : memref<2x18x18x64xf32, #tpu.memory_space<vmem>>, vector<2x16x16x64xf32>
    %48 = vector.extract_strided_slice %0 {offsets = [5, 0], sizes = [1, 64], strides = [1, 1]} : vector<9x64xf32> to vector<1x64xf32>
    %49 = vector.shape_cast %48 : vector<1x64xf32> to vector<64xf32>
    %50 = vector.shape_cast %49 : vector<64xf32> to vector<1x1x1x64xf32>
    %51 = vector.broadcast %50 : vector<1x1x1x64xf32> to vector<2x16x16x64xf32>
    %52 = arith.mulf %47, %51 : vector<2x16x16x64xf32>
    %53 = arith.addf %46, %52 : vector<2x16x16x64xf32>
    %c0_38 = arith.constant 0 : index
    %c2_39 = arith.constant 2 : index
    %c0_40 = arith.constant 0 : index
    %c0_41 = arith.constant 0 : index
    %54 = vector.load %arg11[%c0_38, %c2_39, %c0_40, %c0_41] : memref<2x18x18x64xf32, #tpu.memory_space<vmem>>, vector<2x16x16x64xf32>
    %55 = vector.extract_strided_slice %0 {offsets = [6, 0], sizes = [1, 64], strides = [1, 1]} : vector<9x64xf32> to vector<1x64xf32>
    %56 = vector.shape_cast %55 : vector<1x64xf32> to vector<64xf32>
    %57 = vector.shape_cast %56 : vector<64xf32> to vector<1x1x1x64xf32>
    %58 = vector.broadcast %57 : vector<1x1x1x64xf32> to vector<2x16x16x64xf32>
    %59 = arith.mulf %54, %58 : vector<2x16x16x64xf32>
    %60 = arith.addf %53, %59 : vector<2x16x16x64xf32>
    %c0_42 = arith.constant 0 : index
    %c2_43 = arith.constant 2 : index
    %c1_44 = arith.constant 1 : index
    %c0_45 = arith.constant 0 : index
    %61 = vector.load %arg11[%c0_42, %c2_43, %c1_44, %c0_45] : memref<2x18x18x64xf32, #tpu.memory_space<vmem>>, vector<2x16x16x64xf32>
    %62 = vector.extract_strided_slice %0 {offsets = [7, 0], sizes = [1, 64], strides = [1, 1]} : vector<9x64xf32> to vector<1x64xf32>
    %63 = vector.shape_cast %62 : vector<1x64xf32> to vector<64xf32>
    %64 = vector.shape_cast %63 : vector<64xf32> to vector<1x1x1x64xf32>
    %65 = vector.broadcast %64 : vector<1x1x1x64xf32> to vector<2x16x16x64xf32>
    %66 = arith.mulf %61, %65 : vector<2x16x16x64xf32>
    %67 = arith.addf %60, %66 : vector<2x16x16x64xf32>
    %c0_46 = arith.constant 0 : index
    %c2_47 = arith.constant 2 : index
    %c2_48 = arith.constant 2 : index
    %c0_49 = arith.constant 0 : index
    %68 = vector.load %arg11[%c0_46, %c2_47, %c2_48, %c0_49] : memref<2x18x18x64xf32, #tpu.memory_space<vmem>>, vector<2x16x16x64xf32>
    %69 = vector.extract_strided_slice %0 {offsets = [8, 0], sizes = [1, 64], strides = [1, 1]} : vector<9x64xf32> to vector<1x64xf32>
    %70 = vector.shape_cast %69 : vector<1x64xf32> to vector<64xf32>
    %71 = vector.shape_cast %70 : vector<64xf32> to vector<1x1x1x64xf32>
    %72 = vector.broadcast %71 : vector<1x1x1x64xf32> to vector<2x16x16x64xf32>
    %73 = arith.mulf %68, %72 : vector<2x16x16x64xf32>
    %74 = arith.addf %67, %73 : vector<2x16x16x64xf32>
    %cst_50 = arith.constant 0.000000e+00 : f32
    %75 = vector.broadcast %cst_50 : f32 to vector<2x16x16x64xf32>
    %76 = arith.maximumf %74, %75 : vector<2x16x16x64xf32>
    %77 = vector.shape_cast %76 : vector<2x16x16x64xf32> to vector<2x16x8x2x64xf32>
    %cst_51 = arith.constant dense<0xFF800000> : vector<2x16x8x64xf32>
    %78 = vector.multi_reduction <maximumf>, %77, %cst_51 [3] : vector<2x16x8x2x64xf32> to vector<2x16x8x64xf32>
    %79 = vector.shape_cast %78 : vector<2x16x8x64xf32> to vector<2x8x2x8x64xf32>
    %80 = vector.extract_strided_slice %79 {offsets = [0, 0, 0, 0, 0], sizes = [2, 8, 1, 8, 64], strides = [1, 1, 1, 1, 1]} : vector<2x8x2x8x64xf32> to vector<2x8x1x8x64xf32>
    %81 = vector.shape_cast %80 : vector<2x8x1x8x64xf32> to vector<2x8x8x64xf32>
    %82 = vector.extract_strided_slice %79 {offsets = [0, 0, 1, 0, 0], sizes = [2, 8, 1, 8, 64], strides = [1, 1, 1, 1, 1]} : vector<2x8x2x8x64xf32> to vector<2x8x1x8x64xf32>
    %83 = vector.shape_cast %82 : vector<2x8x1x8x64xf32> to vector<2x8x8x64xf32>
    %84 = arith.maximumf %81, %83 : vector<2x8x8x64xf32>
    %cst_52 = arith.constant 0.000000e+00 : f32
    %85 = vector.broadcast %cst_52 : f32 to vector<2x10x10x64xf32>
    %c0_53 = arith.constant 0 : index
    %c0_54 = arith.constant 0 : index
    %c0_55 = arith.constant 0 : index
    %c0_56 = arith.constant 0 : index
    %86 = vector.load %arg12[%c0_53, %c0_54, %c0_55, %c0_56] : memref<2x10x10x64xf32, #tpu.memory_space<vmem>>, vector<2x10x10x64xf32>
    tpu.vector_store %arg12[%c0_53, %c0_54, %c0_55, %c0_56], %85 {strides = array<i32>} : memref<2x10x10x64xf32, #tpu.memory_space<vmem>>, vector<2x10x10x64xf32>,
    %c0_57 = arith.constant 0 : index
    %c1_58 = arith.constant 1 : index
    %c1_59 = arith.constant 1 : index
    %c0_60 = arith.constant 0 : index
    %87 = vector.load %arg12[%c0_57, %c1_58, %c1_59, %c0_60] : memref<2x10x10x64xf32, #tpu.memory_space<vmem>>, vector<2x8x8x64xf32>
    tpu.vector_store %arg12[%c0_57, %c1_58, %c1_59, %c0_60], %84 {strides = array<i32>} : memref<2x10x10x64xf32, #tpu.memory_space<vmem>>, vector<2x8x8x64xf32>,
    %c0_61 = arith.constant 0 : index
    %c0_62 = arith.constant 0 : index
    %c0_63 = arith.constant 0 : index
    %c0_64 = arith.constant 0 : index
    %88 = vector.load %arg12[%c0_61, %c0_62, %c0_63, %c0_64] : memref<2x10x10x64xf32, #tpu.memory_space<vmem>>, vector<2x10x8x64xf32>
    %c0_65 = arith.constant 0 : index
    %c0_66 = arith.constant 0 : index
    %c1_67 = arith.constant 1 : index
    %c0_68 = arith.constant 0 : index
    %89 = vector.load %arg12[%c0_65, %c0_66, %c1_67, %c0_68] : memref<2x10x10x64xf32, #tpu.memory_space<vmem>>, vector<2x10x8x64xf32>
    %c0_69 = arith.constant 0 : index
    %c0_70 = arith.constant 0 : index
    %c2_71 = arith.constant 2 : index
    %c0_72 = arith.constant 0 : index
    %90 = vector.load %arg12[%c0_69, %c0_70, %c2_71, %c0_72] : memref<2x10x10x64xf32, #tpu.memory_space<vmem>>, vector<2x10x8x64xf32>
    %91 = tpu.concatenate %88, %89, %90 in 3 : vector<2x10x8x64xf32>, vector<2x10x8x64xf32>, vector<2x10x8x64xf32> -> vector<2x10x8x192xf32>
    %cst_73 = arith.constant 0.000000e+00 : f32
    %92 = vector.broadcast %cst_73 : f32 to vector<128x128xf32>
    %c0_74 = arith.constant 0 : index
    %c0_75 = arith.constant 0 : index
    %93 = vector.load %arg5[%c0_74, %c0_75] : memref<1x128xf32, #tpu.memory_space<vmem>>, vector<1x128xf32>
    %94 = vector.broadcast %93 : vector<1x128xf32> to vector<128x128xf32>
    %95 = arith.addf %92, %94 : vector<128x128xf32>
    %96 = vector.extract_strided_slice %91 {offsets = [0, 0, 0, 0], sizes = [2, 8, 8, 192], strides = [1, 1, 1, 1]} : vector<2x10x8x192xf32> to vector<2x8x8x192xf32>
    %97 = vector.shape_cast %96 : vector<2x8x8x192xf32> to vector<128x192xf32>
    %c0_76 = arith.constant 0 : index
    %c0_77 = arith.constant 0 : index
    %c0_78 = arith.constant 0 : index
    %98 = vector.load %arg4[%c0_76, %c0_77, %c0_78] : memref<3x192x128xf32, #tpu.memory_space<vmem>>, vector<1x192x128xf32>
    %99 = vector.shape_cast %98 : vector<1x192x128xf32> to vector<192x128xf32>
    %cst_79 = arith.constant dense<0.000000e+00> : vector<128x128xf32>
    %100 = tpu.matmul %97, %99, %cst_79 {dimension_numbers = #tpu.dot_dimension_numbers<[1], [0], [0], [1], [0, 0, 1, 1], [], []>} : vector<128x192xf32>, vector<192x128xf32>, vector<128x128xf32> -> vector<128x128xf32>
    %101 = arith.addf %95, %100 : vector<128x128xf32>
    %102 = vector.extract_strided_slice %91 {offsets = [0, 1, 0, 0], sizes = [2, 8, 8, 192], strides = [1, 1, 1, 1]} : vector<2x10x8x192xf32> to vector<2x8x8x192xf32>
    %103 = vector.shape_cast %102 : vector<2x8x8x192xf32> to vector<128x192xf32>
    %c1_80 = arith.constant 1 : index
    %c0_81 = arith.constant 0 : index
    %c0_82 = arith.constant 0 : index
    %104 = vector.load %arg4[%c1_80, %c0_81, %c0_82] : memref<3x192x128xf32, #tpu.memory_space<vmem>>, vector<1x192x128xf32>
    %105 = vector.shape_cast %104 : vector<1x192x128xf32> to vector<192x128xf32>
    %cst_83 = arith.constant dense<0.000000e+00> : vector<128x128xf32>
    %106 = tpu.matmul %103, %105, %cst_83 {dimension_numbers = #tpu.dot_dimension_numbers<[1], [0], [0], [1], [0, 0, 1, 1], [], []>} : vector<128x192xf32>, vector<192x128xf32>, vector<128x128xf32> -> vector<128x128xf32>
    %107 = arith.addf %101, %106 : vector<128x128xf32>
    %108 = vector.extract_strided_slice %91 {offsets = [0, 2, 0, 0], sizes = [2, 8, 8, 192], strides = [1, 1, 1, 1]} : vector<2x10x8x192xf32> to vector<2x8x8x192xf32>
    %109 = vector.shape_cast %108 : vector<2x8x8x192xf32> to vector<128x192xf32>
    %c2_84 = arith.constant 2 : index
    %c0_85 = arith.constant 0 : index
    %c0_86 = arith.constant 0 : index
    %110 = vector.load %arg4[%c2_84, %c0_85, %c0_86] : memref<3x192x128xf32, #tpu.memory_space<vmem>>, vector<1x192x128xf32>
    %111 = vector.shape_cast %110 : vector<1x192x128xf32> to vector<192x128xf32>
    %cst_87 = arith.constant dense<0.000000e+00> : vector<128x128xf32>
    %112 = tpu.matmul %109, %111, %cst_87 {dimension_numbers = #tpu.dot_dimension_numbers<[1], [0], [0], [1], [0, 0, 1, 1], [], []>} : vector<128x192xf32>, vector<192x128xf32>, vector<128x128xf32> -> vector<128x128xf32>
    %113 = arith.addf %107, %112 : vector<128x128xf32>
    %cst_88 = arith.constant 0.000000e+00 : f32
    %114 = vector.broadcast %cst_88 : f32 to vector<128x128xf32>
    %115 = arith.maximumf %113, %114 : vector<128x128xf32>
    %116 = vector.shape_cast %115 : vector<128x128xf32> to vector<2x8x8x128xf32>
    %117 = vector.shape_cast %116 : vector<2x8x8x128xf32> to vector<2x8x4x2x128xf32>
    %cst_89 = arith.constant dense<0xFF800000> : vector<2x8x4x128xf32>
    %118 = vector.multi_reduction <maximumf>, %117, %cst_89 [3] : vector<2x8x4x2x128xf32> to vector<2x8x4x128xf32>
    %119 = vector.shape_cast %118 : vector<2x8x4x128xf32> to vector<2x4x2x4x128xf32>
    %120 = vector.extract_strided_slice %119 {offsets = [0, 0, 0, 0, 0], sizes = [2, 4, 1, 4, 128], strides = [1, 1, 1, 1, 1]} : vector<2x4x2x4x128xf32> to vector<2x4x1x4x128xf32>
    %121 = vector.shape_cast %120 : vector<2x4x1x4x128xf32> to vector<2x4x4x128xf32>
    %122 = vector.extract_strided_slice %119 {offsets = [0, 0, 1, 0, 0], sizes = [2, 4, 1, 4, 128], strides = [1, 1, 1, 1, 1]} : vector<2x4x2x4x128xf32> to vector<2x4x1x4x128xf32>
    %123 = vector.shape_cast %122 : vector<2x4x1x4x128xf32> to vector<2x4x4x128xf32>
    %124 = arith.maximumf %121, %123 : vector<2x4x4x128xf32>
    %125 = vector.shape_cast %124 : vector<2x4x4x128xf32> to vector<32x128xf32>
    %c0_90 = arith.constant 0 : index
    %c0_91 = arith.constant 0 : index
    %126 = vector.load %arg6[%c0_90, %c0_91] : memref<128x256xf32, #tpu.memory_space<vmem>>, vector<128x256xf32>
    %cst_92 = arith.constant dense<0.000000e+00> : vector<32x256xf32>
    %127 = tpu.matmul %125, %126, %cst_92 {dimension_numbers = #tpu.dot_dimension_numbers<[1], [0], [0], [1], [0, 0, 1, 1], [], []>} : vector<32x128xf32>, vector<128x256xf32>, vector<32x256xf32> -> vector<32x256xf32>
    %c0_93 = arith.constant 0 : index
    %c0_94 = arith.constant 0 : index
    %128 = vector.load %arg7[%c0_93, %c0_94] : memref<1x256xf32, #tpu.memory_space<vmem>>, vector<1x256xf32>
    %129 = vector.broadcast %128 : vector<1x256xf32> to vector<32x256xf32>
    %130 = arith.addf %127, %129 : vector<32x256xf32>
    %cst_95 = arith.constant 0.000000e+00 : f32
    %131 = vector.broadcast %cst_95 : f32 to vector<32x256xf32>
    %132 = arith.maximumf %130, %131 : vector<32x256xf32>
    %c0_96 = arith.constant 0 : index
    %c0_97 = arith.constant 0 : index
    %133 = vector.load %arg8[%c0_96, %c0_97] : memref<256x16xf32, #tpu.memory_space<vmem>>, vector<256x16xf32>
    %cst_98 = arith.constant dense<0.000000e+00> : vector<32x16xf32>
    %134 = tpu.matmul %132, %133, %cst_98 {dimension_numbers = #tpu.dot_dimension_numbers<[1], [0], [0], [1], [0, 0, 1, 1], [], []>} : vector<32x256xf32>, vector<256x16xf32>, vector<32x16xf32> -> vector<32x16xf32>
    %c0_99 = arith.constant 0 : index
    %c0_100 = arith.constant 0 : index
    %135 = vector.load %arg9[%c0_99, %c0_100] : memref<1x16xf32, #tpu.memory_space<vmem>>, vector<1x16xf32>
    %136 = vector.broadcast %135 : vector<1x16xf32> to vector<32x16xf32>
    %137 = arith.addf %134, %136 : vector<32x16xf32>
    %138 = arith.negf %137 : vector<32x16xf32>
    %139 = math.exp %138 : vector<32x16xf32>
    %cst_101 = arith.constant 1.000000e+00 : f32
    %140 = vector.broadcast %cst_101 : f32 to vector<32x16xf32>
    %141 = arith.addf %140, %139 : vector<32x16xf32>
    %142 = arith.divf %140, %141 : vector<32x16xf32>
    %143 = vector.shape_cast %142 : vector<32x16xf32> to vector<2x16x16xf32>
    %c0_102 = arith.constant 0 : index
    %c0_103 = arith.constant 0 : index
    %c0_104 = arith.constant 0 : index
    %144 = vector.load %arg10[%c0_102, %c0_103, %c0_104] : memref<2x16x16xf32, #tpu.memory_space<vmem>>, vector<2x16x16xf32>
    tpu.vector_store %arg10[%c0_102, %c0_103, %c0_104], %143 {strides = array<i32>} : memref<2x16x16xf32, #tpu.memory_space<vmem>>, vector<2x16x16xf32>,
    return
  }
  func.func @transform_0(%arg0: i32) -> (i32, i32, i32, i32) {
    %c0_i32 = arith.constant 0 : i32
    %c0_i32_0 = arith.constant 0 : i32
    %c0_i32_1 = arith.constant 0 : i32
    %c0_i32_2 = arith.constant 0 : i32
    return %arg0, %c0_i32, %c0_i32_0, %c0_i32_1 : i32, i32, i32, i32
  }
  func.func @transform_1(%arg0: i32) -> (i32, i32) {
    %c0_i32 = arith.constant 0 : i32
    %c0_i32_0 = arith.constant 0 : i32
    %c0_i32_1 = arith.constant 0 : i32
    return %c0_i32, %c0_i32_0 : i32, i32
  }
  func.func @transform_2(%arg0: i32) -> (i32, i32) {
    %c0_i32 = arith.constant 0 : i32
    %c0_i32_0 = arith.constant 0 : i32
    %c0_i32_1 = arith.constant 0 : i32
    return %c0_i32, %c0_i32_0 : i32, i32
  }
  func.func @transform_3(%arg0: i32) -> (i32, i32, i32) {
    %c0_i32 = arith.constant 0 : i32
    %c0_i32_0 = arith.constant 0 : i32
    %c0_i32_1 = arith.constant 0 : i32
    %c0_i32_2 = arith.constant 0 : i32
    return %c0_i32, %c0_i32_0, %c0_i32_1 : i32, i32, i32
  }
  func.func @transform_4(%arg0: i32) -> (i32, i32) {
    %c0_i32 = arith.constant 0 : i32
    %c0_i32_0 = arith.constant 0 : i32
    %c0_i32_1 = arith.constant 0 : i32
    return %c0_i32, %c0_i32_0 : i32, i32
  }
  func.func @transform_5(%arg0: i32) -> (i32, i32) {
    %c0_i32 = arith.constant 0 : i32
    %c0_i32_0 = arith.constant 0 : i32
    %c0_i32_1 = arith.constant 0 : i32
    return %c0_i32, %c0_i32_0 : i32, i32
  }
  func.func @transform_6(%arg0: i32) -> (i32, i32) {
    %c0_i32 = arith.constant 0 : i32
    %c0_i32_0 = arith.constant 0 : i32
    %c0_i32_1 = arith.constant 0 : i32
    return %c0_i32, %c0_i32_0 : i32, i32
  }
  func.func @transform_7(%arg0: i32) -> (i32, i32) {
    %c0_i32 = arith.constant 0 : i32
    %c0_i32_0 = arith.constant 0 : i32
    %c0_i32_1 = arith.constant 0 : i32
    return %c0_i32, %c0_i32_0 : i32, i32
  }
  func.func @transform_8(%arg0: i32) -> (i32, i32) {
    %c0_i32 = arith.constant 0 : i32
    %c0_i32_0 = arith.constant 0 : i32
    %c0_i32_1 = arith.constant 0 : i32
    return %c0_i32, %c0_i32_0 : i32, i32
  }
  func.func @transform_9(%arg0: i32) -> (i32, i32, i32) {
    %c0_i32 = arith.constant 0 : i32
    %c0_i32_0 = arith.constant 0 : i32
    %c0_i32_1 = arith.constant 0 : i32
    return %arg0, %c0_i32, %c0_i32_0 : i32, i32, i32
  }
}

</mosaic_0001>

<llo_original>
// kernel: cnn_encoder_decoder_forward.1
$region0: #{cnn_encoder_decoder_forward.1}
  #allocation0 [shape = 'u32[]', space=smem, size = 0x4, offset = 0x4, fixed_abs, tag = 'smem constant byte address 0x4 - core index']
  #allocation1 [shape = 'u32[144,128]{1,0:T(1,128)}', space=vmem, size = 0x12000, scoped, tag = 'internal scratch']
  #allocation2 [shape = 'f32[2,18,18,64]{3,2,1,0:T(8,128)}', space=vmem, size = 0x6c000, scoped, tag = 'scratch operand']
  #allocation3 [shape = 'f32[2,10,10,64]{3,2,1,0:T(8,128)}', space=vmem, size = 0x28000, scoped, tag = 'scratch operand']
  %s0 = inlined_call_operand.vmem [shape: f32[2,16,16,1], index: 0, kind: input, shape index: {}]
  %s1 = inlined_call_operand.vmem [shape: f32[9,64], index: 1, kind: input, shape index: {}]
  %s2 = inlined_call_operand.vmem [shape: f32[1,64], index: 2, kind: input, shape index: {}]
  %s3 = inlined_call_operand.vmem [shape: f32[3,192,128], index: 3, kind: input, shape index: {}]
  %s4 = inlined_call_operand.vmem [shape: f32[1,128], index: 4, kind: input, shape index: {}]
  %s5 = inlined_call_operand.vmem [shape: f32[128,256], index: 5, kind: input, shape index: {}]
  %s6 = inlined_call_operand.vmem [shape: f32[1,256], index: 6, kind: input, shape index: {}]
  %s7 = inlined_call_operand.vmem [shape: f32[256,16], index: 7, kind: input, shape index: {}]
  %s8 = inlined_call_operand.vmem [shape: f32[1,16], index: 8, kind: input, shape index: {}]
  %s9 = inlined_call_operand.vmem [shape: f32[2,16,16], index: 9, kind: output, shape index: {}]
  %s10 = sld [smem:[#allocation0]]
  $region46: #{cnn_encoder_decoder_forward.1} parent=0
    _
  %s12 = ssub.s32 1, %s10
  %s13 = scalar_select 0, %s12, %s10
  // Predicated region
  $region2: #{cnn_encoder_decoder_forward.1} parent=0 // pred_check
    _
  $region3: #{cnn_encoder_decoder_forward.1} parent=0 // pred_check_branch
    %15 = sbr.rel (0) target = $region5
  $region4: #{cnn_encoder_decoder_forward.1} parent=0 // pred_region
    _
  $region5: #{cnn_encoder_decoder_forward.1} parent=0 // pred_fallthru
    _
  // Predicated region
  $region6: #{cnn_encoder_decoder_forward.1} parent=0 // pred_check
    _
  $region7: #{cnn_encoder_decoder_forward.1} parent=0 // pred_check_branch
    %17 = sbr.rel (0) target = $region9
  $region8: #{cnn_encoder_decoder_forward.1} parent=0 // pred_region
    _
  $region9: #{cnn_encoder_decoder_forward.1} parent=0 // pred_fallthru
    _
  // Predicated region
  $region10: #{cnn_encoder_decoder_forward.1} parent=0 // pred_check
    _
  $region11: #{cnn_encoder_decoder_forward.1} parent=0 // pred_check_branch
    %19 = sbr.rel (0) target = $region13
  $region12: #{cnn_encoder_decoder_forward.1} parent=0 // pred_region
    _
  $region13: #{cnn_encoder_decoder_forward.1} parent=0 // pred_fallthru
    _
  // Predicated region
  $region14: #{cnn_encoder_decoder_forward.1} parent=0 // pred_check
    _
  $region15: #{cnn_encoder_decoder_forward.1} parent=0 // pred_check_branch
    %21 = sbr.rel (0) target = $region17
  $region16: #{cnn_encoder_decoder_forward.1} parent=0 // pred_region
    _
  $region17: #{cnn_encoder_decoder_forward.1} parent=0 // pred_fallthru
    _
  // Predicated region
  $region18: #{cnn_encoder_decoder_forward.1} parent=0 // pred_check
    _
  $region19: #{cnn_encoder_decoder_forward.1} parent=0 // pred_check_branch
    %23 = sbr.rel (0) target = $region21
  $region20: #{cnn_encoder_decoder_forward.1} parent=0 // pred_region
    _
  $region21: #{cnn_encoder_decoder_forward.1} parent=0 // pred_fallthru
    _
  // Predicated region
  $region22: #{cnn_encoder_decoder_forward.1} parent=0 // pred_check
    _
  $region23: #{cnn_encoder_decoder_forward.1} parent=0 // pred_check_branch
    %25 = sbr.rel (0) target = $region25
  $region24: #{cnn_encoder_decoder_forward.1} parent=0 // pred_region
    _
  $region25: #{cnn_encoder_decoder_forward.1} parent=0 // pred_fallthru
    _
  // Predicated region
  $region26: #{cnn_encoder_decoder_forward.1} parent=0 // pred_check
    _
  $region27: #{cnn_encoder_decoder_forward.1} parent=0 // pred_check_branch
    %27 = sbr.rel (0) target = $region29
  $region28: #{cnn_encoder_decoder_forward.1} parent=0 // pred_region
    _
  $region29: #{cnn_encoder_decoder_forward.1} parent=0 // pred_fallthru
    _
  // Predicated region
  $region30: #{cnn_encoder_decoder_forward.1} parent=0 // pred_check
    _
  $region31: #{cnn_encoder_decoder_forward.1} parent=0 // pred_check_branch
    %29 = sbr.rel (0) target = $region33
  $region32: #{cnn_encoder_decoder_forward.1} parent=0 // pred_region
    _
  $region33: #{cnn_encoder_decoder_forward.1} parent=0 // pred_fallthru
    _
  // Predicated region
  $region34: #{cnn_encoder_decoder_forward.1} parent=0 // pred_check
    _
  $region35: #{cnn_encoder_decoder_forward.1} parent=0 // pred_check_branch
    %31 = sbr.rel (0) target = $region37
  $region36: #{cnn_encoder_decoder_forward.1} parent=0 // pred_region
    _
  $region37: #{cnn_encoder_decoder_forward.1} parent=0 // pred_fallthru
    _
  %v32 = vld [vmem:[%s1] sm:$0xff]
  %v33 = vld [vmem:[%s1 + $0x8] sm:$0x1]
  %v34 = vld [vmem:[%s2] sm:$0x1]
  %v36 = vlaneseq
  %v37 = vshrl.u32 %v36, 7
  %v38 = vsub.s32 0, %v37
  %v39 = vrot.slane %v34, %v38
  %v41 = vadd.f32 %v39, 0.0
  %vm42 = vcmask 523264
  %43 = vst.msk [vmem:[#allocation2] sm:$0xff] %vm42, 0.0
  %44 = vst.msk [vmem:[#allocation2 + $0x8] sm:$0xff] %vm42, 0.0
  %vm45 = vcmask 517120
  %46 = vst.msk [vmem:[#allocation2 + $0x10] sm:$0x3] %vm45, 0.0
  %47 = vst.msk [vmem:[#allocation2 + $0x18] sm:$0xff] %vm42, 0.0
  %48 = vst.msk [vmem:[#allocation2 + $0x20] sm:$0xff] %vm42, 0.0
  %49 = vst.msk [vmem:[#allocation2 + $0x28] sm:$0x3] %vm45, 0.0
  %50 = vst.msk [vmem:[#allocation2 + $0x30] sm:$0xff] %vm42, 0.0
  %51 = vst.msk [vmem:[#allocation2 + $0x38] sm:$0xff] %vm42, 0.0
  %52 = vst.msk [vmem:[#allocation2 + $0x40] sm:$0x3] %vm45, 0.0
  %53 = vst.msk [vmem:[#allocation2 + $0x48] sm:$0xff] %vm42, 0.0
  %54 = vst.msk [vmem:[#allocation2 + $0x50] sm:$0xff] %vm42, 0.0
  %55 = vst.msk [vmem:[#allocation2 + $0x58] sm:$0x3] %vm45, 0.0
  %56 = vst.msk [vmem:[#allocation2 + $0x60] sm:$0xff] %vm42, 0.0
  %57 = vst.msk [vmem:[#allocation2 + $0x68] sm:$0xff] %vm42, 0.0
  %58 = vst.msk [vmem:[#allocation2 + $0x70] sm:$0x3] %vm45, 0.0
  %59 = vst.msk [vmem:[#allocation2 + $0x78] sm:$0xff] %vm42, 0.0
  %60 = vst.msk [vmem:[#allocation2 + $0x80] sm:$0xff] %vm42, 0.0
  %61 = vst.msk [vmem:[#allocation2 + $0x88] sm:$0x3] %vm45, 0.0
  %62 = vst.msk [vmem:[#allocation2 + $0x90] sm:$0xff] %vm42, 0.0
  %63 = vst.msk [vmem:[#allocation2 + $0x98] sm:$0xff] %vm42, 0.0
  %64 = vst.msk [vmem:[#allocation2 + $0xa0] sm:$0x3] %vm45, 0.0
  %65 = vst.msk [vmem:[#allocation2 + $0xa8] sm:$0xff] %vm42, 0.0
  %66 = vst.msk [vmem:[#allocation2 + $0xb0] sm:$0xff] %vm42, 0.0
  %67 = vst.msk [vmem:[#allocation2 + $0xb8] sm:$0x3] %vm45, 0.0
  %68 = vst.msk [vmem:[#allocation2 + $0xc0] sm:$0xff] %vm42, 0.0
  %69 = vst.msk [vmem:[#allocation2 + $0xc8] sm:$0xff] %vm42, 0.0
  %70 = vst.msk [vmem:[#allocation2 + $0xd0] sm:$0x3] %vm45, 0.0
  %71 = vst.msk [vmem:[#allocation2 + $0xd8] sm:$0xff] %vm42, 0.0
  %72 = vst.msk [vmem:[#allocation2 + $0xe0] sm:$0xff] %vm42, 0.0
  %73 = vst.msk [vmem:[#allocation2 + $0xe8] sm:$0x3] %vm45, 0.0
  %74 = vst.msk [vmem:[#allocation2 + $0xf0] sm:$0xff] %vm42, 0.0
  %75 = vst.msk [vmem:[#allocation2 + $0xf8] sm:$0xff] %vm42, 0.0
  %76 = vst.msk [vmem:[#allocation2 + $0x100] sm:$0x3] %vm45, 0.0
  %77 = vst.msk [vmem:[#allocation2 + $0x108] sm:$0xff] %vm42, 0.0
  %78 = vst.msk [vmem:[#allocation2 + $0x110] sm:$0xff] %vm42, 0.0
  %79 = vst.msk [vmem:[#allocation2 + $0x118] sm:$0x3] %vm45, 0.0
  %80 = vst.msk [vmem:[#allocation2 + $0x120] sm:$0xff] %vm42, 0.0
  %81 = vst.msk [vmem:[#allocation2 + $0x128] sm:$0xff] %vm42, 0.0
  %82 = vst.msk [vmem:[#allocation2 + $0x130] sm:$0x3] %vm45, 0.0
  %83 = vst.msk [vmem:[#allocation2 + $0x138] sm:$0xff] %vm42, 0.0
  %84 = vst.msk [vmem:[#allocation2 + $0x140] sm:$0xff] %vm42, 0.0
  %85 = vst.msk [vmem:[#allocation2 + $0x148] sm:$0x3] %vm45, 0.0
  %86 = vst.msk [vmem:[#allocation2 + $0x150] sm:$0xff] %vm42, 0.0
  %87 = vst.msk [vmem:[#allocation2 + $0x158] sm:$0xff] %vm42, 0.0
  %88 = vst.msk [vmem:[#allocation2 + $0x160] sm:$0x3] %vm45, 0.0
  %89 = vst.msk [vmem:[#allocation2 + $0x168] sm:$0xff] %vm42, 0.0
  %90 = vst.msk [vmem:[#allocation2 + $0x170] sm:$0xff] %vm42, 0.0
  %91 = vst.msk [vmem:[#allocation2 + $0x178] sm:$0x3] %vm45, 0.0
  %92 = vst.msk [vmem:[#allocation2 + $0x180] sm:$0xff] %vm42, 0.0
  %93 = vst.msk [vmem:[#allocation2 + $0x188] sm:$0xff] %vm42, 0.0
  %94 = vst.msk [vmem:[#allocation2 + $0x190] sm:$0x3] %vm45, 0.0
  %95 = vst.msk [vmem:[#allocation2 + $0x198] sm:$0xff] %vm42, 0.0
  %96 = vst.msk [vmem:[#allocation2 + $0x1a0] sm:$0xff] %vm42, 0.0
  %97 = vst.msk [vmem:[#allocation2 + $0x1a8] sm:$0x3] %vm45, 0.0
  %98 = vst.msk [vmem:[#allocation2 + $0x1b0] sm:$0xff] %vm42, 0.0
  %99 = vst.msk [vmem:[#allocation2 + $0x1b8] sm:$0xff] %vm42, 0.0
  %100 = vst.msk [vmem:[#allocation2 + $0x1c0] sm:$0x3] %vm45, 0.0
  %101 = vst.msk [vmem:[#allocation2 + $0x1c8] sm:$0xff] %vm42, 0.0
  %102 = vst.msk [vmem:[#allocation2 + $0x1d0] sm:$0xff] %vm42, 0.0
  %103 = vst.msk [vmem:[#allocation2 + $0x1d8] sm:$0x3] %vm45, 0.0
  %104 = vst.msk [vmem:[#allocation2 + $0x1e0] sm:$0xff] %vm42, 0.0
  %105 = vst.msk [vmem:[#allocation2 + $0x1e8] sm:$0xff] %vm42, 0.0
  %106 = vst.msk [vmem:[#allocation2 + $0x1f0] sm:$0x3] %vm45, 0.0
  %107 = vst.msk [vmem:[#allocation2 + $0x1f8] sm:$0xff] %vm42, 0.0
  %108 = vst.msk [vmem:[#allocation2 + $0x200] sm:$0xff] %vm42, 0.0
  %109 = vst.msk [vmem:[#allocation2 + $0x208] sm:$0x3] %vm45, 0.0
  %110 = vst.msk [vmem:[#allocation2 + $0x210] sm:$0xff] %vm42, 0.0
  %111 = vst.msk [vmem:[#allocation2 + $0x218] sm:$0xff] %vm42, 0.0
  %112 = vst.msk [vmem:[#allocation2 + $0x220] sm:$0x3] %vm45, 0.0
  %113 = vst.msk [vmem:[#allocation2 + $0x228] sm:$0xff] %vm42, 0.0
  %114 = vst.msk [vmem:[#allocation2 + $0x230] sm:$0xff] %vm42, 0.0
  %115 = vst.msk [vmem:[#allocation2 + $0x238] sm:$0x3] %vm45, 0.0
  %116 = vst.msk [vmem:[#allocation2 + $0x240] sm:$0xff] %vm42, 0.0
  %117 = vst.msk [vmem:[#allocation2 + $0x248] sm:$0xff] %vm42, 0.0
  %118 = vst.msk [vmem:[#allocation2 + $0x250] sm:$0x3] %vm45, 0.0
  %119 = vst.msk [vmem:[#allocation2 + $0x258] sm:$0xff] %vm42, 0.0
  %120 = vst.msk [vmem:[#allocation2 + $0x260] sm:$0xff] %vm42, 0.0
  %121 = vst.msk [vmem:[#allocation2 + $0x268] sm:$0x3] %vm45, 0.0
  %122 = vst.msk [vmem:[#allocation2 + $0x270] sm:$0xff] %vm42, 0.0
  %123 = vst.msk [vmem:[#allocation2 + $0x278] sm:$0xff] %vm42, 0.0
  %124 = vst.msk [vmem:[#allocation2 + $0x280] sm:$0x3] %vm45, 0.0
  %125 = vst.msk [vmem:[#allocation2 + $0x288] sm:$0xff] %vm42, 0.0
  %126 = vst.msk [vmem:[#allocation2 + $0x290] sm:$0xff] %vm42, 0.0
  %127 = vst.msk [vmem:[#allocation2 + $0x298] sm:$0x3] %vm45, 0.0
  %128 = vst.msk [vmem:[#allocation2 + $0x2a0] sm:$0xff] %vm42, 0.0
  %129 = vst.msk [vmem:[#allocation2 + $0x2a8] sm:$0xff] %vm42, 0.0
  %130 = vst.msk [vmem:[#allocation2 + $0x2b0] sm:$0x3] %vm45, 0.0
  %131 = vst.msk [vmem:[#allocation2 + $0x2b8] sm:$0xff] %vm42, 0.0
  %132 = vst.msk [vmem:[#allocation2 + $0x2c0] sm:$0xff] %vm42, 0.0
  %133 = vst.msk [vmem:[#allocation2 + $0x2c8] sm:$0x3] %vm45, 0.0
  %134 = vst.msk [vmem:[#allocation2 + $0x2d0] sm:$0xff] %vm42, 0.0
  %135 = vst.msk [vmem:[#allocation2 + $0x2d8] sm:$0xff] %vm42, 0.0
  %136 = vst.msk [vmem:[#allocation2 + $0x2e0] sm:$0x3] %vm45, 0.0
  %137 = vst.msk [vmem:[#allocation2 + $0x2e8] sm:$0xff] %vm42, 0.0
  %138 = vst.msk [vmem:[#allocation2 + $0x2f0] sm:$0xff] %vm42, 0.0
  %139 = vst.msk [vmem:[#allocation2 + $0x2f8] sm:$0x3] %vm45, 0.0
  %140 = vst.msk [vmem:[#allocation2 + $0x300] sm:$0xff] %vm42, 0.0
  %141 = vst.msk [vmem:[#allocation2 + $0x308] sm:$0xff] %vm42, 0.0
  %142 = vst.msk [vmem:[#allocation2 + $0x310] sm:$0x3] %vm45, 0.0
  %143 = vst.msk [vmem:[#allocation2 + $0x318] sm:$0xff] %vm42, 0.0
  %144 = vst.msk [vmem:[#allocation2 + $0x320] sm:$0xff] %vm42, 0.0
  %145 = vst.msk [vmem:[#allocation2 + $0x328] sm:$0x3] %vm45, 0.0
  %146 = vst.msk [vmem:[#allocation2 + $0x330] sm:$0xff] %vm42, 0.0
  %147 = vst.msk [vmem:[#allocation2 + $0x338] sm:$0xff] %vm42, 0.0
  %148 = vst.msk [vmem:[#allocation2 + $0x340] sm:$0x3] %vm45, 0.0
  %149 = vst.msk [vmem:[#allocation2 + $0x348] sm:$0xff] %vm42, 0.0
  %150 = vst.msk [vmem:[#allocation2 + $0x350] sm:$0xff] %vm42, 0.0
  %151 = vst.msk [vmem:[#allocation2 + $0x358] sm:$0x3] %vm45, 0.0
  %v152 = vld [vmem:[%s0] sm:$0xff]
  %v153 = vld [vmem:[%s0 + $0x8] sm:$0xff]
  %v154 = vld [vmem:[%s0 + $0x10] sm:$0xff]
  %v155 = vld [vmem:[%s0 + $0x18] sm:$0xff]
  %v156 = vld [vmem:[%s0 + $0x20] sm:$0xff]
  %v157 = vld [vmem:[%s0 + $0x28] sm:$0xff]
  %v158 = vld [vmem:[%s0 + $0x30] sm:$0xff]
  %v159 = vld [vmem:[%s0 + $0x38] sm:$0xff]
  %v160 = vld [vmem:[%s0 + $0x40] sm:$0xff]
  %v161 = vld [vmem:[%s0 + $0x48] sm:$0xff]
  %v162 = vld [vmem:[%s0 + $0x50] sm:$0xff]
  %v163 = vld [vmem:[%s0 + $0x58] sm:$0xff]
  %v164 = vld [vmem:[%s0 + $0x60] sm:$0xff]
  %v165 = vld [vmem:[%s0 + $0x68] sm:$0xff]
  %v166 = vld [vmem:[%s0 + $0x70] sm:$0xff]
  %v167 = vld [vmem:[%s0 + $0x78] sm:$0xff]
  %v168 = vld [vmem:[%s0 + $0x80] sm:$0xff]
  %v169 = vld [vmem:[%s0 + $0x88] sm:$0xff]
  %v170 = vld [vmem:[%s0 + $0x90] sm:$0xff]
  %v171 = vld [vmem:[%s0 + $0x98] sm:$0xff]
  %v172 = vld [vmem:[%s0 + $0xa0] sm:$0xff]
  %v173 = vld [vmem:[%s0 + $0xa8] sm:$0xff]
  %v174 = vld [vmem:[%s0 + $0xb0] sm:$0xff]
  %v175 = vld [vmem:[%s0 + $0xb8] sm:$0xff]
  %v176 = vld [vmem:[%s0 + $0xc0] sm:$0xff]
  %v177 = vld [vmem:[%s0 + $0xc8] sm:$0xff]
  %v178 = vld [vmem:[%s0 + $0xd0] sm:$0xff]
  %v179 = vld [vmem:[%s0 + $0xd8] sm:$0xff]
  %v180 = vld [vmem:[%s0 + $0xe0] sm:$0xff]
  %v181 = vld [vmem:[%s0 + $0xe8] sm:$0xff]
  %v182 = vld [vmem:[%s0 + $0xf0] sm:$0xff]
  %v183 = vld [vmem:[%s0 + $0xf8] sm:$0xff]
  %v184 = vld [vmem:[%s0 + $0x100] sm:$0xff]
  %v185 = vld [vmem:[%s0 + $0x108] sm:$0xff]
  %v186 = vld [vmem:[%s0 + $0x110] sm:$0xff]
  %v187 = vld [vmem:[%s0 + $0x118] sm:$0xff]
  %v188 = vld [vmem:[%s0 + $0x120] sm:$0xff]
  %v189 = vld [vmem:[%s0 + $0x128] sm:$0xff]
  %v190 = vld [vmem:[%s0 + $0x130] sm:$0xff]
  %v191 = vld [vmem:[%s0 + $0x138] sm:$0xff]
  %v192 = vld [vmem:[%s0 + $0x140] sm:$0xff]
  %v193 = vld [vmem:[%s0 + $0x148] sm:$0xff]
  %v194 = vld [vmem:[%s0 + $0x150] sm:$0xff]
  %v195 = vld [vmem:[%s0 + $0x158] sm:$0xff]
  %v196 = vld [vmem:[%s0 + $0x160] sm:$0xff]
  %v197 = vld [vmem:[%s0 + $0x168] sm:$0xff]
  %v198 = vld [vmem:[%s0 + $0x170] sm:$0xff]
  %v199 = vld [vmem:[%s0 + $0x178] sm:$0xff]
  %v200 = vld [vmem:[%s0 + $0x180] sm:$0xff]
  %v201 = vld [vmem:[%s0 + $0x188] sm:$0xff]
  %v202 = vld [vmem:[%s0 + $0x190] sm:$0xff]
  %v203 = vld [vmem:[%s0 + $0x198] sm:$0xff]
  %v204 = vld [vmem:[%s0 + $0x1a0] sm:$0xff]
  %v205 = vld [vmem:[%s0 + $0x1a8] sm:$0xff]
  %v206 = vld [vmem:[%s0 + $0x1b0] sm:$0xff]
  %v207 = vld [vmem:[%s0 + $0x1b8] sm:$0xff]
  %v208 = vld [vmem:[%s0 + $0x1c0] sm:$0xff]
  %v209 = vld [vmem:[%s0 + $0x1c8] sm:$0xff]
  %v210 = vld [vmem:[%s0 + $0x1d0] sm:$0xff]
  %v211 = vld [vmem:[%s0 + $0x1d8] sm:$0xff]
  %v212 = vld [vmem:[%s0 + $0x1e0] sm:$0xff]
  %v213 = vld [vmem:[%s0 + $0x1e8] sm:$0xff]
  %v214 = vld [vmem:[%s0 + $0x1f0] sm:$0xff]
  %v215 = vld [vmem:[%s0 + $0x1f8] sm:$0xff]
  %217 = vset.pattern.permute.xlu0 0
  %218 = vperm.xlu0 %217, %v152
  %v219 = vpop.permute.xlu0 %218
  %222 = vset.pattern.permute.xlu0 0
  %223 = vperm.xlu0 %222, %v153
  %v224 = vpop.permute.xlu0 %223
  %227 = vset.pattern.permute.xlu0 0
  %228 = vperm.xlu0 %227, %v154
  %v229 = vpop.permute.xlu0 %228
  %232 = vset.pattern.permute.xlu0 0
  %233 = vperm.xlu0 %232, %v155
  %v234 = vpop.permute.xlu0 %233
  %237 = vset.pattern.permute.xlu0 0
  %238 = vperm.xlu0 %237, %v156
  %v239 = vpop.permute.xlu0 %238
  %242 = vset.pattern.permute.xlu0 0
  %243 = vperm.xlu0 %242, %v157
  %v244 = vpop.permute.xlu0 %243
  %247 = vset.pattern.permute.xlu0 0
  %248 = vperm.xlu0 %247, %v158
  %v249 = vpop.permute.xlu0 %248
  %252 = vset.pattern.permute.xlu0 0
  %253 = vperm.xlu0 %252, %v159
  %v254 = vpop.permute.xlu0 %253
  %257 = vset.pattern.permute.xlu0 0
  %258 = vperm.xlu0 %257, %v160
  %v259 = vpop.permute.xlu0 %258
  %262 = vset.pattern.permute.xlu0 0
  %263 = vperm.xlu0 %262, %v161
  %v264 = vpop.permute.xlu0 %263
  %267 = vset.pattern.permute.xlu0 0
  %268 = vperm.xlu0 %267, %v162
  %v269 = vpop.permute.xlu0 %268
  %272 = vset.pattern.permute.xlu0 0
  %273 = vperm.xlu0 %272, %v163
  %v274 = vpop.permute.xlu0 %273
  %277 = vset.pattern.permute.xlu0 0
  %278 = vperm.xlu0 %277, %v164
  %v279 = vpop.permute.xlu0 %278
  %282 = vset.pattern.permute.xlu0 0
  %283 = vperm.xlu0 %282, %v165
  %v284 = vpop.permute.xlu0 %283
  %287 = vset.pattern.permute.xlu0 0
  %288 = vperm.xlu0 %287, %v166
  %v289 = vpop.permute.xlu0 %288
  %292 = vset.pattern.permute.xlu0 0
  %293 = vperm.xlu0 %292, %v167
  %v294 = vpop.permute.xlu0 %293
  %297 = vset.pattern.permute.xlu0 0
  %298 = vperm.xlu0 %297, %v168
  %v299 = vpop.permute.xlu0 %298
  %302 = vset.pattern.permute.xlu0 0
  %303 = vperm.xlu0 %302, %v169
  %v304 = vpop.permute.xlu0 %303
  %307 = vset.pattern.permute.xlu0 0
  %308 = vperm.xlu0 %307, %v170
  %v309 = vpop.permute.xlu0 %308
  %312 = vset.pattern.permute.xlu0 0
  %313 = vperm.xlu0 %312, %v171
  %v314 = vpop.permute.xlu0 %313
  %317 = vset.pattern.permute.xlu0 0
  %318 = vperm.xlu0 %317, %v172
  %v319 = vpop.permute.xlu0 %318
  %322 = vset.pattern.permute.xlu0 0
  %323 = vperm.xlu0 %322, %v173
  %v324 = vpop.permute.xlu0 %323
  %327 = vset.pattern.permute.xlu0 0
  %328 = vperm.xlu0 %327, %v174
  %v329 = vpop.permute.xlu0 %328
  %332 = vset.pattern.permute.xlu0 0
  %333 = vperm.xlu0 %332, %v175
  %v334 = vpop.permute.xlu0 %333
  %337 = vset.pattern.permute.xlu0 0
  %338 = vperm.xlu0 %337, %v176
  %v339 = vpop.permute.xlu0 %338
  %342 = vset.pattern.permute.xlu0 0
  %343 = vperm.xlu0 %342, %v177
  %v344 = vpop.permute.xlu0 %343
  %347 = vset.pattern.permute.xlu0 0
  %348 = vperm.xlu0 %347, %v178
  %v349 = vpop.permute.xlu0 %348
  %352 = vset.pattern.permute.xlu0 0
  %353 = vperm.xlu0 %352, %v179
  %v354 = vpop.permute.xlu0 %353
  %357 = vset.pattern.permute.xlu0 0
  %358 = vperm.xlu0 %357, %v180
  %v359 = vpop.permute.xlu0 %358
  %362 = vset.pattern.permute.xlu0 0
  %363 = vperm.xlu0 %362, %v181
  %v364 = vpop.permute.xlu0 %363
  %367 = vset.pattern.permute.xlu0 0
  %368 = vperm.xlu0 %367, %v182
  %v369 = vpop.permute.xlu0 %368
  %372 = vset.pattern.permute.xlu0 0
  %373 = vperm.xlu0 %372, %v183
  %v374 = vpop.permute.xlu0 %373
  %377 = vset.pattern.permute.xlu0 0
  %378 = vperm.xlu0 %377, %v184
  %v379 = vpop.permute.xlu0 %378
  %382 = vset.pattern.permute.xlu0 0
  %383 = vperm.xlu0 %382, %v185
  %v384 = vpop.permute.xlu0 %383
  %387 = vset.pattern.permute.xlu0 0
  %388 = vperm.xlu0 %387, %v186
  %v389 = vpop.permute.xlu0 %388
  %392 = vset.pattern.permute.xlu0 0
  %393 = vperm.xlu0 %392, %v187
  %v394 = vpop.permute.xlu0 %393
  %397 = vset.pattern.permute.xlu0 0
  %398 = vperm.xlu0 %397, %v188
  %v399 = vpop.permute.xlu0 %398
  %402 = vset.pattern.permute.xlu0 0
  %403 = vperm.xlu0 %402, %v189
  %v404 = vpop.permute.xlu0 %403
  %407 = vset.pattern.permute.xlu0 0
  %408 = vperm.xlu0 %407, %v190
  %v409 = vpop.permute.xlu0 %408
  %412 = vset.pattern.permute.xlu0 0
  %413 = vperm.xlu0 %412, %v191
  %v414 = vpop.permute.xlu0 %413
  %417 = vset.pattern.permute.xlu0 0
  %418 = vperm.xlu0 %417, %v192
  %v419 = vpop.permute.xlu0 %418
  %422 = vset.pattern.permute.xlu0 0
  %423 = vperm.xlu0 %422, %v193
  %v424 = vpop.permute.xlu0 %423
  %427 = vset.pattern.permute.xlu0 0
  %428 = vperm.xlu0 %427, %v194
  %v429 = vpop.permute.xlu0 %428
  %432 = vset.pattern.permute.xlu0 0
  %433 = vperm.xlu0 %432, %v195
  %v434 = vpop.permute.xlu0 %433
  %437 = vset.pattern.permute.xlu0 0
  %438 = vperm.xlu0 %437, %v196
  %v439 = vpop.permute.xlu0 %438
  %442 = vset.pattern.permute.xlu0 0
  %443 = vperm.xlu0 %442, %v197
  %v444 = vpop.permute.xlu0 %443
  %447 = vset.pattern.permute.xlu0 0
  %448 = vperm.xlu0 %447, %v198
  %v449 = vpop.permute.xlu0 %448
  %452 = vset.pattern.permute.xlu0 0
  %453 = vperm.xlu0 %452, %v199
  %v454 = vpop.permute.xlu0 %453
  %457 = vset.pattern.permute.xlu0 0
  %458 = vperm.xlu0 %457, %v200
  %v459 = vpop.permute.xlu0 %458
  %462 = vset.pattern.permute.xlu0 0
  %463 = vperm.xlu0 %462, %v201
  %v464 = vpop.permute.xlu0 %463
  %467 = vset.pattern.permute.xlu0 0
  %468 = vperm.xlu0 %467, %v202
  %v469 = vpop.permute.xlu0 %468
  %472 = vset.pattern.permute.xlu0 0
  %473 = vperm.xlu0 %472, %v203
  %v474 = vpop.permute.xlu0 %473
  %477 = vset.pattern.permute.xlu0 0
  %478 = vperm.xlu0 %477, %v204
  %v479 = vpop.permute.xlu0 %478
  %482 = vset.pattern.permute.xlu0 0
  %483 = vperm.xlu0 %482, %v205
  %v484 = vpop.permute.xlu0 %483
  %487 = vset.pattern.permute.xlu0 0
  %488 = vperm.xlu0 %487, %v206
  %v489 = vpop.permute.xlu0 %488
  %492 = vset.pattern.permute.xlu0 0
  %493 = vperm.xlu0 %492, %v207
  %v494 = vpop.permute.xlu0 %493
  %497 = vset.pattern.permute.xlu0 0
  %498 = vperm.xlu0 %497, %v208
  %v499 = vpop.permute.xlu0 %498
  %502 = vset.pattern.permute.xlu0 0
  %503 = vperm.xlu0 %502, %v209
  %v504 = vpop.permute.xlu0 %503
  %507 = vset.pattern.permute.xlu0 0
  %508 = vperm.xlu0 %507, %v210
  %v509 = vpop.permute.xlu0 %508
  %512 = vset.pattern.permute.xlu0 0
  %513 = vperm.xlu0 %512, %v211
  %v514 = vpop.permute.xlu0 %513
  %517 = vset.pattern.permute.xlu0 0
  %518 = vperm.xlu0 %517, %v212
  %v519 = vpop.permute.xlu0 %518
  %522 = vset.pattern.permute.xlu0 0
  %523 = vperm.xlu0 %522, %v213
  %v524 = vpop.permute.xlu0 %523
  %527 = vset.pattern.permute.xlu0 0
  %528 = vperm.xlu0 %527, %v214
  %v529 = vpop.permute.xlu0 %528
  %532 = vset.pattern.permute.xlu0 0
  %533 = vperm.xlu0 %532, %v215
  %v534 = vpop.permute.xlu0 %533
  %s536 = scalar_lea.vmem [#allocation2], 24
  %537 = vst.msk [vmem:[%s536 + $0x1] sm:$0xff] %vm42, %v219
  %538 = vst.msk [vmem:[%s536 + $0x9] sm:$0xff] %vm42, %v224
  %539 = vst.msk [vmem:[%s536 + $0x19] sm:$0xff] %vm42, %v229
  %540 = vst.msk [vmem:[%s536 + $0x21] sm:$0xff] %vm42, %v234
  %541 = vst.msk [vmem:[%s536 + $0x31] sm:$0xff] %vm42, %v239
  %542 = vst.msk [vmem:[%s536 + $0x39] sm:$0xff] %vm42, %v244
  %543 = vst.msk [vmem:[%s536 + $0x49] sm:$0xff] %vm42, %v249
  %544 = vst.msk [vmem:[%s536 + $0x51] sm:$0xff] %vm42, %v254
  %545 = vst.msk [vmem:[%s536 + $0x61] sm:$0xff] %vm42, %v259
  %546 = vst.msk [vmem:[%s536 + $0x69] sm:$0xff] %vm42, %v264
  %547 = vst.msk [vmem:[%s536 + $0x79] sm:$0xff] %vm42, %v269
  %548 = vst.msk [vmem:[%s536 + $0x81] sm:$0xff] %vm42, %v274
  %549 = vst.msk [vmem:[%s536 + $0x91] sm:$0xff] %vm42, %v279
  %550 = vst.msk [vmem:[%s536 + $0x99] sm:$0xff] %vm42, %v284
  %551 = vst.msk [vmem:[%s536 + $0xa9] sm:$0xff] %vm42, %v289
  %552 = vst.msk [vmem:[%s536 + $0xb1] sm:$0xff] %vm42, %v294
  %553 = vst.msk [vmem:[%s536 + $0xc1] sm:$0xff] %vm42, %v299
  %554 = vst.msk [vmem:[%s536 + $0xc9] sm:$0xff] %vm42, %v304
  %555 = vst.msk [vmem:[%s536 + $0xd9] sm:$0xff] %vm42, %v309
  %556 = vst.msk [vmem:[%s536 + $0xe1] sm:$0xff] %vm42, %v314
  %557 = vst.msk [vmem:[%s536 + $0xf1] sm:$0xff] %vm42, %v319
  %558 = vst.msk [vmem:[%s536 + $0xf9] sm:$0xff] %vm42, %v324
  %559 = vst.msk [vmem:[%s536 + $0x109] sm:$0xff] %vm42, %v329
  %560 = vst.msk [vmem:[%s536 + $0x111] sm:$0xff] %vm42, %v334
  %561 = vst.msk [vmem:[%s536 + $0x121] sm:$0xff] %vm42, %v339
  %562 = vst.msk [vmem:[%s536 + $0x129] sm:$0xff] %vm42, %v344
  %563 = vst.msk [vmem:[%s536 + $0x139] sm:$0xff] %vm42, %v349
  %564 = vst.msk [vmem:[%s536 + $0x141] sm:$0xff] %vm42, %v354
  %565 = vst.msk [vmem:[%s536 + $0x151] sm:$0xff] %vm42, %v359
  %566 = vst.msk [vmem:[%s536 + $0x159] sm:$0xff] %vm42, %v364
  %567 = vst.msk [vmem:[%s536 + $0x169] sm:$0xff] %vm42, %v369
  %568 = vst.msk [vmem:[%s536 + $0x171] sm:$0xff] %vm42, %v374
  %569 = vst.msk [vmem:[%s536 + $0x1b1] sm:$0xff] %vm42, %v379
  %570 = vst.msk [vmem:[%s536 + $0x1b9] sm:$0xff] %vm42, %v384
  %571 = vst.msk [vmem:[%s536 + $0x1c9] sm:$0xff] %vm42, %v389
  %572 = vst.msk [vmem:[%s536 + $0x1d1] sm:$0xff] %vm42, %v394
  %573 = vst.msk [vmem:[%s536 + $0x1e1] sm:$0xff] %vm42, %v399
  %574 = vst.msk [vmem:[%s536 + $0x1e9] sm:$0xff] %vm42, %v404
  %575 = vst.msk [vmem:[%s536 + $0x1f9] sm:$0xff] %vm42, %v409
  %576 = vst.msk [vmem:[%s536 + $0x201] sm:$0xff] %vm42, %v414
  %577 = vst.msk [vmem:[%s536 + $0x211] sm:$0xff] %vm42, %v419
  %578 = vst.msk [vmem:[%s536 + $0x219] sm:$0xff] %vm42, %v424
  %579 = vst.msk [vmem:[%s536 + $0x229] sm:$0xff] %vm42, %v429
  %580 = vst.msk [vmem:[%s536 + $0x231] sm:$0xff] %vm42, %v434
  %581 = vst.msk [vmem:[%s536 + $0x241] sm:$0xff] %vm42, %v439
  %582 = vst.msk [vmem:[%s536 + $0x249] sm:$0xff] %vm42, %v444
  %583 = vst.msk [vmem:[%s536 + $0x259] sm:$0xff] %vm42, %v449
  %584 = vst.msk [vmem:[%s536 + $0x261] sm:$0xff] %vm42, %v454
  %585 = vst.msk [vmem:[%s536 + $0x271] sm:$0xff] %vm42, %v459
  %586 = vst.msk [vmem:[%s536 + $0x279] sm:$0xff] %vm42, %v464
  %587 = vst.msk [vmem:[%s536 + $0x289] sm:$0xff] %vm42, %v469
  %588 = vst.msk [vmem:[%s536 + $0x291] sm:$0xff] %vm42, %v474
  %589 = vst.msk [vmem:[%s536 + $0x2a1] sm:$0xff] %vm42, %v479
  %590 = vst.msk [vmem:[%s536 + $0x2a9] sm:$0xff] %vm42, %v484
  %591 = vst.msk [vmem:[%s536 + $0x2b9] sm:$0xff] %vm42, %v489
  %592 = vst.msk [vmem:[%s536 + $0x2c1] sm:$0xff] %vm42, %v494
  %593 = vst.msk [vmem:[%s536 + $0x2d1] sm:$0xff] %vm42, %v499
  %594 = vst.msk [vmem:[%s536 + $0x2d9] sm:$0xff] %vm42, %v504
  %595 = vst.msk [vmem:[%s536 + $0x2e9] sm:$0xff] %vm42, %v509
  %596 = vst.msk [vmem:[%s536 + $0x2f1] sm:$0xff] %vm42, %v514
  %597 = vst.msk [vmem:[%s536 + $0x301] sm:$0xff] %vm42, %v519
  %598 = vst.msk [vmem:[%s536 + $0x309] sm:$0xff] %vm42, %v524
  %599 = vst.msk [vmem:[%s536 + $0x319] sm:$0xff] %vm42, %v529
  %600 = vst.msk [vmem:[%s536 + $0x321] sm:$0xff] %vm42, %v534
  %v601 = vld [vmem:[#allocation2] sm:$0xff]
  %v602 = vld [vmem:[#allocation2 + $0x8] sm:$0xff]
  %v603 = vld [vmem:[#allocation2 + $0x18] sm:$0xff]
  %v604 = vld [vmem:[#allocation2 + $0x20] sm:$0xff]
  %v605 = vld [vmem:[#allocation2 + $0x30] sm:$0xff]
  %v606 = vld [vmem:[#allocation2 + $0x38] sm:$0xff]
  %v607 = vld [vmem:[#allocation2 + $0x48] sm:$0xff]
  %v608 = vld [vmem:[#allocation2 + $0x50] sm:$0xff]
  %v609 = vld [vmem:[#allocation2 + $0x60] sm:$0xff]
  %v610 = vld [vmem:[#allocation2 + $0x68] sm:$0xff]
  %v611 = vld [vmem:[#allocation2 + $0x78] sm:$0xff]
  %v612 = vld [vmem:[#allocation2 + $0x80] sm:$0xff]
  %v613 = vld [vmem:[#allocation2 + $0x90] sm:$0xff]
  %v614 = vld [vmem:[#allocation2 + $0x98] sm:$0xff]
  %v615 = vld [vmem:[#allocation2 + $0xa8] sm:$0xff]
  %v616 = vld [vmem:[#allocation2 + $0xb0] sm:$0xff]
  %v617 = vld [vmem:[#allocation2 + $0xc0] sm:$0xff]
  %v618 = vld [vmem:[#allocation2 + $0xc8] sm:$0xff]
  %v619 = vld [vmem:[#allocation2 + $0xd8] sm:$0xff]
  %v620 = vld [vmem:[#allocation2 + $0xe0] sm:$0xff]
  %v621 = vld [vmem:[#allocation2 + $0xf0] sm:$0xff]
  %v622 = vld [vmem:[#allocation2 + $0xf8] sm:$0xff]
  %v623 = vld [vmem:[#allocation2 + $0x108] sm:$0xff]
  %v624 = vld [vmem:[#allocation2 + $0x110] sm:$0xff]
  %v625 = vld [vmem:[#allocation2 + $0x120] sm:$0xff]
  %v626 = vld [vmem:[#allocation2 + $0x128] sm:$0xff]
  %v627 = vld [vmem:[#allocation2 + $0x138] sm:$0xff]
  %v628 = vld [vmem:[#allocation2 + $0x140] sm:$0xff]
  %v629 = vld [vmem:[#allocation2 + $0x150] sm:$0xff]
  %v630 = vld [vmem:[#allocation2 + $0x158] sm:$0xff]
  %v631 = vld [vmem:[#allocation2 + $0x168] sm:$0xff]
  %v632 = vld [vmem:[#allocation2 + $0x170] sm:$0xff]
  %v633 = vld [vmem:[#allocation2 + $0x1b0] sm:$0xff]
  %v634 = vld [vmem:[#allocation2 + $0x1b8] sm:$0xff]
  %v635 = vld [vmem:[#allocation2 + $0x1c8] sm:$0xff]
  %v636 = vld [vmem:[#allocation2 + $0x1d0] sm:$0xff]
  %v637 = vld [vmem:[#allocation2 + $0x1e0] sm:$0xff]
  %v638 = vld [vmem:[#allocation2 + $0x1e8] sm:$0xff]
  %v639 = vld [vmem:[#allocation2 + $0x1f8] sm:$0xff]
  %v640 = vld [vmem:[#allocation2 + $0x200] sm:$0xff]
  %v641 = vld [vmem:[#allocation2 + $0x210] sm:$0xff]
  %v642 = vld [vmem:[#allocation2 + $0x218] sm:$0xff]
  %v643 = vld [vmem:[#allocation2 + $0x228] sm:$0xff]
  %v644 = vld [vmem:[#allocation2 + $0x230] sm:$0xff]
  %v645 = vld [vmem:[#allocation2 + $0x240] sm:$0xff]
  %v646 = vld [vmem:[#allocation2 + $0x248] sm:$0xff]
  %v647 = vld [vmem:[#allocation2 + $0x258] sm:$0xff]
  %v648 = vld [vmem:[#allocation2 + $0x260] sm:$0xff]
  %v649 = vld [vmem:[#allocation2 + $0x270] sm:$0xff]
  %v650 = vld [vmem:[#allocation2 + $0x278] sm:$0xff]
  %v651 = vld [vmem:[#allocation2 + $0x288] sm:$0xff]
  %v652 = vld [vmem:[#allocation2 + $0x290] sm:$0xff]
  %v653 = vld [vmem:[#allocation2 + $0x2a0] sm:$0xff]
  %v654 = vld [vmem:[#allocation2 + $0x2a8] sm:$0xff]
  %v655 = vld [vmem:[#allocation2 + $0x2b8] sm:$0xff]
  %v656 = vld [vmem:[#allocation2 + $0x2c0] sm:$0xff]
  %v657 = vld [vmem:[#allocation2 + $0x2d0] sm:$0xff]
  %v658 = vld [vmem:[#allocation2 + $0x2d8] sm:$0xff]
  %v659 = vld [vmem:[#allocation2 + $0x2e8] sm:$0xff]
  %v660 = vld [vmem:[#allocation2 + $0x2f0] sm:$0xff]
  %v661 = vld [vmem:[#allocation2 + $0x300] sm:$0xff]
  %v662 = vld [vmem:[#allocation2 + $0x308] sm:$0xff]
  %v663 = vld [vmem:[#allocation2 + $0x318] sm:$0xff]
  %v664 = vld [vmem:[#allocation2 + $0x320] sm:$0xff]
  %v665 = vlaneseq
  %v666 = vshrl.u32 %v665, 7
  %v667 = vsub.s32 0, %v666
  %v668 = vrot.slane %v32, %v667
  %v669 = vmul.f32 %v601, %v668
  %v670 = vmul.f32 %v602, %v668
  %v671 = vmul.f32 %v603, %v668
  %v672 = vmul.f32 %v604, %v668
  %v673 = vmul.f32 %v605, %v668
  %v674 = vmul.f32 %v606, %v668
  %v675 = vmul.f32 %v607, %v668
  %v676 = vmul.f32 %v608, %v668
  %v677 = vmul.f32 %v609, %v668
  %v678 = vmul.f32 %v610, %v668
  %v679 = vmul.f32 %v611, %v668
  %v680 = vmul.f32 %v612, %v668
  %v681 = vmul.f32 %v613, %v668
  %v682 = vmul.f32 %v614, %v668
  %v683 = vmul.f32 %v615, %v668
  %v684 = vmul.f32 %v616, %v668
  %v685 = vmul.f32 %v617, %v668
  %v686 = vmul.f32 %v618, %v668
  %v687 = vmul.f32 %v619, %v668
  %v688 = vmul.f32 %v620, %v668
  %v689 = vmul.f32 %v621, %v668
  %v690 = vmul.f32 %v622, %v668
  %v691 = vmul.f32 %v623, %v668
  %v692 = vmul.f32 %v624, %v668
  %v693 = vmul.f32 %v625, %v668
  %v694 = vmul.f32 %v626, %v668
  %v695 = vmul.f32 %v627, %v668
  %v696 = vmul.f32 %v628, %v668
  %v697 = vmul.f32 %v629, %v668
  %v698 = vmul.f32 %v630, %v668
  %v699 = vmul.f32 %v631, %v668
  %v700 = vmul.f32 %v632, %v668
  %v701 = vmul.f32 %v633, %v668
  %v702 = vmul.f32 %v634, %v668
  %v703 = vmul.f32 %v635, %v668
  %v704 = vmul.f32 %v636, %v668
  %v705 = vmul.f32 %v637, %v668
  %v706 = vmul.f32 %v638, %v668
  %v707 = vmul.f32 %v639, %v668
  %v708 = vmul.f32 %v640, %v668
  %v709 = vmul.f32 %v641, %v668
  %v710 = vmul.f32 %v642, %v668
  %v711 = vmul.f32 %v643, %v668
  %v712 = vmul.f32 %v644, %v668
  %v713 = vmul.f32 %v645, %v668
  %v714 = vmul.f32 %v646, %v668
  %v715 = vmul.f32 %v647, %v668
  %v716 = vmul.f32 %v648, %v668
  %v717 = vmul.f32 %v649, %v668
  %v718 = vmul.f32 %v650, %v668
  %v719 = vmul.f32 %v651, %v668
  %v720 = vmul.f32 %v652, %v668
  %v721 = vmul.f32 %v653, %v668
  %v722 = vmul.f32 %v654, %v668
  %v723 = vmul.f32 %v655, %v668
  %v724 = vmul.f32 %v656, %v668
  %v725 = vmul.f32 %v657, %v668
  %v726 = vmul.f32 %v658, %v668
  %v727 = vmul.f32 %v659, %v668
  %v728 = vmul.f32 %v660, %v668
  %v729 = vmul.f32 %v661, %v668
  %v730 = vmul.f32 %v662, %v668
  %v731 = vmul.f32 %v663, %v668
  %v732 = vmul.f32 %v664, %v668
  %v733 = vadd.f32 %v41, %v669
  %v734 = vadd.f32 %v41, %v670
  %v735 = vadd.f32 %v41, %v671
  %v736 = vadd.f32 %v41, %v672
  %v737 = vadd.f32 %v41, %v673
  %v738 = vadd.f32 %v41, %v674
  %v739 = vadd.f32 %v41, %v675
  %v740 = vadd.f32 %v41, %v676
  %v741 = vadd.f32 %v41, %v677
  %v742 = vadd.f32 %v41, %v678
  %v743 = vadd.f32 %v41, %v679
  %v744 = vadd.f32 %v41, %v680
  %v745 = vadd.f32 %v41, %v681
  %v746 = vadd.f32 %v41, %v682
  %v747 = vadd.f32 %v41, %v683
  %v748 = vadd.f32 %v41, %v684
  %v749 = vadd.f32 %v41, %v685
  %v750 = vadd.f32 %v41, %v686
  %v751 = vadd.f32 %v41, %v687
  %v752 = vadd.f32 %v41, %v688
  %v753 = vadd.f32 %v41, %v689
  %v754 = vadd.f32 %v41, %v690
  %v755 = vadd.f32 %v41, %v691
  %v756 = vadd.f32 %v41, %v692
  %v757 = vadd.f32 %v41, %v693
  %v758 = vadd.f32 %v41, %v694
  %v759 = vadd.f32 %v41, %v695
  %v760 = vadd.f32 %v41, %v696
  %v761 = vadd.f32 %v41, %v697
  %v762 = vadd.f32 %v41, %v698
  %v763 = vadd.f32 %v41, %v699
  %v764 = vadd.f32 %v41, %v700
  %v765 = vadd.f32 %v41, %v701
  %v766 = vadd.f32 %v41, %v702
  %v767 = vadd.f32 %v41, %v703
  %v768 = vadd.f32 %v41, %v704
  %v769 = vadd.f32 %v41, %v705
  %v770 = vadd.f32 %v41, %v706
  %v771 = vadd.f32 %v41, %v707
  %v772 = vadd.f32 %v41, %v708
  %v773 = vadd.f32 %v41, %v709
  %v774 = vadd.f32 %v41, %v710
  %v775 = vadd.f32 %v41, %v711
  %v776 = vadd.f32 %v41, %v712
  %v777 = vadd.f32 %v41, %v713
  %v778 = vadd.f32 %v41, %v714
  %v779 = vadd.f32 %v41, %v715
  %v780 = vadd.f32 %v41, %v716
  %v781 = vadd.f32 %v41, %v717
  %v782 = vadd.f32 %v41, %v718
  %v783 = vadd.f32 %v41, %v719
  %v784 = vadd.f32 %v41, %v720
  %v785 = vadd.f32 %v41, %v721
  %v786 = vadd.f32 %v41, %v722
  %v787 = vadd.f32 %v41, %v723
  %v788 = vadd.f32 %v41, %v724
  %v789 = vadd.f32 %v41, %v725
  %v790 = vadd.f32 %v41, %v726
  %v791 = vadd.f32 %v41, %v727
  %v792 = vadd.f32 %v41, %v728
  %v793 = vadd.f32 %v41, %v729
  %v794 = vadd.f32 %v41, %v730
  %v795 = vadd.f32 %v41, %v731
  %v796 = vadd.f32 %v41, %v732
  %v797 = vld [vmem:[#allocation2 + $0x1] sm:$0xff]
  %v798 = vld [vmem:[#allocation2 + $0x9] sm:$0xff]
  %v799 = vld [vmem:[#allocation2 + $0x19] sm:$0xff]
  %v800 = vld [vmem:[#allocation2 + $0x21] sm:$0xff]
  %v801 = vld [vmem:[#allocation2 + $0x31] sm:$0xff]
  %v802 = vld [vmem:[#allocation2 + $0x39] sm:$0xff]
  %v803 = vld [vmem:[#allocation2 + $0x49] sm:$0xff]
  %v804 = vld [vmem:[#allocation2 + $0x51] sm:$0xff]
  %v805 = vld [vmem:[#allocation2 + $0x61] sm:$0xff]
  %v806 = vld [vmem:[#allocation2 + $0x69] sm:$0xff]
  %v807 = vld [vmem:[#allocation2 + $0x79] sm:$0xff]
  %v808 = vld [vmem:[#allocation2 + $0x81] sm:$0xff]
  %v809 = vld [vmem:[#allocation2 + $0x91] sm:$0xff]
  %v810 = vld [vmem:[#allocation2 + $0x99] sm:$0xff]
  %v811 = vld [vmem:[#allocation2 + $0xa9] sm:$0xff]
  %v812 = vld [vmem:[#allocation2 + $0xb1] sm:$0xff]
  %v813 = vld [vmem:[#allocation2 + $0xc1] sm:$0xff]
  %v814 = vld [vmem:[#allocation2 + $0xc9] sm:$0xff]
  %v815 = vld [vmem:[#allocation2 + $0xd9] sm:$0xff]
  %v816 = vld [vmem:[#allocation2 + $0xe1] sm:$0xff]
  %v817 = vld [vmem:[#allocation2 + $0xf1] sm:$0xff]
  %v818 = vld [vmem:[#allocation2 + $0xf9] sm:$0xff]
  %v819 = vld [vmem:[#allocation2 + $0x109] sm:$0xff]
  %v820 = vld [vmem:[#allocation2 + $0x111] sm:$0xff]
  %v821 = vld [vmem:[#allocation2 + $0x121] sm:$0xff]
  %v822 = vld [vmem:[#allocation2 + $0x129] sm:$0xff]
  %v823 = vld [vmem:[#allocation2 + $0x139] sm:$0xff]
  %v824 = vld [vmem:[#allocation2 + $0x141] sm:$0xff]
  %v825 = vld [vmem:[#allocation2 + $0x151] sm:$0xff]
  %v826 = vld [vmem:[#allocation2 + $0x159] sm:$0xff]
  %v827 = vld [vmem:[#allocation2 + $0x169] sm:$0xff]
  %v828 = vld [vmem:[#allocation2 + $0x171] sm:$0xff]
  %v829 = vld [vmem:[#allocation2 + $0x1b1] sm:$0xff]
  %v830 = vld [vmem:[#allocation2 + $0x1b9] sm:$0xff]
  %v831 = vld [vmem:[#allocation2 + $0x1c9] sm:$0xff]
  %v832 = vld [vmem:[#allocation2 + $0x1d1] sm:$0xff]
  %v833 = vld [vmem:[#allocation2 + $0x1e1] sm:$0xff]
  %v834 = vld [vmem:[#allocation2 + $0x1e9] sm:$0xff]
  %v835 = vld [vmem:[#allocation2 + $0x1f9] sm:$0xff]
  %v836 = vld [vmem:[#allocation2 + $0x201] sm:$0xff]
  %v837 = vld [vmem:[#allocation2 + $0x211] sm:$0xff]
  %v838 = vld [vmem:[#allocation2 + $0x219] sm:$0xff]
  %v839 = vld [vmem:[#allocation2 + $0x229] sm:$0xff]
  %v840 = vld [vmem:[#allocation2 + $0x231] sm:$0xff]
  %v841 = vld [vmem:[#allocation2 + $0x241] sm:$0xff]
  %v842 = vld [vmem:[#allocation2 + $0x249] sm:$0xff]
  %v843 = vld [vmem:[#allocation2 + $0x259] sm:$0xff]
  %v844 = vld [vmem:[#allocation2 + $0x261] sm:$0xff]
  %v845 = vld [vmem:[#allocation2 + $0x271] sm:$0xff]
  %v846 = vld [vmem:[#allocation2 + $0x279] sm:$0xff]
  %v847 = vld [vmem:[#allocation2 + $0x289] sm:$0xff]
  %v848 = vld [vmem:[#allocation2 + $0x291] sm:$0xff]
  %v849 = vld [vmem:[#allocation2 + $0x2a1] sm:$0xff]
  %v850 = vld [vmem:[#allocation2 + $0x2a9] sm:$0xff]
  %v851 = vld [vmem:[#allocation2 + $0x2b9] sm:$0xff]
  %v852 = vld [vmem:[#allocation2 + $0x2c1] sm:$0xff]
  %v853 = vld [vmem:[#allocation2 + $0x2d1] sm:$0xff]
  %v854 = vld [vmem:[#allocation2 + $0x2d9] sm:$0xff]
  %v855 = vld [vmem:[#allocation2 + $0x2e9] sm:$0xff]
  %v856 = vld [vmem:[#allocation2 + $0x2f1] sm:$0xff]
  %v857 = vld [vmem:[#allocation2 + $0x301] sm:$0xff]
  %v858 = vld [vmem:[#allocation2 + $0x309] sm:$0xff]
  %v859 = vld [vmem:[#allocation2 + $0x319] sm:$0xff]
  %v860 = vld [vmem:[#allocation2 + $0x321] sm:$0xff]
  %v861 = vlaneseq
  %v862 = vshrl.u32 %v861, 7
  %v863 = vsub.s32 1, %v862
  %v864 = vrot.slane %v32, %v863
  %v865 = vmul.f32 %v797, %v864
  %v866 = vmul.f32 %v798, %v864
  %v867 = vmul.f32 %v799, %v864
  %v868 = vmul.f32 %v800, %v864
  %v869 = vmul.f32 %v801, %v864
  %v870 = vmul.f32 %v802, %v864
  %v871 = vmul.f32 %v803, %v864
  %v872 = vmul.f32 %v804, %v864
  %v873 = vmul.f32 %v805, %v864
  %v874 = vmul.f32 %v806, %v864
  %v875 = vmul.f32 %v807, %v864
  %v876 = vmul.f32 %v808, %v864
  %v877 = vmul.f32 %v809, %v864
  %v878 = vmul.f32 %v810, %v864
  %v879 = vmul.f32 %v811, %v864
  %v880 = vmul.f32 %v812, %v864
  %v881 = vmul.f32 %v813, %v864
  %v882 = vmul.f32 %v814, %v864
  %v883 = vmul.f32 %v815, %v864
  %v884 = vmul.f32 %v816, %v864
  %v885 = vmul.f32 %v817, %v864
  %v886 = vmul.f32 %v818, %v864
  %v887 = vmul.f32 %v819, %v864
  %v888 = vmul.f32 %v820, %v864
  %v889 = vmul.f32 %v821, %v864
  %v890 = vmul.f32 %v822, %v864
  %v891 = vmul.f32 %v823, %v864
  %v892 = vmul.f32 %v824, %v864
  %v893 = vmul.f32 %v825, %v864
  %v894 = vmul.f32 %v826, %v864
  %v895 = vmul.f32 %v827, %v864
  %v896 = vmul.f32 %v828, %v864
  %v897 = vmul.f32 %v829, %v864
  %v898 = vmul.f32 %v830, %v864
  %v899 = vmul.f32 %v831, %v864
  %v900 = vmul.f32 %v832, %v864
  %v901 = vmul.f32 %v833, %v864
  %v902 = vmul.f32 %v834, %v864
  %v903 = vmul.f32 %v835, %v864
  %v904 = vmul.f32 %v836, %v864
  %v905 = vmul.f32 %v837, %v864
  %v906 = vmul.f32 %v838, %v864
  %v907 = vmul.f32 %v839, %v864
  %v908 = vmul.f32 %v840, %v864
  %v909 = vmul.f32 %v841, %v864
  %v910 = vmul.f32 %v842, %v864
  %v911 = vmul.f32 %v843, %v864
  %v912 = vmul.f32 %v844, %v864
  %v913 = vmul.f32 %v845, %v864
  %v914 = vmul.f32 %v846, %v864
  %v915 = vmul.f32 %v847, %v864
  %v916 = vmul.f32 %v848, %v864
  %v917 = vmul.f32 %v849, %v864
  %v918 = vmul.f32 %v850, %v864
  %v919 = vmul.f32 %v851, %v864
  %v920 = vmul.f32 %v852, %v864
  %v921 = vmul.f32 %v853, %v864
  %v922 = vmul.f32 %v854, %v864
  %v923 = vmul.f32 %v855, %v864
  %v924 = vmul.f32 %v856, %v864
  %v925 = vmul.f32 %v857, %v864
  %v926 = vmul.f32 %v858, %v864
  %v927 = vmul.f32 %v859, %v864
  %v928 = vmul.f32 %v860, %v864
  %v929 = vadd.f32 %v733, %v865
  %v930 = vadd.f32 %v734, %v866
  %v931 = vadd.f32 %v735, %v867
  %v932 = vadd.f32 %v736, %v868
  %v933 = vadd.f32 %v737, %v869
  %v934 = vadd.f32 %v738, %v870
  %v935 = vadd.f32 %v739, %v871
  %v936 = vadd.f32 %v740, %v872
  %v937 = vadd.f32 %v741, %v873
  %v938 = vadd.f32 %v742, %v874
  %v939 = vadd.f32 %v743, %v875
  %v940 = vadd.f32 %v744, %v876
  %v941 = vadd.f32 %v745, %v877
  %v942 = vadd.f32 %v746, %v878
  %v943 = vadd.f32 %v747, %v879
  %v944 = vadd.f32 %v748, %v880
  %v945 = vadd.f32 %v749, %v881
  %v946 = vadd.f32 %v750, %v882
  %v947 = vadd.f32 %v751, %v883
  %v948 = vadd.f32 %v752, %v884
  %v949 = vadd.f32 %v753, %v885
  %v950 = vadd.f32 %v754, %v886
  %v951 = vadd.f32 %v755, %v887
  %v952 = vadd.f32 %v756, %v888
  %v953 = vadd.f32 %v757, %v889
  %v954 = vadd.f32 %v758, %v890
  %v955 = vadd.f32 %v759, %v891
  %v956 = vadd.f32 %v760, %v892
  %v957 = vadd.f32 %v761, %v893
  %v958 = vadd.f32 %v762, %v894
  %v959 = vadd.f32 %v763, %v895
  %v960 = vadd.f32 %v764, %v896
  %v961 = vadd.f32 %v765, %v897
  %v962 = vadd.f32 %v766, %v898
  %v963 = vadd.f32 %v767, %v899
  %v964 = vadd.f32 %v768, %v900
  %v965 = vadd.f32 %v769, %v901
  %v966 = vadd.f32 %v770, %v902
  %v967 = vadd.f32 %v771, %v903
  %v968 = vadd.f32 %v772, %v904
  %v969 = vadd.f32 %v773, %v905
  %v970 = vadd.f32 %v774, %v906
  %v971 = vadd.f32 %v775, %v907
  %v972 = vadd.f32 %v776, %v908
  %v973 = vadd.f32 %v777, %v909
  %v974 = vadd.f32 %v778, %v910
  %v975 = vadd.f32 %v779, %v911
  %v976 = vadd.f32 %v780, %v912
  %v977 = vadd.f32 %v781, %v913
  %v978 = vadd.f32 %v782, %v914
  %v979 = vadd.f32 %v783, %v915
  %v980 = vadd.f32 %v784, %v916
  %v981 = vadd.f32 %v785, %v917
  %v982 = vadd.f32 %v786, %v918
  %v983 = vadd.f32 %v787, %v919
  %v984 = vadd.f32 %v788, %v920
  %v985 = vadd.f32 %v789, %v921
  %v986 = vadd.f32 %v790, %v922
  %v987 = vadd.f32 %v791, %v923
  %v988 = vadd.f32 %v792, %v924
  %v989 = vadd.f32 %v793, %v925
  %v990 = vadd.f32 %v794, %v926
  %v991 = vadd.f32 %v795, %v927
  %v992 = vadd.f32 %v796, %v928
  %v993 = vld [vmem:[#allocation2 + $0x2] sm:$0xff]
  %v994 = vld [vmem:[#allocation2 + $0xa] sm:$0xff]
  %v995 = vld [vmem:[#allocation2 + $0x1a] sm:$0xff]
  %v996 = vld [vmem:[#allocation2 + $0x22] sm:$0xff]
  %v997 = vld [vmem:[#allocation2 + $0x32] sm:$0xff]
  %v998 = vld [vmem:[#allocation2 + $0x3a] sm:$0xff]
  %v999 = vld [vmem:[#allocation2 + $0x4a] sm:$0xff]
  %v1000 = vld [vmem:[#allocation2 + $0x52] sm:$0xff]
  %v1001 = vld [vmem:[#allocation2 + $0x62] sm:$0xff]
  %v1002 = vld [vmem:[#allocation2 + $0x6a] sm:$0xff]
  %v1003 = vld [vmem:[#allocation2 + $0x7a] sm:$0xff]
  %v1004 = vld [vmem:[#allocation2 + $0x82] sm:$0xff]
  %v1005 = vld [vmem:[#allocation2 + $0x92] sm:$0xff]
  %v1006 = vld [vmem:[#allocation2 + $0x9a] sm:$0xff]
  %v1007 = vld [vmem:[#allocation2 + $0xaa] sm:$0xff]
  %v1008 = vld [vmem:[#allocation2 + $0xb2] sm:$0xff]
  %v1009 = vld [vmem:[#allocation2 + $0xc2] sm:$0xff]
  %v1010 = vld [vmem:[#allocation2 + $0xca] sm:$0xff]
  %v1011 = vld [vmem:[#allocation2 + $0xda] sm:$0xff]
  %v1012 = vld [vmem:[#allocation2 + $0xe2] sm:$0xff]
  %v1013 = vld [vmem:[#allocation2 + $0xf2] sm:$0xff]
  %v1014 = vld [vmem:[#allocation2 + $0xfa] sm:$0xff]
  %v1015 = vld [vmem:[#allocation2 + $0x10a] sm:$0xff]
  %v1016 = vld [vmem:[#allocation2 + $0x112] sm:$0xff]
  %v1017 = vld [vmem:[#allocation2 + $0x122] sm:$0xff]
  %v1018 = vld [vmem:[#allocation2 + $0x12a] sm:$0xff]
  %v1019 = vld [vmem:[#allocation2 + $0x13a] sm:$0xff]
  %v1020 = vld [vmem:[#allocation2 + $0x142] sm:$0xff]
  %v1021 = vld [vmem:[#allocation2 + $0x152] sm:$0xff]
  %v1022 = vld [vmem:[#allocation2 + $0x15a] sm:$0xff]
  %v1023 = vld [vmem:[#allocation2 + $0x16a] sm:$0xff]
  %v1024 = vld [vmem:[#allocation2 + $0x172] sm:$0xff]
  %v1025 = vld [vmem:[#allocation2 + $0x1b2] sm:$0xff]
  %v1026 = vld [vmem:[#allocation2 + $0x1ba] sm:$0xff]
  %v1027 = vld [vmem:[#allocation2 + $0x1ca] sm:$0xff]
  %v1028 = vld [vmem:[#allocation2 + $0x1d2] sm:$0xff]
  %v1029 = vld [vmem:[#allocation2 + $0x1e2] sm:$0xff]
  %v1030 = vld [vmem:[#allocation2 + $0x1ea] sm:$0xff]
  %v1031 = vld [vmem:[#allocation2 + $0x1fa] sm:$0xff]
  %v1032 = vld [vmem:[#allocation2 + $0x202] sm:$0xff]
  %v1033 = vld [vmem:[#allocation2 + $0x212] sm:$0xff]
  %v1034 = vld [vmem:[#allocation2 + $0x21a] sm:$0xff]
  %v1035 = vld [vmem:[#allocation2 + $0x22a] sm:$0xff]
  %v1036 = vld [vmem:[#allocation2 + $0x232] sm:$0xff]
  %v1037 = vld [vmem:[#allocation2 + $0x242] sm:$0xff]
  %v1038 = vld [vmem:[#allocation2 + $0x24a] sm:$0xff]
  %v1039 = vld [vmem:[#allocation2 + $0x25a] sm:$0xff]
  %v1040 = vld [vmem:[#allocation2 + $0x262] sm:$0xff]
  %v1041 = vld [vmem:[#allocation2 + $0x272] sm:$0xff]
  %v1042 = vld [vmem:[#allocation2 + $0x27a] sm:$0xff]
  %v1043 = vld [vmem:[#allocation2 + $0x28a] sm:$0xff]
  %v1044 = vld [vmem:[#allocation2 + $0x292] sm:$0xff]
  %v1045 = vld [vmem:[#allocation2 + $0x2a2] sm:$0xff]
  %v1046 = vld [vmem:[#allocation2 + $0x2aa] sm:$0xff]
  %v1047 = vld [vmem:[#allocation2 + $0x2ba] sm:$0xff]
  %v1048 = vld [vmem:[#allocation2 + $0x2c2] sm:$0xff]
  %v1049 = vld [vmem:[#allocation2 + $0x2d2] sm:$0xff]
  %v1050 = vld [vmem:[#allocation2 + $0x2da] sm:$0xff]
  %v1051 = vld [vmem:[#allocation2 + $0x2ea] sm:$0xff]
  %v1052 = vld [vmem:[#allocation2 + $0x2f2] sm:$0xff]
  %v1053 = vld [vmem:[#allocation2 + $0x302] sm:$0xff]
  %v1054 = vld [vmem:[#allocation2 + $0x30a] sm:$0xff]
  %v1055 = vld [vmem:[#allocation2 + $0x31a] sm:$0xff]
  %v1056 = vld [vmem:[#allocation2 + $0x322] sm:$0xff]
  %v1057 = vlaneseq
  %v1058 = vshrl.u32 %v1057, 7
  %v1059 = vsub.s32 2, %v1058
  %v1060 = vrot.slane %v32, %v1059
  %v1061 = vmul.f32 %v993, %v1060
  %v1062 = vmul.f32 %v994, %v1060
  %v1063 = vmul.f32 %v995, %v1060
  %v1064 = vmul.f32 %v996, %v1060
  %v1065 = vmul.f32 %v997, %v1060
  %v1066 = vmul.f32 %v998, %v1060
  %v1067 = vmul.f32 %v999, %v1060
  %v1068 = vmul.f32 %v1000, %v1060
  %v1069 = vmul.f32 %v1001, %v1060
  %v1070 = vmul.f32 %v1002, %v1060
  %v1071 = vmul.f32 %v1003, %v1060
  %v1072 = vmul.f32 %v1004, %v1060
  %v1073 = vmul.f32 %v1005, %v1060
  %v1074 = vmul.f32 %v1006, %v1060
  %v1075 = vmul.f32 %v1007, %v1060
  %v1076 = vmul.f32 %v1008, %v1060
  %v1077 = vmul.f32 %v1009, %v1060
  %v1078 = vmul.f32 %v1010, %v1060
  %v1079 = vmul.f32 %v1011, %v1060
  %v1080 = vmul.f32 %v1012, %v1060
  %v1081 = vmul.f32 %v1013, %v1060
  %v1082 = vmul.f32 %v1014, %v1060
  %v1083 = vmul.f32 %v1015, %v1060
  %v1084 = vmul.f32 %v1016, %v1060
  %v1085 = vmul.f32 %v1017, %v1060
  %v1086 = vmul.f32 %v1018, %v1060
  %v1087 = vmul.f32 %v1019, %v1060
  %v1088 = vmul.f32 %v1020, %v1060
  %v1089 = vmul.f32 %v1021, %v1060
  %v1090 = vmul.f32 %v1022, %v1060
  %v1091 = vmul.f32 %v1023, %v1060
  %v1092 = vmul.f32 %v1024, %v1060
  %v1093 = vmul.f32 %v1025, %v1060
  %v1094 = vmul.f32 %v1026, %v1060
  %v1095 = vmul.f32 %v1027, %v1060
  %v1096 = vmul.f32 %v1028, %v1060
  %v1097 = vmul.f32 %v1029, %v1060
  %v1098 = vmul.f32 %v1030, %v1060
  %v1099 = vmul.f32 %v1031, %v1060
  %v1100 = vmul.f32 %v1032, %v1060
  %v1101 = vmul.f32 %v1033, %v1060
  %v1102 = vmul.f32 %v1034, %v1060
  %v1103 = vmul.f32 %v1035, %v1060
  %v1104 = vmul.f32 %v1036, %v1060
  %v1105 = vmul.f32 %v1037, %v1060
  %v1106 = vmul.f32 %v1038, %v1060
  %v1107 = vmul.f32 %v1039, %v1060
  %v1108 = vmul.f32 %v1040, %v1060
  %v1109 = vmul.f32 %v1041, %v1060
  %v1110 = vmul.f32 %v1042, %v1060
  %v1111 = vmul.f32 %v1043, %v1060
  %v1112 = vmul.f32 %v1044, %v1060
  %v1113 = vmul.f32 %v1045, %v1060
  %v1114 = vmul.f32 %v1046, %v1060
  %v1115 = vmul.f32 %v1047, %v1060
  %v1116 = vmul.f32 %v1048, %v1060
  %v1117 = vmul.f32 %v1049, %v1060
  %v1118 = vmul.f32 %v1050, %v1060
  %v1119 = vmul.f32 %v1051, %v1060
  %v1120 = vmul.f32 %v1052, %v1060
  %v1121 = vmul.f32 %v1053, %v1060
  %v1122 = vmul.f32 %v1054, %v1060
  %v1123 = vmul.f32 %v1055, %v1060
  %v1124 = vmul.f32 %v1056, %v1060
  %v1125 = vadd.f32 %v929, %v1061
  %v1126 = vadd.f32 %v930, %v1062
  %v1127 = vadd.f32 %v931, %v1063
  %v1128 = vadd.f32 %v932, %v1064
  %v1129 = vadd.f32 %v933, %v1065
  %v1130 = vadd.f32 %v934, %v1066
  %v1131 = vadd.f32 %v935, %v1067
  %v1132 = vadd.f32 %v936, %v1068
  %v1133 = vadd.f32 %v937, %v1069
  %v1134 = vadd.f32 %v938, %v1070
  %v1135 = vadd.f32 %v939, %v1071
  %v1136 = vadd.f32 %v940, %v1072
  %v1137 = vadd.f32 %v941, %v1073
  %v1138 = vadd.f32 %v942, %v1074
  %v1139 = vadd.f32 %v943, %v1075
  %v1140 = vadd.f32 %v944, %v1076
  %v1141 = vadd.f32 %v945, %v1077
  %v1142 = vadd.f32 %v946, %v1078
  %v1143 = vadd.f32 %v947, %v1079
  %v1144 = vadd.f32 %v948, %v1080
  %v1145 = vadd.f32 %v949, %v1081
  %v1146 = vadd.f32 %v950, %v1082
  %v1147 = vadd.f32 %v951, %v1083
  %v1148 = vadd.f32 %v952, %v1084
  %v1149 = vadd.f32 %v953, %v1085
  %v1150 = vadd.f32 %v954, %v1086
  %v1151 = vadd.f32 %v955, %v1087
  %v1152 = vadd.f32 %v956, %v1088
  %v1153 = vadd.f32 %v957, %v1089
  %v1154 = vadd.f32 %v958, %v1090
  %v1155 = vadd.f32 %v959, %v1091
  %v1156 = vadd.f32 %v960, %v1092
  %v1157 = vadd.f32 %v961, %v1093
  %v1158 = vadd.f32 %v962, %v1094
  %v1159 = vadd.f32 %v963, %v1095
  %v1160 = vadd.f32 %v964, %v1096
  %v1161 = vadd.f32 %v965, %v1097
  %v1162 = vadd.f32 %v966, %v1098
  %v1163 = vadd.f32 %v967, %v1099
  %v1164 = vadd.f32 %v968, %v1100
  %v1165 = vadd.f32 %v969, %v1101
  %v1166 = vadd.f32 %v970, %v1102
  %v1167 = vadd.f32 %v971, %v1103
  %v1168 = vadd.f32 %v972, %v1104
  %v1169 = vadd.f32 %v973, %v1105
  %v1170 = vadd.f32 %v974, %v1106
  %v1171 = vadd.f32 %v975, %v1107
  %v1172 = vadd.f32 %v976, %v1108
  %v1173 = vadd.f32 %v977, %v1109
  %v1174 = vadd.f32 %v978, %v1110
  %v1175 = vadd.f32 %v979, %v1111
  %v1176 = vadd.f32 %v980, %v1112
  %v1177 = vadd.f32 %v981, %v1113
  %v1178 = vadd.f32 %v982, %v1114
  %v1179 = vadd.f32 %v983, %v1115
  %v1180 = vadd.f32 %v984, %v1116
  %v1181 = vadd.f32 %v985, %v1117
  %v1182 = vadd.f32 %v986, %v1118
  %v1183 = vadd.f32 %v987, %v1119
  %v1184 = vadd.f32 %v988, %v1120
  %v1185 = vadd.f32 %v989, %v1121
  %v1186 = vadd.f32 %v990, %v1122
  %v1187 = vadd.f32 %v991, %v1123
  %v1188 = vadd.f32 %v992, %v1124
  %v1189 = vld [vmem:[%s536] sm:$0xff]
  %v1190 = vld [vmem:[%s536 + $0x8] sm:$0xff]
  %v1191 = vld [vmem:[%s536 + $0x18] sm:$0xff]
  %v1192 = vld [vmem:[%s536 + $0x20] sm:$0xff]
  %v1193 = vld [vmem:[%s536 + $0x30] sm:$0xff]
  %v1194 = vld [vmem:[%s536 + $0x38] sm:$0xff]
  %v1195 = vld [vmem:[%s536 + $0x48] sm:$0xff]
  %v1196 = vld [vmem:[%s536 + $0x50] sm:$0xff]
  %v1197 = vld [vmem:[%s536 + $0x60] sm:$0xff]
  %v1198 = vld [vmem:[%s536 + $0x68] sm:$0xff]
  %v1199 = vld [vmem:[%s536 + $0x78] sm:$0xff]
  %v1200 = vld [vmem:[%s536 + $0x80] sm:$0xff]
  %v1201 = vld [vmem:[%s536 + $0x90] sm:$0xff]
  %v1202 = vld [vmem:[%s536 + $0x98] sm:$0xff]
  %v1203 = vld [vmem:[%s536 + $0xa8] sm:$0xff]
  %v1204 = vld [vmem:[%s536 + $0xb0] sm:$0xff]
  %v1205 = vld [vmem:[%s536 + $0xc0] sm:$0xff]
  %v1206 = vld [vmem:[%s536 + $0xc8] sm:$0xff]
  %v1207 = vld [vmem:[%s536 + $0xd8] sm:$0xff]
  %v1208 = vld [vmem:[%s536 + $0xe0] sm:$0xff]
  %v1209 = vld [vmem:[%s536 + $0xf0] sm:$0xff]
  %v1210 = vld [vmem:[%s536 + $0xf8] sm:$0xff]
  %v1211 = vld [vmem:[%s536 + $0x108] sm:$0xff]
  %v1212 = vld [vmem:[%s536 + $0x110] sm:$0xff]
  %v1213 = vld [vmem:[%s536 + $0x120] sm:$0xff]
  %v1214 = vld [vmem:[%s536 + $0x128] sm:$0xff]
  %v1215 = vld [vmem:[%s536 + $0x138] sm:$0xff]
  %v1216 = vld [vmem:[%s536 + $0x140] sm:$0xff]
  %v1217 = vld [vmem:[%s536 + $0x150] sm:$0xff]
  %v1218 = vld [vmem:[%s536 + $0x158] sm:$0xff]
  %v1219 = vld [vmem:[%s536 + $0x168] sm:$0xff]
  %v1220 = vld [vmem:[%s536 + $0x170] sm:$0xff]
  %v1221 = vld [vmem:[%s536 + $0x1b0] sm:$0xff]
  %v1222 = vld [vmem:[%s536 + $0x1b8] sm:$0xff]
  %v1223 = vld [vmem:[%s536 + $0x1c8] sm:$0xff]
  %v1224 = vld [vmem:[%s536 + $0x1d0] sm:$0xff]
  %v1225 = vld [vmem:[%s536 + $0x1e0] sm:$0xff]
  %v1226 = vld [vmem:[%s536 + $0x1e8] sm:$0xff]
  %v1227 = vld [vmem:[%s536 + $0x1f8] sm:$0xff]
  %v1228 = vld [vmem:[%s536 + $0x200] sm:$0xff]
  %v1229 = vld [vmem:[%s536 + $0x210] sm:$0xff]
  %v1230 = vld [vmem:[%s536 + $0x218] sm:$0xff]
  %v1231 = vld [vmem:[%s536 + $0x228] sm:$0xff]
  %v1232 = vld [vmem:[%s536 + $0x230] sm:$0xff]
  %v1233 = vld [vmem:[%s536 + $0x240] sm:$0xff]
  %v1234 = vld [vmem:[%s536 + $0x248] sm:$0xff]
  %v1235 = vld [vmem:[%s536 + $0x258] sm:$0xff]
  %v1236 = vld [vmem:[%s536 + $0x260] sm:$0xff]
  %v1237 = vld [vmem:[%s536 + $0x270] sm:$0xff]
  %v1238 = vld [vmem:[%s536 + $0x278] sm:$0xff]
  %v1239 = vld [vmem:[%s536 + $0x288] sm:$0xff]
  %v1240 = vld [vmem:[%s536 + $0x290] sm:$0xff]
  %v1241 = vld [vmem:[%s536 + $0x2a0] sm:$0xff]
  %v1242 = vld [vmem:[%s536 + $0x2a8] sm:$0xff]
  %v1243 = vld [vmem:[%s536 + $0x2b8] sm:$0xff]
  %v1244 = vld [vmem:[%s536 + $0x2c0] sm:$0xff]
  %v1245 = vld [vmem:[%s536 + $0x2d0] sm:$0xff]
  %v1246 = vld [vmem:[%s536 + $0x2d8] sm:$0xff]
  %v1247 = vld [vmem:[%s536 + $0x2e8] sm:$0xff]
  %v1248 = vld [vmem:[%s536 + $0x2f0] sm:$0xff]
  %v1249 = vld [vmem:[%s536 + $0x300] sm:$0xff]
  %v1250 = vld [vmem:[%s536 + $0x308] sm:$0xff]
  %v1251 = vld [vmem:[%s536 + $0x318] sm:$0xff]
  %v1252 = vld [vmem:[%s536 + $0x320] sm:$0xff]
  %v1253 = vlaneseq
  %v1254 = vshrl.u32 %v1253, 7
  %v1255 = vsub.s32 3, %v1254
  %v1256 = vrot.slane %v32, %v1255
  %v1257 = vmul.f32 %v1189, %v1256
  %v1258 = vmul.f32 %v1190, %v1256
  %v1259 = vmul.f32 %v1191, %v1256
  %v1260 = vmul.f32 %v1192, %v1256
  %v1261 = vmul.f32 %v1193, %v1256
  %v1262 = vmul.f32 %v1194, %v1256
  %v1263 = vmul.f32 %v1195, %v1256
  %v1264 = vmul.f32 %v1196, %v1256
  %v1265 = vmul.f32 %v1197, %v1256
  %v1266 = vmul.f32 %v1198, %v1256
  %v1267 = vmul.f32 %v1199, %v1256
  %v1268 = vmul.f32 %v1200, %v1256
  %v1269 = vmul.f32 %v1201, %v1256
  %v1270 = vmul.f32 %v1202, %v1256
  %v1271 = vmul.f32 %v1203, %v1256
  %v1272 = vmul.f32 %v1204, %v1256
  %v1273 = vmul.f32 %v1205, %v1256
  %v1274 = vmul.f32 %v1206, %v1256
  %v1275 = vmul.f32 %v1207, %v1256
  %v1276 = vmul.f32 %v1208, %v1256
  %v1277 = vmul.f32 %v1209, %v1256
  %v1278 = vmul.f32 %v1210, %v1256
  %v1279 = vmul.f32 %v1211, %v1256
  %v1280 = vmul.f32 %v1212, %v1256
  %v1281 = vmul.f32 %v1213, %v1256
  %v1282 = vmul.f32 %v1214, %v1256
  %v1283 = vmul.f32 %v1215, %v1256
  %v1284 = vmul.f32 %v1216, %v1256
  %v1285 = vmul.f32 %v1217, %v1256
  %v1286 = vmul.f32 %v1218, %v1256
  %v1287 = vmul.f32 %v1219, %v1256
  %v1288 = vmul.f32 %v1220, %v1256
  %v1289 = vmul.f32 %v1221, %v1256
  %v1290 = vmul.f32 %v1222, %v1256
  %v1291 = vmul.f32 %v1223, %v1256
  %v1292 = vmul.f32 %v1224, %v1256
  %v1293 = vmul.f32 %v1225, %v1256
  %v1294 = vmul.f32 %v1226, %v1256
  %v1295 = vmul.f32 %v1227, %v1256
  %v1296 = vmul.f32 %v1228, %v1256
  %v1297 = vmul.f32 %v1229, %v1256
  %v1298 = vmul.f32 %v1230, %v1256
  %v1299 = vmul.f32 %v1231, %v1256
  %v1300 = vmul.f32 %v1232, %v1256
  %v1301 = vmul.f32 %v1233, %v1256
  %v1302 = vmul.f32 %v1234, %v1256
  %v1303 = vmul.f32 %v1235, %v1256
  %v1304 = vmul.f32 %v1236, %v1256
  %v1305 = vmul.f32 %v1237, %v1256
  %v1306 = vmul.f32 %v1238, %v1256
  %v1307 = vmul.f32 %v1239, %v1256
  %v1308 = vmul.f32 %v1240, %v1256
  %v1309 = vmul.f32 %v1241, %v1256
  %v1310 = vmul.f32 %v1242, %v1256
  %v1311 = vmul.f32 %v1243, %v1256
  %v1312 = vmul.f32 %v1244, %v1256
  %v1313 = vmul.f32 %v1245, %v1256
  %v1314 = vmul.f32 %v1246, %v1256
  %v1315 = vmul.f32 %v1247, %v1256
  %v1316 = vmul.f32 %v1248, %v1256
  %v1317 = vmul.f32 %v1249, %v1256
  %v1318 = vmul.f32 %v1250, %v1256
  %v1319 = vmul.f32 %v1251, %v1256
  %v1320 = vmul.f32 %v1252, %v1256
  %v1321 = vadd.f32 %v1125, %v1257
  %v1322 = vadd.f32 %v1126, %v1258
  %v1323 = vadd.f32 %v1127, %v1259
  %v1324 = vadd.f32 %v1128, %v1260
  %v1325 = vadd.f32 %v1129, %v1261
  %v1326 = vadd.f32 %v1130, %v1262
  %v1327 = vadd.f32 %v1131, %v1263
  %v1328 = vadd.f32 %v1132, %v1264
  %v1329 = vadd.f32 %v1133, %v1265
  %v1330 = vadd.f32 %v1134, %v1266
  %v1331 = vadd.f32 %v1135, %v1267
  %v1332 = vadd.f32 %v1136, %v1268
  %v1333 = vadd.f32 %v1137, %v1269
  %v1334 = vadd.f32 %v1138, %v1270
  %v1335 = vadd.f32 %v1139, %v1271
  %v1336 = vadd.f32 %v1140, %v1272
  %v1337 = vadd.f32 %v1141, %v1273
  %v1338 = vadd.f32 %v1142, %v1274
  %v1339 = vadd.f32 %v1143, %v1275
  %v1340 = vadd.f32 %v1144, %v1276
  %v1341 = vadd.f32 %v1145, %v1277
  %v1342 = vadd.f32 %v1146, %v1278
  %v1343 = vadd.f32 %v1147, %v1279
  %v1344 = vadd.f32 %v1148, %v1280
  %v1345 = vadd.f32 %v1149, %v1281
  %v1346 = vadd.f32 %v1150, %v1282
  %v1347 = vadd.f32 %v1151, %v1283
  %v1348 = vadd.f32 %v1152, %v1284
  %v1349 = vadd.f32 %v1153, %v1285
  %v1350 = vadd.f32 %v1154, %v1286
  %v1351 = vadd.f32 %v1155, %v1287
  %v1352 = vadd.f32 %v1156, %v1288
  %v1353 = vadd.f32 %v1157, %v1289
  %v1354 = vadd.f32 %v1158, %v1290
  %v1355 = vadd.f32 %v1159, %v1291
  %v1356 = vadd.f32 %v1160, %v1292
  %v1357 = vadd.f32 %v1161, %v1293
  %v1358 = vadd.f32 %v1162, %v1294
  %v1359 = vadd.f32 %v1163, %v1295
  %v1360 = vadd.f32 %v1164, %v1296
  %v1361 = vadd.f32 %v1165, %v1297
  %v1362 = vadd.f32 %v1166, %v1298
  %v1363 = vadd.f32 %v1167, %v1299
  %v1364 = vadd.f32 %v1168, %v1300
  %v1365 = vadd.f32 %v1169, %v1301
  %v1366 = vadd.f32 %v1170, %v1302
  %v1367 = vadd.f32 %v1171, %v1303
  %v1368 = vadd.f32 %v1172, %v1304
  %v1369 = vadd.f32 %v1173, %v1305
  %v1370 = vadd.f32 %v1174, %v1306
  %v1371 = vadd.f32 %v1175, %v1307
  %v1372 = vadd.f32 %v1176, %v1308
  %v1373 = vadd.f32 %v1177, %v1309
  %v1374 = vadd.f32 %v1178, %v1310
  %v1375 = vadd.f32 %v1179, %v1311
  %v1376 = vadd.f32 %v1180, %v1312
  %v1377 = vadd.f32 %v1181, %v1313
  %v1378 = vadd.f32 %v1182, %v1314
  %v1379 = vadd.f32 %v1183, %v1315
  %v1380 = vadd.f32 %v1184, %v1316
  %v1381 = vadd.f32 %v1185, %v1317
  %v1382 = vadd.f32 %v1186, %v1318
  %v1383 = vadd.f32 %v1187, %v1319
  %v1384 = vadd.f32 %v1188, %v1320
  %v1385 = vld [vmem:[%s536 + $0x1] sm:$0xff]
  %v1386 = vld [vmem:[%s536 + $0x9] sm:$0xff]
  %v1387 = vld [vmem:[%s536 + $0x19] sm:$0xff]
  %v1388 = vld [vmem:[%s536 + $0x21] sm:$0xff]
  %v1389 = vld [vmem:[%s536 + $0x31] sm:$0xff]
  %v1390 = vld [vmem:[%s536 + $0x39] sm:$0xff]
  %v1391 = vld [vmem:[%s536 + $0x49] sm:$0xff]
  %v1392 = vld [vmem:[%s536 + $0x51] sm:$0xff]
  %v1393 = vld [vmem:[%s536 + $0x61] sm:$0xff]
  %v1394 = vld [vmem:[%s536 + $0x69] sm:$0xff]
  %v1395 = vld [vmem:[%s536 + $0x79] sm:$0xff]
  %v1396 = vld [vmem:[%s536 + $0x81] sm:$0xff]
  %v1397 = vld [vmem:[%s536 + $0x91] sm:$0xff]
  %v1398 = vld [vmem:[%s536 + $0x99] sm:$0xff]
  %v1399 = vld [vmem:[%s536 + $0xa9] sm:$0xff]
  %v1400 = vld [vmem:[%s536 + $0xb1] sm:$0xff]
  %v1401 = vld [vmem:[%s536 + $0xc1] sm:$0xff]
  %v1402 = vld [vmem:[%s536 + $0xc9] sm:$0xff]
  %v1403 = vld [vmem:[%s536 + $0xd9] sm:$0xff]
  %v1404 = vld [vmem:[%s536 + $0xe1] sm:$0xff]
  %v1405 = vld [vmem:[%s536 + $0xf1] sm:$0xff]
  %v1406 = vld [vmem:[%s536 + $0xf9] sm:$0xff]
  %v1407 = vld [vmem:[%s536 + $0x109] sm:$0xff]
  %v1408 = vld [vmem:[%s536 + $0x111] sm:$0xff]
  %v1409 = vld [vmem:[%s536 + $0x121] sm:$0xff]
  %v1410 = vld [vmem:[%s536 + $0x129] sm:$0xff]
  %v1411 = vld [vmem:[%s536 + $0x139] sm:$0xff]
  %v1412 = vld [vmem:[%s536 + $0x141] sm:$0xff]
  %v1413 = vld [vmem:[%s536 + $0x151] sm:$0xff]
  %v1414 = vld [vmem:[%s536 + $0x159] sm:$0xff]
  %v1415 = vld [vmem:[%s536 + $0x169] sm:$0xff]
  %v1416 = vld [vmem:[%s536 + $0x171] sm:$0xff]
  %v1417 = vld [vmem:[%s536 + $0x1b1] sm:$0xff]
  %v1418 = vld [vmem:[%s536 + $0x1b9] sm:$0xff]
  %v1419 = vld [vmem:[%s536 + $0x1c9] sm:$0xff]
  %v1420 = vld [vmem:[%s536 + $0x1d1] sm:$0xff]
  %v1421 = vld [vmem:[%s536 + $0x1e1] sm:$0xff]
  %v1422 = vld [vmem:[%s536 + $0x1e9] sm:$0xff]
  %v1423 = vld [vmem:[%s536 + $0x1f9] sm:$0xff]
  %v1424 = vld [vmem:[%s536 + $0x201] sm:$0xff]
  %v1425 = vld [vmem:[%s536 + $0x211] sm:$0xff]
  %v1426 = vld [vmem:[%s536 + $0x219] sm:$0xff]
  %v1427 = vld [vmem:[%s536 + $0x229] sm:$0xff]
  %v1428 = vld [vmem:[%s536 + $0x231] sm:$0xff]
  %v1429 = vld [vmem:[%s536 + $0x241] sm:$0xff]
  %v1430 = vld [vmem:[%s536 + $0x249] sm:$0xff]
  %v1431 = vld [vmem:[%s536 + $0x259] sm:$0xff]
  %v1432 = vld [vmem:[%s536 + $0x261] sm:$0xff]
  %v1433 = vld [vmem:[%s536 + $0x271] sm:$0xff]
  %v1434 = vld [vmem:[%s536 + $0x279] sm:$0xff]
  %v1435 = vld [vmem:[%s536 + $0x289] sm:$0xff]
  %v1436 = vld [vmem:[%s536 + $0x291] sm:$0xff]
  %v1437 = vld [vmem:[%s536 + $0x2a1] sm:$0xff]
  %v1438 = vld [vmem:[%s536 + $0x2a9] sm:$0xff]
  %v1439 = vld [vmem:[%s536 + $0x2b9] sm:$0xff]
  %v1440 = vld [vmem:[%s536 + $0x2c1] sm:$0xff]
  %v1441 = vld [vmem:[%s536 + $0x2d1] sm:$0xff]
  %v1442 = vld [vmem:[%s536 + $0x2d9] sm:$0xff]
  %v1443 = vld [vmem:[%s536 + $0x2e9] sm:$0xff]
  %v1444 = vld [vmem:[%s536 + $0x2f1] sm:$0xff]
  %v1445 = vld [vmem:[%s536 + $0x301] sm:$0xff]
  %v1446 = vld [vmem:[%s536 + $0x309] sm:$0xff]
  %v1447 = vld [vmem:[%s536 + $0x319] sm:$0xff]
  %v1448 = vld [vmem:[%s536 + $0x321] sm:$0xff]
  %v1449 = vlaneseq
  %v1450 = vshrl.u32 %v1449, 7
  %v1451 = vsub.s32 4, %v1450
  %v1452 = vrot.slane %v32, %v1451
  %v1453 = vmul.f32 %v1385, %v1452
  %v1454 = vmul.f32 %v1386, %v1452
  %v1455 = vmul.f32 %v1387, %v1452
  %v1456 = vmul.f32 %v1388, %v1452
  %v1457 = vmul.f32 %v1389, %v1452
  %v1458 = vmul.f32 %v1390, %v1452
  %v1459 = vmul.f32 %v1391, %v1452
  %v1460 = vmul.f32 %v1392, %v1452
  %v1461 = vmul.f32 %v1393, %v1452
  %v1462 = vmul.f32 %v1394, %v1452
  %v1463 = vmul.f32 %v1395, %v1452
  %v1464 = vmul.f32 %v1396, %v1452
  %v1465 = vmul.f32 %v1397, %v1452
  %v1466 = vmul.f32 %v1398, %v1452
  %v1467 = vmul.f32 %v1399, %v1452
  %v1468 = vmul.f32 %v1400, %v1452
  %v1469 = vmul.f32 %v1401, %v1452
  %v1470 = vmul.f32 %v1402, %v1452
  %v1471 = vmul.f32 %v1403, %v1452
  %v1472 = vmul.f32 %v1404, %v1452
  %v1473 = vmul.f32 %v1405, %v1452
  %v1474 = vmul.f32 %v1406, %v1452
  %v1475 = vmul.f32 %v1407, %v1452
  %v1476 = vmul.f32 %v1408, %v1452
  %v1477 = vmul.f32 %v1409, %v1452
  %v1478 = vmul.f32 %v1410, %v1452
  %v1479 = vmul.f32 %v1411, %v1452
  %v1480 = vmul.f32 %v1412, %v1452
  %v1481 = vmul.f32 %v1413, %v1452
  %v1482 = vmul.f32 %v1414, %v1452
  %v1483 = vmul.f32 %v1415, %v1452
  %v1484 = vmul.f32 %v1416, %v1452
  %v1485 = vmul.f32 %v1417, %v1452
  %v1486 = vmul.f32 %v1418, %v1452
  %v1487 = vmul.f32 %v1419, %v1452
  %v1488 = vmul.f32 %v1420, %v1452
  %v1489 = vmul.f32 %v1421, %v1452
  %v1490 = vmul.f32 %v1422, %v1452
  %v1491 = vmul.f32 %v1423, %v1452
  %v1492 = vmul.f32 %v1424, %v1452
  %v1493 = vmul.f32 %v1425, %v1452
  %v1494 = vmul.f32 %v1426, %v1452
  %v1495 = vmul.f32 %v1427, %v1452
  %v1496 = vmul.f32 %v1428, %v1452
  %v1497 = vmul.f32 %v1429, %v1452
  %v1498 = vmul.f32 %v1430, %v1452
  %v1499 = vmul.f32 %v1431, %v1452
  %v1500 = vmul.f32 %v1432, %v1452
  %v1501 = vmul.f32 %v1433, %v1452
  %v1502 = vmul.f32 %v1434, %v1452
  %v1503 = vmul.f32 %v1435, %v1452
  %v1504 = vmul.f32 %v1436, %v1452
  %v1505 = vmul.f32 %v1437, %v1452
  %v1506 = vmul.f32 %v1438, %v1452
  %v1507 = vmul.f32 %v1439, %v1452
  %v1508 = vmul.f32 %v1440, %v1452
  %v1509 = vmul.f32 %v1441, %v1452
  %v1510 = vmul.f32 %v1442, %v1452
  %v1511 = vmul.f32 %v1443, %v1452
  %v1512 = vmul.f32 %v1444, %v1452
  %v1513 = vmul.f32 %v1445, %v1452
  %v1514 = vmul.f32 %v1446, %v1452
  %v1515 = vmul.f32 %v1447, %v1452
  %v1516 = vmul.f32 %v1448, %v1452
  %v1517 = vadd.f32 %v1321, %v1453
  %v1518 = vadd.f32 %v1322, %v1454
  %v1519 = vadd.f32 %v1323, %v1455
  %v1520 = vadd.f32 %v1324, %v1456
  %v1521 = vadd.f32 %v1325, %v1457
  %v1522 = vadd.f32 %v1326, %v1458
  %v1523 = vadd.f32 %v1327, %v1459
  %v1524 = vadd.f32 %v1328, %v1460
  %v1525 = vadd.f32 %v1329, %v1461
  %v1526 = vadd.f32 %v1330, %v1462
  %v1527 = vadd.f32 %v1331, %v1463
  %v1528 = vadd.f32 %v1332, %v1464
  %v1529 = vadd.f32 %v1333, %v1465
  %v1530 = vadd.f32 %v1334, %v1466
  %v1531 = vadd.f32 %v1335, %v1467
  %v1532 = vadd.f32 %v1336, %v1468
  %v1533 = vadd.f32 %v1337, %v1469
  %v1534 = vadd.f32 %v1338, %v1470
  %v1535 = vadd.f32 %v1339, %v1471
  %v1536 = vadd.f32 %v1340, %v1472
  %v1537 = vadd.f32 %v1341, %v1473
  %v1538 = vadd.f32 %v1342, %v1474
  %v1539 = vadd.f32 %v1343, %v1475
  %v1540 = vadd.f32 %v1344, %v1476
  %v1541 = vadd.f32 %v1345, %v1477
  %v1542 = vadd.f32 %v1346, %v1478
  %v1543 = vadd.f32 %v1347, %v1479
  %v1544 = vadd.f32 %v1348, %v1480
  %v1545 = vadd.f32 %v1349, %v1481
  %v1546 = vadd.f32 %v1350, %v1482
  %v1547 = vadd.f32 %v1351, %v1483
  %v1548 = vadd.f32 %v1352, %v1484
  %v1549 = vadd.f32 %v1353, %v1485
  %v1550 = vadd.f32 %v1354, %v1486
  %v1551 = vadd.f32 %v1355, %v1487
  %v1552 = vadd.f32 %v1356, %v1488
  %v1553 = vadd.f32 %v1357, %v1489
  %v1554 = vadd.f32 %v1358, %v1490
  %v1555 = vadd.f32 %v1359, %v1491
  %v1556 = vadd.f32 %v1360, %v1492
  %v1557 = vadd.f32 %v1361, %v1493
  %v1558 = vadd.f32 %v1362, %v1494
  %v1559 = vadd.f32 %v1363, %v1495
  %v1560 = vadd.f32 %v1364, %v1496
  %v1561 = vadd.f32 %v1365, %v1497
  %v1562 = vadd.f32 %v1366, %v1498
  %v1563 = vadd.f32 %v1367, %v1499
  %v1564 = vadd.f32 %v1368, %v1500
  %v1565 = vadd.f32 %v1369, %v1501
  %v1566 = vadd.f32 %v1370, %v1502
  %v1567 = vadd.f32 %v1371, %v1503
  %v1568 = vadd.f32 %v1372, %v1504
  %v1569 = vadd.f32 %v1373, %v1505
  %v1570 = vadd.f32 %v1374, %v1506
  %v1571 = vadd.f32 %v1375, %v1507
  %v1572 = vadd.f32 %v1376, %v1508
  %v1573 = vadd.f32 %v1377, %v1509
  %v1574 = vadd.f32 %v1378, %v1510
  %v1575 = vadd.f32 %v1379, %v1511
  %v1576 = vadd.f32 %v1380, %v1512
  %v1577 = vadd.f32 %v1381, %v1513
  %v1578 = vadd.f32 %v1382, %v1514
  %v1579 = vadd.f32 %v1383, %v1515
  %v1580 = vadd.f32 %v1384, %v1516
  %v1581 = vld [vmem:[%s536 + $0x2] sm:$0xff]
  %v1582 = vld [vmem:[%s536 + $0xa] sm:$0xff]
  %v1583 = vld [vmem:[%s536 + $0x1a] sm:$0xff]
  %v1584 = vld [vmem:[%s536 + $0x22] sm:$0xff]
  %v1585 = vld [vmem:[%s536 + $0x32] sm:$0xff]
  %v1586 = vld [vmem:[%s536 + $0x3a] sm:$0xff]
  %v1587 = vld [vmem:[%s536 + $0x4a] sm:$0xff]
  %v1588 = vld [vmem:[%s536 + $0x52] sm:$0xff]
  %v1589 = vld [vmem:[%s536 + $0x62] sm:$0xff]
  %v1590 = vld [vmem:[%s536 + $0x6a] sm:$0xff]
  %v1591 = vld [vmem:[%s536 + $0x7a] sm:$0xff]
  %v1592 = vld [vmem:[%s536 + $0x82] sm:$0xff]
  %v1593 = vld [vmem:[%s536 + $0x92] sm:$0xff]
  %v1594 = vld [vmem:[%s536 + $0x9a] sm:$0xff]
  %v1595 = vld [vmem:[%s536 + $0xaa] sm:$0xff]
  %v1596 = vld [vmem:[%s536 + $0xb2] sm:$0xff]
  %v1597 = vld [vmem:[%s536 + $0xc2] sm:$0xff]
  %v1598 = vld [vmem:[%s536 + $0xca] sm:$0xff]
  %v1599 = vld [vmem:[%s536 + $0xda] sm:$0xff]
  %v1600 = vld [vmem:[%s536 + $0xe2] sm:$0xff]
  %v1601 = vld [vmem:[%s536 + $0xf2] sm:$0xff]
  %v1602 = vld [vmem:[%s536 + $0xfa] sm:$0xff]
  %v1603 = vld [vmem:[%s536 + $0x10a] sm:$0xff]
  %v1604 = vld [vmem:[%s536 + $0x112] sm:$0xff]
  %v1605 = vld [vmem:[%s536 + $0x122] sm:$0xff]
  %v1606 = vld [vmem:[%s536 + $0x12a] sm:$0xff]
  %v1607 = vld [vmem:[%s536 + $0x13a] sm:$0xff]
  %v1608 = vld [vmem:[%s536 + $0x142] sm:$0xff]
  %v1609 = vld [vmem:[%s536 + $0x152] sm:$0xff]
  %v1610 = vld [vmem:[%s536 + $0x15a] sm:$0xff]
  %v1611 = vld [vmem:[%s536 + $0x16a] sm:$0xff]
  %v1612 = vld [vmem:[%s536 + $0x172] sm:$0xff]
  %v1613 = vld [vmem:[%s536 + $0x1b2] sm:$0xff]
  %v1614 = vld [vmem:[%s536 + $0x1ba] sm:$0xff]
  %v1615 = vld [vmem:[%s536 + $0x1ca] sm:$0xff]
  %v1616 = vld [vmem:[%s536 + $0x1d2] sm:$0xff]
  %v1617 = vld [vmem:[%s536 + $0x1e2] sm:$0xff]
  %v1618 = vld [vmem:[%s536 + $0x1ea] sm:$0xff]
  %v1619 = vld [vmem:[%s536 + $0x1fa] sm:$0xff]
  %v1620 = vld [vmem:[%s536 + $0x202] sm:$0xff]
  %v1621 = vld [vmem:[%s536 + $0x212] sm:$0xff]
  %v1622 = vld [vmem:[%s536 + $0x21a] sm:$0xff]
  %v1623 = vld [vmem:[%s536 + $0x22a] sm:$0xff]
  %v1624 = vld [vmem:[%s536 + $0x232] sm:$0xff]
  %v1625 = vld [vmem:[%s536 + $0x242] sm:$0xff]
  %v1626 = vld [vmem:[%s536 + $0x24a] sm:$0xff]
  %v1627 = vld [vmem:[%s536 + $0x25a] sm:$0xff]
  %v1628 = vld [vmem:[%s536 + $0x262] sm:$0xff]
  %v1629 = vld [vmem:[%s536 + $0x272] sm:$0xff]
  %v1630 = vld [vmem:[%s536 + $0x27a] sm:$0xff]
  %v1631 = vld [vmem:[%s536 + $0x28a] sm:$0xff]
  %v1632 = vld [vmem:[%s536 + $0x292] sm:$0xff]
  %v1633 = vld [vmem:[%s536 + $0x2a2] sm:$0xff]
  %v1634 = vld [vmem:[%s536 + $0x2aa] sm:$0xff]
  %v1635 = vld [vmem:[%s536 + $0x2ba] sm:$0xff]
  %v1636 = vld [vmem:[%s536 + $0x2c2] sm:$0xff]
  %v1637 = vld [vmem:[%s536 + $0x2d2] sm:$0xff]
  %v1638 = vld [vmem:[%s536 + $0x2da] sm:$0xff]
  %v1639 = vld [vmem:[%s536 + $0x2ea] sm:$0xff]
  %v1640 = vld [vmem:[%s536 + $0x2f2] sm:$0xff]
  %v1641 = vld [vmem:[%s536 + $0x302] sm:$0xff]
  %v1642 = vld [vmem:[%s536 + $0x30a] sm:$0xff]
  %v1643 = vld [vmem:[%s536 + $0x31a] sm:$0xff]
  %v1644 = vld [vmem:[%s536 + $0x322] sm:$0xff]
  %v1645 = vlaneseq
  %v1646 = vshrl.u32 %v1645, 7
  %v1647 = vsub.s32 5, %v1646
  %v1648 = vrot.slane %v32, %v1647
  %v1649 = vmul.f32 %v1581, %v1648
  %v1650 = vmul.f32 %v1582, %v1648
  %v1651 = vmul.f32 %v1583, %v1648
  %v1652 = vmul.f32 %v1584, %v1648
  %v1653 = vmul.f32 %v1585, %v1648
  %v1654 = vmul.f32 %v1586, %v1648
  %v1655 = vmul.f32 %v1587, %v1648
  %v1656 = vmul.f32 %v1588, %v1648
  %v1657 = vmul.f32 %v1589, %v1648
  %v1658 = vmul.f32 %v1590, %v1648
  %v1659 = vmul.f32 %v1591, %v1648
  %v1660 = vmul.f32 %v1592, %v1648
  %v1661 = vmul.f32 %v1593, %v1648
  %v1662 = vmul.f32 %v1594, %v1648
  %v1663 = vmul.f32 %v1595, %v1648
  %v1664 = vmul.f32 %v1596, %v1648
  %v1665 = vmul.f32 %v1597, %v1648
  %v1666 = vmul.f32 %v1598, %v1648
  %v1667 = vmul.f32 %v1599, %v1648
  %v1668 = vmul.f32 %v1600, %v1648
  %v1669 = vmul.f32 %v1601, %v1648
  %v1670 = vmul.f32 %v1602, %v1648
  %v1671 = vmul.f32 %v1603, %v1648
  %v1672 = vmul.f32 %v1604, %v1648
  %v1673 = vmul.f32 %v1605, %v1648
  %v1674 = vmul.f32 %v1606, %v1648
  %v1675 = vmul.f32 %v1607, %v1648
  %v1676 = vmul.f32 %v1608, %v1648
  %v1677 = vmul.f32 %v1609, %v1648
  %v1678 = vmul.f32 %v1610, %v1648
  %v1679 = vmul.f32 %v1611, %v1648
  %v1680 = vmul.f32 %v1612, %v1648
  %v1681 = vmul.f32 %v1613, %v1648
  %v1682 = vmul.f32 %v1614, %v1648
  %v1683 = vmul.f32 %v1615, %v1648
  %v1684 = vmul.f32 %v1616, %v1648
  %v1685 = vmul.f32 %v1617, %v1648
  %v1686 = vmul.f32 %v1618, %v1648
  %v1687 = vmul.f32 %v1619, %v1648
  %v1688 = vmul.f32 %v1620, %v1648
  %v1689 = vmul.f32 %v1621, %v1648
  %v1690 = vmul.f32 %v1622, %v1648
  %v1691 = vmul.f32 %v1623, %v1648
  %v1692 = vmul.f32 %v1624, %v1648
  %v1693 = vmul.f32 %v1625, %v1648
  %v1694 = vmul.f32 %v1626, %v1648
  %v1695 = vmul.f32 %v1627, %v1648
  %v1696 = vmul.f32 %v1628, %v1648
  %v1697 = vmul.f32 %v1629, %v1648
  %v1698 = vmul.f32 %v1630, %v1648
  %v1699 = vmul.f32 %v1631, %v1648
  %v1700 = vmul.f32 %v1632, %v1648
  %v1701 = vmul.f32 %v1633, %v1648
  %v1702 = vmul.f32 %v1634, %v1648
  %v1703 = vmul.f32 %v1635, %v1648
  %v1704 = vmul.f32 %v1636, %v1648
  %v1705 = vmul.f32 %v1637, %v1648
  %v1706 = vmul.f32 %v1638, %v1648
  %v1707 = vmul.f32 %v1639, %v1648
  %v1708 = vmul.f32 %v1640, %v1648
  %v1709 = vmul.f32 %v1641, %v1648
  %v1710 = vmul.f32 %v1642, %v1648
  %v1711 = vmul.f32 %v1643, %v1648
  %v1712 = vmul.f32 %v1644, %v1648
  %v1713 = vadd.f32 %v1517, %v1649
  %v1714 = vadd.f32 %v1518, %v1650
  %v1715 = vadd.f32 %v1519, %v1651
  %v1716 = vadd.f32 %v1520, %v1652
  %v1717 = vadd.f32 %v1521, %v1653
  %v1718 = vadd.f32 %v1522, %v1654
  %v1719 = vadd.f32 %v1523, %v1655
  %v1720 = vadd.f32 %v1524, %v1656
  %v1721 = vadd.f32 %v1525, %v1657
  %v1722 = vadd.f32 %v1526, %v1658
  %v1723 = vadd.f32 %v1527, %v1659
  %v1724 = vadd.f32 %v1528, %v1660
  %v1725 = vadd.f32 %v1529, %v1661
  %v1726 = vadd.f32 %v1530, %v1662
  %v1727 = vadd.f32 %v1531, %v1663
  %v1728 = vadd.f32 %v1532, %v1664
  %v1729 = vadd.f32 %v1533, %v1665
  %v1730 = vadd.f32 %v1534, %v1666
  %v1731 = vadd.f32 %v1535, %v1667
  %v1732 = vadd.f32 %v1536, %v1668
  %v1733 = vadd.f32 %v1537, %v1669
  %v1734 = vadd.f32 %v1538, %v1670
  %v1735 = vadd.f32 %v1539, %v1671
  %v1736 = vadd.f32 %v1540, %v1672
  %v1737 = vadd.f32 %v1541, %v1673
  %v1738 = vadd.f32 %v1542, %v1674
  %v1739 = vadd.f32 %v1543, %v1675
  %v1740 = vadd.f32 %v1544, %v1676
  %v1741 = vadd.f32 %v1545, %v1677
  %v1742 = vadd.f32 %v1546, %v1678
  %v1743 = vadd.f32 %v1547, %v1679
  %v1744 = vadd.f32 %v1548, %v1680
  %v1745 = vadd.f32 %v1549, %v1681
  %v1746 = vadd.f32 %v1550, %v1682
  %v1747 = vadd.f32 %v1551, %v1683
  %v1748 = vadd.f32 %v1552, %v1684
  %v1749 = vadd.f32 %v1553, %v1685
  %v1750 = vadd.f32 %v1554, %v1686
  %v1751 = vadd.f32 %v1555, %v1687
  %v1752 = vadd.f32 %v1556, %v1688
  %v1753 = vadd.f32 %v1557, %v1689
  %v1754 = vadd.f32 %v1558, %v1690
  %v1755 = vadd.f32 %v1559, %v1691
  %v1756 = vadd.f32 %v1560, %v1692
  %v1757 = vadd.f32 %v1561, %v1693
  %v1758 = vadd.f32 %v1562, %v1694
  %v1759 = vadd.f32 %v1563, %v1695
  %v1760 = vadd.f32 %v1564, %v1696
  %v1761 = vadd.f32 %v1565, %v1697
  %v1762 = vadd.f32 %v1566, %v1698
  %v1763 = vadd.f32 %v1567, %v1699
  %v1764 = vadd.f32 %v1568, %v1700
  %v1765 = vadd.f32 %v1569, %v1701
  %v1766 = vadd.f32 %v1570, %v1702
  %v1767 = vadd.f32 %v1571, %v1703
  %v1768 = vadd.f32 %v1572, %v1704
  %v1769 = vadd.f32 %v1573, %v1705
  %v1770 = vadd.f32 %v1574, %v1706
  %v1771 = vadd.f32 %v1575, %v1707
  %v1772 = vadd.f32 %v1576, %v1708
  %v1773 = vadd.f32 %v1577, %v1709
  %v1774 = vadd.f32 %v1578, %v1710
  %v1775 = vadd.f32 %v1579, %v1711
  %v1776 = vadd.f32 %v1580, %v1712
  %s1777 = scalar_lea.vmem [#allocation2], 48
  %v1778 = vld [vmem:[%s1777] sm:$0xff]
  %v1779 = vld [vmem:[%s1777 + $0x8] sm:$0xff]
  %v1780 = vld [vmem:[%s1777 + $0x18] sm:$0xff]
  %v1781 = vld [vmem:[%s1777 + $0x20] sm:$0xff]
  %v1782 = vld [vmem:[%s1777 + $0x30] sm:$0xff]
  %v1783 = vld [vmem:[%s1777 + $0x38] sm:$0xff]
  %v1784 = vld [vmem:[%s1777 + $0x48] sm:$0xff]
  %v1785 = vld [vmem:[%s1777 + $0x50] sm:$0xff]
  %v1786 = vld [vmem:[%s1777 + $0x60] sm:$0xff]
  %v1787 = vld [vmem:[%s1777 + $0x68] sm:$0xff]
  %v1788 = vld [vmem:[%s1777 + $0x78] sm:$0xff]
  %v1789 = vld [vmem:[%s1777 + $0x80] sm:$0xff]
  %v1790 = vld [vmem:[%s1777 + $0x90] sm:$0xff]
  %v1791 = vld [vmem:[%s1777 + $0x98] sm:$0xff]
  %v1792 = vld [vmem:[%s1777 + $0xa8] sm:$0xff]
  %v1793 = vld [vmem:[%s1777 + $0xb0] sm:$0xff]
  %v1794 = vld [vmem:[%s1777 + $0xc0] sm:$0xff]
  %v1795 = vld [vmem:[%s1777 + $0xc8] sm:$0xff]
  %v1796 = vld [vmem:[%s1777 + $0xd8] sm:$0xff]
  %v1797 = vld [vmem:[%s1777 + $0xe0] sm:$0xff]
  %v1798 = vld [vmem:[%s1777 + $0xf0] sm:$0xff]
  %v1799 = vld [vmem:[%s1777 + $0xf8] sm:$0xff]
  %v1800 = vld [vmem:[%s1777 + $0x108] sm:$0xff]
  %v1801 = vld [vmem:[%s1777 + $0x110] sm:$0xff]
  %v1802 = vld [vmem:[%s1777 + $0x120] sm:$0xff]
  %v1803 = vld [vmem:[%s1777 + $0x128] sm:$0xff]
  %v1804 = vld [vmem:[%s1777 + $0x138] sm:$0xff]
  %v1805 = vld [vmem:[%s1777 + $0x140] sm:$0xff]
  %v1806 = vld [vmem:[%s1777 + $0x150] sm:$0xff]
  %v1807 = vld [vmem:[%s1777 + $0x158] sm:$0xff]
  %v1808 = vld [vmem:[%s1777 + $0x168] sm:$0xff]
  %v1809 = vld [vmem:[%s1777 + $0x170] sm:$0xff]
  %v1810 = vld [vmem:[%s1777 + $0x1b0] sm:$0xff]
  %v1811 = vld [vmem:[%s1777 + $0x1b8] sm:$0xff]
  %v1812 = vld [vmem:[%s1777 + $0x1c8] sm:$0xff]
  %v1813 = vld [vmem:[%s1777 + $0x1d0] sm:$0xff]
  %v1814 = vld [vmem:[%s1777 + $0x1e0] sm:$0xff]
  %v1815 = vld [vmem:[%s1777 + $0x1e8] sm:$0xff]
  %v1816 = vld [vmem:[%s1777 + $0x1f8] sm:$0xff]
  %v1817 = vld [vmem:[%s1777 + $0x200] sm:$0xff]
  %v1818 = vld [vmem:[%s1777 + $0x210] sm:$0xff]
  %v1819 = vld [vmem:[%s1777 + $0x218] sm:$0xff]
  %v1820 = vld [vmem:[%s1777 + $0x228] sm:$0xff]
  %v1821 = vld [vmem:[%s1777 + $0x230] sm:$0xff]
  %v1822 = vld [vmem:[%s1777 + $0x240] sm:$0xff]
  %v1823 = vld [vmem:[%s1777 + $0x248] sm:$0xff]
  %v1824 = vld [vmem:[%s1777 + $0x258] sm:$0xff]
  %v1825 = vld [vmem:[%s1777 + $0x260] sm:$0xff]
  %v1826 = vld [vmem:[%s1777 + $0x270] sm:$0xff]
  %v1827 = vld [vmem:[%s1777 + $0x278] sm:$0xff]
  %v1828 = vld [vmem:[%s1777 + $0x288] sm:$0xff]
  %v1829 = vld [vmem:[%s1777 + $0x290] sm:$0xff]
  %v1830 = vld [vmem:[%s1777 + $0x2a0] sm:$0xff]
  %v1831 = vld [vmem:[%s1777 + $0x2a8] sm:$0xff]
  %v1832 = vld [vmem:[%s1777 + $0x2b8] sm:$0xff]
  %v1833 = vld [vmem:[%s1777 + $0x2c0] sm:$0xff]
  %v1834 = vld [vmem:[%s1777 + $0x2d0] sm:$0xff]
  %v1835 = vld [vmem:[%s1777 + $0x2d8] sm:$0xff]
  %v1836 = vld [vmem:[%s1777 + $0x2e8] sm:$0xff]
  %v1837 = vld [vmem:[%s1777 + $0x2f0] sm:$0xff]
  %v1838 = vld [vmem:[%s1777 + $0x300] sm:$0xff]
  %v1839 = vld [vmem:[%s1777 + $0x308] sm:$0xff]
  %v1840 = vld [vmem:[%s1777 + $0x318] sm:$0xff]
  %v1841 = vld [vmem:[%s1777 + $0x320] sm:$0xff]
  %v1842 = vlaneseq
  %v1843 = vshrl.u32 %v1842, 7
  %v1844 = vsub.s32 6, %v1843
  %v1845 = vrot.slane %v32, %v1844
  %v1846 = vmul.f32 %v1778, %v1845
  %v1847 = vmul.f32 %v1779, %v1845
  %v1848 = vmul.f32 %v1780, %v1845
  %v1849 = vmul.f32 %v1781, %v1845
  %v1850 = vmul.f32 %v1782, %v1845
  %v1851 = vmul.f32 %v1783, %v1845
  %v1852 = vmul.f32 %v1784, %v1845
  %v1853 = vmul.f32 %v1785, %v1845
  %v1854 = vmul.f32 %v1786, %v1845
  %v1855 = vmul.f32 %v1787, %v1845
  %v1856 = vmul.f32 %v1788, %v1845
  %v1857 = vmul.f32 %v1789, %v1845
  %v1858 = vmul.f32 %v1790, %v1845
  %v1859 = vmul.f32 %v1791, %v1845
  %v1860 = vmul.f32 %v1792, %v1845
  %v1861 = vmul.f32 %v1793, %v1845
  %v1862 = vmul.f32 %v1794, %v1845
  %v1863 = vmul.f32 %v1795, %v1845
  %v1864 = vmul.f32 %v1796, %v1845
  %v1865 = vmul.f32 %v1797, %v1845
  %v1866 = vmul.f32 %v1798, %v1845
  %v1867 = vmul.f32 %v1799, %v1845
  %v1868 = vmul.f32 %v1800, %v1845
  %v1869 = vmul.f32 %v1801, %v1845
  %v1870 = vmul.f32 %v1802, %v1845
  %v1871 = vmul.f32 %v1803, %v1845
  %v1872 = vmul.f32 %v1804, %v1845
  %v1873 = vmul.f32 %v1805, %v1845
  %v1874 = vmul.f32 %v1806, %v1845
  %v1875 = vmul.f32 %v1807, %v1845
  %v1876 = vmul.f32 %v1808, %v1845
  %v1877 = vmul.f32 %v1809, %v1845
  %v1878 = vmul.f32 %v1810, %v1845
  %v1879 = vmul.f32 %v1811, %v1845
  %v1880 = vmul.f32 %v1812, %v1845
  %v1881 = vmul.f32 %v1813, %v1845
  %v1882 = vmul.f32 %v1814, %v1845
  %v1883 = vmul.f32 %v1815, %v1845
  %v1884 = vmul.f32 %v1816, %v1845
  %v1885 = vmul.f32 %v1817, %v1845
  %v1886 = vmul.f32 %v1818, %v1845
  %v1887 = vmul.f32 %v1819, %v1845
  %v1888 = vmul.f32 %v1820, %v1845
  %v1889 = vmul.f32 %v1821, %v1845
  %v1890 = vmul.f32 %v1822, %v1845
  %v1891 = vmul.f32 %v1823, %v1845
  %v1892 = vmul.f32 %v1824, %v1845
  %v1893 = vmul.f32 %v1825, %v1845
  %v1894 = vmul.f32 %v1826, %v1845
  %v1895 = vmul.f32 %v1827, %v1845
  %v1896 = vmul.f32 %v1828, %v1845
  %v1897 = vmul.f32 %v1829, %v1845
  %v1898 = vmul.f32 %v1830, %v1845
  %v1899 = vmul.f32 %v1831, %v1845
  %v1900 = vmul.f32 %v1832, %v1845
  %v1901 = vmul.f32 %v1833, %v1845
  %v1902 = vmul.f32 %v1834, %v1845
  %v1903 = vmul.f32 %v1835, %v1845
  %v1904 = vmul.f32 %v1836, %v1845
  %v1905 = vmul.f32 %v1837, %v1845
  %v1906 = vmul.f32 %v1838, %v1845
  %v1907 = vmul.f32 %v1839, %v1845
  %v1908 = vmul.f32 %v1840, %v1845
  %v1909 = vmul.f32 %v1841, %v1845
  %v1910 = vadd.f32 %v1713, %v1846
  %v1911 = vadd.f32 %v1714, %v1847
  %v1912 = vadd.f32 %v1715, %v1848
  %v1913 = vadd.f32 %v1716, %v1849
  %v1914 = vadd.f32 %v1717, %v1850
  %v1915 = vadd.f32 %v1718, %v1851
  %v1916 = vadd.f32 %v1719, %v1852
  %v1917 = vadd.f32 %v1720, %v1853
  %v1918 = vadd.f32 %v1721, %v1854
  %v1919 = vadd.f32 %v1722, %v1855
  %v1920 = vadd.f32 %v1723, %v1856
  %v1921 = vadd.f32 %v1724, %v1857
  %v1922 = vadd.f32 %v1725, %v1858
  %v1923 = vadd.f32 %v1726, %v1859
  %v1924 = vadd.f32 %v1727, %v1860
  %v1925 = vadd.f32 %v1728, %v1861
  %v1926 = vadd.f32 %v1729, %v1862
  %v1927 = vadd.f32 %v1730, %v1863
  %v1928 = vadd.f32 %v1731, %v1864
  %v1929 = vadd.f32 %v1732, %v1865
  %v1930 = vadd.f32 %v1733, %v1866
  %v1931 = vadd.f32 %v1734, %v1867
  %v1932 = vadd.f32 %v1735, %v1868
  %v1933 = vadd.f32 %v1736, %v1869
  %v1934 = vadd.f32 %v1737, %v1870
  %v1935 = vadd.f32 %v1738, %v1871
  %v1936 = vadd.f32 %v1739, %v1872
  %v1937 = vadd.f32 %v1740, %v1873
  %v1938 = vadd.f32 %v1741, %v1874
  %v1939 = vadd.f32 %v1742, %v1875
  %v1940 = vadd.f32 %v1743, %v1876
  %v1941 = vadd.f32 %v1744, %v1877
  %v1942 = vadd.f32 %v1745, %v1878
  %v1943 = vadd.f32 %v1746, %v1879
  %v1944 = vadd.f32 %v1747, %v1880
  %v1945 = vadd.f32 %v1748, %v1881
  %v1946 = vadd.f32 %v1749, %v1882
  %v1947 = vadd.f32 %v1750, %v1883
  %v1948 = vadd.f32 %v1751, %v1884
  %v1949 = vadd.f32 %v1752, %v1885
  %v1950 = vadd.f32 %v1753, %v1886
  %v1951 = vadd.f32 %v1754, %v1887
  %v1952 = vadd.f32 %v1755, %v1888
  %v1953 = vadd.f32 %v1756, %v1889
  %v1954 = vadd.f32 %v1757, %v1890
  %v1955 = vadd.f32 %v1758, %v1891
  %v1956 = vadd.f32 %v1759, %v1892
  %v1957 = vadd.f32 %v1760, %v1893
  %v1958 = vadd.f32 %v1761, %v1894
  %v1959 = vadd.f32 %v1762, %v1895
  %v1960 = vadd.f32 %v1763, %v1896
  %v1961 = vadd.f32 %v1764, %v1897
  %v1962 = vadd.f32 %v1765, %v1898
  %v1963 = vadd.f32 %v1766, %v1899
  %v1964 = vadd.f32 %v1767, %v1900
  %v1965 = vadd.f32 %v1768, %v1901
  %v1966 = vadd.f32 %v1769, %v1902
  %v1967 = vadd.f32 %v1770, %v1903
  %v1968 = vadd.f32 %v1771, %v1904
  %v1969 = vadd.f32 %v1772, %v1905
  %v1970 = vadd.f32 %v1773, %v1906
  %v1971 = vadd.f32 %v1774, %v1907
  %v1972 = vadd.f32 %v1775, %v1908
  %v1973 = vadd.f32 %v1776, %v1909
  %v1974 = vld [vmem:[%s1777 + $0x1] sm:$0xff]
  %v1975 = vld [vmem:[%s1777 + $0x9] sm:$0xff]
  %v1976 = vld [vmem:[%s1777 + $0x19] sm:$0xff]
  %v1977 = vld [vmem:[%s1777 + $0x21] sm:$0xff]
  %v1978 = vld [vmem:[%s1777 + $0x31] sm:$0xff]
  %v1979 = vld [vmem:[%s1777 + $0x39] sm:$0xff]
  %v1980 = vld [vmem:[%s1777 + $0x49] sm:$0xff]
  %v1981 = vld [vmem:[%s1777 + $0x51] sm:$0xff]
  %v1982 = vld [vmem:[%s1777 + $0x61] sm:$0xff]
  %v1983 = vld [vmem:[%s1777 + $0x69] sm:$0xff]
  %v1984 = vld [vmem:[%s1777 + $0x79] sm:$0xff]
  %v1985 = vld [vmem:[%s1777 + $0x81] sm:$0xff]
  %v1986 = vld [vmem:[%s1777 + $0x91] sm:$0xff]
  %v1987 = vld [vmem:[%s1777 + $0x99] sm:$0xff]
  %v1988 = vld [vmem:[%s1777 + $0xa9] sm:$0xff]
  %v1989 = vld [vmem:[%s1777 + $0xb1] sm:$0xff]
  %v1990 = vld [vmem:[%s1777 + $0xc1] sm:$0xff]
  %v1991 = vld [vmem:[%s1777 + $0xc9] sm:$0xff]
  %v1992 = vld [vmem:[%s1777 + $0xd9] sm:$0xff]
  %v1993 = vld [vmem:[%s1777 + $0xe1] sm:$0xff]
  %v1994 = vld [vmem:[%s1777 + $0xf1] sm:$0xff]
  %v1995 = vld [vmem:[%s1777 + $0xf9] sm:$0xff]
  %v1996 = vld [vmem:[%s1777 + $0x109] sm:$0xff]
  %v1997 = vld [vmem:[%s1777 + $0x111] sm:$0xff]
  %v1998 = vld [vmem:[%s1777 + $0x121] sm:$0xff]
  %v1999 = vld [vmem:[%s1777 + $0x129] sm:$0xff]
  %v2000 = vld [vmem:[%s1777 + $0x139] sm:$0xff]
  %v2001 = vld [vmem:[%s1777 + $0x141] sm:$0xff]
  %v2002 = vld [vmem:[%s1777 + $0x151] sm:$0xff]
  %v2003 = vld [vmem:[%s1777 + $0x159] sm:$0xff]
  %v2004 = vld [vmem:[%s1777 + $0x169] sm:$0xff]
  %v2005 = vld [vmem:[%s1777 + $0x171] sm:$0xff]
  %v2006 = vld [vmem:[%s1777 + $0x1b1] sm:$0xff]
  %v2007 = vld [vmem:[%s1777 + $0x1b9] sm:$0xff]
  %v2008 = vld [vmem:[%s1777 + $0x1c9] sm:$0xff]
  %v2009 = vld [vmem:[%s1777 + $0x1d1] sm:$0xff]
  %v2010 = vld [vmem:[%s1777 + $0x1e1] sm:$0xff]
  %v2011 = vld [vmem:[%s1777 + $0x1e9] sm:$0xff]
  %v2012 = vld [vmem:[%s1777 + $0x1f9] sm:$0xff]
  %v2013 = vld [vmem:[%s1777 + $0x201] sm:$0xff]
  %v2014 = vld [vmem:[%s1777 + $0x211] sm:$0xff]
  %v2015 = vld [vmem:[%s1777 + $0x219] sm:$0xff]
  %v2016 = vld [vmem:[%s1777 + $0x229] sm:$0xff]
  %v2017 = vld [vmem:[%s1777 + $0x231] sm:$0xff]
  %v2018 = vld [vmem:[%s1777 + $0x241] sm:$0xff]
  %v2019 = vld [vmem:[%s1777 + $0x249] sm:$0xff]
  %v2020 = vld [vmem:[%s1777 + $0x259] sm:$0xff]
  %v2021 = vld [vmem:[%s1777 + $0x261] sm:$0xff]
  %v2022 = vld [vmem:[%s1777 + $0x271] sm:$0xff]
  %v2023 = vld [vmem:[%s1777 + $0x279] sm:$0xff]
  %v2024 = vld [vmem:[%s1777 + $0x289] sm:$0xff]
  %v2025 = vld [vmem:[%s1777 + $0x291] sm:$0xff]
  %v2026 = vld [vmem:[%s1777 + $0x2a1] sm:$0xff]
  %v2027 = vld [vmem:[%s1777 + $0x2a9] sm:$0xff]
  %v2028 = vld [vmem:[%s1777 + $0x2b9] sm:$0xff]
  %v2029 = vld [vmem:[%s1777 + $0x2c1] sm:$0xff]
  %v2030 = vld [vmem:[%s1777 + $0x2d1] sm:$0xff]
  %v2031 = vld [vmem:[%s1777 + $0x2d9] sm:$0xff]
  %v2032 = vld [vmem:[%s1777 + $0x2e9] sm:$0xff]
  %v2033 = vld [vmem:[%s1777 + $0x2f1] sm:$0xff]
  %v2034 = vld [vmem:[%s1777 + $0x301] sm:$0xff]
  %v2035 = vld [vmem:[%s1777 + $0x309] sm:$0xff]
  %v2036 = vld [vmem:[%s1777 + $0x319] sm:$0xff]
  %v2037 = vld [vmem:[%s1777 + $0x321] sm:$0xff]
  %v2038 = vlaneseq
  %v2039 = vshrl.u32 %v2038, 7
  %v2040 = vsub.s32 7, %v2039
  %v2041 = vrot.slane %v32, %v2040
  %v2042 = vmul.f32 %v1974, %v2041
  %v2043 = vmul.f32 %v1975, %v2041
  %v2044 = vmul.f32 %v1976, %v2041
  %v2045 = vmul.f32 %v1977, %v2041
  %v2046 = vmul.f32 %v1978, %v2041
  %v2047 = vmul.f32 %v1979, %v2041
  %v2048 = vmul.f32 %v1980, %v2041
  %v2049 = vmul.f32 %v1981, %v2041
  %v2050 = vmul.f32 %v1982, %v2041
  %v2051 = vmul.f32 %v1983, %v2041
  %v2052 = vmul.f32 %v1984, %v2041
  %v2053 = vmul.f32 %v1985, %v2041
  %v2054 = vmul.f32 %v1986, %v2041
  %v2055 = vmul.f32 %v1987, %v2041
  %v2056 = vmul.f32 %v1988, %v2041
  %v2057 = vmul.f32 %v1989, %v2041
  %v2058 = vmul.f32 %v1990, %v2041
  %v2059 = vmul.f32 %v1991, %v2041
  %v2060 = vmul.f32 %v1992, %v2041
  %v2061 = vmul.f32 %v1993, %v2041
  %v2062 = vmul.f32 %v1994, %v2041
  %v2063 = vmul.f32 %v1995, %v2041
  %v2064 = vmul.f32 %v1996, %v2041
  %v2065 = vmul.f32 %v1997, %v2041
  %v2066 = vmul.f32 %v1998, %v2041
  %v2067 = vmul.f32 %v1999, %v2041
  %v2068 = vmul.f32 %v2000, %v2041
  %v2069 = vmul.f32 %v2001, %v2041
  %v2070 = vmul.f32 %v2002, %v2041
  %v2071 = vmul.f32 %v2003, %v2041
  %v2072 = vmul.f32 %v2004, %v2041
  %v2073 = vmul.f32 %v2005, %v2041
  %v2074 = vmul.f32 %v2006, %v2041
  %v2075 = vmul.f32 %v2007, %v2041
  %v2076 = vmul.f32 %v2008, %v2041
  %v2077 = vmul.f32 %v2009, %v2041
  %v2078 = vmul.f32 %v2010, %v2041
  %v2079 = vmul.f32 %v2011, %v2041
  %v2080 = vmul.f32 %v2012, %v2041
  %v2081 = vmul.f32 %v2013, %v2041
  %v2082 = vmul.f32 %v2014, %v2041
  %v2083 = vmul.f32 %v2015, %v2041
  %v2084 = vmul.f32 %v2016, %v2041
  %v2085 = vmul.f32 %v2017, %v2041
  %v2086 = vmul.f32 %v2018, %v2041
  %v2087 = vmul.f32 %v2019, %v2041
  %v2088 = vmul.f32 %v2020, %v2041
  %v2089 = vmul.f32 %v2021, %v2041
  %v2090 = vmul.f32 %v2022, %v2041
  %v2091 = vmul.f32 %v2023, %v2041
  %v2092 = vmul.f32 %v2024, %v2041
  %v2093 = vmul.f32 %v2025, %v2041
  %v2094 = vmul.f32 %v2026, %v2041
  %v2095 = vmul.f32 %v2027, %v2041
  %v2096 = vmul.f32 %v2028, %v2041
  %v2097 = vmul.f32 %v2029, %v2041
  %v2098 = vmul.f32 %v2030, %v2041
  %v2099 = vmul.f32 %v2031, %v2041
  %v2100 = vmul.f32 %v2032, %v2041
  %v2101 = vmul.f32 %v2033, %v2041
  %v2102 = vmul.f32 %v2034, %v2041
  %v2103 = vmul.f32 %v2035, %v2041
  %v2104 = vmul.f32 %v2036, %v2041
  %v2105 = vmul.f32 %v2037, %v2041
  %v2106 = vadd.f32 %v1910, %v2042
  %v2107 = vadd.f32 %v1911, %v2043
  %v2108 = vadd.f32 %v1912, %v2044
  %v2109 = vadd.f32 %v1913, %v2045
  %v2110 = vadd.f32 %v1914, %v2046
  %v2111 = vadd.f32 %v1915, %v2047
  %v2112 = vadd.f32 %v1916, %v2048
  %v2113 = vadd.f32 %v1917, %v2049
  %v2114 = vadd.f32 %v1918, %v2050
  %v2115 = vadd.f32 %v1919, %v2051
  %v2116 = vadd.f32 %v1920, %v2052
  %v2117 = vadd.f32 %v1921, %v2053
  %v2118 = vadd.f32 %v1922, %v2054
  %v2119 = vadd.f32 %v1923, %v2055
  %v2120 = vadd.f32 %v1924, %v2056
  %v2121 = vadd.f32 %v1925, %v2057
  %v2122 = vadd.f32 %v1926, %v2058
  %v2123 = vadd.f32 %v1927, %v2059
  %v2124 = vadd.f32 %v1928, %v2060
  %v2125 = vadd.f32 %v1929, %v2061
  %v2126 = vadd.f32 %v1930, %v2062
  %v2127 = vadd.f32 %v1931, %v2063
  %v2128 = vadd.f32 %v1932, %v2064
  %v2129 = vadd.f32 %v1933, %v2065
  %v2130 = vadd.f32 %v1934, %v2066
  %v2131 = vadd.f32 %v1935, %v2067
  %v2132 = vadd.f32 %v1936, %v2068
  %v2133 = vadd.f32 %v1937, %v2069
  %v2134 = vadd.f32 %v1938, %v2070
  %v2135 = vadd.f32 %v1939, %v2071
  %v2136 = vadd.f32 %v1940, %v2072
  %v2137 = vadd.f32 %v1941, %v2073
  %v2138 = vadd.f32 %v1942, %v2074
  %v2139 = vadd.f32 %v1943, %v2075
  %v2140 = vadd.f32 %v1944, %v2076
  %v2141 = vadd.f32 %v1945, %v2077
  %v2142 = vadd.f32 %v1946, %v2078
  %v2143 = vadd.f32 %v1947, %v2079
  %v2144 = vadd.f32 %v1948, %v2080
  %v2145 = vadd.f32 %v1949, %v2081
  %v2146 = vadd.f32 %v1950, %v2082
  %v2147 = vadd.f32 %v1951, %v2083
  %v2148 = vadd.f32 %v1952, %v2084
  %v2149 = vadd.f32 %v1953, %v2085
  %v2150 = vadd.f32 %v1954, %v2086
  %v2151 = vadd.f32 %v1955, %v2087
  %v2152 = vadd.f32 %v1956, %v2088
  %v2153 = vadd.f32 %v1957, %v2089
  %v2154 = vadd.f32 %v1958, %v2090
  %v2155 = vadd.f32 %v1959, %v2091
  %v2156 = vadd.f32 %v1960, %v2092
  %v2157 = vadd.f32 %v1961, %v2093
  %v2158 = vadd.f32 %v1962, %v2094
  %v2159 = vadd.f32 %v1963, %v2095
  %v2160 = vadd.f32 %v1964, %v2096
  %v2161 = vadd.f32 %v1965, %v2097
  %v2162 = vadd.f32 %v1966, %v2098
  %v2163 = vadd.f32 %v1967, %v2099
  %v2164 = vadd.f32 %v1968, %v2100
  %v2165 = vadd.f32 %v1969, %v2101
  %v2166 = vadd.f32 %v1970, %v2102
  %v2167 = vadd.f32 %v1971, %v2103
  %v2168 = vadd.f32 %v1972, %v2104
  %v2169 = vadd.f32 %v1973, %v2105
  %v2170 = vld [vmem:[%s1777 + $0x2] sm:$0xff]
  %v2171 = vld [vmem:[%s1777 + $0xa] sm:$0xff]
  %v2172 = vld [vmem:[%s1777 + $0x1a] sm:$0xff]
  %v2173 = vld [vmem:[%s1777 + $0x22] sm:$0xff]
  %v2174 = vld [vmem:[%s1777 + $0x32] sm:$0xff]
  %v2175 = vld [vmem:[%s1777 + $0x3a] sm:$0xff]
  %v2176 = vld [vmem:[%s1777 + $0x4a] sm:$0xff]
  %v2177 = vld [vmem:[%s1777 + $0x52] sm:$0xff]
  %v2178 = vld [vmem:[%s1777 + $0x62] sm:$0xff]
  %v2179 = vld [vmem:[%s1777 + $0x6a] sm:$0xff]
  %v2180 = vld [vmem:[%s1777 + $0x7a] sm:$0xff]
  %v2181 = vld [vmem:[%s1777 + $0x82] sm:$0xff]
  %v2182 = vld [vmem:[%s1777 + $0x92] sm:$0xff]
  %v2183 = vld [vmem:[%s1777 + $0x9a] sm:$0xff]
  %v2184 = vld [vmem:[%s1777 + $0xaa] sm:$0xff]
  %v2185 = vld [vmem:[%s1777 + $0xb2] sm:$0xff]
  %v2186 = vld [vmem:[%s1777 + $0xc2] sm:$0xff]
  %v2187 = vld [vmem:[%s1777 + $0xca] sm:$0xff]
  %v2188 = vld [vmem:[%s1777 + $0xda] sm:$0xff]
  %v2189 = vld [vmem:[%s1777 + $0xe2] sm:$0xff]
  %v2190 = vld [vmem:[%s1777 + $0xf2] sm:$0xff]
  %v2191 = vld [vmem:[%s1777 + $0xfa] sm:$0xff]
  %v2192 = vld [vmem:[%s1777 + $0x10a] sm:$0xff]
  %v2193 = vld [vmem:[%s1777 + $0x112] sm:$0xff]
  %v2194 = vld [vmem:[%s1777 + $0x122] sm:$0xff]
  %v2195 = vld [vmem:[%s1777 + $0x12a] sm:$0xff]
  %v2196 = vld [vmem:[%s1777 + $0x13a] sm:$0xff]
  %v2197 = vld [vmem:[%s1777 + $0x142] sm:$0xff]
  %v2198 = vld [vmem:[%s1777 + $0x152] sm:$0xff]
  %v2199 = vld [vmem:[%s1777 + $0x15a] sm:$0xff]
  %v2200 = vld [vmem:[%s1777 + $0x16a] sm:$0xff]
  %v2201 = vld [vmem:[%s1777 + $0x172] sm:$0xff]
  %v2202 = vld [vmem:[%s1777 + $0x1b2] sm:$0xff]
  %v2203 = vld [vmem:[%s1777 + $0x1ba] sm:$0xff]
  %v2204 = vld [vmem:[%s1777 + $0x1ca] sm:$0xff]
  %v2205 = vld [vmem:[%s1777 + $0x1d2] sm:$0xff]
  %v2206 = vld [vmem:[%s1777 + $0x1e2] sm:$0xff]
  %v2207 = vld [vmem:[%s1777 + $0x1ea] sm:$0xff]
  %v2208 = vld [vmem:[%s1777 + $0x1fa] sm:$0xff]
  %v2209 = vld [vmem:[%s1777 + $0x202] sm:$0xff]
  %v2210 = vld [vmem:[%s1777 + $0x212] sm:$0xff]
  %v2211 = vld [vmem:[%s1777 + $0x21a] sm:$0xff]
  %v2212 = vld [vmem:[%s1777 + $0x22a] sm:$0xff]
  %v2213 = vld [vmem:[%s1777 + $0x232] sm:$0xff]
  %v2214 = vld [vmem:[%s1777 + $0x242] sm:$0xff]
  %v2215 = vld [vmem:[%s1777 + $0x24a] sm:$0xff]
  %v2216 = vld [vmem:[%s1777 + $0x25a] sm:$0xff]
  %v2217 = vld [vmem:[%s1777 + $0x262] sm:$0xff]
  %v2218 = vld [vmem:[%s1777 + $0x272] sm:$0xff]
  %v2219 = vld [vmem:[%s1777 + $0x27a] sm:$0xff]
  %v2220 = vld [vmem:[%s1777 + $0x28a] sm:$0xff]
  %v2221 = vld [vmem:[%s1777 + $0x292] sm:$0xff]
  %v2222 = vld [vmem:[%s1777 + $0x2a2] sm:$0xff]
  %v2223 = vld [vmem:[%s1777 + $0x2aa] sm:$0xff]
  %v2224 = vld [vmem:[%s1777 + $0x2ba] sm:$0xff]
  %v2225 = vld [vmem:[%s1777 + $0x2c2] sm:$0xff]
  %v2226 = vld [vmem:[%s1777 + $0x2d2] sm:$0xff]
  %v2227 = vld [vmem:[%s1777 + $0x2da] sm:$0xff]
  %v2228 = vld [vmem:[%s1777 + $0x2ea] sm:$0xff]
  %v2229 = vld [vmem:[%s1777 + $0x2f2] sm:$0xff]
  %v2230 = vld [vmem:[%s1777 + $0x302] sm:$0xff]
  %v2231 = vld [vmem:[%s1777 + $0x30a] sm:$0xff]
  %v2232 = vld [vmem:[%s1777 + $0x31a] sm:$0xff]
  %v2233 = vld [vmem:[%s1777 + $0x322] sm:$0xff]
  %v2234 = vlaneseq
  %v2235 = vshrl.u32 %v2234, 7
  %v2236 = vsub.s32 0, %v2235
  %v2237 = vrot.slane %v33, %v2236
  %v2238 = vmul.f32 %v2170, %v2237
  %v2239 = vmul.f32 %v2171, %v2237
  %v2240 = vmul.f32 %v2172, %v2237
  %v2241 = vmul.f32 %v2173, %v2237
  %v2242 = vmul.f32 %v2174, %v2237
  %v2243 = vmul.f32 %v2175, %v2237
  %v2244 = vmul.f32 %v2176, %v2237
  %v2245 = vmul.f32 %v2177, %v2237
  %v2246 = vmul.f32 %v2178, %v2237
  %v2247 = vmul.f32 %v2179, %v2237
  %v2248 = vmul.f32 %v2180, %v2237
  %v2249 = vmul.f32 %v2181, %v2237
  %v2250 = vmul.f32 %v2182, %v2237
  %v2251 = vmul.f32 %v2183, %v2237
  %v2252 = vmul.f32 %v2184, %v2237
  %v2253 = vmul.f32 %v2185, %v2237
  %v2254 = vmul.f32 %v2186, %v2237
  %v2255 = vmul.f32 %v2187, %v2237
  %v2256 = vmul.f32 %v2188, %v2237
  %v2257 = vmul.f32 %v2189, %v2237
  %v2258 = vmul.f32 %v2190, %v2237
  %v2259 = vmul.f32 %v2191, %v2237
  %v2260 = vmul.f32 %v2192, %v2237
  %v2261 = vmul.f32 %v2193, %v2237
  %v2262 = vmul.f32 %v2194, %v2237
  %v2263 = vmul.f32 %v2195, %v2237
  %v2264 = vmul.f32 %v2196, %v2237
  %v2265 = vmul.f32 %v2197, %v2237
  %v2266 = vmul.f32 %v2198, %v2237
  %v2267 = vmul.f32 %v2199, %v2237
  %v2268 = vmul.f32 %v2200, %v2237
  %v2269 = vmul.f32 %v2201, %v2237
  %v2270 = vmul.f32 %v2202, %v2237
  %v2271 = vmul.f32 %v2203, %v2237
  %v2272 = vmul.f32 %v2204, %v2237
  %v2273 = vmul.f32 %v2205, %v2237
  %v2274 = vmul.f32 %v2206, %v2237
  %v2275 = vmul.f32 %v2207, %v2237
  %v2276 = vmul.f32 %v2208, %v2237
  %v2277 = vmul.f32 %v2209, %v2237
  %v2278 = vmul.f32 %v2210, %v2237
  %v2279 = vmul.f32 %v2211, %v2237
  %v2280 = vmul.f32 %v2212, %v2237
  %v2281 = vmul.f32 %v2213, %v2237
  %v2282 = vmul.f32 %v2214, %v2237
  %v2283 = vmul.f32 %v2215, %v2237
  %v2284 = vmul.f32 %v2216, %v2237
  %v2285 = vmul.f32 %v2217, %v2237
  %v2286 = vmul.f32 %v2218, %v2237
  %v2287 = vmul.f32 %v2219, %v2237
  %v2288 = vmul.f32 %v2220, %v2237
  %v2289 = vmul.f32 %v2221, %v2237
  %v2290 = vmul.f32 %v2222, %v2237
  %v2291 = vmul.f32 %v2223, %v2237
  %v2292 = vmul.f32 %v2224, %v2237
  %v2293 = vmul.f32 %v2225, %v2237
  %v2294 = vmul.f32 %v2226, %v2237
  %v2295 = vmul.f32 %v2227, %v2237
  %v2296 = vmul.f32 %v2228, %v2237
  %v2297 = vmul.f32 %v2229, %v2237
  %v2298 = vmul.f32 %v2230, %v2237
  %v2299 = vmul.f32 %v2231, %v2237
  %v2300 = vmul.f32 %v2232, %v2237
  %v2301 = vmul.f32 %v2233, %v2237
  %v2302 = vadd.f32 %v2106, %v2238
  %v2303 = vadd.f32 %v2107, %v2239
  %v2304 = vadd.f32 %v2108, %v2240
  %v2305 = vadd.f32 %v2109, %v2241
  %v2306 = vadd.f32 %v2110, %v2242
  %v2307 = vadd.f32 %v2111, %v2243
  %v2308 = vadd.f32 %v2112, %v2244
  %v2309 = vadd.f32 %v2113, %v2245
  %v2310 = vadd.f32 %v2114, %v2246
  %v2311 = vadd.f32 %v2115, %v2247
  %v2312 = vadd.f32 %v2116, %v2248
  %v2313 = vadd.f32 %v2117, %v2249
  %v2314 = vadd.f32 %v2118, %v2250
  %v2315 = vadd.f32 %v2119, %v2251
  %v2316 = vadd.f32 %v2120, %v2252
  %v2317 = vadd.f32 %v2121, %v2253
  %v2318 = vadd.f32 %v2122, %v2254
  %v2319 = vadd.f32 %v2123, %v2255
  %v2320 = vadd.f32 %v2124, %v2256
  %v2321 = vadd.f32 %v2125, %v2257
  %v2322 = vadd.f32 %v2126, %v2258
  %v2323 = vadd.f32 %v2127, %v2259
  %v2324 = vadd.f32 %v2128, %v2260
  %v2325 = vadd.f32 %v2129, %v2261
  %v2326 = vadd.f32 %v2130, %v2262
  %v2327 = vadd.f32 %v2131, %v2263
  %v2328 = vadd.f32 %v2132, %v2264
  %v2329 = vadd.f32 %v2133, %v2265
  %v2330 = vadd.f32 %v2134, %v2266
  %v2331 = vadd.f32 %v2135, %v2267
  %v2332 = vadd.f32 %v2136, %v2268
  %v2333 = vadd.f32 %v2137, %v2269
  %v2334 = vadd.f32 %v2138, %v2270
  %v2335 = vadd.f32 %v2139, %v2271
  %v2336 = vadd.f32 %v2140, %v2272
  %v2337 = vadd.f32 %v2141, %v2273
  %v2338 = vadd.f32 %v2142, %v2274
  %v2339 = vadd.f32 %v2143, %v2275
  %v2340 = vadd.f32 %v2144, %v2276
  %v2341 = vadd.f32 %v2145, %v2277
  %v2342 = vadd.f32 %v2146, %v2278
  %v2343 = vadd.f32 %v2147, %v2279
  %v2344 = vadd.f32 %v2148, %v2280
  %v2345 = vadd.f32 %v2149, %v2281
  %v2346 = vadd.f32 %v2150, %v2282
  %v2347 = vadd.f32 %v2151, %v2283
  %v2348 = vadd.f32 %v2152, %v2284
  %v2349 = vadd.f32 %v2153, %v2285
  %v2350 = vadd.f32 %v2154, %v2286
  %v2351 = vadd.f32 %v2155, %v2287
  %v2352 = vadd.f32 %v2156, %v2288
  %v2353 = vadd.f32 %v2157, %v2289
  %v2354 = vadd.f32 %v2158, %v2290
  %v2355 = vadd.f32 %v2159, %v2291
  %v2356 = vadd.f32 %v2160, %v2292
  %v2357 = vadd.f32 %v2161, %v2293
  %v2358 = vadd.f32 %v2162, %v2294
  %v2359 = vadd.f32 %v2163, %v2295
  %v2360 = vadd.f32 %v2164, %v2296
  %v2361 = vadd.f32 %v2165, %v2297
  %v2362 = vadd.f32 %v2166, %v2298
  %v2363 = vadd.f32 %v2167, %v2299
  %v2364 = vadd.f32 %v2168, %v2300
  %v2365 = vadd.f32 %v2169, %v2301
  %v2366 = vmax.f32 %v2302, 0.0
  %v2367 = vmax.f32 %v2303, 0.0
  %v2368 = vmax.f32 %v2304, 0.0
  %v2369 = vmax.f32 %v2305, 0.0
  %v2370 = vmax.f32 %v2306, 0.0
  %v2371 = vmax.f32 %v2307, 0.0
  %v2372 = vmax.f32 %v2308, 0.0
  %v2373 = vmax.f32 %v2309, 0.0
  %v2374 = vmax.f32 %v2310, 0.0
  %v2375 = vmax.f32 %v2311, 0.0
  %v2376 = vmax.f32 %v2312, 0.0
  %v2377 = vmax.f32 %v2313, 0.0
  %v2378 = vmax.f32 %v2314, 0.0
  %v2379 = vmax.f32 %v2315, 0.0
  %v2380 = vmax.f32 %v2316, 0.0
  %v2381 = vmax.f32 %v2317, 0.0
  %v2382 = vmax.f32 %v2318, 0.0
  %v2383 = vmax.f32 %v2319, 0.0
  %v2384 = vmax.f32 %v2320, 0.0
  %v2385 = vmax.f32 %v2321, 0.0
  %v2386 = vmax.f32 %v2322, 0.0
  %v2387 = vmax.f32 %v2323, 0.0
  %v2388 = vmax.f32 %v2324, 0.0
  %v2389 = vmax.f32 %v2325, 0.0
  %v2390 = vmax.f32 %v2326, 0.0
  %v2391 = vmax.f32 %v2327, 0.0
  %v2392 = vmax.f32 %v2328, 0.0
  %v2393 = vmax.f32 %v2329, 0.0
  %v2394 = vmax.f32 %v2330, 0.0
  %v2395 = vmax.f32 %v2331, 0.0
  %v2396 = vmax.f32 %v2332, 0.0
  %v2397 = vmax.f32 %v2333, 0.0
  %v2398 = vmax.f32 %v2334, 0.0
  %v2399 = vmax.f32 %v2335, 0.0
  %v2400 = vmax.f32 %v2336, 0.0
  %v2401 = vmax.f32 %v2337, 0.0
  %v2402 = vmax.f32 %v2338, 0.0
  %v2403 = vmax.f32 %v2339, 0.0
  %v2404 = vmax.f32 %v2340, 0.0
  %v2405 = vmax.f32 %v2341, 0.0
  %v2406 = vmax.f32 %v2342, 0.0
  %v2407 = vmax.f32 %v2343, 0.0
  %v2408 = vmax.f32 %v2344, 0.0
  %v2409 = vmax.f32 %v2345, 0.0
  %v2410 = vmax.f32 %v2346, 0.0
  %v2411 = vmax.f32 %v2347, 0.0
  %v2412 = vmax.f32 %v2348, 0.0
  %v2413 = vmax.f32 %v2349, 0.0
  %v2414 = vmax.f32 %v2350, 0.0
  %v2415 = vmax.f32 %v2351, 0.0
  %v2416 = vmax.f32 %v2352, 0.0
  %v2417 = vmax.f32 %v2353, 0.0
  %v2418 = vmax.f32 %v2354, 0.0
  %v2419 = vmax.f32 %v2355, 0.0
  %v2420 = vmax.f32 %v2356, 0.0
  %v2421 = vmax.f32 %v2357, 0.0
  %v2422 = vmax.f32 %v2358, 0.0
  %v2423 = vmax.f32 %v2359, 0.0
  %v2424 = vmax.f32 %v2360, 0.0
  %v2425 = vmax.f32 %v2361, 0.0
  %v2426 = vmax.f32 %v2362, 0.0
  %v2427 = vmax.f32 %v2363, 0.0
  %v2428 = vmax.f32 %v2364, 0.0
  %v2429 = vmax.f32 %v2365, 0.0
  %v2494 = vcombine.high %v2366, %v2366
  %v2496 = vunpack.c.l.s4 1983009808
  %v2497 = vunpack.c.0.s8 %v2496
  %v2498 = vlaneseq
  %v2499 = vshrl.u32 %v2498, 7
  %v2500 = vsub.s32 %v2497, %v2499
  %v2501 = vrot.slane %v2366, %v2500
  %v2503 = vunpack.c.l.s4 1983009808
  %v2504 = vunpack.c.0.s8 %v2503
  %v2505 = vlaneseq
  %v2506 = vshrl.u32 %v2505, 7
  %v2507 = vsub.s32 %v2504, %v2506
  %v2508 = vrot.slane %v2494, %v2507
  %v2509 = vcombine.high %v2501, %v2501
  %v2510 = vcombine.high %v2508, %v2508
  %v2511 = vcombine.high %v2367, %v2367
  %v2513 = vunpack.c.l.s4 1983009808
  %v2514 = vunpack.c.0.s8 %v2513
  %v2515 = vlaneseq
  %v2516 = vshrl.u32 %v2515, 7
  %v2517 = vsub.s32 %v2514, %v2516
  %v2518 = vrot.slane %v2367, %v2517
  %v2520 = vunpack.c.l.s4 1983009808
  %v2521 = vunpack.c.0.s8 %v2520
  %v2522 = vlaneseq
  %v2523 = vshrl.u32 %v2522, 7
  %v2524 = vsub.s32 %v2521, %v2523
  %v2525 = vrot.slane %v2511, %v2524
  %v2526 = vcombine.high %v2518, %v2518
  %v2527 = vcombine.high %v2525, %v2525
  %v2528 = vcombine.high %v2368, %v2368
  %v2530 = vunpack.c.l.s4 1983009808
  %v2531 = vunpack.c.0.s8 %v2530
  %v2532 = vlaneseq
  %v2533 = vshrl.u32 %v2532, 7
  %v2534 = vsub.s32 %v2531, %v2533
  %v2535 = vrot.slane %v2368, %v2534
  %v2537 = vunpack.c.l.s4 1983009808
  %v2538 = vunpack.c.0.s8 %v2537
  %v2539 = vlaneseq
  %v2540 = vshrl.u32 %v2539, 7
  %v2541 = vsub.s32 %v2538, %v2540
  %v2542 = vrot.slane %v2528, %v2541
  %v2543 = vcombine.high %v2535, %v2535
  %v2544 = vcombine.high %v2542, %v2542
  %v2545 = vcombine.high %v2369, %v2369
  %v2547 = vunpack.c.l.s4 1983009808
  %v2548 = vunpack.c.0.s8 %v2547
  %v2549 = vlaneseq
  %v2550 = vshrl.u32 %v2549, 7
  %v2551 = vsub.s32 %v2548, %v2550
  %v2552 = vrot.slane %v2369, %v2551
  %v2554 = vunpack.c.l.s4 1983009808
  %v2555 = vunpack.c.0.s8 %v2554
  %v2556 = vlaneseq
  %v2557 = vshrl.u32 %v2556, 7
  %v2558 = vsub.s32 %v2555, %v2557
  %v2559 = vrot.slane %v2545, %v2558
  %v2560 = vcombine.high %v2552, %v2552
  %v2561 = vcombine.high %v2559, %v2559
  %v2562 = vcombine.high %v2370, %v2370
  %v2564 = vunpack.c.l.s4 1983009808
  %v2565 = vunpack.c.0.s8 %v2564
  %v2566 = vlaneseq
  %v2567 = vshrl.u32 %v2566, 7
  %v2568 = vsub.s32 %v2565, %v2567
  %v2569 = vrot.slane %v2370, %v2568
  %v2571 = vunpack.c.l.s4 1983009808
  %v2572 = vunpack.c.0.s8 %v2571
  %v2573 = vlaneseq
  %v2574 = vshrl.u32 %v2573, 7
  %v2575 = vsub.s32 %v2572, %v2574
  %v2576 = vrot.slane %v2562, %v2575
  %v2577 = vcombine.high %v2569, %v2569
  %v2578 = vcombine.high %v2576, %v2576
  %v2579 = vcombine.high %v2371, %v2371
  %v2581 = vunpack.c.l.s4 1983009808
  %v2582 = vunpack.c.0.s8 %v2581
  %v2583 = vlaneseq
  %v2584 = vshrl.u32 %v2583, 7
  %v2585 = vsub.s32 %v2582, %v2584
  %v2586 = vrot.slane %v2371, %v2585
  %v2588 = vunpack.c.l.s4 1983009808
  %v2589 = vunpack.c.0.s8 %v2588
  %v2590 = vlaneseq
  %v2591 = vshrl.u32 %v2590, 7
  %v2592 = vsub.s32 %v2589, %v2591
  %v2593 = vrot.slane %v2579, %v2592
  %v2594 = vcombine.high %v2586, %v2586
  %v2595 = vcombine.high %v2593, %v2593
  %v2596 = vcombine.high %v2372, %v2372
  %v2598 = vunpack.c.l.s4 1983009808
  %v2599 = vunpack.c.0.s8 %v2598
  %v2600 = vlaneseq
  %v2601 = vshrl.u32 %v2600, 7
  %v2602 = vsub.s32 %v2599, %v2601
  %v2603 = vrot.slane %v2372, %v2602
  %v2605 = vunpack.c.l.s4 1983009808
  %v2606 = vunpack.c.0.s8 %v2605
  %v2607 = vlaneseq
  %v2608 = vshrl.u32 %v2607, 7
  %v2609 = vsub.s32 %v2606, %v2608
  %v2610 = vrot.slane %v2596, %v2609
  %v2611 = vcombine.high %v2603, %v2603
  %v2612 = vcombine.high %v2610, %v2610
  %v2613 = vcombine.high %v2373, %v2373
  %v2615 = vunpack.c.l.s4 1983009808
  %v2616 = vunpack.c.0.s8 %v2615
  %v2617 = vlaneseq
  %v2618 = vshrl.u32 %v2617, 7
  %v2619 = vsub.s32 %v2616, %v2618
  %v2620 = vrot.slane %v2373, %v2619
  %v2622 = vunpack.c.l.s4 1983009808
  %v2623 = vunpack.c.0.s8 %v2622
  %v2624 = vlaneseq
  %v2625 = vshrl.u32 %v2624, 7
  %v2626 = vsub.s32 %v2623, %v2625
  %v2627 = vrot.slane %v2613, %v2626
  %v2628 = vcombine.high %v2620, %v2620
  %v2629 = vcombine.high %v2627, %v2627
  %v2630 = vcombine.high %v2374, %v2374
  %v2632 = vunpack.c.l.s4 1983009808
  %v2633 = vunpack.c.0.s8 %v2632
  %v2634 = vlaneseq
  %v2635 = vshrl.u32 %v2634, 7
  %v2636 = vsub.s32 %v2633, %v2635
  %v2637 = vrot.slane %v2374, %v2636
  %v2639 = vunpack.c.l.s4 1983009808
  %v2640 = vunpack.c.0.s8 %v2639
  %v2641 = vlaneseq
  %v2642 = vshrl.u32 %v2641, 7
  %v2643 = vsub.s32 %v2640, %v2642
  %v2644 = vrot.slane %v2630, %v2643
  %v2645 = vcombine.high %v2637, %v2637
  %v2646 = vcombine.high %v2644, %v2644
  %v2647 = vcombine.high %v2375, %v2375
  %v2649 = vunpack.c.l.s4 1983009808
  %v2650 = vunpack.c.0.s8 %v2649
  %v2651 = vlaneseq
  %v2652 = vshrl.u32 %v2651, 7
  %v2653 = vsub.s32 %v2650, %v2652
  %v2654 = vrot.slane %v2375, %v2653
  %v2656 = vunpack.c.l.s4 1983009808
  %v2657 = vunpack.c.0.s8 %v2656
  %v2658 = vlaneseq
  %v2659 = vshrl.u32 %v2658, 7
  %v2660 = vsub.s32 %v2657, %v2659
  %v2661 = vrot.slane %v2647, %v2660
  %v2662 = vcombine.high %v2654, %v2654
  %v2663 = vcombine.high %v2661, %v2661
  %v2664 = vcombine.high %v2376, %v2376
  %v2666 = vunpack.c.l.s4 1983009808
  %v2667 = vunpack.c.0.s8 %v2666
  %v2668 = vlaneseq
  %v2669 = vshrl.u32 %v2668, 7
  %v2670 = vsub.s32 %v2667, %v2669
  %v2671 = vrot.slane %v2376, %v2670
  %v2673 = vunpack.c.l.s4 1983009808
  %v2674 = vunpack.c.0.s8 %v2673
  %v2675 = vlaneseq
  %v2676 = vshrl.u32 %v2675, 7
  %v2677 = vsub.s32 %v2674, %v2676
  %v2678 = vrot.slane %v2664, %v2677
  %v2679 = vcombine.high %v2671, %v2671
  %v2680 = vcombine.high %v2678, %v2678
  %v2681 = vcombine.high %v2377, %v2377
  %v2683 = vunpack.c.l.s4 1983009808
  %v2684 = vunpack.c.0.s8 %v2683
  %v2685 = vlaneseq
  %v2686 = vshrl.u32 %v2685, 7
  %v2687 = vsub.s32 %v2684, %v2686
  %v2688 = vrot.slane %v2377, %v2687
  %v2690 = vunpack.c.l.s4 1983009808
  %v2691 = vunpack.c.0.s8 %v2690
  %v2692 = vlaneseq
  %v2693 = vshrl.u32 %v2692, 7
  %v2694 = vsub.s32 %v2691, %v2693
  %v2695 = vrot.slane %v2681, %v2694
  %v2696 = vcombine.high %v2688, %v2688
  %v2697 = vcombine.high %v2695, %v2695
  %v2698 = vcombine.high %v2378, %v2378
  %v2700 = vunpack.c.l.s4 1983009808
  %v2701 = vunpack.c.0.s8 %v2700
  %v2702 = vlaneseq
  %v2703 = vshrl.u32 %v2702, 7
  %v2704 = vsub.s32 %v2701, %v2703
  %v2705 = vrot.slane %v2378, %v2704
  %v2707 = vunpack.c.l.s4 1983009808
  %v2708 = vunpack.c.0.s8 %v2707
  %v2709 = vlaneseq
  %v2710 = vshrl.u32 %v2709, 7
  %v2711 = vsub.s32 %v2708, %v2710
  %v2712 = vrot.slane %v2698, %v2711
  %v2713 = vcombine.high %v2705, %v2705
  %v2714 = vcombine.high %v2712, %v2712
  %v2715 = vcombine.high %v2379, %v2379
  %v2717 = vunpack.c.l.s4 1983009808
  %v2718 = vunpack.c.0.s8 %v2717
  %v2719 = vlaneseq
  %v2720 = vshrl.u32 %v2719, 7
  %v2721 = vsub.s32 %v2718, %v2720
  %v2722 = vrot.slane %v2379, %v2721
  %v2724 = vunpack.c.l.s4 1983009808
  %v2725 = vunpack.c.0.s8 %v2724
  %v2726 = vlaneseq
  %v2727 = vshrl.u32 %v2726, 7
  %v2728 = vsub.s32 %v2725, %v2727
  %v2729 = vrot.slane %v2715, %v2728
  %v2730 = vcombine.high %v2722, %v2722
  %v2731 = vcombine.high %v2729, %v2729
  %v2732 = vcombine.high %v2380, %v2380
  %v2734 = vunpack.c.l.s4 1983009808
  %v2735 = vunpack.c.0.s8 %v2734
  %v2736 = vlaneseq
  %v2737 = vshrl.u32 %v2736, 7
  %v2738 = vsub.s32 %v2735, %v2737
  %v2739 = vrot.slane %v2380, %v2738
  %v2741 = vunpack.c.l.s4 1983009808
  %v2742 = vunpack.c.0.s8 %v2741
  %v2743 = vlaneseq
  %v2744 = vshrl.u32 %v2743, 7
  %v2745 = vsub.s32 %v2742, %v2744
  %v2746 = vrot.slane %v2732, %v2745
  %v2747 = vcombine.high %v2739, %v2739
  %v2748 = vcombine.high %v2746, %v2746
  %v2749 = vcombine.high %v2381, %v2381
  %v2751 = vunpack.c.l.s4 1983009808
  %v2752 = vunpack.c.0.s8 %v2751
  %v2753 = vlaneseq
  %v2754 = vshrl.u32 %v2753, 7
  %v2755 = vsub.s32 %v2752, %v2754
  %v2756 = vrot.slane %v2381, %v2755
  %v2758 = vunpack.c.l.s4 1983009808
  %v2759 = vunpack.c.0.s8 %v2758
  %v2760 = vlaneseq
  %v2761 = vshrl.u32 %v2760, 7
  %v2762 = vsub.s32 %v2759, %v2761
  %v2763 = vrot.slane %v2749, %v2762
  %v2764 = vcombine.high %v2756, %v2756
  %v2765 = vcombine.high %v2763, %v2763
  %v2766 = vcombine.high %v2382, %v2382
  %v2768 = vunpack.c.l.s4 1983009808
  %v2769 = vunpack.c.0.s8 %v2768
  %v2770 = vlaneseq
  %v2771 = vshrl.u32 %v2770, 7
  %v2772 = vsub.s32 %v2769, %v2771
  %v2773 = vrot.slane %v2382, %v2772
  %v2775 = vunpack.c.l.s4 1983009808
  %v2776 = vunpack.c.0.s8 %v2775
  %v2777 = vlaneseq
  %v2778 = vshrl.u32 %v2777, 7
  %v2779 = vsub.s32 %v2776, %v2778
  %v2780 = vrot.slane %v2766, %v2779
  %v2781 = vcombine.high %v2773, %v2773
  %v2782 = vcombine.high %v2780, %v2780
  %v2783 = vcombine.high %v2383, %v2383
  %v2785 = vunpack.c.l.s4 1983009808
  %v2786 = vunpack.c.0.s8 %v2785
  %v2787 = vlaneseq
  %v2788 = vshrl.u32 %v2787, 7
  %v2789 = vsub.s32 %v2786, %v2788
  %v2790 = vrot.slane %v2383, %v2789
  %v2792 = vunpack.c.l.s4 1983009808
  %v2793 = vunpack.c.0.s8 %v2792
  %v2794 = vlaneseq
  %v2795 = vshrl.u32 %v2794, 7
  %v2796 = vsub.s32 %v2793, %v2795
  %v2797 = vrot.slane %v2783, %v2796
  %v2798 = vcombine.high %v2790, %v2790
  %v2799 = vcombine.high %v2797, %v2797
  %v2800 = vcombine.high %v2384, %v2384
  %v2802 = vunpack.c.l.s4 1983009808
  %v2803 = vunpack.c.0.s8 %v2802
  %v2804 = vlaneseq
  %v2805 = vshrl.u32 %v2804, 7
  %v2806 = vsub.s32 %v2803, %v2805
  %v2807 = vrot.slane %v2384, %v2806
  %v2809 = vunpack.c.l.s4 1983009808
  %v2810 = vunpack.c.0.s8 %v2809
  %v2811 = vlaneseq
  %v2812 = vshrl.u32 %v2811, 7
  %v2813 = vsub.s32 %v2810, %v2812
  %v2814 = vrot.slane %v2800, %v2813
  %v2815 = vcombine.high %v2807, %v2807
  %v2816 = vcombine.high %v2814, %v2814
  %v2817 = vcombine.high %v2385, %v2385
  %v2819 = vunpack.c.l.s4 1983009808
  %v2820 = vunpack.c.0.s8 %v2819
  %v2821 = vlaneseq
  %v2822 = vshrl.u32 %v2821, 7
  %v2823 = vsub.s32 %v2820, %v2822
  %v2824 = vrot.slane %v2385, %v2823
  %v2826 = vunpack.c.l.s4 1983009808
  %v2827 = vunpack.c.0.s8 %v2826
  %v2828 = vlaneseq
  %v2829 = vshrl.u32 %v2828, 7
  %v2830 = vsub.s32 %v2827, %v2829
  %v2831 = vrot.slane %v2817, %v2830
  %v2832 = vcombine.high %v2824, %v2824
  %v2833 = vcombine.high %v2831, %v2831
  %v2834 = vcombine.high %v2386, %v2386
  %v2836 = vunpack.c.l.s4 1983009808
  %v2837 = vunpack.c.0.s8 %v2836
  %v2838 = vlaneseq
  %v2839 = vshrl.u32 %v2838, 7
  %v2840 = vsub.s32 %v2837, %v2839
  %v2841 = vrot.slane %v2386, %v2840
  %v2843 = vunpack.c.l.s4 1983009808
  %v2844 = vunpack.c.0.s8 %v2843
  %v2845 = vlaneseq
  %v2846 = vshrl.u32 %v2845, 7
  %v2847 = vsub.s32 %v2844, %v2846
  %v2848 = vrot.slane %v2834, %v2847
  %v2849 = vcombine.high %v2841, %v2841
  %v2850 = vcombine.high %v2848, %v2848
  %v2851 = vcombine.high %v2387, %v2387
  %v2853 = vunpack.c.l.s4 1983009808
  %v2854 = vunpack.c.0.s8 %v2853
  %v2855 = vlaneseq
  %v2856 = vshrl.u32 %v2855, 7
  %v2857 = vsub.s32 %v2854, %v2856
  %v2858 = vrot.slane %v2387, %v2857
  %v2860 = vunpack.c.l.s4 1983009808
  %v2861 = vunpack.c.0.s8 %v2860
  %v2862 = vlaneseq
  %v2863 = vshrl.u32 %v2862, 7
  %v2864 = vsub.s32 %v2861, %v2863
  %v2865 = vrot.slane %v2851, %v2864
  %v2866 = vcombine.high %v2858, %v2858
  %v2867 = vcombine.high %v2865, %v2865
  %v2868 = vcombine.high %v2388, %v2388
  %v2870 = vunpack.c.l.s4 1983009808
  %v2871 = vunpack.c.0.s8 %v2870
  %v2872 = vlaneseq
  %v2873 = vshrl.u32 %v2872, 7
  %v2874 = vsub.s32 %v2871, %v2873
  %v2875 = vrot.slane %v2388, %v2874
  %v2877 = vunpack.c.l.s4 1983009808
  %v2878 = vunpack.c.0.s8 %v2877
  %v2879 = vlaneseq
  %v2880 = vshrl.u32 %v2879, 7
  %v2881 = vsub.s32 %v2878, %v2880
  %v2882 = vrot.slane %v2868, %v2881
  %v2883 = vcombine.high %v2875, %v2875
  %v2884 = vcombine.high %v2882, %v2882
  %v2885 = vcombine.high %v2389, %v2389
  %v2887 = vunpack.c.l.s4 1983009808
  %v2888 = vunpack.c.0.s8 %v2887
  %v2889 = vlaneseq
  %v2890 = vshrl.u32 %v2889, 7
  %v2891 = vsub.s32 %v2888, %v2890
  %v2892 = vrot.slane %v2389, %v2891
  %v2894 = vunpack.c.l.s4 1983009808
  %v2895 = vunpack.c.0.s8 %v2894
  %v2896 = vlaneseq
  %v2897 = vshrl.u32 %v2896, 7
  %v2898 = vsub.s32 %v2895, %v2897
  %v2899 = vrot.slane %v2885, %v2898
  %v2900 = vcombine.high %v2892, %v2892
  %v2901 = vcombine.high %v2899, %v2899
  %v2902 = vcombine.high %v2390, %v2390
  %v2904 = vunpack.c.l.s4 1983009808
  %v2905 = vunpack.c.0.s8 %v2904
  %v2906 = vlaneseq
  %v2907 = vshrl.u32 %v2906, 7
  %v2908 = vsub.s32 %v2905, %v2907
  %v2909 = vrot.slane %v2390, %v2908
  %v2911 = vunpack.c.l.s4 1983009808
  %v2912 = vunpack.c.0.s8 %v2911
  %v2913 = vlaneseq
  %v2914 = vshrl.u32 %v2913, 7
  %v2915 = vsub.s32 %v2912, %v2914
  %v2916 = vrot.slane %v2902, %v2915
  %v2917 = vcombine.high %v2909, %v2909
  %v2918 = vcombine.high %v2916, %v2916
  %v2919 = vcombine.high %v2391, %v2391
  %v2921 = vunpack.c.l.s4 1983009808
  %v2922 = vunpack.c.0.s8 %v2921
  %v2923 = vlaneseq
  %v2924 = vshrl.u32 %v2923, 7
  %v2925 = vsub.s32 %v2922, %v2924
  %v2926 = vrot.slane %v2391, %v2925
  %v2928 = vunpack.c.l.s4 1983009808
  %v2929 = vunpack.c.0.s8 %v2928
  %v2930 = vlaneseq
  %v2931 = vshrl.u32 %v2930, 7
  %v2932 = vsub.s32 %v2929, %v2931
  %v2933 = vrot.slane %v2919, %v2932
  %v2934 = vcombine.high %v2926, %v2926
  %v2935 = vcombine.high %v2933, %v2933
  %v2936 = vcombine.high %v2392, %v2392
  %v2938 = vunpack.c.l.s4 1983009808
  %v2939 = vunpack.c.0.s8 %v2938
  %v2940 = vlaneseq
  %v2941 = vshrl.u32 %v2940, 7
  %v2942 = vsub.s32 %v2939, %v2941
  %v2943 = vrot.slane %v2392, %v2942
  %v2945 = vunpack.c.l.s4 1983009808
  %v2946 = vunpack.c.0.s8 %v2945
  %v2947 = vlaneseq
  %v2948 = vshrl.u32 %v2947, 7
  %v2949 = vsub.s32 %v2946, %v2948
  %v2950 = vrot.slane %v2936, %v2949
  %v2951 = vcombine.high %v2943, %v2943
  %v2952 = vcombine.high %v2950, %v2950
  %v2953 = vcombine.high %v2393, %v2393
  %v2955 = vunpack.c.l.s4 1983009808
  %v2956 = vunpack.c.0.s8 %v2955
  %v2957 = vlaneseq
  %v2958 = vshrl.u32 %v2957, 7
  %v2959 = vsub.s32 %v2956, %v2958
  %v2960 = vrot.slane %v2393, %v2959
  %v2962 = vunpack.c.l.s4 1983009808
  %v2963 = vunpack.c.0.s8 %v2962
  %v2964 = vlaneseq
  %v2965 = vshrl.u32 %v2964, 7
  %v2966 = vsub.s32 %v2963, %v2965
  %v2967 = vrot.slane %v2953, %v2966
  %v2968 = vcombine.high %v2960, %v2960
  %v2969 = vcombine.high %v2967, %v2967
  %v2970 = vcombine.high %v2394, %v2394
  %v2972 = vunpack.c.l.s4 1983009808
  %v2973 = vunpack.c.0.s8 %v2972
  %v2974 = vlaneseq
  %v2975 = vshrl.u32 %v2974, 7
  %v2976 = vsub.s32 %v2973, %v2975
  %v2977 = vrot.slane %v2394, %v2976
  %v2979 = vunpack.c.l.s4 1983009808
  %v2980 = vunpack.c.0.s8 %v2979
  %v2981 = vlaneseq
  %v2982 = vshrl.u32 %v2981, 7
  %v2983 = vsub.s32 %v2980, %v2982
  %v2984 = vrot.slane %v2970, %v2983
  %v2985 = vcombine.high %v2977, %v2977
  %v2986 = vcombine.high %v2984, %v2984
  %v2987 = vcombine.high %v2395, %v2395
  %v2989 = vunpack.c.l.s4 1983009808
  %v2990 = vunpack.c.0.s8 %v2989
  %v2991 = vlaneseq
  %v2992 = vshrl.u32 %v2991, 7
  %v2993 = vsub.s32 %v2990, %v2992
  %v2994 = vrot.slane %v2395, %v2993
  %v2996 = vunpack.c.l.s4 1983009808
  %v2997 = vunpack.c.0.s8 %v2996
  %v2998 = vlaneseq
  %v2999 = vshrl.u32 %v2998, 7
  %v3000 = vsub.s32 %v2997, %v2999
  %v3001 = vrot.slane %v2987, %v3000
  %v3002 = vcombine.high %v2994, %v2994
  %v3003 = vcombine.high %v3001, %v3001
  %v3004 = vcombine.high %v2396, %v2396
  %v3006 = vunpack.c.l.s4 1983009808
  %v3007 = vunpack.c.0.s8 %v3006
  %v3008 = vlaneseq
  %v3009 = vshrl.u32 %v3008, 7
  %v3010 = vsub.s32 %v3007, %v3009
  %v3011 = vrot.slane %v2396, %v3010
  %v3013 = vunpack.c.l.s4 1983009808
  %v3014 = vunpack.c.0.s8 %v3013
  %v3015 = vlaneseq
  %v3016 = vshrl.u32 %v3015, 7
  %v3017 = vsub.s32 %v3014, %v3016
  %v3018 = vrot.slane %v3004, %v3017
  %v3019 = vcombine.high %v3011, %v3011
  %v3020 = vcombine.high %v3018, %v3018
  %v3021 = vcombine.high %v2397, %v2397
  %v3023 = vunpack.c.l.s4 1983009808
  %v3024 = vunpack.c.0.s8 %v3023
  %v3025 = vlaneseq
  %v3026 = vshrl.u32 %v3025, 7
  %v3027 = vsub.s32 %v3024, %v3026
  %v3028 = vrot.slane %v2397, %v3027
  %v3030 = vunpack.c.l.s4 1983009808
  %v3031 = vunpack.c.0.s8 %v3030
  %v3032 = vlaneseq
  %v3033 = vshrl.u32 %v3032, 7
  %v3034 = vsub.s32 %v3031, %v3033
  %v3035 = vrot.slane %v3021, %v3034
  %v3036 = vcombine.high %v3028, %v3028
  %v3037 = vcombine.high %v3035, %v3035
  %v3038 = vcombine.high %v2398, %v2398
  %v3040 = vunpack.c.l.s4 1983009808
  %v3041 = vunpack.c.0.s8 %v3040
  %v3042 = vlaneseq
  %v3043 = vshrl.u32 %v3042, 7
  %v3044 = vsub.s32 %v3041, %v3043
  %v3045 = vrot.slane %v2398, %v3044
  %v3047 = vunpack.c.l.s4 1983009808
  %v3048 = vunpack.c.0.s8 %v3047
  %v3049 = vlaneseq
  %v3050 = vshrl.u32 %v3049, 7
  %v3051 = vsub.s32 %v3048, %v3050
  %v3052 = vrot.slane %v3038, %v3051
  %v3053 = vcombine.high %v3045, %v3045
  %v3054 = vcombine.high %v3052, %v3052
  %v3055 = vcombine.high %v2399, %v2399
  %v3057 = vunpack.c.l.s4 1983009808
  %v3058 = vunpack.c.0.s8 %v3057
  %v3059 = vlaneseq
  %v3060 = vshrl.u32 %v3059, 7
  %v3061 = vsub.s32 %v3058, %v3060
  %v3062 = vrot.slane %v2399, %v3061
  %v3064 = vunpack.c.l.s4 1983009808
  %v3065 = vunpack.c.0.s8 %v3064
  %v3066 = vlaneseq
  %v3067 = vshrl.u32 %v3066, 7
  %v3068 = vsub.s32 %v3065, %v3067
  %v3069 = vrot.slane %v3055, %v3068
  %v3070 = vcombine.high %v3062, %v3062
  %v3071 = vcombine.high %v3069, %v3069
  %v3072 = vcombine.high %v2400, %v2400
  %v3074 = vunpack.c.l.s4 1983009808
  %v3075 = vunpack.c.0.s8 %v3074
  %v3076 = vlaneseq
  %v3077 = vshrl.u32 %v3076, 7
  %v3078 = vsub.s32 %v3075, %v3077
  %v3079 = vrot.slane %v2400, %v3078
  %v3081 = vunpack.c.l.s4 1983009808
  %v3082 = vunpack.c.0.s8 %v3081
  %v3083 = vlaneseq
  %v3084 = vshrl.u32 %v3083, 7
  %v3085 = vsub.s32 %v3082, %v3084
  %v3086 = vrot.slane %v3072, %v3085
  %v3087 = vcombine.high %v3079, %v3079
  %v3088 = vcombine.high %v3086, %v3086
  %v3089 = vcombine.high %v2401, %v2401
  %v3091 = vunpack.c.l.s4 1983009808
  %v3092 = vunpack.c.0.s8 %v3091
  %v3093 = vlaneseq
  %v3094 = vshrl.u32 %v3093, 7
  %v3095 = vsub.s32 %v3092, %v3094
  %v3096 = vrot.slane %v2401, %v3095
  %v3098 = vunpack.c.l.s4 1983009808
  %v3099 = vunpack.c.0.s8 %v3098
  %v3100 = vlaneseq
  %v3101 = vshrl.u32 %v3100, 7
  %v3102 = vsub.s32 %v3099, %v3101
  %v3103 = vrot.slane %v3089, %v3102
  %v3104 = vcombine.high %v3096, %v3096
  %v3105 = vcombine.high %v3103, %v3103
  %v3106 = vcombine.high %v2402, %v2402
  %v3108 = vunpack.c.l.s4 1983009808
  %v3109 = vunpack.c.0.s8 %v3108
  %v3110 = vlaneseq
  %v3111 = vshrl.u32 %v3110, 7
  %v3112 = vsub.s32 %v3109, %v3111
  %v3113 = vrot.slane %v2402, %v3112
  %v3115 = vunpack.c.l.s4 1983009808
  %v3116 = vunpack.c.0.s8 %v3115
  %v3117 = vlaneseq
  %v3118 = vshrl.u32 %v3117, 7
  %v3119 = vsub.s32 %v3116, %v3118
  %v3120 = vrot.slane %v3106, %v3119
  %v3121 = vcombine.high %v3113, %v3113
  %v3122 = vcombine.high %v3120, %v3120
  %v3123 = vcombine.high %v2403, %v2403
  %v3125 = vunpack.c.l.s4 1983009808
  %v3126 = vunpack.c.0.s8 %v3125
  %v3127 = vlaneseq
  %v3128 = vshrl.u32 %v3127, 7
  %v3129 = vsub.s32 %v3126, %v3128
  %v3130 = vrot.slane %v2403, %v3129
  %v3132 = vunpack.c.l.s4 1983009808
  %v3133 = vunpack.c.0.s8 %v3132
  %v3134 = vlaneseq
  %v3135 = vshrl.u32 %v3134, 7
  %v3136 = vsub.s32 %v3133, %v3135
  %v3137 = vrot.slane %v3123, %v3136
  %v3138 = vcombine.high %v3130, %v3130
  %v3139 = vcombine.high %v3137, %v3137
  %v3140 = vcombine.high %v2404, %v2404
  %v3142 = vunpack.c.l.s4 1983009808
  %v3143 = vunpack.c.0.s8 %v3142
  %v3144 = vlaneseq
  %v3145 = vshrl.u32 %v3144, 7
  %v3146 = vsub.s32 %v3143, %v3145
  %v3147 = vrot.slane %v2404, %v3146
  %v3149 = vunpack.c.l.s4 1983009808
  %v3150 = vunpack.c.0.s8 %v3149
  %v3151 = vlaneseq
  %v3152 = vshrl.u32 %v3151, 7
  %v3153 = vsub.s32 %v3150, %v3152
  %v3154 = vrot.slane %v3140, %v3153
  %v3155 = vcombine.high %v3147, %v3147
  %v3156 = vcombine.high %v3154, %v3154
  %v3157 = vcombine.high %v2405, %v2405
  %v3159 = vunpack.c.l.s4 1983009808
  %v3160 = vunpack.c.0.s8 %v3159
  %v3161 = vlaneseq
  %v3162 = vshrl.u32 %v3161, 7
  %v3163 = vsub.s32 %v3160, %v3162
  %v3164 = vrot.slane %v2405, %v3163
  %v3166 = vunpack.c.l.s4 1983009808
  %v3167 = vunpack.c.0.s8 %v3166
  %v3168 = vlaneseq
  %v3169 = vshrl.u32 %v3168, 7
  %v3170 = vsub.s32 %v3167, %v3169
  %v3171 = vrot.slane %v3157, %v3170
  %v3172 = vcombine.high %v3164, %v3164
  %v3173 = vcombine.high %v3171, %v3171
  %v3174 = vcombine.high %v2406, %v2406
  %v3176 = vunpack.c.l.s4 1983009808
  %v3177 = vunpack.c.0.s8 %v3176
  %v3178 = vlaneseq
  %v3179 = vshrl.u32 %v3178, 7
  %v3180 = vsub.s32 %v3177, %v3179
  %v3181 = vrot.slane %v2406, %v3180
  %v3183 = vunpack.c.l.s4 1983009808
  %v3184 = vunpack.c.0.s8 %v3183
  %v3185 = vlaneseq
  %v3186 = vshrl.u32 %v3185, 7
  %v3187 = vsub.s32 %v3184, %v3186
  %v3188 = vrot.slane %v3174, %v3187
  %v3189 = vcombine.high %v3181, %v3181
  %v3190 = vcombine.high %v3188, %v3188
  %v3191 = vcombine.high %v2407, %v2407
  %v3193 = vunpack.c.l.s4 1983009808
  %v3194 = vunpack.c.0.s8 %v3193
  %v3195 = vlaneseq
  %v3196 = vshrl.u32 %v3195, 7
  %v3197 = vsub.s32 %v3194, %v3196
  %v3198 = vrot.slane %v2407, %v3197
  %v3200 = vunpack.c.l.s4 1983009808
  %v3201 = vunpack.c.0.s8 %v3200
  %v3202 = vlaneseq
  %v3203 = vshrl.u32 %v3202, 7
  %v3204 = vsub.s32 %v3201, %v3203
  %v3205 = vrot.slane %v3191, %v3204
  %v3206 = vcombine.high %v3198, %v3198
  %v3207 = vcombine.high %v3205, %v3205
  %v3208 = vcombine.high %v2408, %v2408
  %v3210 = vunpack.c.l.s4 1983009808
  %v3211 = vunpack.c.0.s8 %v3210
  %v3212 = vlaneseq
  %v3213 = vshrl.u32 %v3212, 7
  %v3214 = vsub.s32 %v3211, %v3213
  %v3215 = vrot.slane %v2408, %v3214
  %v3217 = vunpack.c.l.s4 1983009808
  %v3218 = vunpack.c.0.s8 %v3217
  %v3219 = vlaneseq
  %v3220 = vshrl.u32 %v3219, 7
  %v3221 = vsub.s32 %v3218, %v3220
  %v3222 = vrot.slane %v3208, %v3221
  %v3223 = vcombine.high %v3215, %v3215
  %v3224 = vcombine.high %v3222, %v3222
  %v3225 = vcombine.high %v2409, %v2409
  %v3227 = vunpack.c.l.s4 1983009808
  %v3228 = vunpack.c.0.s8 %v3227
  %v3229 = vlaneseq
  %v3230 = vshrl.u32 %v3229, 7
  %v3231 = vsub.s32 %v3228, %v3230
  %v3232 = vrot.slane %v2409, %v3231
  %v3234 = vunpack.c.l.s4 1983009808
  %v3235 = vunpack.c.0.s8 %v3234
  %v3236 = vlaneseq
  %v3237 = vshrl.u32 %v3236, 7
  %v3238 = vsub.s32 %v3235, %v3237
  %v3239 = vrot.slane %v3225, %v3238
  %v3240 = vcombine.high %v3232, %v3232
  %v3241 = vcombine.high %v3239, %v3239
  %v3242 = vcombine.high %v2410, %v2410
  %v3244 = vunpack.c.l.s4 1983009808
  %v3245 = vunpack.c.0.s8 %v3244
  %v3246 = vlaneseq
  %v3247 = vshrl.u32 %v3246, 7
  %v3248 = vsub.s32 %v3245, %v3247
  %v3249 = vrot.slane %v2410, %v3248
  %v3251 = vunpack.c.l.s4 1983009808
  %v3252 = vunpack.c.0.s8 %v3251
  %v3253 = vlaneseq
  %v3254 = vshrl.u32 %v3253, 7
  %v3255 = vsub.s32 %v3252, %v3254
  %v3256 = vrot.slane %v3242, %v3255
  %v3257 = vcombine.high %v3249, %v3249
  %v3258 = vcombine.high %v3256, %v3256
  %v3259 = vcombine.high %v2411, %v2411
  %v3261 = vunpack.c.l.s4 1983009808
  %v3262 = vunpack.c.0.s8 %v3261
  %v3263 = vlaneseq
  %v3264 = vshrl.u32 %v3263, 7
  %v3265 = vsub.s32 %v3262, %v3264
  %v3266 = vrot.slane %v2411, %v3265
  %v3268 = vunpack.c.l.s4 1983009808
  %v3269 = vunpack.c.0.s8 %v3268
  %v3270 = vlaneseq
  %v3271 = vshrl.u32 %v3270, 7
  %v3272 = vsub.s32 %v3269, %v3271
  %v3273 = vrot.slane %v3259, %v3272
  %v3274 = vcombine.high %v3266, %v3266
  %v3275 = vcombine.high %v3273, %v3273
  %v3276 = vcombine.high %v2412, %v2412
  %v3278 = vunpack.c.l.s4 1983009808
  %v3279 = vunpack.c.0.s8 %v3278
  %v3280 = vlaneseq
  %v3281 = vshrl.u32 %v3280, 7
  %v3282 = vsub.s32 %v3279, %v3281
  %v3283 = vrot.slane %v2412, %v3282
  %v3285 = vunpack.c.l.s4 1983009808
  %v3286 = vunpack.c.0.s8 %v3285
  %v3287 = vlaneseq
  %v3288 = vshrl.u32 %v3287, 7
  %v3289 = vsub.s32 %v3286, %v3288
  %v3290 = vrot.slane %v3276, %v3289
  %v3291 = vcombine.high %v3283, %v3283
  %v3292 = vcombine.high %v3290, %v3290
  %v3293 = vcombine.high %v2413, %v2413
  %v3295 = vunpack.c.l.s4 1983009808
  %v3296 = vunpack.c.0.s8 %v3295
  %v3297 = vlaneseq
  %v3298 = vshrl.u32 %v3297, 7
  %v3299 = vsub.s32 %v3296, %v3298
  %v3300 = vrot.slane %v2413, %v3299
  %v3302 = vunpack.c.l.s4 1983009808
  %v3303 = vunpack.c.0.s8 %v3302
  %v3304 = vlaneseq
  %v3305 = vshrl.u32 %v3304, 7
  %v3306 = vsub.s32 %v3303, %v3305
  %v3307 = vrot.slane %v3293, %v3306
  %v3308 = vcombine.high %v3300, %v3300
  %v3309 = vcombine.high %v3307, %v3307
  %v3310 = vcombine.high %v2414, %v2414
  %v3312 = vunpack.c.l.s4 1983009808
  %v3313 = vunpack.c.0.s8 %v3312
  %v3314 = vlaneseq
  %v3315 = vshrl.u32 %v3314, 7
  %v3316 = vsub.s32 %v3313, %v3315
  %v3317 = vrot.slane %v2414, %v3316
  %v3319 = vunpack.c.l.s4 1983009808
  %v3320 = vunpack.c.0.s8 %v3319
  %v3321 = vlaneseq
  %v3322 = vshrl.u32 %v3321, 7
  %v3323 = vsub.s32 %v3320, %v3322
  %v3324 = vrot.slane %v3310, %v3323
  %v3325 = vcombine.high %v3317, %v3317
  %v3326 = vcombine.high %v3324, %v3324
  %v3327 = vcombine.high %v2415, %v2415
  %v3329 = vunpack.c.l.s4 1983009808
  %v3330 = vunpack.c.0.s8 %v3329
  %v3331 = vlaneseq
  %v3332 = vshrl.u32 %v3331, 7
  %v3333 = vsub.s32 %v3330, %v3332
  %v3334 = vrot.slane %v2415, %v3333
  %v3336 = vunpack.c.l.s4 1983009808
  %v3337 = vunpack.c.0.s8 %v3336
  %v3338 = vlaneseq
  %v3339 = vshrl.u32 %v3338, 7
  %v3340 = vsub.s32 %v3337, %v3339
  %v3341 = vrot.slane %v3327, %v3340
  %v3342 = vcombine.high %v3334, %v3334
  %v3343 = vcombine.high %v3341, %v3341
  %v3344 = vcombine.high %v2416, %v2416
  %v3346 = vunpack.c.l.s4 1983009808
  %v3347 = vunpack.c.0.s8 %v3346
  %v3348 = vlaneseq
  %v3349 = vshrl.u32 %v3348, 7
  %v3350 = vsub.s32 %v3347, %v3349
  %v3351 = vrot.slane %v2416, %v3350
  %v3353 = vunpack.c.l.s4 1983009808
  %v3354 = vunpack.c.0.s8 %v3353
  %v3355 = vlaneseq
  %v3356 = vshrl.u32 %v3355, 7
  %v3357 = vsub.s32 %v3354, %v3356
  %v3358 = vrot.slane %v3344, %v3357
  %v3359 = vcombine.high %v3351, %v3351
  %v3360 = vcombine.high %v3358, %v3358
  %v3361 = vcombine.high %v2417, %v2417
  %v3363 = vunpack.c.l.s4 1983009808
  %v3364 = vunpack.c.0.s8 %v3363
  %v3365 = vlaneseq
  %v3366 = vshrl.u32 %v3365, 7
  %v3367 = vsub.s32 %v3364, %v3366
  %v3368 = vrot.slane %v2417, %v3367
  %v3370 = vunpack.c.l.s4 1983009808
  %v3371 = vunpack.c.0.s8 %v3370
  %v3372 = vlaneseq
  %v3373 = vshrl.u32 %v3372, 7
  %v3374 = vsub.s32 %v3371, %v3373
  %v3375 = vrot.slane %v3361, %v3374
  %v3376 = vcombine.high %v3368, %v3368
  %v3377 = vcombine.high %v3375, %v3375
  %v3378 = vcombine.high %v2418, %v2418
  %v3380 = vunpack.c.l.s4 1983009808
  %v3381 = vunpack.c.0.s8 %v3380
  %v3382 = vlaneseq
  %v3383 = vshrl.u32 %v3382, 7
  %v3384 = vsub.s32 %v3381, %v3383
  %v3385 = vrot.slane %v2418, %v3384
  %v3387 = vunpack.c.l.s4 1983009808
  %v3388 = vunpack.c.0.s8 %v3387
  %v3389 = vlaneseq
  %v3390 = vshrl.u32 %v3389, 7
  %v3391 = vsub.s32 %v3388, %v3390
  %v3392 = vrot.slane %v3378, %v3391
  %v3393 = vcombine.high %v3385, %v3385
  %v3394 = vcombine.high %v3392, %v3392
  %v3395 = vcombine.high %v2419, %v2419
  %v3397 = vunpack.c.l.s4 1983009808
  %v3398 = vunpack.c.0.s8 %v3397
  %v3399 = vlaneseq
  %v3400 = vshrl.u32 %v3399, 7
  %v3401 = vsub.s32 %v3398, %v3400
  %v3402 = vrot.slane %v2419, %v3401
  %v3404 = vunpack.c.l.s4 1983009808
  %v3405 = vunpack.c.0.s8 %v3404
  %v3406 = vlaneseq
  %v3407 = vshrl.u32 %v3406, 7
  %v3408 = vsub.s32 %v3405, %v3407
  %v3409 = vrot.slane %v3395, %v3408
  %v3410 = vcombine.high %v3402, %v3402
  %v3411 = vcombine.high %v3409, %v3409
  %v3412 = vcombine.high %v2420, %v2420
  %v3414 = vunpack.c.l.s4 1983009808
  %v3415 = vunpack.c.0.s8 %v3414
  %v3416 = vlaneseq
  %v3417 = vshrl.u32 %v3416, 7
  %v3418 = vsub.s32 %v3415, %v3417
  %v3419 = vrot.slane %v2420, %v3418
  %v3421 = vunpack.c.l.s4 1983009808
  %v3422 = vunpack.c.0.s8 %v3421
  %v3423 = vlaneseq
  %v3424 = vshrl.u32 %v3423, 7
  %v3425 = vsub.s32 %v3422, %v3424
  %v3426 = vrot.slane %v3412, %v3425
  %v3427 = vcombine.high %v3419, %v3419
  %v3428 = vcombine.high %v3426, %v3426
  %v3429 = vcombine.high %v2421, %v2421
  %v3431 = vunpack.c.l.s4 1983009808
  %v3432 = vunpack.c.0.s8 %v3431
  %v3433 = vlaneseq
  %v3434 = vshrl.u32 %v3433, 7
  %v3435 = vsub.s32 %v3432, %v3434
  %v3436 = vrot.slane %v2421, %v3435
  %v3438 = vunpack.c.l.s4 1983009808
  %v3439 = vunpack.c.0.s8 %v3438
  %v3440 = vlaneseq
  %v3441 = vshrl.u32 %v3440, 7
  %v3442 = vsub.s32 %v3439, %v3441
  %v3443 = vrot.slane %v3429, %v3442
  %v3444 = vcombine.high %v3436, %v3436
  %v3445 = vcombine.high %v3443, %v3443
  %v3446 = vcombine.high %v2422, %v2422
  %v3448 = vunpack.c.l.s4 1983009808
  %v3449 = vunpack.c.0.s8 %v3448
  %v3450 = vlaneseq
  %v3451 = vshrl.u32 %v3450, 7
  %v3452 = vsub.s32 %v3449, %v3451
  %v3453 = vrot.slane %v2422, %v3452
  %v3455 = vunpack.c.l.s4 1983009808
  %v3456 = vunpack.c.0.s8 %v3455
  %v3457 = vlaneseq
  %v3458 = vshrl.u32 %v3457, 7
  %v3459 = vsub.s32 %v3456, %v3458
  %v3460 = vrot.slane %v3446, %v3459
  %v3461 = vcombine.high %v3453, %v3453
  %v3462 = vcombine.high %v3460, %v3460
  %v3463 = vcombine.high %v2423, %v2423
  %v3465 = vunpack.c.l.s4 1983009808
  %v3466 = vunpack.c.0.s8 %v3465
  %v3467 = vlaneseq
  %v3468 = vshrl.u32 %v3467, 7
  %v3469 = vsub.s32 %v3466, %v3468
  %v3470 = vrot.slane %v2423, %v3469
  %v3472 = vunpack.c.l.s4 1983009808
  %v3473 = vunpack.c.0.s8 %v3472
  %v3474 = vlaneseq
  %v3475 = vshrl.u32 %v3474, 7
  %v3476 = vsub.s32 %v3473, %v3475
  %v3477 = vrot.slane %v3463, %v3476
  %v3478 = vcombine.high %v3470, %v3470
  %v3479 = vcombine.high %v3477, %v3477
  %v3480 = vcombine.high %v2424, %v2424
  %v3482 = vunpack.c.l.s4 1983009808
  %v3483 = vunpack.c.0.s8 %v3482
  %v3484 = vlaneseq
  %v3485 = vshrl.u32 %v3484, 7
  %v3486 = vsub.s32 %v3483, %v3485
  %v3487 = vrot.slane %v2424, %v3486
  %v3489 = vunpack.c.l.s4 1983009808
  %v3490 = vunpack.c.0.s8 %v3489
  %v3491 = vlaneseq
  %v3492 = vshrl.u32 %v3491, 7
  %v3493 = vsub.s32 %v3490, %v3492
  %v3494 = vrot.slane %v3480, %v3493
  %v3495 = vcombine.high %v3487, %v3487
  %v3496 = vcombine.high %v3494, %v3494
  %v3497 = vcombine.high %v2425, %v2425
  %v3499 = vunpack.c.l.s4 1983009808
  %v3500 = vunpack.c.0.s8 %v3499
  %v3501 = vlaneseq
  %v3502 = vshrl.u32 %v3501, 7
  %v3503 = vsub.s32 %v3500, %v3502
  %v3504 = vrot.slane %v2425, %v3503
  %v3506 = vunpack.c.l.s4 1983009808
  %v3507 = vunpack.c.0.s8 %v3506
  %v3508 = vlaneseq
  %v3509 = vshrl.u32 %v3508, 7
  %v3510 = vsub.s32 %v3507, %v3509
  %v3511 = vrot.slane %v3497, %v3510
  %v3512 = vcombine.high %v3504, %v3504
  %v3513 = vcombine.high %v3511, %v3511
  %v3514 = vcombine.high %v2426, %v2426
  %v3516 = vunpack.c.l.s4 1983009808
  %v3517 = vunpack.c.0.s8 %v3516
  %v3518 = vlaneseq
  %v3519 = vshrl.u32 %v3518, 7
  %v3520 = vsub.s32 %v3517, %v3519
  %v3521 = vrot.slane %v2426, %v3520
  %v3523 = vunpack.c.l.s4 1983009808
  %v3524 = vunpack.c.0.s8 %v3523
  %v3525 = vlaneseq
  %v3526 = vshrl.u32 %v3525, 7
  %v3527 = vsub.s32 %v3524, %v3526
  %v3528 = vrot.slane %v3514, %v3527
  %v3529 = vcombine.high %v3521, %v3521
  %v3530 = vcombine.high %v3528, %v3528
  %v3531 = vcombine.high %v2427, %v2427
  %v3533 = vunpack.c.l.s4 1983009808
  %v3534 = vunpack.c.0.s8 %v3533
  %v3535 = vlaneseq
  %v3536 = vshrl.u32 %v3535, 7
  %v3537 = vsub.s32 %v3534, %v3536
  %v3538 = vrot.slane %v2427, %v3537
  %v3540 = vunpack.c.l.s4 1983009808
  %v3541 = vunpack.c.0.s8 %v3540
  %v3542 = vlaneseq
  %v3543 = vshrl.u32 %v3542, 7
  %v3544 = vsub.s32 %v3541, %v3543
  %v3545 = vrot.slane %v3531, %v3544
  %v3546 = vcombine.high %v3538, %v3538
  %v3547 = vcombine.high %v3545, %v3545
  %v3548 = vcombine.high %v2428, %v2428
  %v3550 = vunpack.c.l.s4 1983009808
  %v3551 = vunpack.c.0.s8 %v3550
  %v3552 = vlaneseq
  %v3553 = vshrl.u32 %v3552, 7
  %v3554 = vsub.s32 %v3551, %v3553
  %v3555 = vrot.slane %v2428, %v3554
  %v3557 = vunpack.c.l.s4 1983009808
  %v3558 = vunpack.c.0.s8 %v3557
  %v3559 = vlaneseq
  %v3560 = vshrl.u32 %v3559, 7
  %v3561 = vsub.s32 %v3558, %v3560
  %v3562 = vrot.slane %v3548, %v3561
  %v3563 = vcombine.high %v3555, %v3555
  %v3564 = vcombine.high %v3562, %v3562
  %v3565 = vcombine.high %v2429, %v2429
  %v3567 = vunpack.c.l.s4 1983009808
  %v3568 = vunpack.c.0.s8 %v3567
  %v3569 = vlaneseq
  %v3570 = vshrl.u32 %v3569, 7
  %v3571 = vsub.s32 %v3568, %v3570
  %v3572 = vrot.slane %v2429, %v3571
  %v3574 = vunpack.c.l.s4 1983009808
  %v3575 = vunpack.c.0.s8 %v3574
  %v3576 = vlaneseq
  %v3577 = vshrl.u32 %v3576, 7
  %v3578 = vsub.s32 %v3575, %v3577
  %v3579 = vrot.slane %v3565, %v3578
  %v3580 = vcombine.high %v3572, %v3572
  %v3581 = vcombine.high %v3579, %v3579
  %v3838 = vsel %vm45, %v2501, -inf
  %v3839 = vrot.slane %v3838, 4
  %v3840 = vmax.f32 %v3838, %v3839
  %v3841 = vrot.slane %v3840, 2
  %v3842 = vmax.f32 %v3840, %v3841
  %v3843 = vrot.slane %v3842, 1
  %v3844 = vmax.f32 %v3842, %v3843
  %v3845 = vsel %vm45, %v2509, -inf
  %v3846 = vrot.slane %v3845, 4
  %v3847 = vmax.f32 %v3845, %v3846
  %v3848 = vrot.slane %v3847, 2
  %v3849 = vmax.f32 %v3847, %v3848
  %v3850 = vrot.slane %v3849, 1
  %v3851 = vmax.f32 %v3849, %v3850
  %v3852 = vsel %vm45, %v2508, -inf
  %v3853 = vrot.slane %v3852, 4
  %v3854 = vmax.f32 %v3852, %v3853
  %v3855 = vrot.slane %v3854, 2
  %v3856 = vmax.f32 %v3854, %v3855
  %v3857 = vrot.slane %v3856, 1
  %v3858 = vmax.f32 %v3856, %v3857
  %v3859 = vsel %vm45, %v2510, -inf
  %v3860 = vrot.slane %v3859, 4
  %v3861 = vmax.f32 %v3859, %v3860
  %v3862 = vrot.slane %v3861, 2
  %v3863 = vmax.f32 %v3861, %v3862
  %v3864 = vrot.slane %v3863, 1
  %v3865 = vmax.f32 %v3863, %v3864
  %v3866 = vsel %vm45, %v2518, -inf
  %v3867 = vrot.slane %v3866, 4
  %v3868 = vmax.f32 %v3866, %v3867
  %v3869 = vrot.slane %v3868, 2
  %v3870 = vmax.f32 %v3868, %v3869
  %v3871 = vrot.slane %v3870, 1
  %v3872 = vmax.f32 %v3870, %v3871
  %v3873 = vsel %vm45, %v2526, -inf
  %v3874 = vrot.slane %v3873, 4
  %v3875 = vmax.f32 %v3873, %v3874
  %v3876 = vrot.slane %v3875, 2
  %v3877 = vmax.f32 %v3875, %v3876
  %v3878 = vrot.slane %v3877, 1
  %v3879 = vmax.f32 %v3877, %v3878
  %v3880 = vsel %vm45, %v2525, -inf
  %v3881 = vrot.slane %v3880, 4
  %v3882 = vmax.f32 %v3880, %v3881
  %v3883 = vrot.slane %v3882, 2
  %v3884 = vmax.f32 %v3882, %v3883
  %v3885 = vrot.slane %v3884, 1
  %v3886 = vmax.f32 %v3884, %v3885
  %v3887 = vsel %vm45, %v2527, -inf
  %v3888 = vrot.slane %v3887, 4
  %v3889 = vmax.f32 %v3887, %v3888
  %v3890 = vrot.slane %v3889, 2
  %v3891 = vmax.f32 %v3889, %v3890
  %v3892 = vrot.slane %v3891, 1
  %v3893 = vmax.f32 %v3891, %v3892
  %v3894 = vsel %vm45, %v2535, -inf
  %v3895 = vrot.slane %v3894, 4
  %v3896 = vmax.f32 %v3894, %v3895
  %v3897 = vrot.slane %v3896, 2
  %v3898 = vmax.f32 %v3896, %v3897
  %v3899 = vrot.slane %v3898, 1
  %v3900 = vmax.f32 %v3898, %v3899
  %v3901 = vsel %vm45, %v2543, -inf
  %v3902 = vrot.slane %v3901, 4
  %v3903 = vmax.f32 %v3901, %v3902
  %v3904 = vrot.slane %v3903, 2
  %v3905 = vmax.f32 %v3903, %v3904
  %v3906 = vrot.slane %v3905, 1
  %v3907 = vmax.f32 %v3905, %v3906
  %v3908 = vsel %vm45, %v2542, -inf
  %v3909 = vrot.slane %v3908, 4
  %v3910 = vmax.f32 %v3908, %v3909
  %v3911 = vrot.slane %v3910, 2
  %v3912 = vmax.f32 %v3910, %v3911
  %v3913 = vrot.slane %v3912, 1
  %v3914 = vmax.f32 %v3912, %v3913
  %v3915 = vsel %vm45, %v2544, -inf
  %v3916 = vrot.slane %v3915, 4
  %v3917 = vmax.f32 %v3915, %v3916
  %v3918 = vrot.slane %v3917, 2
  %v3919 = vmax.f32 %v3917, %v3918
  %v3920 = vrot.slane %v3919, 1
  %v3921 = vmax.f32 %v3919, %v3920
  %v3922 = vsel %vm45, %v2552, -inf
  %v3923 = vrot.slane %v3922, 4
  %v3924 = vmax.f32 %v3922, %v3923
  %v3925 = vrot.slane %v3924, 2
  %v3926 = vmax.f32 %v3924, %v3925
  %v3927 = vrot.slane %v3926, 1
  %v3928 = vmax.f32 %v3926, %v3927
  %v3929 = vsel %vm45, %v2560, -inf
  %v3930 = vrot.slane %v3929, 4
  %v3931 = vmax.f32 %v3929, %v3930
  %v3932 = vrot.slane %v3931, 2
  %v3933 = vmax.f32 %v3931, %v3932
  %v3934 = vrot.slane %v3933, 1
  %v3935 = vmax.f32 %v3933, %v3934
  %v3936 = vsel %vm45, %v2559, -inf
  %v3937 = vrot.slane %v3936, 4
  %v3938 = vmax.f32 %v3936, %v3937
  %v3939 = vrot.slane %v3938, 2
  %v3940 = vmax.f32 %v3938, %v3939
  %v3941 = vrot.slane %v3940, 1
  %v3942 = vmax.f32 %v3940, %v3941
  %v3943 = vsel %vm45, %v2561, -inf
  %v3944 = vrot.slane %v3943, 4
  %v3945 = vmax.f32 %v3943, %v3944
  %v3946 = vrot.slane %v3945, 2
  %v3947 = vmax.f32 %v3945, %v3946
  %v3948 = vrot.slane %v3947, 1
  %v3949 = vmax.f32 %v3947, %v3948
  %v3950 = vsel %vm45, %v2569, -inf
  %v3951 = vrot.slane %v3950, 4
  %v3952 = vmax.f32 %v3950, %v3951
  %v3953 = vrot.slane %v3952, 2
  %v3954 = vmax.f32 %v3952, %v3953
  %v3955 = vrot.slane %v3954, 1
  %v3956 = vmax.f32 %v3954, %v3955
  %v3957 = vsel %vm45, %v2577, -inf
  %v3958 = vrot.slane %v3957, 4
  %v3959 = vmax.f32 %v3957, %v3958
  %v3960 = vrot.slane %v3959, 2
  %v3961 = vmax.f32 %v3959, %v3960
  %v3962 = vrot.slane %v3961, 1
  %v3963 = vmax.f32 %v3961, %v3962
  %v3964 = vsel %vm45, %v2576, -inf
  %v3965 = vrot.slane %v3964, 4
  %v3966 = vmax.f32 %v3964, %v3965
  %v3967 = vrot.slane %v3966, 2
  %v3968 = vmax.f32 %v3966, %v3967
  %v3969 = vrot.slane %v3968, 1
  %v3970 = vmax.f32 %v3968, %v3969
  %v3971 = vsel %vm45, %v2578, -inf
  %v3972 = vrot.slane %v3971, 4
  %v3973 = vmax.f32 %v3971, %v3972
  %v3974 = vrot.slane %v3973, 2
  %v3975 = vmax.f32 %v3973, %v3974
  %v3976 = vrot.slane %v3975, 1
  %v3977 = vmax.f32 %v3975, %v3976
  %v3978 = vsel %vm45, %v2586, -inf
  %v3979 = vrot.slane %v3978, 4
  %v3980 = vmax.f32 %v3978, %v3979
  %v3981 = vrot.slane %v3980, 2
  %v3982 = vmax.f32 %v3980, %v3981
  %v3983 = vrot.slane %v3982, 1
  %v3984 = vmax.f32 %v3982, %v3983
  %v3985 = vsel %vm45, %v2594, -inf
  %v3986 = vrot.slane %v3985, 4
  %v3987 = vmax.f32 %v3985, %v3986
  %v3988 = vrot.slane %v3987, 2
  %v3989 = vmax.f32 %v3987, %v3988
  %v3990 = vrot.slane %v3989, 1
  %v3991 = vmax.f32 %v3989, %v3990
  %v3992 = vsel %vm45, %v2593, -inf
  %v3993 = vrot.slane %v3992, 4
  %v3994 = vmax.f32 %v3992, %v3993
  %v3995 = vrot.slane %v3994, 2
  %v3996 = vmax.f32 %v3994, %v3995
  %v3997 = vrot.slane %v3996, 1
  %v3998 = vmax.f32 %v3996, %v3997
  %v3999 = vsel %vm45, %v2595, -inf
  %v4000 = vrot.slane %v3999, 4
  %v4001 = vmax.f32 %v3999, %v4000
  %v4002 = vrot.slane %v4001, 2
  %v4003 = vmax.f32 %v4001, %v4002
  %v4004 = vrot.slane %v4003, 1
  %v4005 = vmax.f32 %v4003, %v4004
  %v4006 = vsel %vm45, %v2603, -inf
  %v4007 = vrot.slane %v4006, 4
  %v4008 = vmax.f32 %v4006, %v4007
  %v4009 = vrot.slane %v4008, 2
  %v4010 = vmax.f32 %v4008, %v4009
  %v4011 = vrot.slane %v4010, 1
  %v4012 = vmax.f32 %v4010, %v4011
  %v4013 = vsel %vm45, %v2611, -inf
  %v4014 = vrot.slane %v4013, 4
  %v4015 = vmax.f32 %v4013, %v4014
  %v4016 = vrot.slane %v4015, 2
  %v4017 = vmax.f32 %v4015, %v4016
  %v4018 = vrot.slane %v4017, 1
  %v4019 = vmax.f32 %v4017, %v4018
  %v4020 = vsel %vm45, %v2610, -inf
  %v4021 = vrot.slane %v4020, 4
  %v4022 = vmax.f32 %v4020, %v4021
  %v4023 = vrot.slane %v4022, 2
  %v4024 = vmax.f32 %v4022, %v4023
  %v4025 = vrot.slane %v4024, 1
  %v4026 = vmax.f32 %v4024, %v4025
  %v4027 = vsel %vm45, %v2612, -inf
  %v4028 = vrot.slane %v4027, 4
  %v4029 = vmax.f32 %v4027, %v4028
  %v4030 = vrot.slane %v4029, 2
  %v4031 = vmax.f32 %v4029, %v4030
  %v4032 = vrot.slane %v4031, 1
  %v4033 = vmax.f32 %v4031, %v4032
  %v4034 = vsel %vm45, %v2620, -inf
  %v4035 = vrot.slane %v4034, 4
  %v4036 = vmax.f32 %v4034, %v4035
  %v4037 = vrot.slane %v4036, 2
  %v4038 = vmax.f32 %v4036, %v4037
  %v4039 = vrot.slane %v4038, 1
  %v4040 = vmax.f32 %v4038, %v4039
  %v4041 = vsel %vm45, %v2628, -inf
  %v4042 = vrot.slane %v4041, 4
  %v4043 = vmax.f32 %v4041, %v4042
  %v4044 = vrot.slane %v4043, 2
  %v4045 = vmax.f32 %v4043, %v4044
  %v4046 = vrot.slane %v4045, 1
  %v4047 = vmax.f32 %v4045, %v4046
  %v4048 = vsel %vm45, %v2627, -inf
  %v4049 = vrot.slane %v4048, 4
  %v4050 = vmax.f32 %v4048, %v4049
  %v4051 = vrot.slane %v4050, 2
  %v4052 = vmax.f32 %v4050, %v4051
  %v4053 = vrot.slane %v4052, 1
  %v4054 = vmax.f32 %v4052, %v4053
  %v4055 = vsel %vm45, %v2629, -inf
  %v4056 = vrot.slane %v4055, 4
  %v4057 = vmax.f32 %v4055, %v4056
  %v4058 = vrot.slane %v4057, 2
  %v4059 = vmax.f32 %v4057, %v4058
  %v4060 = vrot.slane %v4059, 1
  %v4061 = vmax.f32 %v4059, %v4060
  %v4062 = vsel %vm45, %v2637, -inf
  %v4063 = vrot.slane %v4062, 4
  %v4064 = vmax.f32 %v4062, %v4063
  %v4065 = vrot.slane %v4064, 2
  %v4066 = vmax.f32 %v4064, %v4065
  %v4067 = vrot.slane %v4066, 1
  %v4068 = vmax.f32 %v4066, %v4067
  %v4069 = vsel %vm45, %v2645, -inf
  %v4070 = vrot.slane %v4069, 4
  %v4071 = vmax.f32 %v4069, %v4070
  %v4072 = vrot.slane %v4071, 2
  %v4073 = vmax.f32 %v4071, %v4072
  %v4074 = vrot.slane %v4073, 1
  %v4075 = vmax.f32 %v4073, %v4074
  %v4076 = vsel %vm45, %v2644, -inf
  %v4077 = vrot.slane %v4076, 4
  %v4078 = vmax.f32 %v4076, %v4077
  %v4079 = vrot.slane %v4078, 2
  %v4080 = vmax.f32 %v4078, %v4079
  %v4081 = vrot.slane %v4080, 1
  %v4082 = vmax.f32 %v4080, %v4081
  %v4083 = vsel %vm45, %v2646, -inf
  %v4084 = vrot.slane %v4083, 4
  %v4085 = vmax.f32 %v4083, %v4084
  %v4086 = vrot.slane %v4085, 2
  %v4087 = vmax.f32 %v4085, %v4086
  %v4088 = vrot.slane %v4087, 1
  %v4089 = vmax.f32 %v4087, %v4088
  %v4090 = vsel %vm45, %v2654, -inf
  %v4091 = vrot.slane %v4090, 4
  %v4092 = vmax.f32 %v4090, %v4091
  %v4093 = vrot.slane %v4092, 2
  %v4094 = vmax.f32 %v4092, %v4093
  %v4095 = vrot.slane %v4094, 1
  %v4096 = vmax.f32 %v4094, %v4095
  %v4097 = vsel %vm45, %v2662, -inf
  %v4098 = vrot.slane %v4097, 4
  %v4099 = vmax.f32 %v4097, %v4098
  %v4100 = vrot.slane %v4099, 2
  %v4101 = vmax.f32 %v4099, %v4100
  %v4102 = vrot.slane %v4101, 1
  %v4103 = vmax.f32 %v4101, %v4102
  %v4104 = vsel %vm45, %v2661, -inf
  %v4105 = vrot.slane %v4104, 4
  %v4106 = vmax.f32 %v4104, %v4105
  %v4107 = vrot.slane %v4106, 2
  %v4108 = vmax.f32 %v4106, %v4107
  %v4109 = vrot.slane %v4108, 1
  %v4110 = vmax.f32 %v4108, %v4109
  %v4111 = vsel %vm45, %v2663, -inf
  %v4112 = vrot.slane %v4111, 4
  %v4113 = vmax.f32 %v4111, %v4112
  %v4114 = vrot.slane %v4113, 2
  %v4115 = vmax.f32 %v4113, %v4114
  %v4116 = vrot.slane %v4115, 1
  %v4117 = vmax.f32 %v4115, %v4116
  %v4118 = vsel %vm45, %v2671, -inf
  %v4119 = vrot.slane %v4118, 4
  %v4120 = vmax.f32 %v4118, %v4119
  %v4121 = vrot.slane %v4120, 2
  %v4122 = vmax.f32 %v4120, %v4121
  %v4123 = vrot.slane %v4122, 1
  %v4124 = vmax.f32 %v4122, %v4123
  %v4125 = vsel %vm45, %v2679, -inf
  %v4126 = vrot.slane %v4125, 4
  %v4127 = vmax.f32 %v4125, %v4126
  %v4128 = vrot.slane %v4127, 2
  %v4129 = vmax.f32 %v4127, %v4128
  %v4130 = vrot.slane %v4129, 1
  %v4131 = vmax.f32 %v4129, %v4130
  %v4132 = vsel %vm45, %v2678, -inf
  %v4133 = vrot.slane %v4132, 4
  %v4134 = vmax.f32 %v4132, %v4133
  %v4135 = vrot.slane %v4134, 2
  %v4136 = vmax.f32 %v4134, %v4135
  %v4137 = vrot.slane %v4136, 1
  %v4138 = vmax.f32 %v4136, %v4137
  %v4139 = vsel %vm45, %v2680, -inf
  %v4140 = vrot.slane %v4139, 4
  %v4141 = vmax.f32 %v4139, %v4140
  %v4142 = vrot.slane %v4141, 2
  %v4143 = vmax.f32 %v4141, %v4142
  %v4144 = vrot.slane %v4143, 1
  %v4145 = vmax.f32 %v4143, %v4144
  %v4146 = vsel %vm45, %v2688, -inf
  %v4147 = vrot.slane %v4146, 4
  %v4148 = vmax.f32 %v4146, %v4147
  %v4149 = vrot.slane %v4148, 2
  %v4150 = vmax.f32 %v4148, %v4149
  %v4151 = vrot.slane %v4150, 1
  %v4152 = vmax.f32 %v4150, %v4151
  %v4153 = vsel %vm45, %v2696, -inf
  %v4154 = vrot.slane %v4153, 4
  %v4155 = vmax.f32 %v4153, %v4154
  %v4156 = vrot.slane %v4155, 2
  %v4157 = vmax.f32 %v4155, %v4156
  %v4158 = vrot.slane %v4157, 1
  %v4159 = vmax.f32 %v4157, %v4158
  %v4160 = vsel %vm45, %v2695, -inf
  %v4161 = vrot.slane %v4160, 4
  %v4162 = vmax.f32 %v4160, %v4161
  %v4163 = vrot.slane %v4162, 2
  %v4164 = vmax.f32 %v4162, %v4163
  %v4165 = vrot.slane %v4164, 1
  %v4166 = vmax.f32 %v4164, %v4165
  %v4167 = vsel %vm45, %v2697, -inf
  %v4168 = vrot.slane %v4167, 4
  %v4169 = vmax.f32 %v4167, %v4168
  %v4170 = vrot.slane %v4169, 2
  %v4171 = vmax.f32 %v4169, %v4170
  %v4172 = vrot.slane %v4171, 1
  %v4173 = vmax.f32 %v4171, %v4172
  %v4174 = vsel %vm45, %v2705, -inf
  %v4175 = vrot.slane %v4174, 4
  %v4176 = vmax.f32 %v4174, %v4175
  %v4177 = vrot.slane %v4176, 2
  %v4178 = vmax.f32 %v4176, %v4177
  %v4179 = vrot.slane %v4178, 1
  %v4180 = vmax.f32 %v4178, %v4179
  %v4181 = vsel %vm45, %v2713, -inf
  %v4182 = vrot.slane %v4181, 4
  %v4183 = vmax.f32 %v4181, %v4182
  %v4184 = vrot.slane %v4183, 2
  %v4185 = vmax.f32 %v4183, %v4184
  %v4186 = vrot.slane %v4185, 1
  %v4187 = vmax.f32 %v4185, %v4186
  %v4188 = vsel %vm45, %v2712, -inf
  %v4189 = vrot.slane %v4188, 4
  %v4190 = vmax.f32 %v4188, %v4189
  %v4191 = vrot.slane %v4190, 2
  %v4192 = vmax.f32 %v4190, %v4191
  %v4193 = vrot.slane %v4192, 1
  %v4194 = vmax.f32 %v4192, %v4193
  %v4195 = vsel %vm45, %v2714, -inf
  %v4196 = vrot.slane %v4195, 4
  %v4197 = vmax.f32 %v4195, %v4196
  %v4198 = vrot.slane %v4197, 2
  %v4199 = vmax.f32 %v4197, %v4198
  %v4200 = vrot.slane %v4199, 1
  %v4201 = vmax.f32 %v4199, %v4200
  %v4202 = vsel %vm45, %v2722, -inf
  %v4203 = vrot.slane %v4202, 4
  %v4204 = vmax.f32 %v4202, %v4203
  %v4205 = vrot.slane %v4204, 2
  %v4206 = vmax.f32 %v4204, %v4205
  %v4207 = vrot.slane %v4206, 1
  %v4208 = vmax.f32 %v4206, %v4207
  %v4209 = vsel %vm45, %v2730, -inf
  %v4210 = vrot.slane %v4209, 4
  %v4211 = vmax.f32 %v4209, %v4210
  %v4212 = vrot.slane %v4211, 2
  %v4213 = vmax.f32 %v4211, %v4212
  %v4214 = vrot.slane %v4213, 1
  %v4215 = vmax.f32 %v4213, %v4214
  %v4216 = vsel %vm45, %v2729, -inf
  %v4217 = vrot.slane %v4216, 4
  %v4218 = vmax.f32 %v4216, %v4217
  %v4219 = vrot.slane %v4218, 2
  %v4220 = vmax.f32 %v4218, %v4219
  %v4221 = vrot.slane %v4220, 1
  %v4222 = vmax.f32 %v4220, %v4221
  %v4223 = vsel %vm45, %v2731, -inf
  %v4224 = vrot.slane %v4223, 4
  %v4225 = vmax.f32 %v4223, %v4224
  %v4226 = vrot.slane %v4225, 2
  %v4227 = vmax.f32 %v4225, %v4226
  %v4228 = vrot.slane %v4227, 1
  %v4229 = vmax.f32 %v4227, %v4228
  %v4230 = vsel %vm45, %v2739, -inf
  %v4231 = vrot.slane %v4230, 4
  %v4232 = vmax.f32 %v4230, %v4231
  %v4233 = vrot.slane %v4232, 2
  %v4234 = vmax.f32 %v4232, %v4233
  %v4235 = vrot.slane %v4234, 1
  %v4236 = vmax.f32 %v4234, %v4235
  %v4237 = vsel %vm45, %v2747, -inf
  %v4238 = vrot.slane %v4237, 4
  %v4239 = vmax.f32 %v4237, %v4238
  %v4240 = vrot.slane %v4239, 2
  %v4241 = vmax.f32 %v4239, %v4240
  %v4242 = vrot.slane %v4241, 1
  %v4243 = vmax.f32 %v4241, %v4242
  %v4244 = vsel %vm45, %v2746, -inf
  %v4245 = vrot.slane %v4244, 4
  %v4246 = vmax.f32 %v4244, %v4245
  %v4247 = vrot.slane %v4246, 2
  %v4248 = vmax.f32 %v4246, %v4247
  %v4249 = vrot.slane %v4248, 1
  %v4250 = vmax.f32 %v4248, %v4249
  %v4251 = vsel %vm45, %v2748, -inf
  %v4252 = vrot.slane %v4251, 4
  %v4253 = vmax.f32 %v4251, %v4252
  %v4254 = vrot.slane %v4253, 2
  %v4255 = vmax.f32 %v4253, %v4254
  %v4256 = vrot.slane %v4255, 1
  %v4257 = vmax.f32 %v4255, %v4256
  %v4258 = vsel %vm45, %v2756, -inf
  %v4259 = vrot.slane %v4258, 4
  %v4260 = vmax.f32 %v4258, %v4259
  %v4261 = vrot.slane %v4260, 2
  %v4262 = vmax.f32 %v4260, %v4261
  %v4263 = vrot.slane %v4262, 1
  %v4264 = vmax.f32 %v4262, %v4263
  %v4265 = vsel %vm45, %v2764, -inf
  %v4266 = vrot.slane %v4265, 4
  %v4267 = vmax.f32 %v4265, %v4266
  %v4268 = vrot.slane %v4267, 2
  %v4269 = vmax.f32 %v4267, %v4268
  %v4270 = vrot.slane %v4269, 1
  %v4271 = vmax.f32 %v4269, %v4270
  %v4272 = vsel %vm45, %v2763, -inf
  %v4273 = vrot.slane %v4272, 4
  %v4274 = vmax.f32 %v4272, %v4273
  %v4275 = vrot.slane %v4274, 2
  %v4276 = vmax.f32 %v4274, %v4275
  %v4277 = vrot.slane %v4276, 1
  %v4278 = vmax.f32 %v4276, %v4277
  %v4279 = vsel %vm45, %v2765, -inf
  %v4280 = vrot.slane %v4279, 4
  %v4281 = vmax.f32 %v4279, %v4280
  %v4282 = vrot.slane %v4281, 2
  %v4283 = vmax.f32 %v4281, %v4282
  %v4284 = vrot.slane %v4283, 1
  %v4285 = vmax.f32 %v4283, %v4284
  %v4286 = vsel %vm45, %v2773, -inf
  %v4287 = vrot.slane %v4286, 4
  %v4288 = vmax.f32 %v4286, %v4287
  %v4289 = vrot.slane %v4288, 2
  %v4290 = vmax.f32 %v4288, %v4289
  %v4291 = vrot.slane %v4290, 1
  %v4292 = vmax.f32 %v4290, %v4291
  %v4293 = vsel %vm45, %v2781, -inf
  %v4294 = vrot.slane %v4293, 4
  %v4295 = vmax.f32 %v4293, %v4294
  %v4296 = vrot.slane %v4295, 2
  %v4297 = vmax.f32 %v4295, %v4296
  %v4298 = vrot.slane %v4297, 1
  %v4299 = vmax.f32 %v4297, %v4298
  %v4300 = vsel %vm45, %v2780, -inf
  %v4301 = vrot.slane %v4300, 4
  %v4302 = vmax.f32 %v4300, %v4301
  %v4303 = vrot.slane %v4302, 2
  %v4304 = vmax.f32 %v4302, %v4303
  %v4305 = vrot.slane %v4304, 1
  %v4306 = vmax.f32 %v4304, %v4305
  %v4307 = vsel %vm45, %v2782, -inf
  %v4308 = vrot.slane %v4307, 4
  %v4309 = vmax.f32 %v4307, %v4308
  %v4310 = vrot.slane %v4309, 2
  %v4311 = vmax.f32 %v4309, %v4310
  %v4312 = vrot.slane %v4311, 1
  %v4313 = vmax.f32 %v4311, %v4312
  %v4314 = vsel %vm45, %v2790, -inf
  %v4315 = vrot.slane %v4314, 4
  %v4316 = vmax.f32 %v4314, %v4315
  %v4317 = vrot.slane %v4316, 2
  %v4318 = vmax.f32 %v4316, %v4317
  %v4319 = vrot.slane %v4318, 1
  %v4320 = vmax.f32 %v4318, %v4319
  %v4321 = vsel %vm45, %v2798, -inf
  %v4322 = vrot.slane %v4321, 4
  %v4323 = vmax.f32 %v4321, %v4322
  %v4324 = vrot.slane %v4323, 2
  %v4325 = vmax.f32 %v4323, %v4324
  %v4326 = vrot.slane %v4325, 1
  %v4327 = vmax.f32 %v4325, %v4326
  %v4328 = vsel %vm45, %v2797, -inf
  %v4329 = vrot.slane %v4328, 4
  %v4330 = vmax.f32 %v4328, %v4329
  %v4331 = vrot.slane %v4330, 2
  %v4332 = vmax.f32 %v4330, %v4331
  %v4333 = vrot.slane %v4332, 1
  %v4334 = vmax.f32 %v4332, %v4333
  %v4335 = vsel %vm45, %v2799, -inf
  %v4336 = vrot.slane %v4335, 4
  %v4337 = vmax.f32 %v4335, %v4336
  %v4338 = vrot.slane %v4337, 2
  %v4339 = vmax.f32 %v4337, %v4338
  %v4340 = vrot.slane %v4339, 1
  %v4341 = vmax.f32 %v4339, %v4340
  %v4342 = vsel %vm45, %v2807, -inf
  %v4343 = vrot.slane %v4342, 4
  %v4344 = vmax.f32 %v4342, %v4343
  %v4345 = vrot.slane %v4344, 2
  %v4346 = vmax.f32 %v4344, %v4345
  %v4347 = vrot.slane %v4346, 1
  %v4348 = vmax.f32 %v4346, %v4347
  %v4349 = vsel %vm45, %v2815, -inf
  %v4350 = vrot.slane %v4349, 4
  %v4351 = vmax.f32 %v4349, %v4350
  %v4352 = vrot.slane %v4351, 2
  %v4353 = vmax.f32 %v4351, %v4352
  %v4354 = vrot.slane %v4353, 1
  %v4355 = vmax.f32 %v4353, %v4354
  %v4356 = vsel %vm45, %v2814, -inf
  %v4357 = vrot.slane %v4356, 4
  %v4358 = vmax.f32 %v4356, %v4357
  %v4359 = vrot.slane %v4358, 2
  %v4360 = vmax.f32 %v4358, %v4359
  %v4361 = vrot.slane %v4360, 1
  %v4362 = vmax.f32 %v4360, %v4361
  %v4363 = vsel %vm45, %v2816, -inf
  %v4364 = vrot.slane %v4363, 4
  %v4365 = vmax.f32 %v4363, %v4364
  %v4366 = vrot.slane %v4365, 2
  %v4367 = vmax.f32 %v4365, %v4366
  %v4368 = vrot.slane %v4367, 1
  %v4369 = vmax.f32 %v4367, %v4368
  %v4370 = vsel %vm45, %v2824, -inf
  %v4371 = vrot.slane %v4370, 4
  %v4372 = vmax.f32 %v4370, %v4371
  %v4373 = vrot.slane %v4372, 2
  %v4374 = vmax.f32 %v4372, %v4373
  %v4375 = vrot.slane %v4374, 1
  %v4376 = vmax.f32 %v4374, %v4375
  %v4377 = vsel %vm45, %v2832, -inf
  %v4378 = vrot.slane %v4377, 4
  %v4379 = vmax.f32 %v4377, %v4378
  %v4380 = vrot.slane %v4379, 2
  %v4381 = vmax.f32 %v4379, %v4380
  %v4382 = vrot.slane %v4381, 1
  %v4383 = vmax.f32 %v4381, %v4382
  %v4384 = vsel %vm45, %v2831, -inf
  %v4385 = vrot.slane %v4384, 4
  %v4386 = vmax.f32 %v4384, %v4385
  %v4387 = vrot.slane %v4386, 2
  %v4388 = vmax.f32 %v4386, %v4387
  %v4389 = vrot.slane %v4388, 1
  %v4390 = vmax.f32 %v4388, %v4389
  %v4391 = vsel %vm45, %v2833, -inf
  %v4392 = vrot.slane %v4391, 4
  %v4393 = vmax.f32 %v4391, %v4392
  %v4394 = vrot.slane %v4393, 2
  %v4395 = vmax.f32 %v4393, %v4394
  %v4396 = vrot.slane %v4395, 1
  %v4397 = vmax.f32 %v4395, %v4396
  %v4398 = vsel %vm45, %v2841, -inf
  %v4399 = vrot.slane %v4398, 4
  %v4400 = vmax.f32 %v4398, %v4399
  %v4401 = vrot.slane %v4400, 2
  %v4402 = vmax.f32 %v4400, %v4401
  %v4403 = vrot.slane %v4402, 1
  %v4404 = vmax.f32 %v4402, %v4403
  %v4405 = vsel %vm45, %v2849, -inf
  %v4406 = vrot.slane %v4405, 4
  %v4407 = vmax.f32 %v4405, %v4406
  %v4408 = vrot.slane %v4407, 2
  %v4409 = vmax.f32 %v4407, %v4408
  %v4410 = vrot.slane %v4409, 1
  %v4411 = vmax.f32 %v4409, %v4410
  %v4412 = vsel %vm45, %v2848, -inf
  %v4413 = vrot.slane %v4412, 4
  %v4414 = vmax.f32 %v4412, %v4413
  %v4415 = vrot.slane %v4414, 2
  %v4416 = vmax.f32 %v4414, %v4415
  %v4417 = vrot.slane %v4416, 1
  %v4418 = vmax.f32 %v4416, %v4417
  %v4419 = vsel %vm45, %v2850, -inf
  %v4420 = vrot.slane %v4419, 4
  %v4421 = vmax.f32 %v4419, %v4420
  %v4422 = vrot.slane %v4421, 2
  %v4423 = vmax.f32 %v4421, %v4422
  %v4424 = vrot.slane %v4423, 1
  %v4425 = vmax.f32 %v4423, %v4424
  %v4426 = vsel %vm45, %v2858, -inf
  %v4427 = vrot.slane %v4426, 4
  %v4428 = vmax.f32 %v4426, %v4427
  %v4429 = vrot.slane %v4428, 2
  %v4430 = vmax.f32 %v4428, %v4429
  %v4431 = vrot.slane %v4430, 1
  %v4432 = vmax.f32 %v4430, %v4431
  %v4433 = vsel %vm45, %v2866, -inf
  %v4434 = vrot.slane %v4433, 4
  %v4435 = vmax.f32 %v4433, %v4434
  %v4436 = vrot.slane %v4435, 2
  %v4437 = vmax.f32 %v4435, %v4436
  %v4438 = vrot.slane %v4437, 1
  %v4439 = vmax.f32 %v4437, %v4438
  %v4440 = vsel %vm45, %v2865, -inf
  %v4441 = vrot.slane %v4440, 4
  %v4442 = vmax.f32 %v4440, %v4441
  %v4443 = vrot.slane %v4442, 2
  %v4444 = vmax.f32 %v4442, %v4443
  %v4445 = vrot.slane %v4444, 1
  %v4446 = vmax.f32 %v4444, %v4445
  %v4447 = vsel %vm45, %v2867, -inf
  %v4448 = vrot.slane %v4447, 4
  %v4449 = vmax.f32 %v4447, %v4448
  %v4450 = vrot.slane %v4449, 2
  %v4451 = vmax.f32 %v4449, %v4450
  %v4452 = vrot.slane %v4451, 1
  %v4453 = vmax.f32 %v4451, %v4452
  %v4454 = vsel %vm45, %v2875, -inf
  %v4455 = vrot.slane %v4454, 4
  %v4456 = vmax.f32 %v4454, %v4455
  %v4457 = vrot.slane %v4456, 2
  %v4458 = vmax.f32 %v4456, %v4457
  %v4459 = vrot.slane %v4458, 1
  %v4460 = vmax.f32 %v4458, %v4459
  %v4461 = vsel %vm45, %v2883, -inf
  %v4462 = vrot.slane %v4461, 4
  %v4463 = vmax.f32 %v4461, %v4462
  %v4464 = vrot.slane %v4463, 2
  %v4465 = vmax.f32 %v4463, %v4464
  %v4466 = vrot.slane %v4465, 1
  %v4467 = vmax.f32 %v4465, %v4466
  %v4468 = vsel %vm45, %v2882, -inf
  %v4469 = vrot.slane %v4468, 4
  %v4470 = vmax.f32 %v4468, %v4469
  %v4471 = vrot.slane %v4470, 2
  %v4472 = vmax.f32 %v4470, %v4471
  %v4473 = vrot.slane %v4472, 1
  %v4474 = vmax.f32 %v4472, %v4473
  %v4475 = vsel %vm45, %v2884, -inf
  %v4476 = vrot.slane %v4475, 4
  %v4477 = vmax.f32 %v4475, %v4476
  %v4478 = vrot.slane %v4477, 2
  %v4479 = vmax.f32 %v4477, %v4478
  %v4480 = vrot.slane %v4479, 1
  %v4481 = vmax.f32 %v4479, %v4480
  %v4482 = vsel %vm45, %v2892, -inf
  %v4483 = vrot.slane %v4482, 4
  %v4484 = vmax.f32 %v4482, %v4483
  %v4485 = vrot.slane %v4484, 2
  %v4486 = vmax.f32 %v4484, %v4485
  %v4487 = vrot.slane %v4486, 1
  %v4488 = vmax.f32 %v4486, %v4487
  %v4489 = vsel %vm45, %v2900, -inf
  %v4490 = vrot.slane %v4489, 4
  %v4491 = vmax.f32 %v4489, %v4490
  %v4492 = vrot.slane %v4491, 2
  %v4493 = vmax.f32 %v4491, %v4492
  %v4494 = vrot.slane %v4493, 1
  %v4495 = vmax.f32 %v4493, %v4494
  %v4496 = vsel %vm45, %v2899, -inf
  %v4497 = vrot.slane %v4496, 4
  %v4498 = vmax.f32 %v4496, %v4497
  %v4499 = vrot.slane %v4498, 2
  %v4500 = vmax.f32 %v4498, %v4499
  %v4501 = vrot.slane %v4500, 1
  %v4502 = vmax.f32 %v4500, %v4501
  %v4503 = vsel %vm45, %v2901, -inf
  %v4504 = vrot.slane %v4503, 4
  %v4505 = vmax.f32 %v4503, %v4504
  %v4506 = vrot.slane %v4505, 2
  %v4507 = vmax.f32 %v4505, %v4506
  %v4508 = vrot.slane %v4507, 1
  %v4509 = vmax.f32 %v4507, %v4508
  %v4510 = vsel %vm45, %v2909, -inf
  %v4511 = vrot.slane %v4510, 4
  %v4512 = vmax.f32 %v4510, %v4511
  %v4513 = vrot.slane %v4512, 2
  %v4514 = vmax.f32 %v4512, %v4513
  %v4515 = vrot.slane %v4514, 1
  %v4516 = vmax.f32 %v4514, %v4515
  %v4517 = vsel %vm45, %v2917, -inf
  %v4518 = vrot.slane %v4517, 4
  %v4519 = vmax.f32 %v4517, %v4518
  %v4520 = vrot.slane %v4519, 2
  %v4521 = vmax.f32 %v4519, %v4520
  %v4522 = vrot.slane %v4521, 1
  %v4523 = vmax.f32 %v4521, %v4522
  %v4524 = vsel %vm45, %v2916, -inf
  %v4525 = vrot.slane %v4524, 4
  %v4526 = vmax.f32 %v4524, %v4525
  %v4527 = vrot.slane %v4526, 2
  %v4528 = vmax.f32 %v4526, %v4527
  %v4529 = vrot.slane %v4528, 1
  %v4530 = vmax.f32 %v4528, %v4529
  %v4531 = vsel %vm45, %v2918, -inf
  %v4532 = vrot.slane %v4531, 4
  %v4533 = vmax.f32 %v4531, %v4532
  %v4534 = vrot.slane %v4533, 2
  %v4535 = vmax.f32 %v4533, %v4534
  %v4536 = vrot.slane %v4535, 1
  %v4537 = vmax.f32 %v4535, %v4536
  %v4538 = vsel %vm45, %v2926, -inf
  %v4539 = vrot.slane %v4538, 4
  %v4540 = vmax.f32 %v4538, %v4539
  %v4541 = vrot.slane %v4540, 2
  %v4542 = vmax.f32 %v4540, %v4541
  %v4543 = vrot.slane %v4542, 1
  %v4544 = vmax.f32 %v4542, %v4543
  %v4545 = vsel %vm45, %v2934, -inf
  %v4546 = vrot.slane %v4545, 4
  %v4547 = vmax.f32 %v4545, %v4546
  %v4548 = vrot.slane %v4547, 2
  %v4549 = vmax.f32 %v4547, %v4548
  %v4550 = vrot.slane %v4549, 1
  %v4551 = vmax.f32 %v4549, %v4550
  %v4552 = vsel %vm45, %v2933, -inf
  %v4553 = vrot.slane %v4552, 4
  %v4554 = vmax.f32 %v4552, %v4553
  %v4555 = vrot.slane %v4554, 2
  %v4556 = vmax.f32 %v4554, %v4555
  %v4557 = vrot.slane %v4556, 1
  %v4558 = vmax.f32 %v4556, %v4557
  %v4559 = vsel %vm45, %v2935, -inf
  %v4560 = vrot.slane %v4559, 4
  %v4561 = vmax.f32 %v4559, %v4560
  %v4562 = vrot.slane %v4561, 2
  %v4563 = vmax.f32 %v4561, %v4562
  %v4564 = vrot.slane %v4563, 1
  %v4565 = vmax.f32 %v4563, %v4564
  %v4566 = vsel %vm45, %v2943, -inf
  %v4567 = vrot.slane %v4566, 4
  %v4568 = vmax.f32 %v4566, %v4567
  %v4569 = vrot.slane %v4568, 2
  %v4570 = vmax.f32 %v4568, %v4569
  %v4571 = vrot.slane %v4570, 1
  %v4572 = vmax.f32 %v4570, %v4571
  %v4573 = vsel %vm45, %v2951, -inf
  %v4574 = vrot.slane %v4573, 4
  %v4575 = vmax.f32 %v4573, %v4574
  %v4576 = vrot.slane %v4575, 2
  %v4577 = vmax.f32 %v4575, %v4576
  %v4578 = vrot.slane %v4577, 1
  %v4579 = vmax.f32 %v4577, %v4578
  %v4580 = vsel %vm45, %v2950, -inf
  %v4581 = vrot.slane %v4580, 4
  %v4582 = vmax.f32 %v4580, %v4581
  %v4583 = vrot.slane %v4582, 2
  %v4584 = vmax.f32 %v4582, %v4583
  %v4585 = vrot.slane %v4584, 1
  %v4586 = vmax.f32 %v4584, %v4585
  %v4587 = vsel %vm45, %v2952, -inf
  %v4588 = vrot.slane %v4587, 4
  %v4589 = vmax.f32 %v4587, %v4588
  %v4590 = vrot.slane %v4589, 2
  %v4591 = vmax.f32 %v4589, %v4590
  %v4592 = vrot.slane %v4591, 1
  %v4593 = vmax.f32 %v4591, %v4592
  %v4594 = vsel %vm45, %v2960, -inf
  %v4595 = vrot.slane %v4594, 4
  %v4596 = vmax.f32 %v4594, %v4595
  %v4597 = vrot.slane %v4596, 2
  %v4598 = vmax.f32 %v4596, %v4597
  %v4599 = vrot.slane %v4598, 1
  %v4600 = vmax.f32 %v4598, %v4599
  %v4601 = vsel %vm45, %v2968, -inf
  %v4602 = vrot.slane %v4601, 4
  %v4603 = vmax.f32 %v4601, %v4602
  %v4604 = vrot.slane %v4603, 2
  %v4605 = vmax.f32 %v4603, %v4604
  %v4606 = vrot.slane %v4605, 1
  %v4607 = vmax.f32 %v4605, %v4606
  %v4608 = vsel %vm45, %v2967, -inf
  %v4609 = vrot.slane %v4608, 4
  %v4610 = vmax.f32 %v4608, %v4609
  %v4611 = vrot.slane %v4610, 2
  %v4612 = vmax.f32 %v4610, %v4611
  %v4613 = vrot.slane %v4612, 1
  %v4614 = vmax.f32 %v4612, %v4613
  %v4615 = vsel %vm45, %v2969, -inf
  %v4616 = vrot.slane %v4615, 4
  %v4617 = vmax.f32 %v4615, %v4616
  %v4618 = vrot.slane %v4617, 2
  %v4619 = vmax.f32 %v4617, %v4618
  %v4620 = vrot.slane %v4619, 1
  %v4621 = vmax.f32 %v4619, %v4620
  %v4622 = vsel %vm45, %v2977, -inf
  %v4623 = vrot.slane %v4622, 4
  %v4624 = vmax.f32 %v4622, %v4623
  %v4625 = vrot.slane %v4624, 2
  %v4626 = vmax.f32 %v4624, %v4625
  %v4627 = vrot.slane %v4626, 1
  %v4628 = vmax.f32 %v4626, %v4627
  %v4629 = vsel %vm45, %v2985, -inf
  %v4630 = vrot.slane %v4629, 4
  %v4631 = vmax.f32 %v4629, %v4630
  %v4632 = vrot.slane %v4631, 2
  %v4633 = vmax.f32 %v4631, %v4632
  %v4634 = vrot.slane %v4633, 1
  %v4635 = vmax.f32 %v4633, %v4634
  %v4636 = vsel %vm45, %v2984, -inf
  %v4637 = vrot.slane %v4636, 4
  %v4638 = vmax.f32 %v4636, %v4637
  %v4639 = vrot.slane %v4638, 2
  %v4640 = vmax.f32 %v4638, %v4639
  %v4641 = vrot.slane %v4640, 1
  %v4642 = vmax.f32 %v4640, %v4641
  %v4643 = vsel %vm45, %v2986, -inf
  %v4644 = vrot.slane %v4643, 4
  %v4645 = vmax.f32 %v4643, %v4644
  %v4646 = vrot.slane %v4645, 2
  %v4647 = vmax.f32 %v4645, %v4646
  %v4648 = vrot.slane %v4647, 1
  %v4649 = vmax.f32 %v4647, %v4648
  %v4650 = vsel %vm45, %v2994, -inf
  %v4651 = vrot.slane %v4650, 4
  %v4652 = vmax.f32 %v4650, %v4651
  %v4653 = vrot.slane %v4652, 2
  %v4654 = vmax.f32 %v4652, %v4653
  %v4655 = vrot.slane %v4654, 1
  %v4656 = vmax.f32 %v4654, %v4655
  %v4657 = vsel %vm45, %v3002, -inf
  %v4658 = vrot.slane %v4657, 4
  %v4659 = vmax.f32 %v4657, %v4658
  %v4660 = vrot.slane %v4659, 2
  %v4661 = vmax.f32 %v4659, %v4660
  %v4662 = vrot.slane %v4661, 1
  %v4663 = vmax.f32 %v4661, %v4662
  %v4664 = vsel %vm45, %v3001, -inf
  %v4665 = vrot.slane %v4664, 4
  %v4666 = vmax.f32 %v4664, %v4665
  %v4667 = vrot.slane %v4666, 2
  %v4668 = vmax.f32 %v4666, %v4667
  %v4669 = vrot.slane %v4668, 1
  %v4670 = vmax.f32 %v4668, %v4669
  %v4671 = vsel %vm45, %v3003, -inf
  %v4672 = vrot.slane %v4671, 4
  %v4673 = vmax.f32 %v4671, %v4672
  %v4674 = vrot.slane %v4673, 2
  %v4675 = vmax.f32 %v4673, %v4674
  %v4676 = vrot.slane %v4675, 1
  %v4677 = vmax.f32 %v4675, %v4676
  %v4678 = vsel %vm45, %v3011, -inf
  %v4679 = vrot.slane %v4678, 4
  %v4680 = vmax.f32 %v4678, %v4679
  %v4681 = vrot.slane %v4680, 2
  %v4682 = vmax.f32 %v4680, %v4681
  %v4683 = vrot.slane %v4682, 1
  %v4684 = vmax.f32 %v4682, %v4683
  %v4685 = vsel %vm45, %v3019, -inf
  %v4686 = vrot.slane %v4685, 4
  %v4687 = vmax.f32 %v4685, %v4686
  %v4688 = vrot.slane %v4687, 2
  %v4689 = vmax.f32 %v4687, %v4688
  %v4690 = vrot.slane %v4689, 1
  %v4691 = vmax.f32 %v4689, %v4690
  %v4692 = vsel %vm45, %v3018, -inf
  %v4693 = vrot.slane %v4692, 4
  %v4694 = vmax.f32 %v4692, %v4693
  %v4695 = vrot.slane %v4694, 2
  %v4696 = vmax.f32 %v4694, %v4695
  %v4697 = vrot.slane %v4696, 1
  %v4698 = vmax.f32 %v4696, %v4697
  %v4699 = vsel %vm45, %v3020, -inf
  %v4700 = vrot.slane %v4699, 4
  %v4701 = vmax.f32 %v4699, %v4700
  %v4702 = vrot.slane %v4701, 2
  %v4703 = vmax.f32 %v4701, %v4702
  %v4704 = vrot.slane %v4703, 1
  %v4705 = vmax.f32 %v4703, %v4704
  %v4706 = vsel %vm45, %v3028, -inf
  %v4707 = vrot.slane %v4706, 4
  %v4708 = vmax.f32 %v4706, %v4707
  %v4709 = vrot.slane %v4708, 2
  %v4710 = vmax.f32 %v4708, %v4709
  %v4711 = vrot.slane %v4710, 1
  %v4712 = vmax.f32 %v4710, %v4711
  %v4713 = vsel %vm45, %v3036, -inf
  %v4714 = vrot.slane %v4713, 4
  %v4715 = vmax.f32 %v4713, %v4714
  %v4716 = vrot.slane %v4715, 2
  %v4717 = vmax.f32 %v4715, %v4716
  %v4718 = vrot.slane %v4717, 1
  %v4719 = vmax.f32 %v4717, %v4718
  %v4720 = vsel %vm45, %v3035, -inf
  %v4721 = vrot.slane %v4720, 4
  %v4722 = vmax.f32 %v4720, %v4721
  %v4723 = vrot.slane %v4722, 2
  %v4724 = vmax.f32 %v4722, %v4723
  %v4725 = vrot.slane %v4724, 1
  %v4726 = vmax.f32 %v4724, %v4725
  %v4727 = vsel %vm45, %v3037, -inf
  %v4728 = vrot.slane %v4727, 4
  %v4729 = vmax.f32 %v4727, %v4728
  %v4730 = vrot.slane %v4729, 2
  %v4731 = vmax.f32 %v4729, %v4730
  %v4732 = vrot.slane %v4731, 1
  %v4733 = vmax.f32 %v4731, %v4732
  %v4734 = vsel %vm45, %v3045, -inf
  %v4735 = vrot.slane %v4734, 4
  %v4736 = vmax.f32 %v4734, %v4735
  %v4737 = vrot.slane %v4736, 2
  %v4738 = vmax.f32 %v4736, %v4737
  %v4739 = vrot.slane %v4738, 1
  %v4740 = vmax.f32 %v4738, %v4739
  %v4741 = vsel %vm45, %v3053, -inf
  %v4742 = vrot.slane %v4741, 4
  %v4743 = vmax.f32 %v4741, %v4742
  %v4744 = vrot.slane %v4743, 2
  %v4745 = vmax.f32 %v4743, %v4744
  %v4746 = vrot.slane %v4745, 1
  %v4747 = vmax.f32 %v4745, %v4746
  %v4748 = vsel %vm45, %v3052, -inf
  %v4749 = vrot.slane %v4748, 4
  %v4750 = vmax.f32 %v4748, %v4749
  %v4751 = vrot.slane %v4750, 2
  %v4752 = vmax.f32 %v4750, %v4751
  %v4753 = vrot.slane %v4752, 1
  %v4754 = vmax.f32 %v4752, %v4753
  %v4755 = vsel %vm45, %v3054, -inf
  %v4756 = vrot.slane %v4755, 4
  %v4757 = vmax.f32 %v4755, %v4756
  %v4758 = vrot.slane %v4757, 2
  %v4759 = vmax.f32 %v4757, %v4758
  %v4760 = vrot.slane %v4759, 1
  %v4761 = vmax.f32 %v4759, %v4760
  %v4762 = vsel %vm45, %v3062, -inf
  %v4763 = vrot.slane %v4762, 4
  %v4764 = vmax.f32 %v4762, %v4763
  %v4765 = vrot.slane %v4764, 2
  %v4766 = vmax.f32 %v4764, %v4765
  %v4767 = vrot.slane %v4766, 1
  %v4768 = vmax.f32 %v4766, %v4767
  %v4769 = vsel %vm45, %v3070, -inf
  %v4770 = vrot.slane %v4769, 4
  %v4771 = vmax.f32 %v4769, %v4770
  %v4772 = vrot.slane %v4771, 2
  %v4773 = vmax.f32 %v4771, %v4772
  %v4774 = vrot.slane %v4773, 1
  %v4775 = vmax.f32 %v4773, %v4774
  %v4776 = vsel %vm45, %v3069, -inf
  %v4777 = vrot.slane %v4776, 4
  %v4778 = vmax.f32 %v4776, %v4777
  %v4779 = vrot.slane %v4778, 2
  %v4780 = vmax.f32 %v4778, %v4779
  %v4781 = vrot.slane %v4780, 1
  %v4782 = vmax.f32 %v4780, %v4781
  %v4783 = vsel %vm45, %v3071, -inf
  %v4784 = vrot.slane %v4783, 4
  %v4785 = vmax.f32 %v4783, %v4784
  %v4786 = vrot.slane %v4785, 2
  %v4787 = vmax.f32 %v4785, %v4786
  %v4788 = vrot.slane %v4787, 1
  %v4789 = vmax.f32 %v4787, %v4788
  %v4790 = vsel %vm45, %v3079, -inf
  %v4791 = vrot.slane %v4790, 4
  %v4792 = vmax.f32 %v4790, %v4791
  %v4793 = vrot.slane %v4792, 2
  %v4794 = vmax.f32 %v4792, %v4793
  %v4795 = vrot.slane %v4794, 1
  %v4796 = vmax.f32 %v4794, %v4795
  %v4797 = vsel %vm45, %v3087, -inf
  %v4798 = vrot.slane %v4797, 4
  %v4799 = vmax.f32 %v4797, %v4798
  %v4800 = vrot.slane %v4799, 2
  %v4801 = vmax.f32 %v4799, %v4800
  %v4802 = vrot.slane %v4801, 1
  %v4803 = vmax.f32 %v4801, %v4802
  %v4804 = vsel %vm45, %v3086, -inf
  %v4805 = vrot.slane %v4804, 4
  %v4806 = vmax.f32 %v4804, %v4805
  %v4807 = vrot.slane %v4806, 2
  %v4808 = vmax.f32 %v4806, %v4807
  %v4809 = vrot.slane %v4808, 1
  %v4810 = vmax.f32 %v4808, %v4809
  %v4811 = vsel %vm45, %v3088, -inf
  %v4812 = vrot.slane %v4811, 4
  %v4813 = vmax.f32 %v4811, %v4812
  %v4814 = vrot.slane %v4813, 2
  %v4815 = vmax.f32 %v4813, %v4814
  %v4816 = vrot.slane %v4815, 1
  %v4817 = vmax.f32 %v4815, %v4816
  %v4818 = vsel %vm45, %v3096, -inf
  %v4819 = vrot.slane %v4818, 4
  %v4820 = vmax.f32 %v4818, %v4819
  %v4821 = vrot.slane %v4820, 2
  %v4822 = vmax.f32 %v4820, %v4821
  %v4823 = vrot.slane %v4822, 1
  %v4824 = vmax.f32 %v4822, %v4823
  %v4825 = vsel %vm45, %v3104, -inf
  %v4826 = vrot.slane %v4825, 4
  %v4827 = vmax.f32 %v4825, %v4826
  %v4828 = vrot.slane %v4827, 2
  %v4829 = vmax.f32 %v4827, %v4828
  %v4830 = vrot.slane %v4829, 1
  %v4831 = vmax.f32 %v4829, %v4830
  %v4832 = vsel %vm45, %v3103, -inf
  %v4833 = vrot.slane %v4832, 4
  %v4834 = vmax.f32 %v4832, %v4833
  %v4835 = vrot.slane %v4834, 2
  %v4836 = vmax.f32 %v4834, %v4835
  %v4837 = vrot.slane %v4836, 1
  %v4838 = vmax.f32 %v4836, %v4837
  %v4839 = vsel %vm45, %v3105, -inf
  %v4840 = vrot.slane %v4839, 4
  %v4841 = vmax.f32 %v4839, %v4840
  %v4842 = vrot.slane %v4841, 2
  %v4843 = vmax.f32 %v4841, %v4842
  %v4844 = vrot.slane %v4843, 1
  %v4845 = vmax.f32 %v4843, %v4844
  %v4846 = vsel %vm45, %v3113, -inf
  %v4847 = vrot.slane %v4846, 4
  %v4848 = vmax.f32 %v4846, %v4847
  %v4849 = vrot.slane %v4848, 2
  %v4850 = vmax.f32 %v4848, %v4849
  %v4851 = vrot.slane %v4850, 1
  %v4852 = vmax.f32 %v4850, %v4851
  %v4853 = vsel %vm45, %v3121, -inf
  %v4854 = vrot.slane %v4853, 4
  %v4855 = vmax.f32 %v4853, %v4854
  %v4856 = vrot.slane %v4855, 2
  %v4857 = vmax.f32 %v4855, %v4856
  %v4858 = vrot.slane %v4857, 1
  %v4859 = vmax.f32 %v4857, %v4858
  %v4860 = vsel %vm45, %v3120, -inf
  %v4861 = vrot.slane %v4860, 4
  %v4862 = vmax.f32 %v4860, %v4861
  %v4863 = vrot.slane %v4862, 2
  %v4864 = vmax.f32 %v4862, %v4863
  %v4865 = vrot.slane %v4864, 1
  %v4866 = vmax.f32 %v4864, %v4865
  %v4867 = vsel %vm45, %v3122, -inf
  %v4868 = vrot.slane %v4867, 4
  %v4869 = vmax.f32 %v4867, %v4868
  %v4870 = vrot.slane %v4869, 2
  %v4871 = vmax.f32 %v4869, %v4870
  %v4872 = vrot.slane %v4871, 1
  %v4873 = vmax.f32 %v4871, %v4872
  %v4874 = vsel %vm45, %v3130, -inf
  %v4875 = vrot.slane %v4874, 4
  %v4876 = vmax.f32 %v4874, %v4875
  %v4877 = vrot.slane %v4876, 2
  %v4878 = vmax.f32 %v4876, %v4877
  %v4879 = vrot.slane %v4878, 1
  %v4880 = vmax.f32 %v4878, %v4879
  %v4881 = vsel %vm45, %v3138, -inf
  %v4882 = vrot.slane %v4881, 4
  %v4883 = vmax.f32 %v4881, %v4882
  %v4884 = vrot.slane %v4883, 2
  %v4885 = vmax.f32 %v4883, %v4884
  %v4886 = vrot.slane %v4885, 1
  %v4887 = vmax.f32 %v4885, %v4886
  %v4888 = vsel %vm45, %v3137, -inf
  %v4889 = vrot.slane %v4888, 4
  %v4890 = vmax.f32 %v4888, %v4889
  %v4891 = vrot.slane %v4890, 2
  %v4892 = vmax.f32 %v4890, %v4891
  %v4893 = vrot.slane %v4892, 1
  %v4894 = vmax.f32 %v4892, %v4893
  %v4895 = vsel %vm45, %v3139, -inf
  %v4896 = vrot.slane %v4895, 4
  %v4897 = vmax.f32 %v4895, %v4896
  %v4898 = vrot.slane %v4897, 2
  %v4899 = vmax.f32 %v4897, %v4898
  %v4900 = vrot.slane %v4899, 1
  %v4901 = vmax.f32 %v4899, %v4900
  %v4902 = vsel %vm45, %v3147, -inf
  %v4903 = vrot.slane %v4902, 4
  %v4904 = vmax.f32 %v4902, %v4903
  %v4905 = vrot.slane %v4904, 2
  %v4906 = vmax.f32 %v4904, %v4905
  %v4907 = vrot.slane %v4906, 1
  %v4908 = vmax.f32 %v4906, %v4907
  %v4909 = vsel %vm45, %v3155, -inf
  %v4910 = vrot.slane %v4909, 4
  %v4911 = vmax.f32 %v4909, %v4910
  %v4912 = vrot.slane %v4911, 2
  %v4913 = vmax.f32 %v4911, %v4912
  %v4914 = vrot.slane %v4913, 1
  %v4915 = vmax.f32 %v4913, %v4914
  %v4916 = vsel %vm45, %v3154, -inf
  %v4917 = vrot.slane %v4916, 4
  %v4918 = vmax.f32 %v4916, %v4917
  %v4919 = vrot.slane %v4918, 2
  %v4920 = vmax.f32 %v4918, %v4919
  %v4921 = vrot.slane %v4920, 1
  %v4922 = vmax.f32 %v4920, %v4921
  %v4923 = vsel %vm45, %v3156, -inf
  %v4924 = vrot.slane %v4923, 4
  %v4925 = vmax.f32 %v4923, %v4924
  %v4926 = vrot.slane %v4925, 2
  %v4927 = vmax.f32 %v4925, %v4926
  %v4928 = vrot.slane %v4927, 1
  %v4929 = vmax.f32 %v4927, %v4928
  %v4930 = vsel %vm45, %v3164, -inf
  %v4931 = vrot.slane %v4930, 4
  %v4932 = vmax.f32 %v4930, %v4931
  %v4933 = vrot.slane %v4932, 2
  %v4934 = vmax.f32 %v4932, %v4933
  %v4935 = vrot.slane %v4934, 1
  %v4936 = vmax.f32 %v4934, %v4935
  %v4937 = vsel %vm45, %v3172, -inf
  %v4938 = vrot.slane %v4937, 4
  %v4939 = vmax.f32 %v4937, %v4938
  %v4940 = vrot.slane %v4939, 2
  %v4941 = vmax.f32 %v4939, %v4940
  %v4942 = vrot.slane %v4941, 1
  %v4943 = vmax.f32 %v4941, %v4942
  %v4944 = vsel %vm45, %v3171, -inf
  %v4945 = vrot.slane %v4944, 4
  %v4946 = vmax.f32 %v4944, %v4945
  %v4947 = vrot.slane %v4946, 2
  %v4948 = vmax.f32 %v4946, %v4947
  %v4949 = vrot.slane %v4948, 1
  %v4950 = vmax.f32 %v4948, %v4949
  %v4951 = vsel %vm45, %v3173, -inf
  %v4952 = vrot.slane %v4951, 4
  %v4953 = vmax.f32 %v4951, %v4952
  %v4954 = vrot.slane %v4953, 2
  %v4955 = vmax.f32 %v4953, %v4954
  %v4956 = vrot.slane %v4955, 1
  %v4957 = vmax.f32 %v4955, %v4956
  %v4958 = vsel %vm45, %v3181, -inf
  %v4959 = vrot.slane %v4958, 4
  %v4960 = vmax.f32 %v4958, %v4959
  %v4961 = vrot.slane %v4960, 2
  %v4962 = vmax.f32 %v4960, %v4961
  %v4963 = vrot.slane %v4962, 1
  %v4964 = vmax.f32 %v4962, %v4963
  %v4965 = vsel %vm45, %v3189, -inf
  %v4966 = vrot.slane %v4965, 4
  %v4967 = vmax.f32 %v4965, %v4966
  %v4968 = vrot.slane %v4967, 2
  %v4969 = vmax.f32 %v4967, %v4968
  %v4970 = vrot.slane %v4969, 1
  %v4971 = vmax.f32 %v4969, %v4970
  %v4972 = vsel %vm45, %v3188, -inf
  %v4973 = vrot.slane %v4972, 4
  %v4974 = vmax.f32 %v4972, %v4973
  %v4975 = vrot.slane %v4974, 2
  %v4976 = vmax.f32 %v4974, %v4975
  %v4977 = vrot.slane %v4976, 1
  %v4978 = vmax.f32 %v4976, %v4977
  %v4979 = vsel %vm45, %v3190, -inf
  %v4980 = vrot.slane %v4979, 4
  %v4981 = vmax.f32 %v4979, %v4980
  %v4982 = vrot.slane %v4981, 2
  %v4983 = vmax.f32 %v4981, %v4982
  %v4984 = vrot.slane %v4983, 1
  %v4985 = vmax.f32 %v4983, %v4984
  %v4986 = vsel %vm45, %v3198, -inf
  %v4987 = vrot.slane %v4986, 4
  %v4988 = vmax.f32 %v4986, %v4987
  %v4989 = vrot.slane %v4988, 2
  %v4990 = vmax.f32 %v4988, %v4989
  %v4991 = vrot.slane %v4990, 1
  %v4992 = vmax.f32 %v4990, %v4991
  %v4993 = vsel %vm45, %v3206, -inf
  %v4994 = vrot.slane %v4993, 4
  %v4995 = vmax.f32 %v4993, %v4994
  %v4996 = vrot.slane %v4995, 2
  %v4997 = vmax.f32 %v4995, %v4996
  %v4998 = vrot.slane %v4997, 1
  %v4999 = vmax.f32 %v4997, %v4998
  %v5000 = vsel %vm45, %v3205, -inf
  %v5001 = vrot.slane %v5000, 4
  %v5002 = vmax.f32 %v5000, %v5001
  %v5003 = vrot.slane %v5002, 2
  %v5004 = vmax.f32 %v5002, %v5003
  %v5005 = vrot.slane %v5004, 1
  %v5006 = vmax.f32 %v5004, %v5005
  %v5007 = vsel %vm45, %v3207, -inf
  %v5008 = vrot.slane %v5007, 4
  %v5009 = vmax.f32 %v5007, %v5008
  %v5010 = vrot.slane %v5009, 2
  %v5011 = vmax.f32 %v5009, %v5010
  %v5012 = vrot.slane %v5011, 1
  %v5013 = vmax.f32 %v5011, %v5012
  %v5014 = vsel %vm45, %v3215, -inf
  %v5015 = vrot.slane %v5014, 4
  %v5016 = vmax.f32 %v5014, %v5015
  %v5017 = vrot.slane %v5016, 2
  %v5018 = vmax.f32 %v5016, %v5017
  %v5019 = vrot.slane %v5018, 1
  %v5020 = vmax.f32 %v5018, %v5019
  %v5021 = vsel %vm45, %v3223, -inf
  %v5022 = vrot.slane %v5021, 4
  %v5023 = vmax.f32 %v5021, %v5022
  %v5024 = vrot.slane %v5023, 2
  %v5025 = vmax.f32 %v5023, %v5024
  %v5026 = vrot.slane %v5025, 1
  %v5027 = vmax.f32 %v5025, %v5026
  %v5028 = vsel %vm45, %v3222, -inf
  %v5029 = vrot.slane %v5028, 4
  %v5030 = vmax.f32 %v5028, %v5029
  %v5031 = vrot.slane %v5030, 2
  %v5032 = vmax.f32 %v5030, %v5031
  %v5033 = vrot.slane %v5032, 1
  %v5034 = vmax.f32 %v5032, %v5033
  %v5035 = vsel %vm45, %v3224, -inf
  %v5036 = vrot.slane %v5035, 4
  %v5037 = vmax.f32 %v5035, %v5036
  %v5038 = vrot.slane %v5037, 2
  %v5039 = vmax.f32 %v5037, %v5038
  %v5040 = vrot.slane %v5039, 1
  %v5041 = vmax.f32 %v5039, %v5040
  %v5042 = vsel %vm45, %v3232, -inf
  %v5043 = vrot.slane %v5042, 4
  %v5044 = vmax.f32 %v5042, %v5043
  %v5045 = vrot.slane %v5044, 2
  %v5046 = vmax.f32 %v5044, %v5045
  %v5047 = vrot.slane %v5046, 1
  %v5048 = vmax.f32 %v5046, %v5047
  %v5049 = vsel %vm45, %v3240, -inf
  %v5050 = vrot.slane %v5049, 4
  %v5051 = vmax.f32 %v5049, %v5050
  %v5052 = vrot.slane %v5051, 2
  %v5053 = vmax.f32 %v5051, %v5052
  %v5054 = vrot.slane %v5053, 1
  %v5055 = vmax.f32 %v5053, %v5054
  %v5056 = vsel %vm45, %v3239, -inf
  %v5057 = vrot.slane %v5056, 4
  %v5058 = vmax.f32 %v5056, %v5057
  %v5059 = vrot.slane %v5058, 2
  %v5060 = vmax.f32 %v5058, %v5059
  %v5061 = vrot.slane %v5060, 1
  %v5062 = vmax.f32 %v5060, %v5061
  %v5063 = vsel %vm45, %v3241, -inf
  %v5064 = vrot.slane %v5063, 4
  %v5065 = vmax.f32 %v5063, %v5064
  %v5066 = vrot.slane %v5065, 2
  %v5067 = vmax.f32 %v5065, %v5066
  %v5068 = vrot.slane %v5067, 1
  %v5069 = vmax.f32 %v5067, %v5068
  %v5070 = vsel %vm45, %v3249, -inf
  %v5071 = vrot.slane %v5070, 4
  %v5072 = vmax.f32 %v5070, %v5071
  %v5073 = vrot.slane %v5072, 2
  %v5074 = vmax.f32 %v5072, %v5073
  %v5075 = vrot.slane %v5074, 1
  %v5076 = vmax.f32 %v5074, %v5075
  %v5077 = vsel %vm45, %v3257, -inf
  %v5078 = vrot.slane %v5077, 4
  %v5079 = vmax.f32 %v5077, %v5078
  %v5080 = vrot.slane %v5079, 2
  %v5081 = vmax.f32 %v5079, %v5080
  %v5082 = vrot.slane %v5081, 1
  %v5083 = vmax.f32 %v5081, %v5082
  %v5084 = vsel %vm45, %v3256, -inf
  %v5085 = vrot.slane %v5084, 4
  %v5086 = vmax.f32 %v5084, %v5085
  %v5087 = vrot.slane %v5086, 2
  %v5088 = vmax.f32 %v5086, %v5087
  %v5089 = vrot.slane %v5088, 1
  %v5090 = vmax.f32 %v5088, %v5089
  %v5091 = vsel %vm45, %v3258, -inf
  %v5092 = vrot.slane %v5091, 4
  %v5093 = vmax.f32 %v5091, %v5092
  %v5094 = vrot.slane %v5093, 2
  %v5095 = vmax.f32 %v5093, %v5094
  %v5096 = vrot.slane %v5095, 1
  %v5097 = vmax.f32 %v5095, %v5096
  %v5098 = vsel %vm45, %v3266, -inf
  %v5099 = vrot.slane %v5098, 4
  %v5100 = vmax.f32 %v5098, %v5099
  %v5101 = vrot.slane %v5100, 2
  %v5102 = vmax.f32 %v5100, %v5101
  %v5103 = vrot.slane %v5102, 1
  %v5104 = vmax.f32 %v5102, %v5103
  %v5105 = vsel %vm45, %v3274, -inf
  %v5106 = vrot.slane %v5105, 4
  %v5107 = vmax.f32 %v5105, %v5106
  %v5108 = vrot.slane %v5107, 2
  %v5109 = vmax.f32 %v5107, %v5108
  %v5110 = vrot.slane %v5109, 1
  %v5111 = vmax.f32 %v5109, %v5110
  %v5112 = vsel %vm45, %v3273, -inf
  %v5113 = vrot.slane %v5112, 4
  %v5114 = vmax.f32 %v5112, %v5113
  %v5115 = vrot.slane %v5114, 2
  %v5116 = vmax.f32 %v5114, %v5115
  %v5117 = vrot.slane %v5116, 1
  %v5118 = vmax.f32 %v5116, %v5117
  %v5119 = vsel %vm45, %v3275, -inf
  %v5120 = vrot.slane %v5119, 4
  %v5121 = vmax.f32 %v5119, %v5120
  %v5122 = vrot.slane %v5121, 2
  %v5123 = vmax.f32 %v5121, %v5122
  %v5124 = vrot.slane %v5123, 1
  %v5125 = vmax.f32 %v5123, %v5124
  %v5126 = vsel %vm45, %v3283, -inf
  %v5127 = vrot.slane %v5126, 4
  %v5128 = vmax.f32 %v5126, %v5127
  %v5129 = vrot.slane %v5128, 2
  %v5130 = vmax.f32 %v5128, %v5129
  %v5131 = vrot.slane %v5130, 1
  %v5132 = vmax.f32 %v5130, %v5131
  %v5133 = vsel %vm45, %v3291, -inf
  %v5134 = vrot.slane %v5133, 4
  %v5135 = vmax.f32 %v5133, %v5134
  %v5136 = vrot.slane %v5135, 2
  %v5137 = vmax.f32 %v5135, %v5136
  %v5138 = vrot.slane %v5137, 1
  %v5139 = vmax.f32 %v5137, %v5138
  %v5140 = vsel %vm45, %v3290, -inf
  %v5141 = vrot.slane %v5140, 4
  %v5142 = vmax.f32 %v5140, %v5141
  %v5143 = vrot.slane %v5142, 2
  %v5144 = vmax.f32 %v5142, %v5143
  %v5145 = vrot.slane %v5144, 1
  %v5146 = vmax.f32 %v5144, %v5145
  %v5147 = vsel %vm45, %v3292, -inf
  %v5148 = vrot.slane %v5147, 4
  %v5149 = vmax.f32 %v5147, %v5148
  %v5150 = vrot.slane %v5149, 2
  %v5151 = vmax.f32 %v5149, %v5150
  %v5152 = vrot.slane %v5151, 1
  %v5153 = vmax.f32 %v5151, %v5152
  %v5154 = vsel %vm45, %v3300, -inf
  %v5155 = vrot.slane %v5154, 4
  %v5156 = vmax.f32 %v5154, %v5155
  %v5157 = vrot.slane %v5156, 2
  %v5158 = vmax.f32 %v5156, %v5157
  %v5159 = vrot.slane %v5158, 1
  %v5160 = vmax.f32 %v5158, %v5159
  %v5161 = vsel %vm45, %v3308, -inf
  %v5162 = vrot.slane %v5161, 4
  %v5163 = vmax.f32 %v5161, %v5162
  %v5164 = vrot.slane %v5163, 2
  %v5165 = vmax.f32 %v5163, %v5164
  %v5166 = vrot.slane %v5165, 1
  %v5167 = vmax.f32 %v5165, %v5166
  %v5168 = vsel %vm45, %v3307, -inf
  %v5169 = vrot.slane %v5168, 4
  %v5170 = vmax.f32 %v5168, %v5169
  %v5171 = vrot.slane %v5170, 2
  %v5172 = vmax.f32 %v5170, %v5171
  %v5173 = vrot.slane %v5172, 1
  %v5174 = vmax.f32 %v5172, %v5173
  %v5175 = vsel %vm45, %v3309, -inf
  %v5176 = vrot.slane %v5175, 4
  %v5177 = vmax.f32 %v5175, %v5176
  %v5178 = vrot.slane %v5177, 2
  %v5179 = vmax.f32 %v5177, %v5178
  %v5180 = vrot.slane %v5179, 1
  %v5181 = vmax.f32 %v5179, %v5180
  %v5182 = vsel %vm45, %v3317, -inf
  %v5183 = vrot.slane %v5182, 4
  %v5184 = vmax.f32 %v5182, %v5183
  %v5185 = vrot.slane %v5184, 2
  %v5186 = vmax.f32 %v5184, %v5185
  %v5187 = vrot.slane %v5186, 1
  %v5188 = vmax.f32 %v5186, %v5187
  %v5189 = vsel %vm45, %v3325, -inf
  %v5190 = vrot.slane %v5189, 4
  %v5191 = vmax.f32 %v5189, %v5190
  %v5192 = vrot.slane %v5191, 2
  %v5193 = vmax.f32 %v5191, %v5192
  %v5194 = vrot.slane %v5193, 1
  %v5195 = vmax.f32 %v5193, %v5194
  %v5196 = vsel %vm45, %v3324, -inf
  %v5197 = vrot.slane %v5196, 4
  %v5198 = vmax.f32 %v5196, %v5197
  %v5199 = vrot.slane %v5198, 2
  %v5200 = vmax.f32 %v5198, %v5199
  %v5201 = vrot.slane %v5200, 1
  %v5202 = vmax.f32 %v5200, %v5201
  %v5203 = vsel %vm45, %v3326, -inf
  %v5204 = vrot.slane %v5203, 4
  %v5205 = vmax.f32 %v5203, %v5204
  %v5206 = vrot.slane %v5205, 2
  %v5207 = vmax.f32 %v5205, %v5206
  %v5208 = vrot.slane %v5207, 1
  %v5209 = vmax.f32 %v5207, %v5208
  %v5210 = vsel %vm45, %v3334, -inf
  %v5211 = vrot.slane %v5210, 4
  %v5212 = vmax.f32 %v5210, %v5211
  %v5213 = vrot.slane %v5212, 2
  %v5214 = vmax.f32 %v5212, %v5213
  %v5215 = vrot.slane %v5214, 1
  %v5216 = vmax.f32 %v5214, %v5215
  %v5217 = vsel %vm45, %v3342, -inf
  %v5218 = vrot.slane %v5217, 4
  %v5219 = vmax.f32 %v5217, %v5218
  %v5220 = vrot.slane %v5219, 2
  %v5221 = vmax.f32 %v5219, %v5220
  %v5222 = vrot.slane %v5221, 1
  %v5223 = vmax.f32 %v5221, %v5222
  %v5224 = vsel %vm45, %v3341, -inf
  %v5225 = vrot.slane %v5224, 4
  %v5226 = vmax.f32 %v5224, %v5225
  %v5227 = vrot.slane %v5226, 2
  %v5228 = vmax.f32 %v5226, %v5227
  %v5229 = vrot.slane %v5228, 1
  %v5230 = vmax.f32 %v5228, %v5229
  %v5231 = vsel %vm45, %v3343, -inf
  %v5232 = vrot.slane %v5231, 4
  %v5233 = vmax.f32 %v5231, %v5232
  %v5234 = vrot.slane %v5233, 2
  %v5235 = vmax.f32 %v5233, %v5234
  %v5236 = vrot.slane %v5235, 1
  %v5237 = vmax.f32 %v5235, %v5236
  %v5238 = vsel %vm45, %v3351, -inf
  %v5239 = vrot.slane %v5238, 4
  %v5240 = vmax.f32 %v5238, %v5239
  %v5241 = vrot.slane %v5240, 2
  %v5242 = vmax.f32 %v5240, %v5241
  %v5243 = vrot.slane %v5242, 1
  %v5244 = vmax.f32 %v5242, %v5243
  %v5245 = vsel %vm45, %v3359, -inf
  %v5246 = vrot.slane %v5245, 4
  %v5247 = vmax.f32 %v5245, %v5246
  %v5248 = vrot.slane %v5247, 2
  %v5249 = vmax.f32 %v5247, %v5248
  %v5250 = vrot.slane %v5249, 1
  %v5251 = vmax.f32 %v5249, %v5250
  %v5252 = vsel %vm45, %v3358, -inf
  %v5253 = vrot.slane %v5252, 4
  %v5254 = vmax.f32 %v5252, %v5253
  %v5255 = vrot.slane %v5254, 2
  %v5256 = vmax.f32 %v5254, %v5255
  %v5257 = vrot.slane %v5256, 1
  %v5258 = vmax.f32 %v5256, %v5257
  %v5259 = vsel %vm45, %v3360, -inf
  %v5260 = vrot.slane %v5259, 4
  %v5261 = vmax.f32 %v5259, %v5260
  %v5262 = vrot.slane %v5261, 2
  %v5263 = vmax.f32 %v5261, %v5262
  %v5264 = vrot.slane %v5263, 1
  %v5265 = vmax.f32 %v5263, %v5264
  %v5266 = vsel %vm45, %v3368, -inf
  %v5267 = vrot.slane %v5266, 4
  %v5268 = vmax.f32 %v5266, %v5267
  %v5269 = vrot.slane %v5268, 2
  %v5270 = vmax.f32 %v5268, %v5269
  %v5271 = vrot.slane %v5270, 1
  %v5272 = vmax.f32 %v5270, %v5271
  %v5273 = vsel %vm45, %v3376, -inf
  %v5274 = vrot.slane %v5273, 4
  %v5275 = vmax.f32 %v5273, %v5274
  %v5276 = vrot.slane %v5275, 2
  %v5277 = vmax.f32 %v5275, %v5276
  %v5278 = vrot.slane %v5277, 1
  %v5279 = vmax.f32 %v5277, %v5278
  %v5280 = vsel %vm45, %v3375, -inf
  %v5281 = vrot.slane %v5280, 4
  %v5282 = vmax.f32 %v5280, %v5281
  %v5283 = vrot.slane %v5282, 2
  %v5284 = vmax.f32 %v5282, %v5283
  %v5285 = vrot.slane %v5284, 1
  %v5286 = vmax.f32 %v5284, %v5285
  %v5287 = vsel %vm45, %v3377, -inf
  %v5288 = vrot.slane %v5287, 4
  %v5289 = vmax.f32 %v5287, %v5288
  %v5290 = vrot.slane %v5289, 2
  %v5291 = vmax.f32 %v5289, %v5290
  %v5292 = vrot.slane %v5291, 1
  %v5293 = vmax.f32 %v5291, %v5292
  %v5294 = vsel %vm45, %v3385, -inf
  %v5295 = vrot.slane %v5294, 4
  %v5296 = vmax.f32 %v5294, %v5295
  %v5297 = vrot.slane %v5296, 2
  %v5298 = vmax.f32 %v5296, %v5297
  %v5299 = vrot.slane %v5298, 1
  %v5300 = vmax.f32 %v5298, %v5299
  %v5301 = vsel %vm45, %v3393, -inf
  %v5302 = vrot.slane %v5301, 4
  %v5303 = vmax.f32 %v5301, %v5302
  %v5304 = vrot.slane %v5303, 2
  %v5305 = vmax.f32 %v5303, %v5304
  %v5306 = vrot.slane %v5305, 1
  %v5307 = vmax.f32 %v5305, %v5306
  %v5308 = vsel %vm45, %v3392, -inf
  %v5309 = vrot.slane %v5308, 4
  %v5310 = vmax.f32 %v5308, %v5309
  %v5311 = vrot.slane %v5310, 2
  %v5312 = vmax.f32 %v5310, %v5311
  %v5313 = vrot.slane %v5312, 1
  %v5314 = vmax.f32 %v5312, %v5313
  %v5315 = vsel %vm45, %v3394, -inf
  %v5316 = vrot.slane %v5315, 4
  %v5317 = vmax.f32 %v5315, %v5316
  %v5318 = vrot.slane %v5317, 2
  %v5319 = vmax.f32 %v5317, %v5318
  %v5320 = vrot.slane %v5319, 1
  %v5321 = vmax.f32 %v5319, %v5320
  %v5322 = vsel %vm45, %v3402, -inf
  %v5323 = vrot.slane %v5322, 4
  %v5324 = vmax.f32 %v5322, %v5323
  %v5325 = vrot.slane %v5324, 2
  %v5326 = vmax.f32 %v5324, %v5325
  %v5327 = vrot.slane %v5326, 1
  %v5328 = vmax.f32 %v5326, %v5327
  %v5329 = vsel %vm45, %v3410, -inf
  %v5330 = vrot.slane %v5329, 4
  %v5331 = vmax.f32 %v5329, %v5330
  %v5332 = vrot.slane %v5331, 2
  %v5333 = vmax.f32 %v5331, %v5332
  %v5334 = vrot.slane %v5333, 1
  %v5335 = vmax.f32 %v5333, %v5334
  %v5336 = vsel %vm45, %v3409, -inf
  %v5337 = vrot.slane %v5336, 4
  %v5338 = vmax.f32 %v5336, %v5337
  %v5339 = vrot.slane %v5338, 2
  %v5340 = vmax.f32 %v5338, %v5339
  %v5341 = vrot.slane %v5340, 1
  %v5342 = vmax.f32 %v5340, %v5341
  %v5343 = vsel %vm45, %v3411, -inf
  %v5344 = vrot.slane %v5343, 4
  %v5345 = vmax.f32 %v5343, %v5344
  %v5346 = vrot.slane %v5345, 2
  %v5347 = vmax.f32 %v5345, %v5346
  %v5348 = vrot.slane %v5347, 1
  %v5349 = vmax.f32 %v5347, %v5348
  %v5350 = vsel %vm45, %v3419, -inf
  %v5351 = vrot.slane %v5350, 4
  %v5352 = vmax.f32 %v5350, %v5351
  %v5353 = vrot.slane %v5352, 2
  %v5354 = vmax.f32 %v5352, %v5353
  %v5355 = vrot.slane %v5354, 1
  %v5356 = vmax.f32 %v5354, %v5355
  %v5357 = vsel %vm45, %v3427, -inf
  %v5358 = vrot.slane %v5357, 4
  %v5359 = vmax.f32 %v5357, %v5358
  %v5360 = vrot.slane %v5359, 2
  %v5361 = vmax.f32 %v5359, %v5360
  %v5362 = vrot.slane %v5361, 1
  %v5363 = vmax.f32 %v5361, %v5362
  %v5364 = vsel %vm45, %v3426, -inf
  %v5365 = vrot.slane %v5364, 4
  %v5366 = vmax.f32 %v5364, %v5365
  %v5367 = vrot.slane %v5366, 2
  %v5368 = vmax.f32 %v5366, %v5367
  %v5369 = vrot.slane %v5368, 1
  %v5370 = vmax.f32 %v5368, %v5369
  %v5371 = vsel %vm45, %v3428, -inf
  %v5372 = vrot.slane %v5371, 4
  %v5373 = vmax.f32 %v5371, %v5372
  %v5374 = vrot.slane %v5373, 2
  %v5375 = vmax.f32 %v5373, %v5374
  %v5376 = vrot.slane %v5375, 1
  %v5377 = vmax.f32 %v5375, %v5376
  %v5378 = vsel %vm45, %v3436, -inf
  %v5379 = vrot.slane %v5378, 4
  %v5380 = vmax.f32 %v5378, %v5379
  %v5381 = vrot.slane %v5380, 2
  %v5382 = vmax.f32 %v5380, %v5381
  %v5383 = vrot.slane %v5382, 1
  %v5384 = vmax.f32 %v5382, %v5383
  %v5385 = vsel %vm45, %v3444, -inf
  %v5386 = vrot.slane %v5385, 4
  %v5387 = vmax.f32 %v5385, %v5386
  %v5388 = vrot.slane %v5387, 2
  %v5389 = vmax.f32 %v5387, %v5388
  %v5390 = vrot.slane %v5389, 1
  %v5391 = vmax.f32 %v5389, %v5390
  %v5392 = vsel %vm45, %v3443, -inf
  %v5393 = vrot.slane %v5392, 4
  %v5394 = vmax.f32 %v5392, %v5393
  %v5395 = vrot.slane %v5394, 2
  %v5396 = vmax.f32 %v5394, %v5395
  %v5397 = vrot.slane %v5396, 1
  %v5398 = vmax.f32 %v5396, %v5397
  %v5399 = vsel %vm45, %v3445, -inf
  %v5400 = vrot.slane %v5399, 4
  %v5401 = vmax.f32 %v5399, %v5400
  %v5402 = vrot.slane %v5401, 2
  %v5403 = vmax.f32 %v5401, %v5402
  %v5404 = vrot.slane %v5403, 1
  %v5405 = vmax.f32 %v5403, %v5404
  %v5406 = vsel %vm45, %v3453, -inf
  %v5407 = vrot.slane %v5406, 4
  %v5408 = vmax.f32 %v5406, %v5407
  %v5409 = vrot.slane %v5408, 2
  %v5410 = vmax.f32 %v5408, %v5409
  %v5411 = vrot.slane %v5410, 1
  %v5412 = vmax.f32 %v5410, %v5411
  %v5413 = vsel %vm45, %v3461, -inf
  %v5414 = vrot.slane %v5413, 4
  %v5415 = vmax.f32 %v5413, %v5414
  %v5416 = vrot.slane %v5415, 2
  %v5417 = vmax.f32 %v5415, %v5416
  %v5418 = vrot.slane %v5417, 1
  %v5419 = vmax.f32 %v5417, %v5418
  %v5420 = vsel %vm45, %v3460, -inf
  %v5421 = vrot.slane %v5420, 4
  %v5422 = vmax.f32 %v5420, %v5421
  %v5423 = vrot.slane %v5422, 2
  %v5424 = vmax.f32 %v5422, %v5423
  %v5425 = vrot.slane %v5424, 1
  %v5426 = vmax.f32 %v5424, %v5425
  %v5427 = vsel %vm45, %v3462, -inf
  %v5428 = vrot.slane %v5427, 4
  %v5429 = vmax.f32 %v5427, %v5428
  %v5430 = vrot.slane %v5429, 2
  %v5431 = vmax.f32 %v5429, %v5430
  %v5432 = vrot.slane %v5431, 1
  %v5433 = vmax.f32 %v5431, %v5432
  %v5434 = vsel %vm45, %v3470, -inf
  %v5435 = vrot.slane %v5434, 4
  %v5436 = vmax.f32 %v5434, %v5435
  %v5437 = vrot.slane %v5436, 2
  %v5438 = vmax.f32 %v5436, %v5437
  %v5439 = vrot.slane %v5438, 1
  %v5440 = vmax.f32 %v5438, %v5439
  %v5441 = vsel %vm45, %v3478, -inf
  %v5442 = vrot.slane %v5441, 4
  %v5443 = vmax.f32 %v5441, %v5442
  %v5444 = vrot.slane %v5443, 2
  %v5445 = vmax.f32 %v5443, %v5444
  %v5446 = vrot.slane %v5445, 1
  %v5447 = vmax.f32 %v5445, %v5446
  %v5448 = vsel %vm45, %v3477, -inf
  %v5449 = vrot.slane %v5448, 4
  %v5450 = vmax.f32 %v5448, %v5449
  %v5451 = vrot.slane %v5450, 2
  %v5452 = vmax.f32 %v5450, %v5451
  %v5453 = vrot.slane %v5452, 1
  %v5454 = vmax.f32 %v5452, %v5453
  %v5455 = vsel %vm45, %v3479, -inf
  %v5456 = vrot.slane %v5455, 4
  %v5457 = vmax.f32 %v5455, %v5456
  %v5458 = vrot.slane %v5457, 2
  %v5459 = vmax.f32 %v5457, %v5458
  %v5460 = vrot.slane %v5459, 1
  %v5461 = vmax.f32 %v5459, %v5460
  %v5462 = vsel %vm45, %v3487, -inf
  %v5463 = vrot.slane %v5462, 4
  %v5464 = vmax.f32 %v5462, %v5463
  %v5465 = vrot.slane %v5464, 2
  %v5466 = vmax.f32 %v5464, %v5465
  %v5467 = vrot.slane %v5466, 1
  %v5468 = vmax.f32 %v5466, %v5467
  %v5469 = vsel %vm45, %v3495, -inf
  %v5470 = vrot.slane %v5469, 4
  %v5471 = vmax.f32 %v5469, %v5470
  %v5472 = vrot.slane %v5471, 2
  %v5473 = vmax.f32 %v5471, %v5472
  %v5474 = vrot.slane %v5473, 1
  %v5475 = vmax.f32 %v5473, %v5474
  %v5476 = vsel %vm45, %v3494, -inf
  %v5477 = vrot.slane %v5476, 4
  %v5478 = vmax.f32 %v5476, %v5477
  %v5479 = vrot.slane %v5478, 2
  %v5480 = vmax.f32 %v5478, %v5479
  %v5481 = vrot.slane %v5480, 1
  %v5482 = vmax.f32 %v5480, %v5481
  %v5483 = vsel %vm45, %v3496, -inf
  %v5484 = vrot.slane %v5483, 4
  %v5485 = vmax.f32 %v5483, %v5484
  %v5486 = vrot.slane %v5485, 2
  %v5487 = vmax.f32 %v5485, %v5486
  %v5488 = vrot.slane %v5487, 1
  %v5489 = vmax.f32 %v5487, %v5488
  %v5490 = vsel %vm45, %v3504, -inf
  %v5491 = vrot.slane %v5490, 4
  %v5492 = vmax.f32 %v5490, %v5491
  %v5493 = vrot.slane %v5492, 2
  %v5494 = vmax.f32 %v5492, %v5493
  %v5495 = vrot.slane %v5494, 1
  %v5496 = vmax.f32 %v5494, %v5495
  %v5497 = vsel %vm45, %v3512, -inf
  %v5498 = vrot.slane %v5497, 4
  %v5499 = vmax.f32 %v5497, %v5498
  %v5500 = vrot.slane %v5499, 2
  %v5501 = vmax.f32 %v5499, %v5500
  %v5502 = vrot.slane %v5501, 1
  %v5503 = vmax.f32 %v5501, %v5502
  %v5504 = vsel %vm45, %v3511, -inf
  %v5505 = vrot.slane %v5504, 4
  %v5506 = vmax.f32 %v5504, %v5505
  %v5507 = vrot.slane %v5506, 2
  %v5508 = vmax.f32 %v5506, %v5507
  %v5509 = vrot.slane %v5508, 1
  %v5510 = vmax.f32 %v5508, %v5509
  %v5511 = vsel %vm45, %v3513, -inf
  %v5512 = vrot.slane %v5511, 4
  %v5513 = vmax.f32 %v5511, %v5512
  %v5514 = vrot.slane %v5513, 2
  %v5515 = vmax.f32 %v5513, %v5514
  %v5516 = vrot.slane %v5515, 1
  %v5517 = vmax.f32 %v5515, %v5516
  %v5518 = vsel %vm45, %v3521, -inf
  %v5519 = vrot.slane %v5518, 4
  %v5520 = vmax.f32 %v5518, %v5519
  %v5521 = vrot.slane %v5520, 2
  %v5522 = vmax.f32 %v5520, %v5521
  %v5523 = vrot.slane %v5522, 1
  %v5524 = vmax.f32 %v5522, %v5523
  %v5525 = vsel %vm45, %v3529, -inf
  %v5526 = vrot.slane %v5525, 4
  %v5527 = vmax.f32 %v5525, %v5526
  %v5528 = vrot.slane %v5527, 2
  %v5529 = vmax.f32 %v5527, %v5528
  %v5530 = vrot.slane %v5529, 1
  %v5531 = vmax.f32 %v5529, %v5530
  %v5532 = vsel %vm45, %v3528, -inf
  %v5533 = vrot.slane %v5532, 4
  %v5534 = vmax.f32 %v5532, %v5533
  %v5535 = vrot.slane %v5534, 2
  %v5536 = vmax.f32 %v5534, %v5535
  %v5537 = vrot.slane %v5536, 1
  %v5538 = vmax.f32 %v5536, %v5537
  %v5539 = vsel %vm45, %v3530, -inf
  %v5540 = vrot.slane %v5539, 4
  %v5541 = vmax.f32 %v5539, %v5540
  %v5542 = vrot.slane %v5541, 2
  %v5543 = vmax.f32 %v5541, %v5542
  %v5544 = vrot.slane %v5543, 1
  %v5545 = vmax.f32 %v5543, %v5544
  %v5546 = vsel %vm45, %v3538, -inf
  %v5547 = vrot.slane %v5546, 4
  %v5548 = vmax.f32 %v5546, %v5547
  %v5549 = vrot.slane %v5548, 2
  %v5550 = vmax.f32 %v5548, %v5549
  %v5551 = vrot.slane %v5550, 1
  %v5552 = vmax.f32 %v5550, %v5551
  %v5553 = vsel %vm45, %v3546, -inf
  %v5554 = vrot.slane %v5553, 4
  %v5555 = vmax.f32 %v5553, %v5554
  %v5556 = vrot.slane %v5555, 2
  %v5557 = vmax.f32 %v5555, %v5556
  %v5558 = vrot.slane %v5557, 1
  %v5559 = vmax.f32 %v5557, %v5558
  %v5560 = vsel %vm45, %v3545, -inf
  %v5561 = vrot.slane %v5560, 4
  %v5562 = vmax.f32 %v5560, %v5561
  %v5563 = vrot.slane %v5562, 2
  %v5564 = vmax.f32 %v5562, %v5563
  %v5565 = vrot.slane %v5564, 1
  %v5566 = vmax.f32 %v5564, %v5565
  %v5567 = vsel %vm45, %v3547, -inf
  %v5568 = vrot.slane %v5567, 4
  %v5569 = vmax.f32 %v5567, %v5568
  %v5570 = vrot.slane %v5569, 2
  %v5571 = vmax.f32 %v5569, %v5570
  %v5572 = vrot.slane %v5571, 1
  %v5573 = vmax.f32 %v5571, %v5572
  %v5574 = vsel %vm45, %v3555, -inf
  %v5575 = vrot.slane %v5574, 4
  %v5576 = vmax.f32 %v5574, %v5575
  %v5577 = vrot.slane %v5576, 2
  %v5578 = vmax.f32 %v5576, %v5577
  %v5579 = vrot.slane %v5578, 1
  %v5580 = vmax.f32 %v5578, %v5579
  %v5581 = vsel %vm45, %v3563, -inf
  %v5582 = vrot.slane %v5581, 4
  %v5583 = vmax.f32 %v5581, %v5582
  %v5584 = vrot.slane %v5583, 2
  %v5585 = vmax.f32 %v5583, %v5584
  %v5586 = vrot.slane %v5585, 1
  %v5587 = vmax.f32 %v5585, %v5586
  %v5588 = vsel %vm45, %v3562, -inf
  %v5589 = vrot.slane %v5588, 4
  %v5590 = vmax.f32 %v5588, %v5589
  %v5591 = vrot.slane %v5590, 2
  %v5592 = vmax.f32 %v5590, %v5591
  %v5593 = vrot.slane %v5592, 1
  %v5594 = vmax.f32 %v5592, %v5593
  %v5595 = vsel %vm45, %v3564, -inf
  %v5596 = vrot.slane %v5595, 4
  %v5597 = vmax.f32 %v5595, %v5596
  %v5598 = vrot.slane %v5597, 2
  %v5599 = vmax.f32 %v5597, %v5598
  %v5600 = vrot.slane %v5599, 1
  %v5601 = vmax.f32 %v5599, %v5600
  %v5602 = vsel %vm45, %v3572, -inf
  %v5603 = vrot.slane %v5602, 4
  %v5604 = vmax.f32 %v5602, %v5603
  %v5605 = vrot.slane %v5604, 2
  %v5606 = vmax.f32 %v5604, %v5605
  %v5607 = vrot.slane %v5606, 1
  %v5608 = vmax.f32 %v5606, %v5607
  %v5609 = vsel %vm45, %v3580, -inf
  %v5610 = vrot.slane %v5609, 4
  %v5611 = vmax.f32 %v5609, %v5610
  %v5612 = vrot.slane %v5611, 2
  %v5613 = vmax.f32 %v5611, %v5612
  %v5614 = vrot.slane %v5613, 1
  %v5615 = vmax.f32 %v5613, %v5614
  %v5616 = vsel %vm45, %v3579, -inf
  %v5617 = vrot.slane %v5616, 4
  %v5618 = vmax.f32 %v5616, %v5617
  %v5619 = vrot.slane %v5618, 2
  %v5620 = vmax.f32 %v5618, %v5619
  %v5621 = vrot.slane %v5620, 1
  %v5622 = vmax.f32 %v5620, %v5621
  %v5623 = vsel %vm45, %v3581, -inf
  %v5624 = vrot.slane %v5623, 4
  %v5625 = vmax.f32 %v5623, %v5624
  %v5626 = vrot.slane %v5625, 2
  %v5627 = vmax.f32 %v5625, %v5626
  %v5628 = vrot.slane %v5627, 1
  %v5629 = vmax.f32 %v5627, %v5628
  %v5630 = vmax.f32 %v3844, %v3900
  %v5631 = vmax.f32 %v3851, %v3907
  %v5632 = vmax.f32 %v3858, %v3914
  %v5633 = vmax.f32 %v3865, %v3921
  %v5634 = vmax.f32 %v3872, %v3928
  %v5635 = vmax.f32 %v3879, %v3935
  %v5636 = vmax.f32 %v3886, %v3942
  %v5637 = vmax.f32 %v3893, %v3949
  %v5638 = vmax.f32 %v3956, %v4012
  %v5639 = vmax.f32 %v3963, %v4019
  %v5640 = vmax.f32 %v3970, %v4026
  %v5641 = vmax.f32 %v3977, %v4033
  %v5642 = vmax.f32 %v3984, %v4040
  %v5643 = vmax.f32 %v3991, %v4047
  %v5644 = vmax.f32 %v3998, %v4054
  %v5645 = vmax.f32 %v4005, %v4061
  %v5646 = vmax.f32 %v4068, %v4124
  %v5647 = vmax.f32 %v4075, %v4131
  %v5648 = vmax.f32 %v4082, %v4138
  %v5649 = vmax.f32 %v4089, %v4145
  %v5650 = vmax.f32 %v4096, %v4152
  %v5651 = vmax.f32 %v4103, %v4159
  %v5652 = vmax.f32 %v4110, %v4166
  %v5653 = vmax.f32 %v4117, %v4173
  %v5654 = vmax.f32 %v4180, %v4236
  %v5655 = vmax.f32 %v4187, %v4243
  %v5656 = vmax.f32 %v4194, %v4250
  %v5657 = vmax.f32 %v4201, %v4257
  %v5658 = vmax.f32 %v4208, %v4264
  %v5659 = vmax.f32 %v4215, %v4271
  %v5660 = vmax.f32 %v4222, %v4278
  %v5661 = vmax.f32 %v4229, %v4285
  %v5662 = vmax.f32 %v4292, %v4348
  %v5663 = vmax.f32 %v4299, %v4355
  %v5664 = vmax.f32 %v4306, %v4362
  %v5665 = vmax.f32 %v4313, %v4369
  %v5666 = vmax.f32 %v4320, %v4376
  %v5667 = vmax.f32 %v4327, %v4383
  %v5668 = vmax.f32 %v4334, %v4390
  %v5669 = vmax.f32 %v4341, %v4397
  %v5670 = vmax.f32 %v4404, %v4460
  %v5671 = vmax.f32 %v4411, %v4467
  %v5672 = vmax.f32 %v4418, %v4474
  %v5673 = vmax.f32 %v4425, %v4481
  %v5674 = vmax.f32 %v4432, %v4488
  %v5675 = vmax.f32 %v4439, %v4495
  %v5676 = vmax.f32 %v4446, %v4502
  %v5677 = vmax.f32 %v4453, %v4509
  %v5678 = vmax.f32 %v4516, %v4572
  %v5679 = vmax.f32 %v4523, %v4579
  %v5680 = vmax.f32 %v4530, %v4586
  %v5681 = vmax.f32 %v4537, %v4593
  %v5682 = vmax.f32 %v4544, %v4600
  %v5683 = vmax.f32 %v4551, %v4607
  %v5684 = vmax.f32 %v4558, %v4614
  %v5685 = vmax.f32 %v4565, %v4621
  %v5686 = vmax.f32 %v4628, %v4684
  %v5687 = vmax.f32 %v4635, %v4691
  %v5688 = vmax.f32 %v4642, %v4698
  %v5689 = vmax.f32 %v4649, %v4705
  %v5690 = vmax.f32 %v4656, %v4712
  %v5691 = vmax.f32 %v4663, %v4719
  %v5692 = vmax.f32 %v4670, %v4726
  %v5693 = vmax.f32 %v4677, %v4733
  %v5694 = vmax.f32 %v4740, %v4796
  %v5695 = vmax.f32 %v4747, %v4803
  %v5696 = vmax.f32 %v4754, %v4810
  %v5697 = vmax.f32 %v4761, %v4817
  %v5698 = vmax.f32 %v4768, %v4824
  %v5699 = vmax.f32 %v4775, %v4831
  %v5700 = vmax.f32 %v4782, %v4838
  %v5701 = vmax.f32 %v4789, %v4845
  %v5702 = vmax.f32 %v4852, %v4908
  %v5703 = vmax.f32 %v4859, %v4915
  %v5704 = vmax.f32 %v4866, %v4922
  %v5705 = vmax.f32 %v4873, %v4929
  %v5706 = vmax.f32 %v4880, %v4936
  %v5707 = vmax.f32 %v4887, %v4943
  %v5708 = vmax.f32 %v4894, %v4950
  %v5709 = vmax.f32 %v4901, %v4957
  %v5710 = vmax.f32 %v4964, %v5020
  %v5711 = vmax.f32 %v4971, %v5027
  %v5712 = vmax.f32 %v4978, %v5034
  %v5713 = vmax.f32 %v4985, %v5041
  %v5714 = vmax.f32 %v4992, %v5048
  %v5715 = vmax.f32 %v4999, %v5055
  %v5716 = vmax.f32 %v5006, %v5062
  %v5717 = vmax.f32 %v5013, %v5069
  %v5718 = vmax.f32 %v5076, %v5132
  %v5719 = vmax.f32 %v5083, %v5139
  %v5720 = vmax.f32 %v5090, %v5146
  %v5721 = vmax.f32 %v5097, %v5153
  %v5722 = vmax.f32 %v5104, %v5160
  %v5723 = vmax.f32 %v5111, %v5167
  %v5724 = vmax.f32 %v5118, %v5174
  %v5725 = vmax.f32 %v5125, %v5181
  %v5726 = vmax.f32 %v5188, %v5244
  %v5727 = vmax.f32 %v5195, %v5251
  %v5728 = vmax.f32 %v5202, %v5258
  %v5729 = vmax.f32 %v5209, %v5265
  %v5730 = vmax.f32 %v5216, %v5272
  %v5731 = vmax.f32 %v5223, %v5279
  %v5732 = vmax.f32 %v5230, %v5286
  %v5733 = vmax.f32 %v5237, %v5293
  %v5734 = vmax.f32 %v5300, %v5356
  %v5735 = vmax.f32 %v5307, %v5363
  %v5736 = vmax.f32 %v5314, %v5370
  %v5737 = vmax.f32 %v5321, %v5377
  %v5738 = vmax.f32 %v5328, %v5384
  %v5739 = vmax.f32 %v5335, %v5391
  %v5740 = vmax.f32 %v5342, %v5398
  %v5741 = vmax.f32 %v5349, %v5405
  %v5742 = vmax.f32 %v5412, %v5468
  %v5743 = vmax.f32 %v5419, %v5475
  %v5744 = vmax.f32 %v5426, %v5482
  %v5745 = vmax.f32 %v5433, %v5489
  %v5746 = vmax.f32 %v5440, %v5496
  %v5747 = vmax.f32 %v5447, %v5503
  %v5748 = vmax.f32 %v5454, %v5510
  %v5749 = vmax.f32 %v5461, %v5517
  %v5750 = vmax.f32 %v5524, %v5580
  %v5751 = vmax.f32 %v5531, %v5587
  %v5752 = vmax.f32 %v5538, %v5594
  %v5753 = vmax.f32 %v5545, %v5601
  %v5754 = vmax.f32 %v5552, %v5608
  %v5755 = vmax.f32 %v5559, %v5615
  %v5756 = vmax.f32 %v5566, %v5622
  %v5757 = vmax.f32 %v5573, %v5629
  %5758 = vst.msk [vmem:[#allocation3] sm:$0xff] %vm42, 0.0
  %5759 = vst.msk [vmem:[#allocation3 + $0x8] sm:$0x3] %vm45, 0.0
  %5760 = vst.msk [vmem:[#allocation3 + $0x10] sm:$0xff] %vm42, 0.0
  %5761 = vst.msk [vmem:[#allocation3 + $0x18] sm:$0x3] %vm45, 0.0
  %5762 = vst.msk [vmem:[#allocation3 + $0x20] sm:$0xff] %vm42, 0.0
  %5763 = vst.msk [vmem:[#allocation3 + $0x28] sm:$0x3] %vm45, 0.0
  %5764 = vst.msk [vmem:[#allocation3 + $0x30] sm:$0xff] %vm42, 0.0
  %5765 = vst.msk [vmem:[#allocation3 + $0x38] sm:$0x3] %vm45, 0.0
  %5766 = vst.msk [vmem:[#allocation3 + $0x40] sm:$0xff] %vm42, 0.0
  %5767 = vst.msk [vmem:[#allocation3 + $0x48] sm:$0x3] %vm45, 0.0
  %5768 = vst.msk [vmem:[#allocation3 + $0x50] sm:$0xff] %vm42, 0.0
  %5769 = vst.msk [vmem:[#allocation3 + $0x58] sm:$0x3] %vm45, 0.0
  %5770 = vst.msk [vmem:[#allocation3 + $0x60] sm:$0xff] %vm42, 0.0
  %5771 = vst.msk [vmem:[#allocation3 + $0x68] sm:$0x3] %vm45, 0.0
  %5772 = vst.msk [vmem:[#allocation3 + $0x70] sm:$0xff] %vm42, 0.0
  %5773 = vst.msk [vmem:[#allocation3 + $0x78] sm:$0x3] %vm45, 0.0
  %5774 = vst.msk [vmem:[#allocation3 + $0x80] sm:$0xff] %vm42, 0.0
  %5775 = vst.msk [vmem:[#allocation3 + $0x88] sm:$0x3] %vm45, 0.0
  %5776 = vst.msk [vmem:[#allocation3 + $0x90] sm:$0xff] %vm42, 0.0
  %5777 = vst.msk [vmem:[#allocation3 + $0x98] sm:$0x3] %vm45, 0.0
  %5778 = vst.msk [vmem:[#allocation3 + $0xa0] sm:$0xff] %vm42, 0.0
  %5779 = vst.msk [vmem:[#allocation3 + $0xa8] sm:$0x3] %vm45, 0.0
  %5780 = vst.msk [vmem:[#allocation3 + $0xb0] sm:$0xff] %vm42, 0.0
  %5781 = vst.msk [vmem:[#allocation3 + $0xb8] sm:$0x3] %vm45, 0.0
  %5782 = vst.msk [vmem:[#allocation3 + $0xc0] sm:$0xff] %vm42, 0.0
  %5783 = vst.msk [vmem:[#allocation3 + $0xc8] sm:$0x3] %vm45, 0.0
  %5784 = vst.msk [vmem:[#allocation3 + $0xd0] sm:$0xff] %vm42, 0.0
  %5785 = vst.msk [vmem:[#allocation3 + $0xd8] sm:$0x3] %vm45, 0.0
  %5786 = vst.msk [vmem:[#allocation3 + $0xe0] sm:$0xff] %vm42, 0.0
  %5787 = vst.msk [vmem:[#allocation3 + $0xe8] sm:$0x3] %vm45, 0.0
  %5788 = vst.msk [vmem:[#allocation3 + $0xf0] sm:$0xff] %vm42, 0.0
  %5789 = vst.msk [vmem:[#allocation3 + $0xf8] sm:$0x3] %vm45, 0.0
  %5790 = vst.msk [vmem:[#allocation3 + $0x100] sm:$0xff] %vm42, 0.0
  %5791 = vst.msk [vmem:[#allocation3 + $0x108] sm:$0x3] %vm45, 0.0
  %5792 = vst.msk [vmem:[#allocation3 + $0x110] sm:$0xff] %vm42, 0.0
  %5793 = vst.msk [vmem:[#allocation3 + $0x118] sm:$0x3] %vm45, 0.0
  %5794 = vst.msk [vmem:[#allocation3 + $0x120] sm:$0xff] %vm42, 0.0
  %5795 = vst.msk [vmem:[#allocation3 + $0x128] sm:$0x3] %vm45, 0.0
  %5796 = vst.msk [vmem:[#allocation3 + $0x130] sm:$0xff] %vm42, 0.0
  %5797 = vst.msk [vmem:[#allocation3 + $0x138] sm:$0x3] %vm45, 0.0
  %vm5926 = vcmask 1041409
  %v5927 = vsel %vm5926, %v5631, %v5630
  %vm5928 = vcmask 1042434
  %v5929 = vsel %vm5928, %v5632, %v5927
  %vm5930 = vcmask 1043459
  %v5931 = vsel %vm5930, %v5633, %v5929
  %vm5932 = vcmask 1044484
  %v5933 = vsel %vm5932, %v5634, %v5931
  %vm5934 = vcmask 1045509
  %v5935 = vsel %vm5934, %v5635, %v5933
  %vm5936 = vcmask 1046534
  %v5937 = vsel %vm5936, %v5636, %v5935
  %vm5938 = vcmask 1047559
  %v5939 = vsel %vm5938, %v5637, %v5937
  %v5940 = vsel %vm5926, %v5639, %v5638
  %v5941 = vsel %vm5928, %v5640, %v5940
  %v5942 = vsel %vm5930, %v5641, %v5941
  %v5943 = vsel %vm5932, %v5642, %v5942
  %v5944 = vsel %vm5934, %v5643, %v5943
  %v5945 = vsel %vm5936, %v5644, %v5944
  %v5946 = vsel %vm5938, %v5645, %v5945
  %v5947 = vsel %vm5926, %v5647, %v5646
  %v5948 = vsel %vm5928, %v5648, %v5947
  %v5949 = vsel %vm5930, %v5649, %v5948
  %v5950 = vsel %vm5932, %v5650, %v5949
  %v5951 = vsel %vm5934, %v5651, %v5950
  %v5952 = vsel %vm5936, %v5652, %v5951
  %v5953 = vsel %vm5938, %v5653, %v5952
  %v5954 = vsel %vm5926, %v5655, %v5654
  %v5955 = vsel %vm5928, %v5656, %v5954
  %v5956 = vsel %vm5930, %v5657, %v5955
  %v5957 = vsel %vm5932, %v5658, %v5956
  %v5958 = vsel %vm5934, %v5659, %v5957
  %v5959 = vsel %vm5936, %v5660, %v5958
  %v5960 = vsel %vm5938, %v5661, %v5959
  %v5961 = vsel %vm5926, %v5663, %v5662
  %v5962 = vsel %vm5928, %v5664, %v5961
  %v5963 = vsel %vm5930, %v5665, %v5962
  %v5964 = vsel %vm5932, %v5666, %v5963
  %v5965 = vsel %vm5934, %v5667, %v5964
  %v5966 = vsel %vm5936, %v5668, %v5965
  %v5967 = vsel %vm5938, %v5669, %v5966
  %v5968 = vsel %vm5926, %v5671, %v5670
  %v5969 = vsel %vm5928, %v5672, %v5968
  %v5970 = vsel %vm5930, %v5673, %v5969
  %v5971 = vsel %vm5932, %v5674, %v5970
  %v5972 = vsel %vm5934, %v5675, %v5971
  %v5973 = vsel %vm5936, %v5676, %v5972
  %v5974 = vsel %vm5938, %v5677, %v5973
  %v5975 = vsel %vm5926, %v5679, %v5678
  %v5976 = vsel %vm5928, %v5680, %v5975
  %v5977 = vsel %vm5930, %v5681, %v5976
  %v5978 = vsel %vm5932, %v5682, %v5977
  %v5979 = vsel %vm5934, %v5683, %v5978
  %v5980 = vsel %vm5936, %v5684, %v5979
  %v5981 = vsel %vm5938, %v5685, %v5980
  %v5982 = vsel %vm5926, %v5687, %v5686
  %v5983 = vsel %vm5928, %v5688, %v5982
  %v5984 = vsel %vm5930, %v5689, %v5983
  %v5985 = vsel %vm5932, %v5690, %v5984
  %v5986 = vsel %vm5934, %v5691, %v5985
  %v5987 = vsel %vm5936, %v5692, %v5986
  %v5988 = vsel %vm5938, %v5693, %v5987
  %v5989 = vsel %vm5926, %v5695, %v5694
  %v5990 = vsel %vm5928, %v5696, %v5989
  %v5991 = vsel %vm5930, %v5697, %v5990
  %v5992 = vsel %vm5932, %v5698, %v5991
  %v5993 = vsel %vm5934, %v5699, %v5992
  %v5994 = vsel %vm5936, %v5700, %v5993
  %v5995 = vsel %vm5938, %v5701, %v5994
  %v5996 = vsel %vm5926, %v5703, %v5702
  %v5997 = vsel %vm5928, %v5704, %v5996
  %v5998 = vsel %vm5930, %v5705, %v5997
  %v5999 = vsel %vm5932, %v5706, %v5998
  %v6000 = vsel %vm5934, %v5707, %v5999
  %v6001 = vsel %vm5936, %v5708, %v6000
  %v6002 = vsel %vm5938, %v5709, %v6001
  %v6003 = vsel %vm5926, %v5711, %v5710
  %v6004 = vsel %vm5928, %v5712, %v6003
  %v6005 = vsel %vm5930, %v5713, %v6004
  %v6006 = vsel %vm5932, %v5714, %v6005
  %v6007 = vsel %vm5934, %v5715, %v6006
  %v6008 = vsel %vm5936, %v5716, %v6007
  %v6009 = vsel %vm5938, %v5717, %v6008
  %v6010 = vsel %vm5926, %v5719, %v5718
  %v6011 = vsel %vm5928, %v5720, %v6010
  %v6012 = vsel %vm5930, %v5721, %v6011
  %v6013 = vsel %vm5932, %v5722, %v6012
  %v6014 = vsel %vm5934, %v5723, %v6013
  %v6015 = vsel %vm5936, %v5724, %v6014
  %v6016 = vsel %vm5938, %v5725, %v6015
  %v6017 = vsel %vm5926, %v5727, %v5726
  %v6018 = vsel %vm5928, %v5728, %v6017
  %v6019 = vsel %vm5930, %v5729, %v6018
  %v6020 = vsel %vm5932, %v5730, %v6019
  %v6021 = vsel %vm5934, %v5731, %v6020
  %v6022 = vsel %vm5936, %v5732, %v6021
  %v6023 = vsel %vm5938, %v5733, %v6022
  %v6024 = vsel %vm5926, %v5735, %v5734
  %v6025 = vsel %vm5928, %v5736, %v6024
  %v6026 = vsel %vm5930, %v5737, %v6025
  %v6027 = vsel %vm5932, %v5738, %v6026
  %v6028 = vsel %vm5934, %v5739, %v6027
  %v6029 = vsel %vm5936, %v5740, %v6028
  %v6030 = vsel %vm5938, %v5741, %v6029
  %v6031 = vsel %vm5926, %v5743, %v5742
  %v6032 = vsel %vm5928, %v5744, %v6031
  %v6033 = vsel %vm5930, %v5745, %v6032
  %v6034 = vsel %vm5932, %v5746, %v6033
  %v6035 = vsel %vm5934, %v5747, %v6034
  %v6036 = vsel %vm5936, %v5748, %v6035
  %v6037 = vsel %vm5938, %v5749, %v6036
  %v6038 = vsel %vm5926, %v5751, %v5750
  %v6039 = vsel %vm5928, %v5752, %v6038
  %v6040 = vsel %vm5930, %v5753, %v6039
  %v6041 = vsel %vm5932, %v5754, %v6040
  %v6042 = vsel %vm5934, %v5755, %v6041
  %v6043 = vsel %vm5936, %v5756, %v6042
  %v6044 = vsel %vm5938, %v5757, %v6043
  %s6061 = scalar_lea.vmem [#allocation3], 16
  %6062 = vst.msk [vmem:[%s6061 + $0x1] sm:$0xff] %vm42, %v5939
  %6063 = vst.msk [vmem:[%s6061 + $0x11] sm:$0xff] %vm42, %v5946
  %6064 = vst.msk [vmem:[%s6061 + $0x21] sm:$0xff] %vm42, %v5953
  %6065 = vst.msk [vmem:[%s6061 + $0x31] sm:$0xff] %vm42, %v5960
  %6066 = vst.msk [vmem:[%s6061 + $0x41] sm:$0xff] %vm42, %v5967
  %6067 = vst.msk [vmem:[%s6061 + $0x51] sm:$0xff] %vm42, %v5974
  %6068 = vst.msk [vmem:[%s6061 + $0x61] sm:$0xff] %vm42, %v5981
  %6069 = vst.msk [vmem:[%s6061 + $0x71] sm:$0xff] %vm42, %v5988
  %6070 = vst.msk [vmem:[%s6061 + $0xa1] sm:$0xff] %vm42, %v5995
  %6071 = vst.msk [vmem:[%s6061 + $0xb1] sm:$0xff] %vm42, %v6002
  %6072 = vst.msk [vmem:[%s6061 + $0xc1] sm:$0xff] %vm42, %v6009
  %6073 = vst.msk [vmem:[%s6061 + $0xd1] sm:$0xff] %vm42, %v6016
  %6074 = vst.msk [vmem:[%s6061 + $0xe1] sm:$0xff] %vm42, %v6023
  %6075 = vst.msk [vmem:[%s6061 + $0xf1] sm:$0xff] %vm42, %v6030
  %6076 = vst.msk [vmem:[%s6061 + $0x101] sm:$0xff] %vm42, %v6037
  %6077 = vst.msk [vmem:[%s6061 + $0x111] sm:$0xff] %vm42, %v6044
  %v6078 = vld [vmem:[#allocation3] sm:$0xff]
  %v6079 = vld [vmem:[#allocation3 + $0x10] sm:$0xff]
  %v6080 = vld [vmem:[#allocation3 + $0x20] sm:$0xff]
  %v6081 = vld [vmem:[#allocation3 + $0x30] sm:$0xff]
  %v6082 = vld [vmem:[#allocation3 + $0x40] sm:$0xff]
  %v6083 = vld [vmem:[#allocation3 + $0x50] sm:$0xff]
  %v6084 = vld [vmem:[#allocation3 + $0x60] sm:$0xff]
  %v6085 = vld [vmem:[#allocation3 + $0x70] sm:$0xff]
  %v6086 = vld [vmem:[#allocation3 + $0x80] sm:$0xff]
  %v6087 = vld [vmem:[#allocation3 + $0x90] sm:$0xff]
  %v6088 = vld [vmem:[#allocation3 + $0xa0] sm:$0xff]
  %v6089 = vld [vmem:[#allocation3 + $0xb0] sm:$0xff]
  %v6090 = vld [vmem:[#allocation3 + $0xc0] sm:$0xff]
  %v6091 = vld [vmem:[#allocation3 + $0xd0] sm:$0xff]
  %v6092 = vld [vmem:[#allocation3 + $0xe0] sm:$0xff]
  %v6093 = vld [vmem:[#allocation3 + $0xf0] sm:$0xff]
  %v6094 = vld [vmem:[#allocation3 + $0x100] sm:$0xff]
  %v6095 = vld [vmem:[#allocation3 + $0x110] sm:$0xff]
  %v6096 = vld [vmem:[#allocation3 + $0x120] sm:$0xff]
  %v6097 = vld [vmem:[#allocation3 + $0x130] sm:$0xff]
  %v6098 = vld [vmem:[#allocation3 + $0x1] sm:$0xff]
  %v6099 = vld [vmem:[#allocation3 + $0x11] sm:$0xff]
  %v6100 = vld [vmem:[#allocation3 + $0x21] sm:$0xff]
  %v6101 = vld [vmem:[#allocation3 + $0x31] sm:$0xff]
  %v6102 = vld [vmem:[#allocation3 + $0x41] sm:$0xff]
  %v6103 = vld [vmem:[#allocation3 + $0x51] sm:$0xff]
  %v6104 = vld [vmem:[#allocation3 + $0x61] sm:$0xff]
  %v6105 = vld [vmem:[#allocation3 + $0x71] sm:$0xff]
  %v6106 = vld [vmem:[#allocation3 + $0x81] sm:$0xff]
  %v6107 = vld [vmem:[#allocation3 + $0x91] sm:$0xff]
  %v6108 = vld [vmem:[#allocation3 + $0xa1] sm:$0xff]
  %v6109 = vld [vmem:[#allocation3 + $0xb1] sm:$0xff]
  %v6110 = vld [vmem:[#allocation3 + $0xc1] sm:$0xff]
  %v6111 = vld [vmem:[#allocation3 + $0xd1] sm:$0xff]
  %v6112 = vld [vmem:[#allocation3 + $0xe1] sm:$0xff]
  %v6113 = vld [vmem:[#allocation3 + $0xf1] sm:$0xff]
  %v6114 = vld [vmem:[#allocation3 + $0x101] sm:$0xff]
  %v6115 = vld [vmem:[#allocation3 + $0x111] sm:$0xff]
  %v6116 = vld [vmem:[#allocation3 + $0x121] sm:$0xff]
  %v6117 = vld [vmem:[#allocation3 + $0x131] sm:$0xff]
  %v6118 = vld [vmem:[#allocation3 + $0x2] sm:$0xff]
  %v6119 = vld [vmem:[#allocation3 + $0x12] sm:$0xff]
  %v6120 = vld [vmem:[#allocation3 + $0x22] sm:$0xff]
  %v6121 = vld [vmem:[#allocation3 + $0x32] sm:$0xff]
  %v6122 = vld [vmem:[#allocation3 + $0x42] sm:$0xff]
  %v6123 = vld [vmem:[#allocation3 + $0x52] sm:$0xff]
  %v6124 = vld [vmem:[#allocation3 + $0x62] sm:$0xff]
  %v6125 = vld [vmem:[#allocation3 + $0x72] sm:$0xff]
  %v6126 = vld [vmem:[#allocation3 + $0x82] sm:$0xff]
  %v6127 = vld [vmem:[#allocation3 + $0x92] sm:$0xff]
  %v6128 = vld [vmem:[#allocation3 + $0xa2] sm:$0xff]
  %v6129 = vld [vmem:[#allocation3 + $0xb2] sm:$0xff]
  %v6130 = vld [vmem:[#allocation3 + $0xc2] sm:$0xff]
  %v6131 = vld [vmem:[#allocation3 + $0xd2] sm:$0xff]
  %v6132 = vld [vmem:[#allocation3 + $0xe2] sm:$0xff]
  %v6133 = vld [vmem:[#allocation3 + $0xf2] sm:$0xff]
  %v6134 = vld [vmem:[#allocation3 + $0x102] sm:$0xff]
  %v6135 = vld [vmem:[#allocation3 + $0x112] sm:$0xff]
  %v6136 = vld [vmem:[#allocation3 + $0x122] sm:$0xff]
  %v6137 = vld [vmem:[#allocation3 + $0x132] sm:$0xff]
  %6158 = vrot.lane.b32.xlu0 %v6098, 64
  %v6159 = vpop.permute.xlu0 %6158
  %6160 = vrot.lane.b32.xlu0 %v6099, 64
  %v6161 = vpop.permute.xlu0 %6160
  %6162 = vrot.lane.b32.xlu0 %v6100, 64
  %v6163 = vpop.permute.xlu0 %6162
  %6164 = vrot.lane.b32.xlu0 %v6101, 64
  %v6165 = vpop.permute.xlu0 %6164
  %6166 = vrot.lane.b32.xlu0 %v6102, 64
  %v6167 = vpop.permute.xlu0 %6166
  %6168 = vrot.lane.b32.xlu0 %v6103, 64
  %v6169 = vpop.permute.xlu0 %6168
  %6170 = vrot.lane.b32.xlu0 %v6104, 64
  %v6171 = vpop.permute.xlu0 %6170
  %6172 = vrot.lane.b32.xlu0 %v6105, 64
  %v6173 = vpop.permute.xlu0 %6172
  %6174 = vrot.lane.b32.xlu0 %v6106, 64
  %v6175 = vpop.permute.xlu0 %6174
  %6176 = vrot.lane.b32.xlu0 %v6107, 64
  %v6177 = vpop.permute.xlu0 %6176
  %6178 = vrot.lane.b32.xlu0 %v6108, 64
  %v6179 = vpop.permute.xlu0 %6178
  %6180 = vrot.lane.b32.xlu0 %v6109, 64
  %v6181 = vpop.permute.xlu0 %6180
  %6182 = vrot.lane.b32.xlu0 %v6110, 64
  %v6183 = vpop.permute.xlu0 %6182
  %6184 = vrot.lane.b32.xlu0 %v6111, 64
  %v6185 = vpop.permute.xlu0 %6184
  %6186 = vrot.lane.b32.xlu0 %v6112, 64
  %v6187 = vpop.permute.xlu0 %6186
  %6188 = vrot.lane.b32.xlu0 %v6113, 64
  %v6189 = vpop.permute.xlu0 %6188
  %6190 = vrot.lane.b32.xlu0 %v6114, 64
  %v6191 = vpop.permute.xlu0 %6190
  %6192 = vrot.lane.b32.xlu0 %v6115, 64
  %v6193 = vpop.permute.xlu0 %6192
  %6194 = vrot.lane.b32.xlu0 %v6116, 64
  %v6195 = vpop.permute.xlu0 %6194
  %6196 = vrot.lane.b32.xlu0 %v6117, 64
  %v6197 = vpop.permute.xlu0 %6196
  %v6218 = vsel %vm42, %v6078, %v6159
  %v6219 = vsel %vm42, %v6079, %v6161
  %v6220 = vsel %vm42, %v6080, %v6163
  %v6221 = vsel %vm42, %v6081, %v6165
  %v6222 = vsel %vm42, %v6082, %v6167
  %v6223 = vsel %vm42, %v6083, %v6169
  %v6224 = vsel %vm42, %v6084, %v6171
  %v6225 = vsel %vm42, %v6085, %v6173
  %v6226 = vsel %vm42, %v6086, %v6175
  %v6227 = vsel %vm42, %v6087, %v6177
  %v6228 = vsel %vm42, %v6088, %v6179
  %v6229 = vsel %vm42, %v6089, %v6181
  %v6230 = vsel %vm42, %v6090, %v6183
  %v6231 = vsel %vm42, %v6091, %v6185
  %v6232 = vsel %vm42, %v6092, %v6187
  %v6233 = vsel %vm42, %v6093, %v6189
  %v6234 = vsel %vm42, %v6094, %v6191
  %v6235 = vsel %vm42, %v6095, %v6193
  %v6236 = vsel %vm42, %v6096, %v6195
  %v6237 = vsel %vm42, %v6097, %v6197
  %v6238 = vld [vmem:[%s4] sm:$0x1]
  %v6240 = vlaneseq
  %v6241 = vshrl.u32 %v6240, 7
  %v6242 = vsub.s32 0, %v6241
  %v6243 = vrot.slane %v6238, %v6242
  %v6245 = vadd.f32 %v6243, 0.0
  %v6246 = vld [vmem:[%s3] sm:$0xff]
  %v6247 = vld [vmem:[%s3 + $0x8] sm:$0xff]
  %v6248 = vld [vmem:[%s3 + $0x10] sm:$0xff]
  %v6249 = vld [vmem:[%s3 + $0x18] sm:$0xff]
  %v6250 = vld [vmem:[%s3 + $0x20] sm:$0xff]
  %v6251 = vld [vmem:[%s3 + $0x28] sm:$0xff]
  %v6252 = vld [vmem:[%s3 + $0x30] sm:$0xff]
  %v6253 = vld [vmem:[%s3 + $0x38] sm:$0xff]
  %v6254 = vld [vmem:[%s3 + $0x40] sm:$0xff]
  %v6255 = vld [vmem:[%s3 + $0x48] sm:$0xff]
  %v6256 = vld [vmem:[%s3 + $0x50] sm:$0xff]
  %v6257 = vld [vmem:[%s3 + $0x58] sm:$0xff]
  %v6258 = vld [vmem:[%s3 + $0x60] sm:$0xff]
  %v6259 = vld [vmem:[%s3 + $0x68] sm:$0xff]
  %v6260 = vld [vmem:[%s3 + $0x70] sm:$0xff]
  %v6261 = vld [vmem:[%s3 + $0x78] sm:$0xff]
  %v6262 = vld [vmem:[%s3 + $0x80] sm:$0xff]
  %v6263 = vld [vmem:[%s3 + $0x88] sm:$0xff]
  %v6264 = vld [vmem:[%s3 + $0x90] sm:$0xff]
  %v6265 = vld [vmem:[%s3 + $0x98] sm:$0xff]
  %v6266 = vld [vmem:[%s3 + $0xa0] sm:$0xff]
  %v6267 = vld [vmem:[%s3 + $0xa8] sm:$0xff]
  %v6268 = vld [vmem:[%s3 + $0xb0] sm:$0xff]
  %v6269 = vld [vmem:[%s3 + $0xb8] sm:$0xff]
  %v6271 = vsel %vm42, %v6118, 0
  %v6274 = vsel %vm42, %v6119, 0
  %v6277 = vsel %vm42, %v6120, 0
  %v6280 = vsel %vm42, %v6121, 0
  %v6283 = vsel %vm42, %v6122, 0
  %v6286 = vsel %vm42, %v6123, 0
  %v6289 = vsel %vm42, %v6124, 0
  %v6292 = vsel %vm42, %v6125, 0
  %v6295 = vsel %vm42, %v6128, 0
  %v6298 = vsel %vm42, %v6129, 0
  %v6301 = vsel %vm42, %v6130, 0
  %v6304 = vsel %vm42, %v6131, 0
  %v6307 = vsel %vm42, %v6132, 0
  %v6310 = vsel %vm42, %v6133, 0
  %v6313 = vsel %vm42, %v6134, 0
  %v6316 = vsel %vm42, %v6135, 0
  %6318 = vmatprep.subr.mxu0 0.0
  %6319 = vmatpush1.msra.mxu0 %v6246
  %6320 = vmatprep.subr.mxu0 0.0
  %6321 = vmatpush1.msra.mxu0 %v6247
  %6322 = vmatprep.subr.mxu0 0.0
  %6323 = vmatpush1.msra.mxu0 %v6248
  %6324 = vmatprep.subr.mxu0 0.0
  %6325 = vmatpush1.msra.mxu0 %v6249
  %6326 = vmatprep.subr.mxu0 0.0
  %6327 = vmatpush1.msra.mxu0 %v6250
  %6328 = vmatprep.subr.mxu0 0.0
  %6329 = vmatpush1.msra.mxu0 %v6251
  %6330 = vmatprep.subr.mxu0 0.0
  %6331 = vmatpush1.msra.mxu0 %v6252
  %6332 = vmatprep.subr.mxu0 0.0
  %6333 = vmatpush1.msra.mxu0 %v6253
  %6334 = vmatprep.subr.mxu0 0.0
  %6335 = vmatpush1.msra.mxu0 %v6254
  %6336 = vmatprep.subr.mxu0 0.0
  %6337 = vmatpush1.msra.mxu0 %v6255
  %6338 = vmatprep.subr.mxu0 0.0
  %6339 = vmatpush1.msra.mxu0 %v6256
  %6340 = vmatprep.subr.mxu0 0.0
  %6341 = vmatpush1.msra.mxu0 %v6257
  %6342 = vmatprep.subr.mxu0 0.0
  %6343 = vmatpush1.msra.mxu0 %v6258
  %6344 = vmatprep.subr.mxu0 0.0
  %6345 = vmatpush1.msra.mxu0 %v6259
  %6346 = vmatprep.subr.mxu0 0.0
  %6347 = vmatpush1.msra.mxu0 %v6260
  %6348 = vmatprep.subr.mxu0 0.0
  %6349 = vmatpush1.msra.mxu0 %v6261
  %6350 = vmatprep.subr.mxu0 0.0
  %6351 = vmatpush1.msra.mxu0 %v6262
  %6352 = vmatprep.subr.mxu0 0.0
  %6353 = vmatpush1.msra.mxu0 %v6263
  %6354 = vmatprep.subr.mxu0 0.0
  %6355 = vmatpush1.msra.mxu0 %v6264
  %6356 = vmatprep.subr.mxu0 0.0
  %6357 = vmatpush1.msra.mxu0 %v6265
  %6358 = vmatprep.subr.mxu0 0.0
  %6359 = vmatpush1.msra.mxu0 %v6266
  %6360 = vmatprep.subr.mxu0 0.0
  %6361 = vmatpush1.msra.mxu0 %v6267
  %6362 = vmatprep.subr.mxu0 0.0
  %6363 = vmatpush1.msra.mxu0 %v6268
  %6364 = vmatprep.subr.mxu0 0.0
  %6365 = vmatpush1.msra.mxu0 %v6269
  %6366 = vmatprep.subr.mxu0 0.0
  %6367 = vmatpush1.msra.mxu0 0.0
  %6368 = vmatprep.subr.mxu0 0.0
  %6369 = vmatpush1.msra.mxu0 0.0
  %6370 = vmatprep.subr.mxu0 0.0
  %6371 = vmatpush1.msra.mxu0 0.0
  %6372 = vmatprep.subr.mxu0 0.0
  %6373 = vmatpush1.msra.mxu0 0.0
  %6374 = vmatprep.subr.mxu0 0.0
  %6375 = vmatpush1.msra.mxu0 0.0
  %6376 = vmatprep.subr.mxu0 0.0
  %6377 = vmatpush1.msra.mxu0 0.0
  %6378 = vmatprep.subr.mxu0 0.0
  %6379 = vmatpush1.msra.mxu0 0.0
  %6380 = vmatprep.subr.mxu0 0.0
  %6381 = vmatpush1.msra.mxu0 0.0
  %6382 = vmatprep.mubr.f32.mxu0 %v6271
  %6383 = vmatmul.mubr.f32.gmra.mrb[0].mxu0 %v6218
  %v6384 = vpop.f32.mrb[0].mxu0
  %v6385 = vadd.f32 0.0, %v6384
  %v6386 = vpop.f32.mrb[0].mxu0
  %6387 = vmatprep.mubr.f32.mxu0 %v6274
  %6388 = vmatmul.mubr.f32.gmra.mrb[0].mxu0 %v6219
  %v6389 = vpop.f32.mrb[0].mxu0
  %v6390 = vadd.f32 0.0, %v6389
  %v6391 = vpop.f32.mrb[0].mxu0
  %6392 = vmatprep.mubr.f32.mxu0 %v6277
  %6393 = vmatmul.mubr.f32.gmra.mrb[0].mxu0 %v6220
  %v6394 = vpop.f32.mrb[0].mxu0
  %v6395 = vadd.f32 0.0, %v6394
  %v6396 = vpop.f32.mrb[0].mxu0
  %6397 = vmatprep.mubr.f32.mxu0 %v6280
  %6398 = vmatmul.mubr.f32.gmra.mrb[0].mxu0 %v6221
  %v6399 = vpop.f32.mrb[0].mxu0
  %v6400 = vadd.f32 0.0, %v6399
  %v6401 = vpop.f32.mrb[0].mxu0
  %6402 = vmatprep.mubr.f32.mxu0 %v6283
  %6403 = vmatmul.mubr.f32.gmra.mrb[0].mxu0 %v6222
  %v6404 = vpop.f32.mrb[0].mxu0
  %v6405 = vadd.f32 0.0, %v6404
  %v6406 = vpop.f32.mrb[0].mxu0
  %6407 = vmatprep.mubr.f32.mxu0 %v6286
  %6408 = vmatmul.mubr.f32.gmra.mrb[0].mxu0 %v6223
  %v6409 = vpop.f32.mrb[0].mxu0
  %v6410 = vadd.f32 0.0, %v6409
  %v6411 = vpop.f32.mrb[0].mxu0
  %6412 = vmatprep.mubr.f32.mxu0 %v6289
  %6413 = vmatmul.mubr.f32.gmra.mrb[0].mxu0 %v6224
  %v6414 = vpop.f32.mrb[0].mxu0
  %v6415 = vadd.f32 0.0, %v6414
  %v6416 = vpop.f32.mrb[0].mxu0
  %6417 = vmatprep.mubr.f32.mxu0 %v6292
  %6418 = vmatmul.mubr.f32.gmra.mrb[0].mxu0 %v6225
  %v6419 = vpop.f32.mrb[0].mxu0
  %v6420 = vadd.f32 0.0, %v6419
  %v6421 = vpop.f32.mrb[0].mxu0
  %6422 = vmatprep.mubr.f32.mxu0 %v6295
  %6423 = vmatmul.mubr.f32.gmra.mrb[0].mxu0 %v6228
  %v6424 = vpop.f32.mrb[0].mxu0
  %v6425 = vadd.f32 0.0, %v6424
  %v6426 = vpop.f32.mrb[0].mxu0
  %6427 = vmatprep.mubr.f32.mxu0 %v6298
  %6428 = vmatmul.mubr.f32.gmra.mrb[0].mxu0 %v6229
  %v6429 = vpop.f32.mrb[0].mxu0
  %v6430 = vadd.f32 0.0, %v6429
  %v6431 = vpop.f32.mrb[0].mxu0
  %6432 = vmatprep.mubr.f32.mxu0 %v6301
  %6433 = vmatmul.mubr.f32.gmra.mrb[0].mxu0 %v6230
  %v6434 = vpop.f32.mrb[0].mxu0
  %v6435 = vadd.f32 0.0, %v6434
  %v6436 = vpop.f32.mrb[0].mxu0
  %6437 = vmatprep.mubr.f32.mxu0 %v6304
  %6438 = vmatmul.mubr.f32.gmra.mrb[0].mxu0 %v6231
  %v6439 = vpop.f32.mrb[0].mxu0
  %v6440 = vadd.f32 0.0, %v6439
  %v6441 = vpop.f32.mrb[0].mxu0
  %6442 = vmatprep.mubr.f32.mxu0 %v6307
  %6443 = vmatmul.mubr.f32.gmra.mrb[0].mxu0 %v6232
  %v6444 = vpop.f32.mrb[0].mxu0
  %v6445 = vadd.f32 0.0, %v6444
  %v6446 = vpop.f32.mrb[0].mxu0
  %6447 = vmatprep.mubr.f32.mxu0 %v6310
  %6448 = vmatmul.mubr.f32.gmra.mrb[0].mxu0 %v6233
  %v6449 = vpop.f32.mrb[0].mxu0
  %v6450 = vadd.f32 0.0, %v6449
  %v6451 = vpop.f32.mrb[0].mxu0
  %6452 = vmatprep.mubr.f32.mxu0 %v6313
  %6453 = vmatmul.mubr.f32.gmra.mrb[0].mxu0 %v6234
  %v6454 = vpop.f32.mrb[0].mxu0
  %v6455 = vadd.f32 0.0, %v6454
  %v6456 = vpop.f32.mrb[0].mxu0
  %6457 = vmatprep.mubr.f32.mxu0 %v6316
  %6458 = vmatmul.mubr.f32.gmra.mrb[0].mxu0 %v6235
  %v6459 = vpop.f32.mrb[0].mxu0
  %v6460 = vadd.f32 0.0, %v6459
  %v6461 = vpop.f32.mrb[0].mxu0
  %6462 = vdwg.mxu0
  %v6463 = vadd.f32 %v6245, %v6385
  %v6464 = vadd.f32 %v6245, %v6390
  %v6465 = vadd.f32 %v6245, %v6395
  %v6466 = vadd.f32 %v6245, %v6400
  %v6467 = vadd.f32 %v6245, %v6405
  %v6468 = vadd.f32 %v6245, %v6410
  %v6469 = vadd.f32 %v6245, %v6415
  %v6470 = vadd.f32 %v6245, %v6420
  %v6471 = vadd.f32 %v6245, %v6425
  %v6472 = vadd.f32 %v6245, %v6430
  %v6473 = vadd.f32 %v6245, %v6435
  %v6474 = vadd.f32 %v6245, %v6440
  %v6475 = vadd.f32 %v6245, %v6445
  %v6476 = vadd.f32 %v6245, %v6450
  %v6477 = vadd.f32 %v6245, %v6455
  %v6478 = vadd.f32 %v6245, %v6460
  %s6479 = scalar_lea.vmem %s3, 192
  %v6480 = vld [vmem:[%s6479] sm:$0xff]
  %v6481 = vld [vmem:[%s6479 + $0x8] sm:$0xff]
  %v6482 = vld [vmem:[%s6479 + $0x10] sm:$0xff]
  %v6483 = vld [vmem:[%s6479 + $0x18] sm:$0xff]
  %v6484 = vld [vmem:[%s6479 + $0x20] sm:$0xff]
  %v6485 = vld [vmem:[%s6479 + $0x28] sm:$0xff]
  %v6486 = vld [vmem:[%s6479 + $0x30] sm:$0xff]
  %v6487 = vld [vmem:[%s6479 + $0x38] sm:$0xff]
  %v6488 = vld [vmem:[%s6479 + $0x40] sm:$0xff]
  %v6489 = vld [vmem:[%s6479 + $0x48] sm:$0xff]
  %v6490 = vld [vmem:[%s6479 + $0x50] sm:$0xff]
  %v6491 = vld [vmem:[%s6479 + $0x58] sm:$0xff]
  %v6492 = vld [vmem:[%s6479 + $0x60] sm:$0xff]
  %v6493 = vld [vmem:[%s6479 + $0x68] sm:$0xff]
  %v6494 = vld [vmem:[%s6479 + $0x70] sm:$0xff]
  %v6495 = vld [vmem:[%s6479 + $0x78] sm:$0xff]
  %v6496 = vld [vmem:[%s6479 + $0x80] sm:$0xff]
  %v6497 = vld [vmem:[%s6479 + $0x88] sm:$0xff]
  %v6498 = vld [vmem:[%s6479 + $0x90] sm:$0xff]
  %v6499 = vld [vmem:[%s6479 + $0x98] sm:$0xff]
  %v6500 = vld [vmem:[%s6479 + $0xa0] sm:$0xff]
  %v6501 = vld [vmem:[%s6479 + $0xa8] sm:$0xff]
  %v6502 = vld [vmem:[%s6479 + $0xb0] sm:$0xff]
  %v6503 = vld [vmem:[%s6479 + $0xb8] sm:$0xff]
  %v6505 = vsel %vm42, %v6126, 0
  %v6508 = vsel %vm42, %v6136, 0
  %6510 = vmatprep.subr.mxu0 0.0
  %6511 = vmatpush1.msra.mxu0 %v6480
  %6512 = vmatprep.subr.mxu0 0.0
  %6513 = vmatpush1.msra.mxu0 %v6481
  %6514 = vmatprep.subr.mxu0 0.0
  %6515 = vmatpush1.msra.mxu0 %v6482
  %6516 = vmatprep.subr.mxu0 0.0
  %6517 = vmatpush1.msra.mxu0 %v6483
  %6518 = vmatprep.subr.mxu0 0.0
  %6519 = vmatpush1.msra.mxu0 %v6484
  %6520 = vmatprep.subr.mxu0 0.0
  %6521 = vmatpush1.msra.mxu0 %v6485
  %6522 = vmatprep.subr.mxu0 0.0
  %6523 = vmatpush1.msra.mxu0 %v6486
  %6524 = vmatprep.subr.mxu0 0.0
  %6525 = vmatpush1.msra.mxu0 %v6487
  %6526 = vmatprep.subr.mxu0 0.0
  %6527 = vmatpush1.msra.mxu0 %v6488
  %6528 = vmatprep.subr.mxu0 0.0
  %6529 = vmatpush1.msra.mxu0 %v6489
  %6530 = vmatprep.subr.mxu0 0.0
  %6531 = vmatpush1.msra.mxu0 %v6490
  %6532 = vmatprep.subr.mxu0 0.0
  %6533 = vmatpush1.msra.mxu0 %v6491
  %6534 = vmatprep.subr.mxu0 0.0
  %6535 = vmatpush1.msra.mxu0 %v6492
  %6536 = vmatprep.subr.mxu0 0.0
  %6537 = vmatpush1.msra.mxu0 %v6493
  %6538 = vmatprep.subr.mxu0 0.0
  %6539 = vmatpush1.msra.mxu0 %v6494
  %6540 = vmatprep.subr.mxu0 0.0
  %6541 = vmatpush1.msra.mxu0 %v6495
  %6542 = vmatprep.subr.mxu0 0.0
  %6543 = vmatpush1.msra.mxu0 %v6496
  %6544 = vmatprep.subr.mxu0 0.0
  %6545 = vmatpush1.msra.mxu0 %v6497
  %6546 = vmatprep.subr.mxu0 0.0
  %6547 = vmatpush1.msra.mxu0 %v6498
  %6548 = vmatprep.subr.mxu0 0.0
  %6549 = vmatpush1.msra.mxu0 %v6499
  %6550 = vmatprep.subr.mxu0 0.0
  %6551 = vmatpush1.msra.mxu0 %v6500
  %6552 = vmatprep.subr.mxu0 0.0
  %6553 = vmatpush1.msra.mxu0 %v6501
  %6554 = vmatprep.subr.mxu0 0.0
  %6555 = vmatpush1.msra.mxu0 %v6502
  %6556 = vmatprep.subr.mxu0 0.0
  %6557 = vmatpush1.msra.mxu0 %v6503
  %6558 = vmatprep.subr.mxu0 0.0
  %6559 = vmatpush1.msra.mxu0 0.0
  %6560 = vmatprep.subr.mxu0 0.0
  %6561 = vmatpush1.msra.mxu0 0.0
  %6562 = vmatprep.subr.mxu0 0.0
  %6563 = vmatpush1.msra.mxu0 0.0
  %6564 = vmatprep.subr.mxu0 0.0
  %6565 = vmatpush1.msra.mxu0 0.0
  %6566 = vmatprep.subr.mxu0 0.0
  %6567 = vmatpush1.msra.mxu0 0.0
  %6568 = vmatprep.subr.mxu0 0.0
  %6569 = vmatpush1.msra.mxu0 0.0
  %6570 = vmatprep.subr.mxu0 0.0
  %6571 = vmatpush1.msra.mxu0 0.0
  %6572 = vmatprep.subr.mxu0 0.0
  %6573 = vmatpush1.msra.mxu0 0.0
  %6574 = vmatprep.mubr.f32.mxu0 %v6274
  %6575 = vmatmul.mubr.f32.gmra.mrb[0].mxu0 %v6219
  %v6576 = vpop.f32.mrb[0].mxu0
  %v6577 = vadd.f32 0.0, %v6576
  %v6578 = vpop.f32.mrb[0].mxu0
  %6579 = vmatprep.mubr.f32.mxu0 %v6277
  %6580 = vmatmul.mubr.f32.gmra.mrb[0].mxu0 %v6220
  %v6581 = vpop.f32.mrb[0].mxu0
  %v6582 = vadd.f32 0.0, %v6581
  %v6583 = vpop.f32.mrb[0].mxu0
  %6584 = vmatprep.mubr.f32.mxu0 %v6280
  %6585 = vmatmul.mubr.f32.gmra.mrb[0].mxu0 %v6221
  %v6586 = vpop.f32.mrb[0].mxu0
  %v6587 = vadd.f32 0.0, %v6586
  %v6588 = vpop.f32.mrb[0].mxu0
  %6589 = vmatprep.mubr.f32.mxu0 %v6283
  %6590 = vmatmul.mubr.f32.gmra.mrb[0].mxu0 %v6222
  %v6591 = vpop.f32.mrb[0].mxu0
  %v6592 = vadd.f32 0.0, %v6591
  %v6593 = vpop.f32.mrb[0].mxu0
  %6594 = vmatprep.mubr.f32.mxu0 %v6286
  %6595 = vmatmul.mubr.f32.gmra.mrb[0].mxu0 %v6223
  %v6596 = vpop.f32.mrb[0].mxu0
  %v6597 = vadd.f32 0.0, %v6596
  %v6598 = vpop.f32.mrb[0].mxu0
  %6599 = vmatprep.mubr.f32.mxu0 %v6289
  %6600 = vmatmul.mubr.f32.gmra.mrb[0].mxu0 %v6224
  %v6601 = vpop.f32.mrb[0].mxu0
  %v6602 = vadd.f32 0.0, %v6601
  %v6603 = vpop.f32.mrb[0].mxu0
  %6604 = vmatprep.mubr.f32.mxu0 %v6292
  %6605 = vmatmul.mubr.f32.gmra.mrb[0].mxu0 %v6225
  %v6606 = vpop.f32.mrb[0].mxu0
  %v6607 = vadd.f32 0.0, %v6606
  %v6608 = vpop.f32.mrb[0].mxu0
  %6609 = vmatprep.mubr.f32.mxu0 %v6505
  %6610 = vmatmul.mubr.f32.gmra.mrb[0].mxu0 %v6226
  %v6611 = vpop.f32.mrb[0].mxu0
  %v6612 = vadd.f32 0.0, %v6611
  %v6613 = vpop.f32.mrb[0].mxu0
  %6614 = vmatprep.mubr.f32.mxu0 %v6298
  %6615 = vmatmul.mubr.f32.gmra.mrb[0].mxu0 %v6229
  %v6616 = vpop.f32.mrb[0].mxu0
  %v6617 = vadd.f32 0.0, %v6616
  %v6618 = vpop.f32.mrb[0].mxu0
  %6619 = vmatprep.mubr.f32.mxu0 %v6301
  %6620 = vmatmul.mubr.f32.gmra.mrb[0].mxu0 %v6230
  %v6621 = vpop.f32.mrb[0].mxu0
  %v6622 = vadd.f32 0.0, %v6621
  %v6623 = vpop.f32.mrb[0].mxu0
  %6624 = vmatprep.mubr.f32.mxu0 %v6304
  %6625 = vmatmul.mubr.f32.gmra.mrb[0].mxu0 %v6231
  %v6626 = vpop.f32.mrb[0].mxu0
  %v6627 = vadd.f32 0.0, %v6626
  %v6628 = vpop.f32.mrb[0].mxu0
  %6629 = vmatprep.mubr.f32.mxu0 %v6307
  %6630 = vmatmul.mubr.f32.gmra.mrb[0].mxu0 %v6232
  %v6631 = vpop.f32.mrb[0].mxu0
  %v6632 = vadd.f32 0.0, %v6631
  %v6633 = vpop.f32.mrb[0].mxu0
  %6634 = vmatprep.mubr.f32.mxu0 %v6310
  %6635 = vmatmul.mubr.f32.gmra.mrb[0].mxu0 %v6233
  %v6636 = vpop.f32.mrb[0].mxu0
  %v6637 = vadd.f32 0.0, %v6636
  %v6638 = vpop.f32.mrb[0].mxu0
  %6639 = vmatprep.mubr.f32.mxu0 %v6313
  %6640 = vmatmul.mubr.f32.gmra.mrb[0].mxu0 %v6234
  %v6641 = vpop.f32.mrb[0].mxu0
  %v6642 = vadd.f32 0.0, %v6641
  %v6643 = vpop.f32.mrb[0].mxu0
  %6644 = vmatprep.mubr.f32.mxu0 %v6316
  %6645 = vmatmul.mubr.f32.gmra.mrb[0].mxu0 %v6235
  %v6646 = vpop.f32.mrb[0].mxu0
  %v6647 = vadd.f32 0.0, %v6646
  %v6648 = vpop.f32.mrb[0].mxu0
  %6649 = vmatprep.mubr.f32.mxu0 %v6508
  %6650 = vmatmul.mubr.f32.gmra.mrb[0].mxu0 %v6236
  %v6651 = vpop.f32.mrb[0].mxu0
  %v6652 = vadd.f32 0.0, %v6651
  %v6653 = vpop.f32.mrb[0].mxu0
  %6654 = vdwg.mxu0
  %v6655 = vadd.f32 %v6463, %v6577
  %v6656 = vadd.f32 %v6464, %v6582
  %v6657 = vadd.f32 %v6465, %v6587
  %v6658 = vadd.f32 %v6466, %v6592
  %v6659 = vadd.f32 %v6467, %v6597
  %v6660 = vadd.f32 %v6468, %v6602
  %v6661 = vadd.f32 %v6469, %v6607
  %v6662 = vadd.f32 %v6470, %v6612
  %v6663 = vadd.f32 %v6471, %v6617
  %v6664 = vadd.f32 %v6472, %v6622
  %v6665 = vadd.f32 %v6473, %v6627
  %v6666 = vadd.f32 %v6474, %v6632
  %v6667 = vadd.f32 %v6475, %v6637
  %v6668 = vadd.f32 %v6476, %v6642
  %v6669 = vadd.f32 %v6477, %v6647
  %v6670 = vadd.f32 %v6478, %v6652
  %s6671 = scalar_lea.vmem %s3, 384
  %v6672 = vld [vmem:[%s6671] sm:$0xff]
  %v6673 = vld [vmem:[%s6671 + $0x8] sm:$0xff]
  %v6674 = vld [vmem:[%s6671 + $0x10] sm:$0xff]
  %v6675 = vld [vmem:[%s6671 + $0x18] sm:$0xff]
  %v6676 = vld [vmem:[%s6671 + $0x20] sm:$0xff]
  %v6677 = vld [vmem:[%s6671 + $0x28] sm:$0xff]
  %v6678 = vld [vmem:[%s6671 + $0x30] sm:$0xff]
  %v6679 = vld [vmem:[%s6671 + $0x38] sm:$0xff]
  %v6680 = vld [vmem:[%s6671 + $0x40] sm:$0xff]
  %v6681 = vld [vmem:[%s6671 + $0x48] sm:$0xff]
  %v6682 = vld [vmem:[%s6671 + $0x50] sm:$0xff]
  %v6683 = vld [vmem:[%s6671 + $0x58] sm:$0xff]
  %v6684 = vld [vmem:[%s6671 + $0x60] sm:$0xff]
  %v6685 = vld [vmem:[%s6671 + $0x68] sm:$0xff]
  %v6686 = vld [vmem:[%s6671 + $0x70] sm:$0xff]
  %v6687 = vld [vmem:[%s6671 + $0x78] sm:$0xff]
  %v6688 = vld [vmem:[%s6671 + $0x80] sm:$0xff]
  %v6689 = vld [vmem:[%s6671 + $0x88] sm:$0xff]
  %v6690 = vld [vmem:[%s6671 + $0x90] sm:$0xff]
  %v6691 = vld [vmem:[%s6671 + $0x98] sm:$0xff]
  %v6692 = vld [vmem:[%s6671 + $0xa0] sm:$0xff]
  %v6693 = vld [vmem:[%s6671 + $0xa8] sm:$0xff]
  %v6694 = vld [vmem:[%s6671 + $0xb0] sm:$0xff]
  %v6695 = vld [vmem:[%s6671 + $0xb8] sm:$0xff]
  %v6697 = vsel %vm42, %v6127, 0
  %v6700 = vsel %vm42, %v6137, 0
  %6702 = vmatprep.subr.mxu0 0.0
  %6703 = vmatpush1.msra.mxu0 %v6672
  %6704 = vmatprep.subr.mxu0 0.0
  %6705 = vmatpush1.msra.mxu0 %v6673
  %6706 = vmatprep.subr.mxu0 0.0
  %6707 = vmatpush1.msra.mxu0 %v6674
  %6708 = vmatprep.subr.mxu0 0.0
  %6709 = vmatpush1.msra.mxu0 %v6675
  %6710 = vmatprep.subr.mxu0 0.0
  %6711 = vmatpush1.msra.mxu0 %v6676
  %6712 = vmatprep.subr.mxu0 0.0
  %6713 = vmatpush1.msra.mxu0 %v6677
  %6714 = vmatprep.subr.mxu0 0.0
  %6715 = vmatpush1.msra.mxu0 %v6678
  %6716 = vmatprep.subr.mxu0 0.0
  %6717 = vmatpush1.msra.mxu0 %v6679
  %6718 = vmatprep.subr.mxu0 0.0
  %6719 = vmatpush1.msra.mxu0 %v6680
  %6720 = vmatprep.subr.mxu0 0.0
  %6721 = vmatpush1.msra.mxu0 %v6681
  %6722 = vmatprep.subr.mxu0 0.0
  %6723 = vmatpush1.msra.mxu0 %v6682
  %6724 = vmatprep.subr.mxu0 0.0
  %6725 = vmatpush1.msra.mxu0 %v6683
  %6726 = vmatprep.subr.mxu0 0.0
  %6727 = vmatpush1.msra.mxu0 %v6684
  %6728 = vmatprep.subr.mxu0 0.0
  %6729 = vmatpush1.msra.mxu0 %v6685
  %6730 = vmatprep.subr.mxu0 0.0
  %6731 = vmatpush1.msra.mxu0 %v6686
  %6732 = vmatprep.subr.mxu0 0.0
  %6733 = vmatpush1.msra.mxu0 %v6687
  %6734 = vmatprep.subr.mxu0 0.0
  %6735 = vmatpush1.msra.mxu0 %v6688
  %6736 = vmatprep.subr.mxu0 0.0
  %6737 = vmatpush1.msra.mxu0 %v6689
  %6738 = vmatprep.subr.mxu0 0.0
  %6739 = vmatpush1.msra.mxu0 %v6690
  %6740 = vmatprep.subr.mxu0 0.0
  %6741 = vmatpush1.msra.mxu0 %v6691
  %6742 = vmatprep.subr.mxu0 0.0
  %6743 = vmatpush1.msra.mxu0 %v6692
  %6744 = vmatprep.subr.mxu0 0.0
  %6745 = vmatpush1.msra.mxu0 %v6693
  %6746 = vmatprep.subr.mxu0 0.0
  %6747 = vmatpush1.msra.mxu0 %v6694
  %6748 = vmatprep.subr.mxu0 0.0
  %6749 = vmatpush1.msra.mxu0 %v6695
  %6750 = vmatprep.subr.mxu0 0.0
  %6751 = vmatpush1.msra.mxu0 0.0
  %6752 = vmatprep.subr.mxu0 0.0
  %6753 = vmatpush1.msra.mxu0 0.0
  %6754 = vmatprep.subr.mxu0 0.0
  %6755 = vmatpush1.msra.mxu0 0.0
  %6756 = vmatprep.subr.mxu0 0.0
  %6757 = vmatpush1.msra.mxu0 0.0
  %6758 = vmatprep.subr.mxu0 0.0
  %6759 = vmatpush1.msra.mxu0 0.0
  %6760 = vmatprep.subr.mxu0 0.0
  %6761 = vmatpush1.msra.mxu0 0.0
  %6762 = vmatprep.subr.mxu0 0.0
  %6763 = vmatpush1.msra.mxu0 0.0
  %6764 = vmatprep.subr.mxu0 0.0
  %6765 = vmatpush1.msra.mxu0 0.0
  %6766 = vmatprep.mubr.f32.mxu0 %v6277
  %6767 = vmatmul.mubr.f32.gmra.mrb[0].mxu0 %v6220
  %v6768 = vpop.f32.mrb[0].mxu0
  %v6769 = vadd.f32 0.0, %v6768
  %v6770 = vpop.f32.mrb[0].mxu0
  %6771 = vmatprep.mubr.f32.mxu0 %v6280
  %6772 = vmatmul.mubr.f32.gmra.mrb[0].mxu0 %v6221
  %v6773 = vpop.f32.mrb[0].mxu0
  %v6774 = vadd.f32 0.0, %v6773
  %v6775 = vpop.f32.mrb[0].mxu0
  %6776 = vmatprep.mubr.f32.mxu0 %v6283
  %6777 = vmatmul.mubr.f32.gmra.mrb[0].mxu0 %v6222
  %v6778 = vpop.f32.mrb[0].mxu0
  %v6779 = vadd.f32 0.0, %v6778
  %v6780 = vpop.f32.mrb[0].mxu0
  %6781 = vmatprep.mubr.f32.mxu0 %v6286
  %6782 = vmatmul.mubr.f32.gmra.mrb[0].mxu0 %v6223
  %v6783 = vpop.f32.mrb[0].mxu0
  %v6784 = vadd.f32 0.0, %v6783
  %v6785 = vpop.f32.mrb[0].mxu0
  %6786 = vmatprep.mubr.f32.mxu0 %v6289
  %6787 = vmatmul.mubr.f32.gmra.mrb[0].mxu0 %v6224
  %v6788 = vpop.f32.mrb[0].mxu0
  %v6789 = vadd.f32 0.0, %v6788
  %v6790 = vpop.f32.mrb[0].mxu0
  %6791 = vmatprep.mubr.f32.mxu0 %v6292
  %6792 = vmatmul.mubr.f32.gmra.mrb[0].mxu0 %v6225
  %v6793 = vpop.f32.mrb[0].mxu0
  %v6794 = vadd.f32 0.0, %v6793
  %v6795 = vpop.f32.mrb[0].mxu0
  %6796 = vmatprep.mubr.f32.mxu0 %v6505
  %6797 = vmatmul.mubr.f32.gmra.mrb[0].mxu0 %v6226
  %v6798 = vpop.f32.mrb[0].mxu0
  %v6799 = vadd.f32 0.0, %v6798
  %v6800 = vpop.f32.mrb[0].mxu0
  %6801 = vmatprep.mubr.f32.mxu0 %v6697
  %6802 = vmatmul.mubr.f32.gmra.mrb[0].mxu0 %v6227
  %v6803 = vpop.f32.mrb[0].mxu0
  %v6804 = vadd.f32 0.0, %v6803
  %v6805 = vpop.f32.mrb[0].mxu0
  %6806 = vmatprep.mubr.f32.mxu0 %v6301
  %6807 = vmatmul.mubr.f32.gmra.mrb[0].mxu0 %v6230
  %v6808 = vpop.f32.mrb[0].mxu0
  %v6809 = vadd.f32 0.0, %v6808
  %v6810 = vpop.f32.mrb[0].mxu0
  %6811 = vmatprep.mubr.f32.mxu0 %v6304
  %6812 = vmatmul.mubr.f32.gmra.mrb[0].mxu0 %v6231
  %v6813 = vpop.f32.mrb[0].mxu0
  %v6814 = vadd.f32 0.0, %v6813
  %v6815 = vpop.f32.mrb[0].mxu0
  %6816 = vmatprep.mubr.f32.mxu0 %v6307
  %6817 = vmatmul.mubr.f32.gmra.mrb[0].mxu0 %v6232
  %v6818 = vpop.f32.mrb[0].mxu0
  %v6819 = vadd.f32 0.0, %v6818
  %v6820 = vpop.f32.mrb[0].mxu0
  %6821 = vmatprep.mubr.f32.mxu0 %v6310
  %6822 = vmatmul.mubr.f32.gmra.mrb[0].mxu0 %v6233
  %v6823 = vpop.f32.mrb[0].mxu0
  %v6824 = vadd.f32 0.0, %v6823
  %v6825 = vpop.f32.mrb[0].mxu0
  %6826 = vmatprep.mubr.f32.mxu0 %v6313
  %6827 = vmatmul.mubr.f32.gmra.mrb[0].mxu0 %v6234
  %v6828 = vpop.f32.mrb[0].mxu0
  %v6829 = vadd.f32 0.0, %v6828
  %v6830 = vpop.f32.mrb[0].mxu0
  %6831 = vmatprep.mubr.f32.mxu0 %v6316
  %6832 = vmatmul.mubr.f32.gmra.mrb[0].mxu0 %v6235
  %v6833 = vpop.f32.mrb[0].mxu0
  %v6834 = vadd.f32 0.0, %v6833
  %v6835 = vpop.f32.mrb[0].mxu0
  %6836 = vmatprep.mubr.f32.mxu0 %v6508
  %6837 = vmatmul.mubr.f32.gmra.mrb[0].mxu0 %v6236
  %v6838 = vpop.f32.mrb[0].mxu0
  %v6839 = vadd.f32 0.0, %v6838
  %v6840 = vpop.f32.mrb[0].mxu0
  %6841 = vmatprep.mubr.f32.mxu0 %v6700
  %6842 = vmatmul.mubr.f32.gmra.mrb[0].mxu0 %v6237
  %v6843 = vpop.f32.mrb[0].mxu0
  %v6844 = vadd.f32 0.0, %v6843
  %v6845 = vpop.f32.mrb[0].mxu0
  %6846 = vdwg.mxu0
  %v6847 = vadd.f32 %v6655, %v6769
  %v6848 = vadd.f32 %v6656, %v6774
  %v6849 = vadd.f32 %v6657, %v6779
  %v6850 = vadd.f32 %v6658, %v6784
  %v6851 = vadd.f32 %v6659, %v6789
  %v6852 = vadd.f32 %v6660, %v6794
  %v6853 = vadd.f32 %v6661, %v6799
  %v6854 = vadd.f32 %v6662, %v6804
  %v6855 = vadd.f32 %v6663, %v6809
  %v6856 = vadd.f32 %v6664, %v6814
  %v6857 = vadd.f32 %v6665, %v6819
  %v6858 = vadd.f32 %v6666, %v6824
  %v6859 = vadd.f32 %v6667, %v6829
  %v6860 = vadd.f32 %v6668, %v6834
  %v6861 = vadd.f32 %v6669, %v6839
  %v6862 = vadd.f32 %v6670, %v6844
  %v6863 = vmax.f32 %v6847, 0.0
  %v6864 = vmax.f32 %v6848, 0.0
  %v6865 = vmax.f32 %v6849, 0.0
  %v6866 = vmax.f32 %v6850, 0.0
  %v6867 = vmax.f32 %v6851, 0.0
  %v6868 = vmax.f32 %v6852, 0.0
  %v6869 = vmax.f32 %v6853, 0.0
  %v6870 = vmax.f32 %v6854, 0.0
  %v6871 = vmax.f32 %v6855, 0.0
  %v6872 = vmax.f32 %v6856, 0.0
  %v6873 = vmax.f32 %v6857, 0.0
  %v6874 = vmax.f32 %v6858, 0.0
  %v6875 = vmax.f32 %v6859, 0.0
  %v6876 = vmax.f32 %v6860, 0.0
  %v6877 = vmax.f32 %v6861, 0.0
  %v6878 = vmax.f32 %v6862, 0.0
  %v6895 = vcombine.high %v6863, %v6863
  %v6897 = vunpack.c.l.s4 1983009808
  %v6898 = vunpack.c.0.s8 %v6897
  %v6899 = vlaneseq
  %v6900 = vshrl.u32 %v6899, 7
  %v6901 = vsub.s32 %v6898, %v6900
  %v6902 = vrot.slane %v6863, %v6901
  %v6904 = vunpack.c.l.s4 1983009808
  %v6905 = vunpack.c.0.s8 %v6904
  %v6906 = vlaneseq
  %v6907 = vshrl.u32 %v6906, 7
  %v6908 = vsub.s32 %v6905, %v6907
  %v6909 = vrot.slane %v6895, %v6908
  %v6910 = vcombine.high %v6902, %v6902
  %v6911 = vcombine.high %v6909, %v6909
  %v6912 = vcombine.high %v6864, %v6864
  %v6914 = vunpack.c.l.s4 1983009808
  %v6915 = vunpack.c.0.s8 %v6914
  %v6916 = vlaneseq
  %v6917 = vshrl.u32 %v6916, 7
  %v6918 = vsub.s32 %v6915, %v6917
  %v6919 = vrot.slane %v6864, %v6918
  %v6921 = vunpack.c.l.s4 1983009808
  %v6922 = vunpack.c.0.s8 %v6921
  %v6923 = vlaneseq
  %v6924 = vshrl.u32 %v6923, 7
  %v6925 = vsub.s32 %v6922, %v6924
  %v6926 = vrot.slane %v6912, %v6925
  %v6927 = vcombine.high %v6919, %v6919
  %v6928 = vcombine.high %v6926, %v6926
  %v6929 = vcombine.high %v6865, %v6865
  %v6931 = vunpack.c.l.s4 1983009808
  %v6932 = vunpack.c.0.s8 %v6931
  %v6933 = vlaneseq
  %v6934 = vshrl.u32 %v6933, 7
  %v6935 = vsub.s32 %v6932, %v6934
  %v6936 = vrot.slane %v6865, %v6935
  %v6938 = vunpack.c.l.s4 1983009808
  %v6939 = vunpack.c.0.s8 %v6938
  %v6940 = vlaneseq
  %v6941 = vshrl.u32 %v6940, 7
  %v6942 = vsub.s32 %v6939, %v6941
  %v6943 = vrot.slane %v6929, %v6942
  %v6944 = vcombine.high %v6936, %v6936
  %v6945 = vcombine.high %v6943, %v6943
  %v6946 = vcombine.high %v6866, %v6866
  %v6948 = vunpack.c.l.s4 1983009808
  %v6949 = vunpack.c.0.s8 %v6948
  %v6950 = vlaneseq
  %v6951 = vshrl.u32 %v6950, 7
  %v6952 = vsub.s32 %v6949, %v6951
  %v6953 = vrot.slane %v6866, %v6952
  %v6955 = vunpack.c.l.s4 1983009808
  %v6956 = vunpack.c.0.s8 %v6955
  %v6957 = vlaneseq
  %v6958 = vshrl.u32 %v6957, 7
  %v6959 = vsub.s32 %v6956, %v6958
  %v6960 = vrot.slane %v6946, %v6959
  %v6961 = vcombine.high %v6953, %v6953
  %v6962 = vcombine.high %v6960, %v6960
  %v6963 = vcombine.high %v6867, %v6867
  %v6965 = vunpack.c.l.s4 1983009808
  %v6966 = vunpack.c.0.s8 %v6965
  %v6967 = vlaneseq
  %v6968 = vshrl.u32 %v6967, 7
  %v6969 = vsub.s32 %v6966, %v6968
  %v6970 = vrot.slane %v6867, %v6969
  %v6972 = vunpack.c.l.s4 1983009808
  %v6973 = vunpack.c.0.s8 %v6972
  %v6974 = vlaneseq
  %v6975 = vshrl.u32 %v6974, 7
  %v6976 = vsub.s32 %v6973, %v6975
  %v6977 = vrot.slane %v6963, %v6976
  %v6978 = vcombine.high %v6970, %v6970
  %v6979 = vcombine.high %v6977, %v6977
  %v6980 = vcombine.high %v6868, %v6868
  %v6982 = vunpack.c.l.s4 1983009808
  %v6983 = vunpack.c.0.s8 %v6982
  %v6984 = vlaneseq
  %v6985 = vshrl.u32 %v6984, 7
  %v6986 = vsub.s32 %v6983, %v6985
  %v6987 = vrot.slane %v6868, %v6986
  %v6989 = vunpack.c.l.s4 1983009808
  %v6990 = vunpack.c.0.s8 %v6989
  %v6991 = vlaneseq
  %v6992 = vshrl.u32 %v6991, 7
  %v6993 = vsub.s32 %v6990, %v6992
  %v6994 = vrot.slane %v6980, %v6993
  %v6995 = vcombine.high %v6987, %v6987
  %v6996 = vcombine.high %v6994, %v6994
  %v6997 = vcombine.high %v6869, %v6869
  %v6999 = vunpack.c.l.s4 1983009808
  %v7000 = vunpack.c.0.s8 %v6999
  %v7001 = vlaneseq
  %v7002 = vshrl.u32 %v7001, 7
  %v7003 = vsub.s32 %v7000, %v7002
  %v7004 = vrot.slane %v6869, %v7003
  %v7006 = vunpack.c.l.s4 1983009808
  %v7007 = vunpack.c.0.s8 %v7006
  %v7008 = vlaneseq
  %v7009 = vshrl.u32 %v7008, 7
  %v7010 = vsub.s32 %v7007, %v7009
  %v7011 = vrot.slane %v6997, %v7010
  %v7012 = vcombine.high %v7004, %v7004
  %v7013 = vcombine.high %v7011, %v7011
  %v7014 = vcombine.high %v6870, %v6870
  %v7016 = vunpack.c.l.s4 1983009808
  %v7017 = vunpack.c.0.s8 %v7016
  %v7018 = vlaneseq
  %v7019 = vshrl.u32 %v7018, 7
  %v7020 = vsub.s32 %v7017, %v7019
  %v7021 = vrot.slane %v6870, %v7020
  %v7023 = vunpack.c.l.s4 1983009808
  %v7024 = vunpack.c.0.s8 %v7023
  %v7025 = vlaneseq
  %v7026 = vshrl.u32 %v7025, 7
  %v7027 = vsub.s32 %v7024, %v7026
  %v7028 = vrot.slane %v7014, %v7027
  %v7029 = vcombine.high %v7021, %v7021
  %v7030 = vcombine.high %v7028, %v7028
  %v7031 = vcombine.high %v6871, %v6871
  %v7033 = vunpack.c.l.s4 1983009808
  %v7034 = vunpack.c.0.s8 %v7033
  %v7035 = vlaneseq
  %v7036 = vshrl.u32 %v7035, 7
  %v7037 = vsub.s32 %v7034, %v7036
  %v7038 = vrot.slane %v6871, %v7037
  %v7040 = vunpack.c.l.s4 1983009808
  %v7041 = vunpack.c.0.s8 %v7040
  %v7042 = vlaneseq
  %v7043 = vshrl.u32 %v7042, 7
  %v7044 = vsub.s32 %v7041, %v7043
  %v7045 = vrot.slane %v7031, %v7044
  %v7046 = vcombine.high %v7038, %v7038
  %v7047 = vcombine.high %v7045, %v7045
  %v7048 = vcombine.high %v6872, %v6872
  %v7050 = vunpack.c.l.s4 1983009808
  %v7051 = vunpack.c.0.s8 %v7050
  %v7052 = vlaneseq
  %v7053 = vshrl.u32 %v7052, 7
  %v7054 = vsub.s32 %v7051, %v7053
  %v7055 = vrot.slane %v6872, %v7054
  %v7057 = vunpack.c.l.s4 1983009808
  %v7058 = vunpack.c.0.s8 %v7057
  %v7059 = vlaneseq
  %v7060 = vshrl.u32 %v7059, 7
  %v7061 = vsub.s32 %v7058, %v7060
  %v7062 = vrot.slane %v7048, %v7061
  %v7063 = vcombine.high %v7055, %v7055
  %v7064 = vcombine.high %v7062, %v7062
  %v7065 = vcombine.high %v6873, %v6873
  %v7067 = vunpack.c.l.s4 1983009808
  %v7068 = vunpack.c.0.s8 %v7067
  %v7069 = vlaneseq
  %v7070 = vshrl.u32 %v7069, 7
  %v7071 = vsub.s32 %v7068, %v7070
  %v7072 = vrot.slane %v6873, %v7071
  %v7074 = vunpack.c.l.s4 1983009808
  %v7075 = vunpack.c.0.s8 %v7074
  %v7076 = vlaneseq
  %v7077 = vshrl.u32 %v7076, 7
  %v7078 = vsub.s32 %v7075, %v7077
  %v7079 = vrot.slane %v7065, %v7078
  %v7080 = vcombine.high %v7072, %v7072
  %v7081 = vcombine.high %v7079, %v7079
  %v7082 = vcombine.high %v6874, %v6874
  %v7084 = vunpack.c.l.s4 1983009808
  %v7085 = vunpack.c.0.s8 %v7084
  %v7086 = vlaneseq
  %v7087 = vshrl.u32 %v7086, 7
  %v7088 = vsub.s32 %v7085, %v7087
  %v7089 = vrot.slane %v6874, %v7088
  %v7091 = vunpack.c.l.s4 1983009808
  %v7092 = vunpack.c.0.s8 %v7091
  %v7093 = vlaneseq
  %v7094 = vshrl.u32 %v7093, 7
  %v7095 = vsub.s32 %v7092, %v7094
  %v7096 = vrot.slane %v7082, %v7095
  %v7097 = vcombine.high %v7089, %v7089
  %v7098 = vcombine.high %v7096, %v7096
  %v7099 = vcombine.high %v6875, %v6875
  %v7101 = vunpack.c.l.s4 1983009808
  %v7102 = vunpack.c.0.s8 %v7101
  %v7103 = vlaneseq
  %v7104 = vshrl.u32 %v7103, 7
  %v7105 = vsub.s32 %v7102, %v7104
  %v7106 = vrot.slane %v6875, %v7105
  %v7108 = vunpack.c.l.s4 1983009808
  %v7109 = vunpack.c.0.s8 %v7108
  %v7110 = vlaneseq
  %v7111 = vshrl.u32 %v7110, 7
  %v7112 = vsub.s32 %v7109, %v7111
  %v7113 = vrot.slane %v7099, %v7112
  %v7114 = vcombine.high %v7106, %v7106
  %v7115 = vcombine.high %v7113, %v7113
  %v7116 = vcombine.high %v6876, %v6876
  %v7118 = vunpack.c.l.s4 1983009808
  %v7119 = vunpack.c.0.s8 %v7118
  %v7120 = vlaneseq
  %v7121 = vshrl.u32 %v7120, 7
  %v7122 = vsub.s32 %v7119, %v7121
  %v7123 = vrot.slane %v6876, %v7122
  %v7125 = vunpack.c.l.s4 1983009808
  %v7126 = vunpack.c.0.s8 %v7125
  %v7127 = vlaneseq
  %v7128 = vshrl.u32 %v7127, 7
  %v7129 = vsub.s32 %v7126, %v7128
  %v7130 = vrot.slane %v7116, %v7129
  %v7131 = vcombine.high %v7123, %v7123
  %v7132 = vcombine.high %v7130, %v7130
  %v7133 = vcombine.high %v6877, %v6877
  %v7135 = vunpack.c.l.s4 1983009808
  %v7136 = vunpack.c.0.s8 %v7135
  %v7137 = vlaneseq
  %v7138 = vshrl.u32 %v7137, 7
  %v7139 = vsub.s32 %v7136, %v7138
  %v7140 = vrot.slane %v6877, %v7139
  %v7142 = vunpack.c.l.s4 1983009808
  %v7143 = vunpack.c.0.s8 %v7142
  %v7144 = vlaneseq
  %v7145 = vshrl.u32 %v7144, 7
  %v7146 = vsub.s32 %v7143, %v7145
  %v7147 = vrot.slane %v7133, %v7146
  %v7148 = vcombine.high %v7140, %v7140
  %v7149 = vcombine.high %v7147, %v7147
  %v7150 = vcombine.high %v6878, %v6878
  %v7152 = vunpack.c.l.s4 1983009808
  %v7153 = vunpack.c.0.s8 %v7152
  %v7154 = vlaneseq
  %v7155 = vshrl.u32 %v7154, 7
  %v7156 = vsub.s32 %v7153, %v7155
  %v7157 = vrot.slane %v6878, %v7156
  %v7159 = vunpack.c.l.s4 1983009808
  %v7160 = vunpack.c.0.s8 %v7159
  %v7161 = vlaneseq
  %v7162 = vshrl.u32 %v7161, 7
  %v7163 = vsub.s32 %v7160, %v7162
  %v7164 = vrot.slane %v7150, %v7163
  %v7165 = vcombine.high %v7157, %v7157
  %v7166 = vcombine.high %v7164, %v7164
  %vm7231 = vcmask 1041408
  %v7232 = vsel %vm7231, %v6902, -inf
  %v7233 = vrot.slane %v7232, 4
  %v7234 = vmax.f32 %v7232, %v7233
  %v7235 = vrot.slane %v7234, 2
  %v7236 = vmax.f32 %v7234, %v7235
  %v7237 = vrot.slane %v7236, 1
  %v7238 = vmax.f32 %v7236, %v7237
  %v7239 = vsel %vm7231, %v6910, -inf
  %v7240 = vrot.slane %v7239, 4
  %v7241 = vmax.f32 %v7239, %v7240
  %v7242 = vrot.slane %v7241, 2
  %v7243 = vmax.f32 %v7241, %v7242
  %v7244 = vrot.slane %v7243, 1
  %v7245 = vmax.f32 %v7243, %v7244
  %v7246 = vsel %vm7231, %v6909, -inf
  %v7247 = vrot.slane %v7246, 4
  %v7248 = vmax.f32 %v7246, %v7247
  %v7249 = vrot.slane %v7248, 2
  %v7250 = vmax.f32 %v7248, %v7249
  %v7251 = vrot.slane %v7250, 1
  %v7252 = vmax.f32 %v7250, %v7251
  %v7253 = vsel %vm7231, %v6911, -inf
  %v7254 = vrot.slane %v7253, 4
  %v7255 = vmax.f32 %v7253, %v7254
  %v7256 = vrot.slane %v7255, 2
  %v7257 = vmax.f32 %v7255, %v7256
  %v7258 = vrot.slane %v7257, 1
  %v7259 = vmax.f32 %v7257, %v7258
  %v7260 = vsel %vm7231, %v6919, -inf
  %v7261 = vrot.slane %v7260, 4
  %v7262 = vmax.f32 %v7260, %v7261
  %v7263 = vrot.slane %v7262, 2
  %v7264 = vmax.f32 %v7262, %v7263
  %v7265 = vrot.slane %v7264, 1
  %v7266 = vmax.f32 %v7264, %v7265
  %v7267 = vsel %vm7231, %v6927, -inf
  %v7268 = vrot.slane %v7267, 4
  %v7269 = vmax.f32 %v7267, %v7268
  %v7270 = vrot.slane %v7269, 2
  %v7271 = vmax.f32 %v7269, %v7270
  %v7272 = vrot.slane %v7271, 1
  %v7273 = vmax.f32 %v7271, %v7272
  %v7274 = vsel %vm7231, %v6926, -inf
  %v7275 = vrot.slane %v7274, 4
  %v7276 = vmax.f32 %v7274, %v7275
  %v7277 = vrot.slane %v7276, 2
  %v7278 = vmax.f32 %v7276, %v7277
  %v7279 = vrot.slane %v7278, 1
  %v7280 = vmax.f32 %v7278, %v7279
  %v7281 = vsel %vm7231, %v6928, -inf
  %v7282 = vrot.slane %v7281, 4
  %v7283 = vmax.f32 %v7281, %v7282
  %v7284 = vrot.slane %v7283, 2
  %v7285 = vmax.f32 %v7283, %v7284
  %v7286 = vrot.slane %v7285, 1
  %v7287 = vmax.f32 %v7285, %v7286
  %v7288 = vsel %vm7231, %v6936, -inf
  %v7289 = vrot.slane %v7288, 4
  %v7290 = vmax.f32 %v7288, %v7289
  %v7291 = vrot.slane %v7290, 2
  %v7292 = vmax.f32 %v7290, %v7291
  %v7293 = vrot.slane %v7292, 1
  %v7294 = vmax.f32 %v7292, %v7293
  %v7295 = vsel %vm7231, %v6944, -inf
  %v7296 = vrot.slane %v7295, 4
  %v7297 = vmax.f32 %v7295, %v7296
  %v7298 = vrot.slane %v7297, 2
  %v7299 = vmax.f32 %v7297, %v7298
  %v7300 = vrot.slane %v7299, 1
  %v7301 = vmax.f32 %v7299, %v7300
  %v7302 = vsel %vm7231, %v6943, -inf
  %v7303 = vrot.slane %v7302, 4
  %v7304 = vmax.f32 %v7302, %v7303
  %v7305 = vrot.slane %v7304, 2
  %v7306 = vmax.f32 %v7304, %v7305
  %v7307 = vrot.slane %v7306, 1
  %v7308 = vmax.f32 %v7306, %v7307
  %v7309 = vsel %vm7231, %v6945, -inf
  %v7310 = vrot.slane %v7309, 4
  %v7311 = vmax.f32 %v7309, %v7310
  %v7312 = vrot.slane %v7311, 2
  %v7313 = vmax.f32 %v7311, %v7312
  %v7314 = vrot.slane %v7313, 1
  %v7315 = vmax.f32 %v7313, %v7314
  %v7316 = vsel %vm7231, %v6953, -inf
  %v7317 = vrot.slane %v7316, 4
  %v7318 = vmax.f32 %v7316, %v7317
  %v7319 = vrot.slane %v7318, 2
  %v7320 = vmax.f32 %v7318, %v7319
  %v7321 = vrot.slane %v7320, 1
  %v7322 = vmax.f32 %v7320, %v7321
  %v7323 = vsel %vm7231, %v6961, -inf
  %v7324 = vrot.slane %v7323, 4
  %v7325 = vmax.f32 %v7323, %v7324
  %v7326 = vrot.slane %v7325, 2
  %v7327 = vmax.f32 %v7325, %v7326
  %v7328 = vrot.slane %v7327, 1
  %v7329 = vmax.f32 %v7327, %v7328
  %v7330 = vsel %vm7231, %v6960, -inf
  %v7331 = vrot.slane %v7330, 4
  %v7332 = vmax.f32 %v7330, %v7331
  %v7333 = vrot.slane %v7332, 2
  %v7334 = vmax.f32 %v7332, %v7333
  %v7335 = vrot.slane %v7334, 1
  %v7336 = vmax.f32 %v7334, %v7335
  %v7337 = vsel %vm7231, %v6962, -inf
  %v7338 = vrot.slane %v7337, 4
  %v7339 = vmax.f32 %v7337, %v7338
  %v7340 = vrot.slane %v7339, 2
  %v7341 = vmax.f32 %v7339, %v7340
  %v7342 = vrot.slane %v7341, 1
  %v7343 = vmax.f32 %v7341, %v7342
  %v7344 = vsel %vm7231, %v6970, -inf
  %v7345 = vrot.slane %v7344, 4
  %v7346 = vmax.f32 %v7344, %v7345
  %v7347 = vrot.slane %v7346, 2
  %v7348 = vmax.f32 %v7346, %v7347
  %v7349 = vrot.slane %v7348, 1
  %v7350 = vmax.f32 %v7348, %v7349
  %v7351 = vsel %vm7231, %v6978, -inf
  %v7352 = vrot.slane %v7351, 4
  %v7353 = vmax.f32 %v7351, %v7352
  %v7354 = vrot.slane %v7353, 2
  %v7355 = vmax.f32 %v7353, %v7354
  %v7356 = vrot.slane %v7355, 1
  %v7357 = vmax.f32 %v7355, %v7356
  %v7358 = vsel %vm7231, %v6977, -inf
  %v7359 = vrot.slane %v7358, 4
  %v7360 = vmax.f32 %v7358, %v7359
  %v7361 = vrot.slane %v7360, 2
  %v7362 = vmax.f32 %v7360, %v7361
  %v7363 = vrot.slane %v7362, 1
  %v7364 = vmax.f32 %v7362, %v7363
  %v7365 = vsel %vm7231, %v6979, -inf
  %v7366 = vrot.slane %v7365, 4
  %v7367 = vmax.f32 %v7365, %v7366
  %v7368 = vrot.slane %v7367, 2
  %v7369 = vmax.f32 %v7367, %v7368
  %v7370 = vrot.slane %v7369, 1
  %v7371 = vmax.f32 %v7369, %v7370
  %v7372 = vsel %vm7231, %v6987, -inf
  %v7373 = vrot.slane %v7372, 4
  %v7374 = vmax.f32 %v7372, %v7373
  %v7375 = vrot.slane %v7374, 2
  %v7376 = vmax.f32 %v7374, %v7375
  %v7377 = vrot.slane %v7376, 1
  %v7378 = vmax.f32 %v7376, %v7377
  %v7379 = vsel %vm7231, %v6995, -inf
  %v7380 = vrot.slane %v7379, 4
  %v7381 = vmax.f32 %v7379, %v7380
  %v7382 = vrot.slane %v7381, 2
  %v7383 = vmax.f32 %v7381, %v7382
  %v7384 = vrot.slane %v7383, 1
  %v7385 = vmax.f32 %v7383, %v7384
  %v7386 = vsel %vm7231, %v6994, -inf
  %v7387 = vrot.slane %v7386, 4
  %v7388 = vmax.f32 %v7386, %v7387
  %v7389 = vrot.slane %v7388, 2
  %v7390 = vmax.f32 %v7388, %v7389
  %v7391 = vrot.slane %v7390, 1
  %v7392 = vmax.f32 %v7390, %v7391
  %v7393 = vsel %vm7231, %v6996, -inf
  %v7394 = vrot.slane %v7393, 4
  %v7395 = vmax.f32 %v7393, %v7394
  %v7396 = vrot.slane %v7395, 2
  %v7397 = vmax.f32 %v7395, %v7396
  %v7398 = vrot.slane %v7397, 1
  %v7399 = vmax.f32 %v7397, %v7398
  %v7400 = vsel %vm7231, %v7004, -inf
  %v7401 = vrot.slane %v7400, 4
  %v7402 = vmax.f32 %v7400, %v7401
  %v7403 = vrot.slane %v7402, 2
  %v7404 = vmax.f32 %v7402, %v7403
  %v7405 = vrot.slane %v7404, 1
  %v7406 = vmax.f32 %v7404, %v7405
  %v7407 = vsel %vm7231, %v7012, -inf
  %v7408 = vrot.slane %v7407, 4
  %v7409 = vmax.f32 %v7407, %v7408
  %v7410 = vrot.slane %v7409, 2
  %v7411 = vmax.f32 %v7409, %v7410
  %v7412 = vrot.slane %v7411, 1
  %v7413 = vmax.f32 %v7411, %v7412
  %v7414 = vsel %vm7231, %v7011, -inf
  %v7415 = vrot.slane %v7414, 4
  %v7416 = vmax.f32 %v7414, %v7415
  %v7417 = vrot.slane %v7416, 2
  %v7418 = vmax.f32 %v7416, %v7417
  %v7419 = vrot.slane %v7418, 1
  %v7420 = vmax.f32 %v7418, %v7419
  %v7421 = vsel %vm7231, %v7013, -inf
  %v7422 = vrot.slane %v7421, 4
  %v7423 = vmax.f32 %v7421, %v7422
  %v7424 = vrot.slane %v7423, 2
  %v7425 = vmax.f32 %v7423, %v7424
  %v7426 = vrot.slane %v7425, 1
  %v7427 = vmax.f32 %v7425, %v7426
  %v7428 = vsel %vm7231, %v7021, -inf
  %v7429 = vrot.slane %v7428, 4
  %v7430 = vmax.f32 %v7428, %v7429
  %v7431 = vrot.slane %v7430, 2
  %v7432 = vmax.f32 %v7430, %v7431
  %v7433 = vrot.slane %v7432, 1
  %v7434 = vmax.f32 %v7432, %v7433
  %v7435 = vsel %vm7231, %v7029, -inf
  %v7436 = vrot.slane %v7435, 4
  %v7437 = vmax.f32 %v7435, %v7436
  %v7438 = vrot.slane %v7437, 2
  %v7439 = vmax.f32 %v7437, %v7438
  %v7440 = vrot.slane %v7439, 1
  %v7441 = vmax.f32 %v7439, %v7440
  %v7442 = vsel %vm7231, %v7028, -inf
  %v7443 = vrot.slane %v7442, 4
  %v7444 = vmax.f32 %v7442, %v7443
  %v7445 = vrot.slane %v7444, 2
  %v7446 = vmax.f32 %v7444, %v7445
  %v7447 = vrot.slane %v7446, 1
  %v7448 = vmax.f32 %v7446, %v7447
  %v7449 = vsel %vm7231, %v7030, -inf
  %v7450 = vrot.slane %v7449, 4
  %v7451 = vmax.f32 %v7449, %v7450
  %v7452 = vrot.slane %v7451, 2
  %v7453 = vmax.f32 %v7451, %v7452
  %v7454 = vrot.slane %v7453, 1
  %v7455 = vmax.f32 %v7453, %v7454
  %v7456 = vsel %vm7231, %v7038, -inf
  %v7457 = vrot.slane %v7456, 4
  %v7458 = vmax.f32 %v7456, %v7457
  %v7459 = vrot.slane %v7458, 2
  %v7460 = vmax.f32 %v7458, %v7459
  %v7461 = vrot.slane %v7460, 1
  %v7462 = vmax.f32 %v7460, %v7461
  %v7463 = vsel %vm7231, %v7046, -inf
  %v7464 = vrot.slane %v7463, 4
  %v7465 = vmax.f32 %v7463, %v7464
  %v7466 = vrot.slane %v7465, 2
  %v7467 = vmax.f32 %v7465, %v7466
  %v7468 = vrot.slane %v7467, 1
  %v7469 = vmax.f32 %v7467, %v7468
  %v7470 = vsel %vm7231, %v7045, -inf
  %v7471 = vrot.slane %v7470, 4
  %v7472 = vmax.f32 %v7470, %v7471
  %v7473 = vrot.slane %v7472, 2
  %v7474 = vmax.f32 %v7472, %v7473
  %v7475 = vrot.slane %v7474, 1
  %v7476 = vmax.f32 %v7474, %v7475
  %v7477 = vsel %vm7231, %v7047, -inf
  %v7478 = vrot.slane %v7477, 4
  %v7479 = vmax.f32 %v7477, %v7478
  %v7480 = vrot.slane %v7479, 2
  %v7481 = vmax.f32 %v7479, %v7480
  %v7482 = vrot.slane %v7481, 1
  %v7483 = vmax.f32 %v7481, %v7482
  %v7484 = vsel %vm7231, %v7055, -inf
  %v7485 = vrot.slane %v7484, 4
  %v7486 = vmax.f32 %v7484, %v7485
  %v7487 = vrot.slane %v7486, 2
  %v7488 = vmax.f32 %v7486, %v7487
  %v7489 = vrot.slane %v7488, 1
  %v7490 = vmax.f32 %v7488, %v7489
  %v7491 = vsel %vm7231, %v7063, -inf
  %v7492 = vrot.slane %v7491, 4
  %v7493 = vmax.f32 %v7491, %v7492
  %v7494 = vrot.slane %v7493, 2
  %v7495 = vmax.f32 %v7493, %v7494
  %v7496 = vrot.slane %v7495, 1
  %v7497 = vmax.f32 %v7495, %v7496
  %v7498 = vsel %vm7231, %v7062, -inf
  %v7499 = vrot.slane %v7498, 4
  %v7500 = vmax.f32 %v7498, %v7499
  %v7501 = vrot.slane %v7500, 2
  %v7502 = vmax.f32 %v7500, %v7501
  %v7503 = vrot.slane %v7502, 1
  %v7504 = vmax.f32 %v7502, %v7503
  %v7505 = vsel %vm7231, %v7064, -inf
  %v7506 = vrot.slane %v7505, 4
  %v7507 = vmax.f32 %v7505, %v7506
  %v7508 = vrot.slane %v7507, 2
  %v7509 = vmax.f32 %v7507, %v7508
  %v7510 = vrot.slane %v7509, 1
  %v7511 = vmax.f32 %v7509, %v7510
  %v7512 = vsel %vm7231, %v7072, -inf
  %v7513 = vrot.slane %v7512, 4
  %v7514 = vmax.f32 %v7512, %v7513
  %v7515 = vrot.slane %v7514, 2
  %v7516 = vmax.f32 %v7514, %v7515
  %v7517 = vrot.slane %v7516, 1
  %v7518 = vmax.f32 %v7516, %v7517
  %v7519 = vsel %vm7231, %v7080, -inf
  %v7520 = vrot.slane %v7519, 4
  %v7521 = vmax.f32 %v7519, %v7520
  %v7522 = vrot.slane %v7521, 2
  %v7523 = vmax.f32 %v7521, %v7522
  %v7524 = vrot.slane %v7523, 1
  %v7525 = vmax.f32 %v7523, %v7524
  %v7526 = vsel %vm7231, %v7079, -inf
  %v7527 = vrot.slane %v7526, 4
  %v7528 = vmax.f32 %v7526, %v7527
  %v7529 = vrot.slane %v7528, 2
  %v7530 = vmax.f32 %v7528, %v7529
  %v7531 = vrot.slane %v7530, 1
  %v7532 = vmax.f32 %v7530, %v7531
  %v7533 = vsel %vm7231, %v7081, -inf
  %v7534 = vrot.slane %v7533, 4
  %v7535 = vmax.f32 %v7533, %v7534
  %v7536 = vrot.slane %v7535, 2
  %v7537 = vmax.f32 %v7535, %v7536
  %v7538 = vrot.slane %v7537, 1
  %v7539 = vmax.f32 %v7537, %v7538
  %v7540 = vsel %vm7231, %v7089, -inf
  %v7541 = vrot.slane %v7540, 4
  %v7542 = vmax.f32 %v7540, %v7541
  %v7543 = vrot.slane %v7542, 2
  %v7544 = vmax.f32 %v7542, %v7543
  %v7545 = vrot.slane %v7544, 1
  %v7546 = vmax.f32 %v7544, %v7545
  %v7547 = vsel %vm7231, %v7097, -inf
  %v7548 = vrot.slane %v7547, 4
  %v7549 = vmax.f32 %v7547, %v7548
  %v7550 = vrot.slane %v7549, 2
  %v7551 = vmax.f32 %v7549, %v7550
  %v7552 = vrot.slane %v7551, 1
  %v7553 = vmax.f32 %v7551, %v7552
  %v7554 = vsel %vm7231, %v7096, -inf
  %v7555 = vrot.slane %v7554, 4
  %v7556 = vmax.f32 %v7554, %v7555
  %v7557 = vrot.slane %v7556, 2
  %v7558 = vmax.f32 %v7556, %v7557
  %v7559 = vrot.slane %v7558, 1
  %v7560 = vmax.f32 %v7558, %v7559
  %v7561 = vsel %vm7231, %v7098, -inf
  %v7562 = vrot.slane %v7561, 4
  %v7563 = vmax.f32 %v7561, %v7562
  %v7564 = vrot.slane %v7563, 2
  %v7565 = vmax.f32 %v7563, %v7564
  %v7566 = vrot.slane %v7565, 1
  %v7567 = vmax.f32 %v7565, %v7566
  %v7568 = vsel %vm7231, %v7106, -inf
  %v7569 = vrot.slane %v7568, 4
  %v7570 = vmax.f32 %v7568, %v7569
  %v7571 = vrot.slane %v7570, 2
  %v7572 = vmax.f32 %v7570, %v7571
  %v7573 = vrot.slane %v7572, 1
  %v7574 = vmax.f32 %v7572, %v7573
  %v7575 = vsel %vm7231, %v7114, -inf
  %v7576 = vrot.slane %v7575, 4
  %v7577 = vmax.f32 %v7575, %v7576
  %v7578 = vrot.slane %v7577, 2
  %v7579 = vmax.f32 %v7577, %v7578
  %v7580 = vrot.slane %v7579, 1
  %v7581 = vmax.f32 %v7579, %v7580
  %v7582 = vsel %vm7231, %v7113, -inf
  %v7583 = vrot.slane %v7582, 4
  %v7584 = vmax.f32 %v7582, %v7583
  %v7585 = vrot.slane %v7584, 2
  %v7586 = vmax.f32 %v7584, %v7585
  %v7587 = vrot.slane %v7586, 1
  %v7588 = vmax.f32 %v7586, %v7587
  %v7589 = vsel %vm7231, %v7115, -inf
  %v7590 = vrot.slane %v7589, 4
  %v7591 = vmax.f32 %v7589, %v7590
  %v7592 = vrot.slane %v7591, 2
  %v7593 = vmax.f32 %v7591, %v7592
  %v7594 = vrot.slane %v7593, 1
  %v7595 = vmax.f32 %v7593, %v7594
  %v7596 = vsel %vm7231, %v7123, -inf
  %v7597 = vrot.slane %v7596, 4
  %v7598 = vmax.f32 %v7596, %v7597
  %v7599 = vrot.slane %v7598, 2
  %v7600 = vmax.f32 %v7598, %v7599
  %v7601 = vrot.slane %v7600, 1
  %v7602 = vmax.f32 %v7600, %v7601
  %v7603 = vsel %vm7231, %v7131, -inf
  %v7604 = vrot.slane %v7603, 4
  %v7605 = vmax.f32 %v7603, %v7604
  %v7606 = vrot.slane %v7605, 2
  %v7607 = vmax.f32 %v7605, %v7606
  %v7608 = vrot.slane %v7607, 1
  %v7609 = vmax.f32 %v7607, %v7608
  %v7610 = vsel %vm7231, %v7130, -inf
  %v7611 = vrot.slane %v7610, 4
  %v7612 = vmax.f32 %v7610, %v7611
  %v7613 = vrot.slane %v7612, 2
  %v7614 = vmax.f32 %v7612, %v7613
  %v7615 = vrot.slane %v7614, 1
  %v7616 = vmax.f32 %v7614, %v7615
  %v7617 = vsel %vm7231, %v7132, -inf
  %v7618 = vrot.slane %v7617, 4
  %v7619 = vmax.f32 %v7617, %v7618
  %v7620 = vrot.slane %v7619, 2
  %v7621 = vmax.f32 %v7619, %v7620
  %v7622 = vrot.slane %v7621, 1
  %v7623 = vmax.f32 %v7621, %v7622
  %v7624 = vsel %vm7231, %v7140, -inf
  %v7625 = vrot.slane %v7624, 4
  %v7626 = vmax.f32 %v7624, %v7625
  %v7627 = vrot.slane %v7626, 2
  %v7628 = vmax.f32 %v7626, %v7627
  %v7629 = vrot.slane %v7628, 1
  %v7630 = vmax.f32 %v7628, %v7629
  %v7631 = vsel %vm7231, %v7148, -inf
  %v7632 = vrot.slane %v7631, 4
  %v7633 = vmax.f32 %v7631, %v7632
  %v7634 = vrot.slane %v7633, 2
  %v7635 = vmax.f32 %v7633, %v7634
  %v7636 = vrot.slane %v7635, 1
  %v7637 = vmax.f32 %v7635, %v7636
  %v7638 = vsel %vm7231, %v7147, -inf
  %v7639 = vrot.slane %v7638, 4
  %v7640 = vmax.f32 %v7638, %v7639
  %v7641 = vrot.slane %v7640, 2
  %v7642 = vmax.f32 %v7640, %v7641
  %v7643 = vrot.slane %v7642, 1
  %v7644 = vmax.f32 %v7642, %v7643
  %v7645 = vsel %vm7231, %v7149, -inf
  %v7646 = vrot.slane %v7645, 4
  %v7647 = vmax.f32 %v7645, %v7646
  %v7648 = vrot.slane %v7647, 2
  %v7649 = vmax.f32 %v7647, %v7648
  %v7650 = vrot.slane %v7649, 1
  %v7651 = vmax.f32 %v7649, %v7650
  %v7652 = vsel %vm7231, %v7157, -inf
  %v7653 = vrot.slane %v7652, 4
  %v7654 = vmax.f32 %v7652, %v7653
  %v7655 = vrot.slane %v7654, 2
  %v7656 = vmax.f32 %v7654, %v7655
  %v7657 = vrot.slane %v7656, 1
  %v7658 = vmax.f32 %v7656, %v7657
  %v7659 = vsel %vm7231, %v7165, -inf
  %v7660 = vrot.slane %v7659, 4
  %v7661 = vmax.f32 %v7659, %v7660
  %v7662 = vrot.slane %v7661, 2
  %v7663 = vmax.f32 %v7661, %v7662
  %v7664 = vrot.slane %v7663, 1
  %v7665 = vmax.f32 %v7663, %v7664
  %v7666 = vsel %vm7231, %v7164, -inf
  %v7667 = vrot.slane %v7666, 4
  %v7668 = vmax.f32 %v7666, %v7667
  %v7669 = vrot.slane %v7668, 2
  %v7670 = vmax.f32 %v7668, %v7669
  %v7671 = vrot.slane %v7670, 1
  %v7672 = vmax.f32 %v7670, %v7671
  %v7673 = vsel %vm7231, %v7166, -inf
  %v7674 = vrot.slane %v7673, 4
  %v7675 = vmax.f32 %v7673, %v7674
  %v7676 = vrot.slane %v7675, 2
  %v7677 = vmax.f32 %v7675, %v7676
  %v7678 = vrot.slane %v7677, 1
  %v7679 = vmax.f32 %v7677, %v7678
  %v7680 = vmax.f32 %v7238, %v7266
  %v7681 = vmax.f32 %v7245, %v7273
  %v7682 = vmax.f32 %v7252, %v7280
  %v7683 = vmax.f32 %v7259, %v7287
  %v7684 = vmax.f32 %v7294, %v7322
  %v7685 = vmax.f32 %v7301, %v7329
  %v7686 = vmax.f32 %v7308, %v7336
  %v7687 = vmax.f32 %v7315, %v7343
  %v7688 = vmax.f32 %v7350, %v7378
  %v7689 = vmax.f32 %v7357, %v7385
  %v7690 = vmax.f32 %v7364, %v7392
  %v7691 = vmax.f32 %v7371, %v7399
  %v7692 = vmax.f32 %v7406, %v7434
  %v7693 = vmax.f32 %v7413, %v7441
  %v7694 = vmax.f32 %v7420, %v7448
  %v7695 = vmax.f32 %v7427, %v7455
  %v7696 = vmax.f32 %v7462, %v7490
  %v7697 = vmax.f32 %v7469, %v7497
  %v7698 = vmax.f32 %v7476, %v7504
  %v7699 = vmax.f32 %v7483, %v7511
  %v7700 = vmax.f32 %v7518, %v7546
  %v7701 = vmax.f32 %v7525, %v7553
  %v7702 = vmax.f32 %v7532, %v7560
  %v7703 = vmax.f32 %v7539, %v7567
  %v7704 = vmax.f32 %v7574, %v7602
  %v7705 = vmax.f32 %v7581, %v7609
  %v7706 = vmax.f32 %v7588, %v7616
  %v7707 = vmax.f32 %v7595, %v7623
  %v7708 = vmax.f32 %v7630, %v7658
  %v7709 = vmax.f32 %v7637, %v7665
  %v7710 = vmax.f32 %v7644, %v7672
  %v7711 = vmax.f32 %v7651, %v7679
  %v7712 = vld [vmem:[%s5] sm:$0xff]
  %v7713 = vld [vmem:[%s5 + $0x8] sm:$0xff]
  %v7714 = vld [vmem:[%s5 + $0x10] sm:$0xff]
  %v7715 = vld [vmem:[%s5 + $0x18] sm:$0xff]
  %v7716 = vld [vmem:[%s5 + $0x20] sm:$0xff]
  %v7717 = vld [vmem:[%s5 + $0x28] sm:$0xff]
  %v7718 = vld [vmem:[%s5 + $0x30] sm:$0xff]
  %v7719 = vld [vmem:[%s5 + $0x38] sm:$0xff]
  %v7720 = vld [vmem:[%s5 + $0x40] sm:$0xff]
  %v7721 = vld [vmem:[%s5 + $0x48] sm:$0xff]
  %v7722 = vld [vmem:[%s5 + $0x50] sm:$0xff]
  %v7723 = vld [vmem:[%s5 + $0x58] sm:$0xff]
  %v7724 = vld [vmem:[%s5 + $0x60] sm:$0xff]
  %v7725 = vld [vmem:[%s5 + $0x68] sm:$0xff]
  %v7726 = vld [vmem:[%s5 + $0x70] sm:$0xff]
  %v7727 = vld [vmem:[%s5 + $0x78] sm:$0xff]
  %v7728 = vld [vmem:[%s5 + $0x80] sm:$0xff]
  %v7729 = vld [vmem:[%s5 + $0x88] sm:$0xff]
  %v7730 = vld [vmem:[%s5 + $0x90] sm:$0xff]
  %v7731 = vld [vmem:[%s5 + $0x98] sm:$0xff]
  %v7732 = vld [vmem:[%s5 + $0xa0] sm:$0xff]
  %v7733 = vld [vmem:[%s5 + $0xa8] sm:$0xff]
  %v7734 = vld [vmem:[%s5 + $0xb0] sm:$0xff]
  %v7735 = vld [vmem:[%s5 + $0xb8] sm:$0xff]
  %v7736 = vld [vmem:[%s5 + $0xc0] sm:$0xff]
  %v7737 = vld [vmem:[%s5 + $0xc8] sm:$0xff]
  %v7738 = vld [vmem:[%s5 + $0xd0] sm:$0xff]
  %v7739 = vld [vmem:[%s5 + $0xd8] sm:$0xff]
  %v7740 = vld [vmem:[%s5 + $0xe0] sm:$0xff]
  %v7741 = vld [vmem:[%s5 + $0xe8] sm:$0xff]
  %v7742 = vld [vmem:[%s5 + $0xf0] sm:$0xff]
  %v7743 = vld [vmem:[%s5 + $0xf8] sm:$0xff]
  %v7744 = vld [vmem:[%s6] sm:$0x3]
  %v7746 = vlaneseq
  %v7747 = vshrl.u32 %v7746, 7
  %v7748 = vsub.s32 0, %v7747
  %v7749 = vrot.slane %v7744, %v7748
  %v7750 = vlaneseq
  %v7751 = vshrl.u32 %v7750, 7
  %v7752 = vsub.s32 1, %v7751
  %v7753 = vrot.slane %v7744, %v7752
  %v7788 = vsel %vm5926, %v7681, %v7680
  %v7789 = vsel %vm5928, %v7682, %v7788
  %v7790 = vsel %vm5930, %v7683, %v7789
  %v7791 = vsel %vm5932, %v7684, %v7790
  %v7792 = vsel %vm5934, %v7685, %v7791
  %v7793 = vsel %vm5936, %v7686, %v7792
  %v7794 = vsel %vm5938, %v7687, %v7793
  %v7795 = vsel %vm5926, %v7689, %v7688
  %v7796 = vsel %vm5928, %v7690, %v7795
  %v7797 = vsel %vm5930, %v7691, %v7796
  %v7798 = vsel %vm5932, %v7692, %v7797
  %v7799 = vsel %vm5934, %v7693, %v7798
  %v7800 = vsel %vm5936, %v7694, %v7799
  %v7801 = vsel %vm5938, %v7695, %v7800
  %v7802 = vsel %vm5926, %v7697, %v7696
  %v7803 = vsel %vm5928, %v7698, %v7802
  %v7804 = vsel %vm5930, %v7699, %v7803
  %v7805 = vsel %vm5932, %v7700, %v7804
  %v7806 = vsel %vm5934, %v7701, %v7805
  %v7807 = vsel %vm5936, %v7702, %v7806
  %v7808 = vsel %vm5938, %v7703, %v7807
  %v7809 = vsel %vm5926, %v7705, %v7704
  %v7810 = vsel %vm5928, %v7706, %v7809
  %v7811 = vsel %vm5930, %v7707, %v7810
  %v7812 = vsel %vm5932, %v7708, %v7811
  %v7813 = vsel %vm5934, %v7709, %v7812
  %v7814 = vsel %vm5936, %v7710, %v7813
  %v7815 = vsel %vm5938, %v7711, %v7814
  %7820 = vmatprep.subr.mxu0 %v7713
  %7821 = vmatpush1.msra.mxu0 %v7712
  %7822 = vmatprep.subr.mxu0 %v7715
  %7823 = vmatpush1.msra.mxu0 %v7714
  %7824 = vmatprep.subr.mxu0 %v7717
  %7825 = vmatpush1.msra.mxu0 %v7716
  %7826 = vmatprep.subr.mxu0 %v7719
  %7827 = vmatpush1.msra.mxu0 %v7718
  %7828 = vmatprep.subr.mxu0 %v7721
  %7829 = vmatpush1.msra.mxu0 %v7720
  %7830 = vmatprep.subr.mxu0 %v7723
  %7831 = vmatpush1.msra.mxu0 %v7722
  %7832 = vmatprep.subr.mxu0 %v7725
  %7833 = vmatpush1.msra.mxu0 %v7724
  %7834 = vmatprep.subr.mxu0 %v7727
  %7835 = vmatpush1.msra.mxu0 %v7726
  %7836 = vmatprep.subr.mxu0 %v7729
  %7837 = vmatpush1.msra.mxu0 %v7728
  %7838 = vmatprep.subr.mxu0 %v7731
  %7839 = vmatpush1.msra.mxu0 %v7730
  %7840 = vmatprep.subr.mxu0 %v7733
  %7841 = vmatpush1.msra.mxu0 %v7732
  %7842 = vmatprep.subr.mxu0 %v7735
  %7843 = vmatpush1.msra.mxu0 %v7734
  %7844 = vmatprep.subr.mxu0 %v7737
  %7845 = vmatpush1.msra.mxu0 %v7736
  %7846 = vmatprep.subr.mxu0 %v7739
  %7847 = vmatpush1.msra.mxu0 %v7738
  %7848 = vmatprep.subr.mxu0 %v7741
  %7849 = vmatpush1.msra.mxu0 %v7740
  %7850 = vmatprep.subr.mxu0 %v7743
  %7851 = vmatpush1.msra.mxu0 %v7742
  %7852 = vmatprep.subr.mxu0 0.0
  %7853 = vmatpush1.msra.mxu0 0.0
  %7854 = vmatprep.subr.mxu0 0.0
  %7855 = vmatpush1.msra.mxu0 0.0
  %7856 = vmatprep.subr.mxu0 0.0
  %7857 = vmatpush1.msra.mxu0 0.0
  %7858 = vmatprep.subr.mxu0 0.0
  %7859 = vmatpush1.msra.mxu0 0.0
  %7860 = vmatprep.subr.mxu0 0.0
  %7861 = vmatpush1.msra.mxu0 0.0
  %7862 = vmatprep.subr.mxu0 0.0
  %7863 = vmatpush1.msra.mxu0 0.0
  %7864 = vmatprep.subr.mxu0 0.0
  %7865 = vmatpush1.msra.mxu0 0.0
  %7866 = vmatprep.subr.mxu0 0.0
  %7867 = vmatpush1.msra.mxu0 0.0
  %7868 = vmatprep.subr.mxu0 0.0
  %7869 = vmatpush1.msra.mxu0 0.0
  %7870 = vmatprep.subr.mxu0 0.0
  %7871 = vmatpush1.msra.mxu0 0.0
  %7872 = vmatprep.subr.mxu0 0.0
  %7873 = vmatpush1.msra.mxu0 0.0
  %7874 = vmatprep.subr.mxu0 0.0
  %7875 = vmatpush1.msra.mxu0 0.0
  %7876 = vmatprep.subr.mxu0 0.0
  %7877 = vmatpush1.msra.mxu0 0.0
  %7878 = vmatprep.subr.mxu0 0.0
  %7879 = vmatpush1.msra.mxu0 0.0
  %7880 = vmatprep.subr.mxu0 0.0
  %7881 = vmatpush1.msra.mxu0 0.0
  %7882 = vmatprep.subr.mxu0 0.0
  %7883 = vmatpush1.msra.mxu0 0.0
  %7884 = vmatprep.mubr.f32.mxu0 0.0
  %7885 = vmatmul.mubr.f32.gmra.mrb[0].mxu0 %v7794
  %v7886 = vpop.f32.mrb[0].mxu0
  %v7887 = vadd.f32 %v7749, %v7886
  %v7888 = vpop.f32.mrb[0].mxu0
  %v7889 = vadd.f32 %v7753, %v7888
  %7890 = vmatprep.mubr.f32.mxu0 0.0
  %7891 = vmatmul.mubr.f32.gmra.mrb[0].mxu0 %v7801
  %v7892 = vpop.f32.mrb[0].mxu0
  %v7893 = vadd.f32 %v7749, %v7892
  %v7894 = vpop.f32.mrb[0].mxu0
  %v7895 = vadd.f32 %v7753, %v7894
  %7896 = vmatprep.mubr.f32.mxu0 0.0
  %7897 = vmatmul.mubr.f32.gmra.mrb[0].mxu0 %v7808
  %v7898 = vpop.f32.mrb[0].mxu0
  %v7899 = vadd.f32 %v7749, %v7898
  %v7900 = vpop.f32.mrb[0].mxu0
  %v7901 = vadd.f32 %v7753, %v7900
  %7902 = vmatprep.mubr.f32.mxu0 0.0
  %7903 = vmatmul.mubr.f32.gmra.mrb[0].mxu0 %v7815
  %v7904 = vpop.f32.mrb[0].mxu0
  %v7905 = vadd.f32 %v7749, %v7904
  %v7906 = vpop.f32.mrb[0].mxu0
  %v7907 = vadd.f32 %v7753, %v7906
  %7908 = vdwg.mxu0
  %v7909 = vmax.f32 %v7887, 0.0
  %v7910 = vmax.f32 %v7889, 0.0
  %v7911 = vmax.f32 %v7893, 0.0
  %v7912 = vmax.f32 %v7895, 0.0
  %v7913 = vmax.f32 %v7899, 0.0
  %v7914 = vmax.f32 %v7901, 0.0
  %v7915 = vmax.f32 %v7905, 0.0
  %v7916 = vmax.f32 %v7907, 0.0
  %v7917 = vld [vmem:[%s7] sm:$0xff]
  %v7918 = vld [vmem:[%s7 + $0x8] sm:$0xff]
  %v7919 = vld [vmem:[%s7 + $0x10] sm:$0xff]
  %v7920 = vld [vmem:[%s7 + $0x18] sm:$0xff]
  %v7921 = vld [vmem:[%s7 + $0x20] sm:$0xff]
  %v7922 = vld [vmem:[%s7 + $0x28] sm:$0xff]
  %v7923 = vld [vmem:[%s7 + $0x30] sm:$0xff]
  %v7924 = vld [vmem:[%s7 + $0x38] sm:$0xff]
  %v7925 = vld [vmem:[%s7 + $0x40] sm:$0xff]
  %v7926 = vld [vmem:[%s7 + $0x48] sm:$0xff]
  %v7927 = vld [vmem:[%s7 + $0x50] sm:$0xff]
  %v7928 = vld [vmem:[%s7 + $0x58] sm:$0xff]
  %v7929 = vld [vmem:[%s7 + $0x60] sm:$0xff]
  %v7930 = vld [vmem:[%s7 + $0x68] sm:$0xff]
  %v7931 = vld [vmem:[%s7 + $0x70] sm:$0xff]
  %v7932 = vld [vmem:[%s7 + $0x78] sm:$0xff]
  %v7933 = vld [vmem:[%s7 + $0x80] sm:$0xff]
  %v7934 = vld [vmem:[%s7 + $0x88] sm:$0xff]
  %v7935 = vld [vmem:[%s7 + $0x90] sm:$0xff]
  %v7936 = vld [vmem:[%s7 + $0x98] sm:$0xff]
  %v7937 = vld [vmem:[%s7 + $0xa0] sm:$0xff]
  %v7938 = vld [vmem:[%s7 + $0xa8] sm:$0xff]
  %v7939 = vld [vmem:[%s7 + $0xb0] sm:$0xff]
  %v7940 = vld [vmem:[%s7 + $0xb8] sm:$0xff]
  %v7941 = vld [vmem:[%s7 + $0xc0] sm:$0xff]
  %v7942 = vld [vmem:[%s7 + $0xc8] sm:$0xff]
  %v7943 = vld [vmem:[%s7 + $0xd0] sm:$0xff]
  %v7944 = vld [vmem:[%s7 + $0xd8] sm:$0xff]
  %v7945 = vld [vmem:[%s7 + $0xe0] sm:$0xff]
  %v7946 = vld [vmem:[%s7 + $0xe8] sm:$0xff]
  %v7947 = vld [vmem:[%s7 + $0xf0] sm:$0xff]
  %v7948 = vld [vmem:[%s7 + $0xf8] sm:$0xff]
  %v7949 = vld [vmem:[%s8] sm:$0x1]
  %v7951 = vlaneseq
  %v7952 = vshrl.u32 %v7951, 7
  %v7953 = vsub.s32 0, %v7952
  %v7954 = vrot.slane %v7949, %v7953
  %7956 = vmatprep.subr.mxu0 0.0
  %7957 = vmatpush1.msra.mxu0 %v7917
  %7958 = vmatprep.subr.mxu0 0.0
  %7959 = vmatpush1.msra.mxu0 %v7918
  %7960 = vmatprep.subr.mxu0 0.0
  %7961 = vmatpush1.msra.mxu0 %v7919
  %7962 = vmatprep.subr.mxu0 0.0
  %7963 = vmatpush1.msra.mxu0 %v7920
  %7964 = vmatprep.subr.mxu0 0.0
  %7965 = vmatpush1.msra.mxu0 %v7921
  %7966 = vmatprep.subr.mxu0 0.0
  %7967 = vmatpush1.msra.mxu0 %v7922
  %7968 = vmatprep.subr.mxu0 0.0
  %7969 = vmatpush1.msra.mxu0 %v7923
  %7970 = vmatprep.subr.mxu0 0.0
  %7971 = vmatpush1.msra.mxu0 %v7924
  %7972 = vmatprep.subr.mxu0 0.0
  %7973 = vmatpush1.msra.mxu0 %v7925
  %7974 = vmatprep.subr.mxu0 0.0
  %7975 = vmatpush1.msra.mxu0 %v7926
  %7976 = vmatprep.subr.mxu0 0.0
  %7977 = vmatpush1.msra.mxu0 %v7927
  %7978 = vmatprep.subr.mxu0 0.0
  %7979 = vmatpush1.msra.mxu0 %v7928
  %7980 = vmatprep.subr.mxu0 0.0
  %7981 = vmatpush1.msra.mxu0 %v7929
  %7982 = vmatprep.subr.mxu0 0.0
  %7983 = vmatpush1.msra.mxu0 %v7930
  %7984 = vmatprep.subr.mxu0 0.0
  %7985 = vmatpush1.msra.mxu0 %v7931
  %7986 = vmatprep.subr.mxu0 0.0
  %7987 = vmatpush1.msra.mxu0 %v7932
  %7988 = vmatprep.subr.mxu0 0.0
  %7989 = vmatpush1.msra.mxu0 %v7933
  %7990 = vmatprep.subr.mxu0 0.0
  %7991 = vmatpush1.msra.mxu0 %v7934
  %7992 = vmatprep.subr.mxu0 0.0
  %7993 = vmatpush1.msra.mxu0 %v7935
  %7994 = vmatprep.subr.mxu0 0.0
  %7995 = vmatpush1.msra.mxu0 %v7936
  %7996 = vmatprep.subr.mxu0 0.0
  %7997 = vmatpush1.msra.mxu0 %v7937
  %7998 = vmatprep.subr.mxu0 0.0
  %7999 = vmatpush1.msra.mxu0 %v7938
  %8000 = vmatprep.subr.mxu0 0.0
  %8001 = vmatpush1.msra.mxu0 %v7939
  %8002 = vmatprep.subr.mxu0 0.0
  %8003 = vmatpush1.msra.mxu0 %v7940
  %8004 = vmatprep.subr.mxu0 0.0
  %8005 = vmatpush1.msra.mxu0 %v7941
  %8006 = vmatprep.subr.mxu0 0.0
  %8007 = vmatpush1.msra.mxu0 %v7942
  %8008 = vmatprep.subr.mxu0 0.0
  %8009 = vmatpush1.msra.mxu0 %v7943
  %8010 = vmatprep.subr.mxu0 0.0
  %8011 = vmatpush1.msra.mxu0 %v7944
  %8012 = vmatprep.subr.mxu0 0.0
  %8013 = vmatpush1.msra.mxu0 %v7945
  %8014 = vmatprep.subr.mxu0 0.0
  %8015 = vmatpush1.msra.mxu0 %v7946
  %8016 = vmatprep.subr.mxu0 0.0
  %8017 = vmatpush1.msra.mxu0 %v7947
  %8018 = vmatprep.subr.mxu0 0.0
  %8019 = vmatpush1.msra.mxu0 %v7948
  %8020 = vmatprep.mubr.f32.mxu0 %v7910
  %8021 = vmatmul.mubr.f32.gmra.mrb[0].mxu0 %v7909
  %v8022 = vpop.f32.mrb[0].mxu0
  %v8023 = vadd.f32 %v7954, %v8022
  %v8024 = vpop.f32.mrb[0].mxu0
  %8025 = vmatprep.mubr.f32.mxu0 %v7912
  %8026 = vmatmul.mubr.f32.gmra.mrb[0].mxu0 %v7911
  %v8027 = vpop.f32.mrb[0].mxu0
  %v8028 = vadd.f32 %v7954, %v8027
  %v8029 = vpop.f32.mrb[0].mxu0
  %8030 = vmatprep.mubr.f32.mxu0 %v7914
  %8031 = vmatmul.mubr.f32.gmra.mrb[0].mxu0 %v7913
  %v8032 = vpop.f32.mrb[0].mxu0
  %v8033 = vadd.f32 %v7954, %v8032
  %v8034 = vpop.f32.mrb[0].mxu0
  %8035 = vmatprep.mubr.f32.mxu0 %v7916
  %8036 = vmatmul.mubr.f32.gmra.mrb[0].mxu0 %v7915
  %v8037 = vpop.f32.mrb[0].mxu0
  %v8038 = vadd.f32 %v7954, %v8037
  %v8039 = vpop.f32.mrb[0].mxu0
  %8040 = vdwg.mxu0
  %v8041 = vxor.u32 %v8023, 2147483648
  %v8042 = vxor.u32 %v8028, 2147483648
  %v8043 = vxor.u32 %v8033, 2147483648
  %v8044 = vxor.u32 %v8038, 2147483648
  %v8045 = vmul.f32 %v8041, 1.442695
  %v8046 = vpow.pop %v8045
  %v8047 = vmul.f32 %v8042, 1.442695
  %v8048 = vpow.pop %v8047
  %v8049 = vmul.f32 %v8043, 1.442695
  %v8050 = vpow.pop %v8049
  %v8051 = vmul.f32 %v8044, 1.442695
  %v8052 = vpow.pop %v8051
  %v8053 = vadd.f32 %v8046, 1.0
  %v8054 = vadd.f32 %v8048, 1.0
  %v8055 = vadd.f32 %v8050, 1.0
  %v8056 = vadd.f32 %v8052, 1.0
  %v8057 = vrcp.pop %v8053
  %v8058 = vmul.f32 1.0, %v8057
  %v8059 = vrcp.pop %v8054
  %v8060 = vmul.f32 1.0, %v8059
  %v8061 = vrcp.pop %v8055
  %v8062 = vmul.f32 1.0, %v8061
  %v8063 = vrcp.pop %v8056
  %v8064 = vmul.f32 1.0, %v8063
  %vm8065 = vcmask 130048
  %8066 = vst.msk [vmem:[%s9] sm:$0xff] %vm8065, %v8058
  %8067 = vst.msk [vmem:[%s9 + $0x8] sm:$0xff] %vm8065, %v8060
  %8068 = vst.msk [vmem:[%s9 + $0x10] sm:$0xff] %vm8065, %v8062
  %8069 = vst.msk [vmem:[%s9 + $0x18] sm:$0xff] %vm8065, %v8064
  // Predicated region
  $region38: #{cnn_encoder_decoder_forward.1} parent=0 // pred_check
    _
  $region39: #{cnn_encoder_decoder_forward.1} parent=0 // pred_check_branch
    %8071 = sbr.rel (0) target = $region41
  $region40: #{cnn_encoder_decoder_forward.1} parent=0 // pred_region
    _
  $region41: #{cnn_encoder_decoder_forward.1} parent=0 // pred_fallthru
    _
  // Predicated region
  $region42: #{cnn_encoder_decoder_forward.1} parent=0 // pred_check
    _
  $region43: #{cnn_encoder_decoder_forward.1} parent=0 // pred_check_branch
    %8073 = sbr.rel (0) target = $region45
  $region44: #{cnn_encoder_decoder_forward.1} parent=0 // pred_region
    _
  $region45: #{cnn_encoder_decoder_forward.1} parent=0 // pred_fallthru
    _

</llo_original>
